<compile_context>
chip_gen: v7x
topology: tpu7x:2x2x1
jax: 0.10.0
libtpu: 0.0.40
codegen_flags: <defaults>
</compile_context>

<pallas_src>
import math
import functools

import jax
import jax.numpy as jnp
from jax.experimental import pallas as pl
from jax.experimental.pallas import tpu as pltpu

D_MODEL = 32
NUM_HEADS = 8
NUM_LAYERS = 4
DIM_FF = 2048
LN_EPS = 1e-5
HEAD_DIM = D_MODEL // NUM_HEADS


def _layer_norm(x, gamma, beta, eps=LN_EPS):
    mu = jnp.mean(x, axis=-1, keepdims=True)
    var = jnp.mean((x - mu) ** 2, axis=-1, keepdims=True)
    return (x - mu) * jax.lax.rsqrt(var + eps) * gamma + beta


def fused_encoder_kernel(
    x_ref,        # (B*S, D)   f32  original input (read at layer 0)
    wqkv_ref,     # (1, D, 3D) f32  fused Q|K|V projection (pre-transposed)
    bqkv_ref,     # (1, 1, 3D) f32
    wo_ref,       # (1, D, D)  f32  attention output projection
    vec_ref,      # (1, 6, D)  f32  rows = [b_o, ln1_g, ln1_b, ffn_b2, ln2_g, ln2_b]
    w1_ref,       # (1, D, F)  bf16 FFN up-projection
    b1_ref,       # (1, 1, F)  f32
    w2_ref,       # (1, F, D)  bf16 FFN down-projection
    o_ref,        # (B*S, D)   f32  written only at the last layer
    acc_ref,      # VMEM scratch (B*S, D) f32  running activation
    *, batch, seq,
):
    l = pl.program_id(0)

    @pl.when(l == 0)
    def _():
        acc_ref[...] = x_ref[...]

    x = acc_ref[...]                                        # (B*S, D) f32

    vecs = vec_ref[0]                                       # (6, D) f32
    bo  = vecs[0:1, :]
    g1  = vecs[1:2, :]
    be1 = vecs[2:3, :]
    b2  = vecs[3:4, :]
    g2  = vecs[4:5, :]
    be2 = vecs[5:6, :]

    # --- multi-head self attention: one fused QKV matmul on all B*S rows ---
    qkv = jnp.dot(x, wqkv_ref[0], preferred_element_type=jnp.float32) + bqkv_ref[0]
    q = qkv[:, 0 * D_MODEL:1 * D_MODEL] * (1.0 / math.sqrt(HEAD_DIM))
    k = qkv[:, 1 * D_MODEL:2 * D_MODEL]
    v = qkv[:, 2 * D_MODEL:3 * D_MODEL]

    batch_outs = []
    for b in range(batch):                                  # static, B is tiny
        r0 = b * seq
        qb = q[r0:r0 + seq, :]                              # (S, D)
        kbT = k[r0:r0 + seq, :].T                           # (D, S): 1 transpose/batch
        vb = v[r0:r0 + seq, :]
        heads = []
        for h in range(NUM_HEADS):                          # static, head_dim = 4
            lo = h * HEAD_DIM
            s = jnp.dot(qb[:, lo:lo + HEAD_DIM], kbT[lo:lo + HEAD_DIM, :],
                        preferred_element_type=jnp.float32)            # (S, S)
            s = s - jnp.max(s, axis=-1, keepdims=True)
            p = jnp.exp(s)
            p = p * pl.reciprocal(jnp.sum(p, axis=-1, keepdims=True), approx=True)
            heads.append(jnp.dot(p, vb[:, lo:lo + HEAD_DIM],
                                 preferred_element_type=jnp.float32))   # (S, hd)
        batch_outs.append(jnp.concatenate(heads, axis=-1))              # (S, D)
    attn = jnp.concatenate(batch_outs, axis=0)                          # (B*S, D)

    attn = jnp.dot(attn, wo_ref[0], preferred_element_type=jnp.float32) + bo

    # residual + LayerNorm1 (dropout = identity in eval mode)
    h1 = _layer_norm(x + attn, g1, be1)

    # --- feed-forward (bf16 weights on the MXU, f32 accumulate/elementwise) ---
    ff = jnp.dot(h1.astype(jnp.bfloat16), w1_ref[0],
                 preferred_element_type=jnp.float32) + b1_ref[0]
    ff = jnp.maximum(ff, 0.0)                               # relu in f32
    ff = jnp.dot(ff.astype(jnp.bfloat16), w2_ref[0],
                 preferred_element_type=jnp.float32) + b2

    # residual + LayerNorm2
    out = _layer_norm(h1 + ff, g2, be2)
    acc_ref[...] = out

    @pl.when(l == pl.num_programs(0) - 1)
    def _():
        o_ref[...] = out.astype(o_ref.dtype)


_WEIGHT_ORDER = ("wqkv", "bqkv", "wo", "vecs", "w1", "b1", "w2")


def fused_encoder(x2d, params, *, batch, seq):
    """x2d: (B*S, D) f32. params: dict of (L, ...) stacked per-layer arrays."""
    BS, D = x2d.shape
    L = params["wqkv"].shape[0]
    weights = [params[name] for name in _WEIGHT_ORDER]

    def stacked_spec(arr):
        nd = arr.ndim
        return pl.BlockSpec((1,) + arr.shape[1:],
                            lambda l, _n=nd: (l,) + (0,) * (_n - 1))

    in_specs = [pl.BlockSpec((BS, D), lambda l: (0, 0))]     # input: fetched once
    in_specs += [stacked_spec(w) for w in weights]           # weights: indexed by layer

    kernel = functools.partial(fused_encoder_kernel, batch=batch, seq=seq)

    return pl.pallas_call(
        kernel,
        out_shape=jax.ShapeDtypeStruct((BS, D), jnp.float32),
        grid_spec=pltpu.PrefetchScalarGridSpec(
            num_scalar_prefetch=0,
            grid=(L,),
            in_specs=in_specs,
            out_specs=pl.BlockSpec((BS, D), lambda l: (0, 0)),
            scratch_shapes=[pltpu.VMEM((BS, D), jnp.float32)],
        ),
        compiler_params=pltpu.CompilerParams(
            dimension_semantics=("arbitrary",),               # layers are sequential
            vmem_limit_bytes=8 << 20,                         # footprint < ~2 MiB
        ),
    )(x2d, *weights)


def init_params(key, num_layers=NUM_LAYERS, d_model=D_MODEL, dim_ff=DIM_FF):
    """Deterministic synthetic parameters, stacked along a leading layer axis.
    Matmul weights are stored pre-transposed (y = x @ W, i.e. PyTorch W.T);
    Q|K|V concatenated along the output dim; FFN weights in bf16."""
    L = num_layers
    ks = jax.random.split(key, 5)

    def w(k, shape, scale=0.02):
        return jax.random.normal(k, shape, jnp.float32) * scale

    # rows of `vecs`: [b_o, ln1_gamma, ln1_beta, ffn_b2, ln2_gamma, ln2_beta]
    vecs = jnp.stack([
        0.01 * jax.random.normal(ks[4], (L, d_model), jnp.float32),  # b_o
        jnp.ones((L, d_model), jnp.float32),                         # ln1 gamma
        jnp.zeros((L, d_model), jnp.float32),                        # ln1 beta
        jnp.zeros((L, d_model), jnp.float32),                        # ffn b2
        jnp.ones((L, d_model), jnp.float32),                         # ln2 gamma
        jnp.zeros((L, d_model), jnp.float32),                        # ln2 beta
    ], axis=1)                                                       # (L, 6, D)

    return {
        "wqkv": w(ks[0], (L, d_model, 3 * d_model)),
        "bqkv": jnp.zeros((L, 1, 3 * d_model), jnp.float32),
        "wo":   w(ks[1], (L, d_model, d_model)),
        "vecs": vecs,
        "w1":   w(ks[2], (L, d_model, dim_ff)).astype(jnp.bfloat16),
        "b1":   jnp.zeros((L, 1, dim_ff), jnp.float32),
        "w2":   w(ks[3], (L, dim_ff, d_model)).astype(jnp.bfloat16),
    }


@jax.jit
def spatial_encoder_forward(x, params):
    """x: (B, C=d_model, S) -> (B, S, d_model), matching the PyTorch module
    (NCL -> NLC permute, then the 4-layer encoder stack; src_mask=None)."""
    B, C, S = x.shape
    y = jnp.transpose(x, (0, 2, 1)).astype(jnp.float32)     # (B, S, D)
    out2d = fused_encoder(y.reshape(B * S, C), params, batch=B, seq=S)
    return out2d.reshape(B, S, C)


if __name__ == "__main__":
    key = jax.random.PRNGKey(0)
    k_x, k_p = jax.random.split(key)

    B, C, S = 2, D_MODEL, 16               # x: (batch, input_features=32, spatial=16)
    x = jax.random.normal(k_x, (B, C, S), jnp.float32)
    params = init_params(k_p)

    out = spatial_encoder_forward(x, params)
    out = jax.block_until_ready(out)

    assert out.shape == (B, S, D_MODEL), out.shape
    assert bool(jnp.all(jnp.isfinite(out)))
    print("KERNEL_OK")
</pallas_src>

<mosaic_0001>
module attributes {stable_mosaic.version = 11 : i64} {
  func.func @fused_encoder_kernel(%arg0: i32, %arg1: memref<32x32xf32, #tpu.memory_space<vmem>>, %arg2: memref<1x32x96xf32, #tpu.memory_space<vmem>>, %arg3: memref<1x1x96xf32, #tpu.memory_space<vmem>>, %arg4: memref<1x32x32xf32, #tpu.memory_space<vmem>>, %arg5: memref<1x6x32xf32, #tpu.memory_space<vmem>>, %arg6: memref<1x32x2048xbf16, #tpu.memory_space<vmem>>, %arg7: memref<1x1x2048xf32, #tpu.memory_space<vmem>>, %arg8: memref<1x2048x32xbf16, #tpu.memory_space<vmem>>, %arg9: memref<32x32xf32, #tpu.memory_space<vmem>>, %arg10: memref<32x32xf32, #tpu.memory_space<vmem>>) attributes {dimension_semantics = [#tpu.dimension_semantics<arbitrary>], iteration_bounds = array<i64: 4>, scalar_prefetch = 0 : i64, scratch_operands = 1 : i64, tpu.core_type = #tpu.core_type<tc>, window_params = [{pipeline_mode = #tpu.pipeline_mode<synchronous>, transform_indices = @transform_0, window_bounds = array<i64: 32, 32>}, {transform_indices = @transform_1, window_bounds = array<i64: 1, 32, 96>}, {transform_indices = @transform_2, window_bounds = array<i64: 1, 1, 96>}, {transform_indices = @transform_3, window_bounds = array<i64: 1, 32, 32>}, {transform_indices = @transform_4, window_bounds = array<i64: 1, 6, 32>}, {transform_indices = @transform_5, window_bounds = array<i64: 1, 32, 2048>}, {transform_indices = @transform_6, window_bounds = array<i64: 1, 1, 2048>}, {transform_indices = @transform_7, window_bounds = array<i64: 1, 2048, 32>}, {pipeline_mode = #tpu.pipeline_mode<synchronous>, transform_indices = @transform_8, window_bounds = array<i64: 32, 32>}]} {
    %c0_i32 = arith.constant 0 : i32
    %0 = arith.cmpi eq, %arg0, %c0_i32 : i32
    %1 = arith.extui %0 : i1 to i32
    %c0_i32_0 = arith.constant 0 : i32
    %2 = arith.cmpi ne, %1, %c0_i32_0 : i32
    scf.if %2 {
      %c0_105 = arith.constant 0 : index
      %c0_106 = arith.constant 0 : index
      %346 = vector.load %arg1[%c0_105, %c0_106] : memref<32x32xf32, #tpu.memory_space<vmem>>, vector<32x32xf32>
      %c0_107 = arith.constant 0 : index
      %c0_108 = arith.constant 0 : index
      %347 = vector.load %arg10[%c0_107, %c0_108] : memref<32x32xf32, #tpu.memory_space<vmem>>, vector<32x32xf32>
      tpu.vector_store %arg10[%c0_107, %c0_108], %346 {strides = array<i32>} : memref<32x32xf32, #tpu.memory_space<vmem>>, vector<32x32xf32>,
    } else {
    }
    %c0 = arith.constant 0 : index
    %c0_1 = arith.constant 0 : index
    %3 = vector.load %arg10[%c0, %c0_1] : memref<32x32xf32, #tpu.memory_space<vmem>>, vector<32x32xf32>
    %c0_2 = arith.constant 0 : index
    %c0_3 = arith.constant 0 : index
    %c0_4 = arith.constant 0 : index
    %4 = vector.load %arg5[%c0_2, %c0_3, %c0_4] : memref<1x6x32xf32, #tpu.memory_space<vmem>>, vector<1x6x32xf32>
    %5 = vector.shape_cast %4 : vector<1x6x32xf32> to vector<6x32xf32>
    %6 = vector.extract_strided_slice %5 {offsets = [0, 0], sizes = [1, 32], strides = [1, 1]} : vector<6x32xf32> to vector<1x32xf32>
    %7 = vector.extract_strided_slice %5 {offsets = [1, 0], sizes = [1, 32], strides = [1, 1]} : vector<6x32xf32> to vector<1x32xf32>
    %8 = vector.extract_strided_slice %5 {offsets = [2, 0], sizes = [1, 32], strides = [1, 1]} : vector<6x32xf32> to vector<1x32xf32>
    %9 = vector.extract_strided_slice %5 {offsets = [3, 0], sizes = [1, 32], strides = [1, 1]} : vector<6x32xf32> to vector<1x32xf32>
    %10 = vector.extract_strided_slice %5 {offsets = [4, 0], sizes = [1, 32], strides = [1, 1]} : vector<6x32xf32> to vector<1x32xf32>
    %11 = vector.extract_strided_slice %5 {offsets = [5, 0], sizes = [1, 32], strides = [1, 1]} : vector<6x32xf32> to vector<1x32xf32>
    %c0_5 = arith.constant 0 : index
    %c0_6 = arith.constant 0 : index
    %c0_7 = arith.constant 0 : index
    %12 = vector.load %arg2[%c0_5, %c0_6, %c0_7] : memref<1x32x96xf32, #tpu.memory_space<vmem>>, vector<1x32x96xf32>
    %13 = vector.shape_cast %12 : vector<1x32x96xf32> to vector<32x96xf32>
    %cst = arith.constant dense<0.000000e+00> : vector<32x96xf32>
    %14 = tpu.matmul %3, %13, %cst {dimension_numbers = #tpu.dot_dimension_numbers<[1], [0], [0], [1], [0, 0, 1, 1], [], []>} : vector<32x32xf32>, vector<32x96xf32>, vector<32x96xf32> -> vector<32x96xf32>
    %c0_8 = arith.constant 0 : index
    %c0_9 = arith.constant 0 : index
    %c0_10 = arith.constant 0 : index
    %15 = vector.load %arg3[%c0_8, %c0_9, %c0_10] : memref<1x1x96xf32, #tpu.memory_space<vmem>>, vector<1x1x96xf32>
    %16 = vector.shape_cast %15 : vector<1x1x96xf32> to vector<1x96xf32>
    %17 = vector.broadcast %16 : vector<1x96xf32> to vector<32x96xf32>
    %18 = arith.addf %14, %17 : vector<32x96xf32>
    %19 = vector.extract_strided_slice %18 {offsets = [0, 0], sizes = [32, 32], strides = [1, 1]} : vector<32x96xf32> to vector<32x32xf32>
    %cst_11 = arith.constant 5.000000e-01 : f32
    %20 = vector.broadcast %cst_11 : f32 to vector<32x32xf32>
    %21 = arith.mulf %19, %20 : vector<32x32xf32>
    %22 = vector.extract_strided_slice %18 {offsets = [0, 32], sizes = [32, 32], strides = [1, 1]} : vector<32x96xf32> to vector<32x32xf32>
    %23 = vector.extract_strided_slice %18 {offsets = [0, 64], sizes = [32, 32], strides = [1, 1]} : vector<32x96xf32> to vector<32x32xf32>
    %24 = vector.extract_strided_slice %21 {offsets = [0, 0], sizes = [16, 32], strides = [1, 1]} : vector<32x32xf32> to vector<16x32xf32>
    %25 = vector.extract_strided_slice %22 {offsets = [0, 0], sizes = [16, 32], strides = [1, 1]} : vector<32x32xf32> to vector<16x32xf32>
    %26 = tpu.transpose %25, [1, 0] : vector<16x32xf32> -> vector<32x16xf32>
    %27 = vector.extract_strided_slice %23 {offsets = [0, 0], sizes = [16, 32], strides = [1, 1]} : vector<32x32xf32> to vector<16x32xf32>
    %28 = vector.extract_strided_slice %24 {offsets = [0, 0], sizes = [16, 4], strides = [1, 1]} : vector<16x32xf32> to vector<16x4xf32>
    %29 = vector.extract_strided_slice %26 {offsets = [0, 0], sizes = [4, 16], strides = [1, 1]} : vector<32x16xf32> to vector<4x16xf32>
    %cst_12 = arith.constant dense<0.000000e+00> : vector<16x16xf32>
    %30 = tpu.matmul %28, %29, %cst_12 {dimension_numbers = #tpu.dot_dimension_numbers<[1], [0], [0], [1], [0, 0, 1, 1], [], []>} : vector<16x4xf32>, vector<4x16xf32>, vector<16x16xf32> -> vector<16x16xf32>
    %cst_13 = arith.constant dense<0xFF800000> : vector<16xf32>
    %31 = vector.multi_reduction <maximumf>, %30, %cst_13 [1] : vector<16x16xf32> to vector<16xf32>
    %32 = vector.shape_cast %31 : vector<16xf32> to vector<16x1xf32>
    %33 = vector.broadcast %32 : vector<16x1xf32> to vector<16x16xf32>
    %34 = arith.subf %30, %33 : vector<16x16xf32>
    %35 = math.exp %34 : vector<16x16xf32>
    %cst_14 = arith.constant dense<0.000000e+00> : vector<16xf32>
    %36 = vector.multi_reduction <add>, %35, %cst_14 [1] : vector<16x16xf32> to vector<16xf32>
    %37 = vector.shape_cast %36 : vector<16xf32> to vector<16x1xf32>
    %38 = tpu.reciprocal %37 {approx = true} : vector<16x1xf32> -> vector<16x1xf32>
    %39 = vector.broadcast %38 : vector<16x1xf32> to vector<16x16xf32>
    %40 = arith.mulf %35, %39 : vector<16x16xf32>
    %41 = vector.extract_strided_slice %27 {offsets = [0, 0], sizes = [16, 4], strides = [1, 1]} : vector<16x32xf32> to vector<16x4xf32>
    %cst_15 = arith.constant dense<0.000000e+00> : vector<16x4xf32>
    %42 = tpu.matmul %40, %41, %cst_15 {dimension_numbers = #tpu.dot_dimension_numbers<[1], [0], [0], [1], [0, 0, 1, 1], [], []>} : vector<16x16xf32>, vector<16x4xf32>, vector<16x4xf32> -> vector<16x4xf32>
    %43 = vector.extract_strided_slice %24 {offsets = [0, 4], sizes = [16, 4], strides = [1, 1]} : vector<16x32xf32> to vector<16x4xf32>
    %44 = vector.extract_strided_slice %26 {offsets = [4, 0], sizes = [4, 16], strides = [1, 1]} : vector<32x16xf32> to vector<4x16xf32>
    %cst_16 = arith.constant dense<0.000000e+00> : vector<16x16xf32>
    %45 = tpu.matmul %43, %44, %cst_16 {dimension_numbers = #tpu.dot_dimension_numbers<[1], [0], [0], [1], [0, 0, 1, 1], [], []>} : vector<16x4xf32>, vector<4x16xf32>, vector<16x16xf32> -> vector<16x16xf32>
    %cst_17 = arith.constant dense<0xFF800000> : vector<16xf32>
    %46 = vector.multi_reduction <maximumf>, %45, %cst_17 [1] : vector<16x16xf32> to vector<16xf32>
    %47 = vector.shape_cast %46 : vector<16xf32> to vector<16x1xf32>
    %48 = vector.broadcast %47 : vector<16x1xf32> to vector<16x16xf32>
    %49 = arith.subf %45, %48 : vector<16x16xf32>
    %50 = math.exp %49 : vector<16x16xf32>
    %cst_18 = arith.constant dense<0.000000e+00> : vector<16xf32>
    %51 = vector.multi_reduction <add>, %50, %cst_18 [1] : vector<16x16xf32> to vector<16xf32>
    %52 = vector.shape_cast %51 : vector<16xf32> to vector<16x1xf32>
    %53 = tpu.reciprocal %52 {approx = true} : vector<16x1xf32> -> vector<16x1xf32>
    %54 = vector.broadcast %53 : vector<16x1xf32> to vector<16x16xf32>
    %55 = arith.mulf %50, %54 : vector<16x16xf32>
    %56 = vector.extract_strided_slice %27 {offsets = [0, 4], sizes = [16, 4], strides = [1, 1]} : vector<16x32xf32> to vector<16x4xf32>
    %cst_19 = arith.constant dense<0.000000e+00> : vector<16x4xf32>
    %57 = tpu.matmul %55, %56, %cst_19 {dimension_numbers = #tpu.dot_dimension_numbers<[1], [0], [0], [1], [0, 0, 1, 1], [], []>} : vector<16x16xf32>, vector<16x4xf32>, vector<16x4xf32> -> vector<16x4xf32>
    %58 = vector.extract_strided_slice %24 {offsets = [0, 8], sizes = [16, 4], strides = [1, 1]} : vector<16x32xf32> to vector<16x4xf32>
    %59 = vector.extract_strided_slice %26 {offsets = [8, 0], sizes = [4, 16], strides = [1, 1]} : vector<32x16xf32> to vector<4x16xf32>
    %cst_20 = arith.constant dense<0.000000e+00> : vector<16x16xf32>
    %60 = tpu.matmul %58, %59, %cst_20 {dimension_numbers = #tpu.dot_dimension_numbers<[1], [0], [0], [1], [0, 0, 1, 1], [], []>} : vector<16x4xf32>, vector<4x16xf32>, vector<16x16xf32> -> vector<16x16xf32>
    %cst_21 = arith.constant dense<0xFF800000> : vector<16xf32>
    %61 = vector.multi_reduction <maximumf>, %60, %cst_21 [1] : vector<16x16xf32> to vector<16xf32>
    %62 = vector.shape_cast %61 : vector<16xf32> to vector<16x1xf32>
    %63 = vector.broadcast %62 : vector<16x1xf32> to vector<16x16xf32>
    %64 = arith.subf %60, %63 : vector<16x16xf32>
    %65 = math.exp %64 : vector<16x16xf32>
    %cst_22 = arith.constant dense<0.000000e+00> : vector<16xf32>
    %66 = vector.multi_reduction <add>, %65, %cst_22 [1] : vector<16x16xf32> to vector<16xf32>
    %67 = vector.shape_cast %66 : vector<16xf32> to vector<16x1xf32>
    %68 = tpu.reciprocal %67 {approx = true} : vector<16x1xf32> -> vector<16x1xf32>
    %69 = vector.broadcast %68 : vector<16x1xf32> to vector<16x16xf32>
    %70 = arith.mulf %65, %69 : vector<16x16xf32>
    %71 = vector.extract_strided_slice %27 {offsets = [0, 8], sizes = [16, 4], strides = [1, 1]} : vector<16x32xf32> to vector<16x4xf32>
    %cst_23 = arith.constant dense<0.000000e+00> : vector<16x4xf32>
    %72 = tpu.matmul %70, %71, %cst_23 {dimension_numbers = #tpu.dot_dimension_numbers<[1], [0], [0], [1], [0, 0, 1, 1], [], []>} : vector<16x16xf32>, vector<16x4xf32>, vector<16x4xf32> -> vector<16x4xf32>
    %73 = vector.extract_strided_slice %24 {offsets = [0, 12], sizes = [16, 4], strides = [1, 1]} : vector<16x32xf32> to vector<16x4xf32>
    %74 = vector.extract_strided_slice %26 {offsets = [12, 0], sizes = [4, 16], strides = [1, 1]} : vector<32x16xf32> to vector<4x16xf32>
    %cst_24 = arith.constant dense<0.000000e+00> : vector<16x16xf32>
    %75 = tpu.matmul %73, %74, %cst_24 {dimension_numbers = #tpu.dot_dimension_numbers<[1], [0], [0], [1], [0, 0, 1, 1], [], []>} : vector<16x4xf32>, vector<4x16xf32>, vector<16x16xf32> -> vector<16x16xf32>
    %cst_25 = arith.constant dense<0xFF800000> : vector<16xf32>
    %76 = vector.multi_reduction <maximumf>, %75, %cst_25 [1] : vector<16x16xf32> to vector<16xf32>
    %77 = vector.shape_cast %76 : vector<16xf32> to vector<16x1xf32>
    %78 = vector.broadcast %77 : vector<16x1xf32> to vector<16x16xf32>
    %79 = arith.subf %75, %78 : vector<16x16xf32>
    %80 = math.exp %79 : vector<16x16xf32>
    %cst_26 = arith.constant dense<0.000000e+00> : vector<16xf32>
    %81 = vector.multi_reduction <add>, %80, %cst_26 [1] : vector<16x16xf32> to vector<16xf32>
    %82 = vector.shape_cast %81 : vector<16xf32> to vector<16x1xf32>
    %83 = tpu.reciprocal %82 {approx = true} : vector<16x1xf32> -> vector<16x1xf32>
    %84 = vector.broadcast %83 : vector<16x1xf32> to vector<16x16xf32>
    %85 = arith.mulf %80, %84 : vector<16x16xf32>
    %86 = vector.extract_strided_slice %27 {offsets = [0, 12], sizes = [16, 4], strides = [1, 1]} : vector<16x32xf32> to vector<16x4xf32>
    %cst_27 = arith.constant dense<0.000000e+00> : vector<16x4xf32>
    %87 = tpu.matmul %85, %86, %cst_27 {dimension_numbers = #tpu.dot_dimension_numbers<[1], [0], [0], [1], [0, 0, 1, 1], [], []>} : vector<16x16xf32>, vector<16x4xf32>, vector<16x4xf32> -> vector<16x4xf32>
    %88 = vector.extract_strided_slice %24 {offsets = [0, 16], sizes = [16, 4], strides = [1, 1]} : vector<16x32xf32> to vector<16x4xf32>
    %89 = vector.extract_strided_slice %26 {offsets = [16, 0], sizes = [4, 16], strides = [1, 1]} : vector<32x16xf32> to vector<4x16xf32>
    %cst_28 = arith.constant dense<0.000000e+00> : vector<16x16xf32>
    %90 = tpu.matmul %88, %89, %cst_28 {dimension_numbers = #tpu.dot_dimension_numbers<[1], [0], [0], [1], [0, 0, 1, 1], [], []>} : vector<16x4xf32>, vector<4x16xf32>, vector<16x16xf32> -> vector<16x16xf32>
    %cst_29 = arith.constant dense<0xFF800000> : vector<16xf32>
    %91 = vector.multi_reduction <maximumf>, %90, %cst_29 [1] : vector<16x16xf32> to vector<16xf32>
    %92 = vector.shape_cast %91 : vector<16xf32> to vector<16x1xf32>
    %93 = vector.broadcast %92 : vector<16x1xf32> to vector<16x16xf32>
    %94 = arith.subf %90, %93 : vector<16x16xf32>
    %95 = math.exp %94 : vector<16x16xf32>
    %cst_30 = arith.constant dense<0.000000e+00> : vector<16xf32>
    %96 = vector.multi_reduction <add>, %95, %cst_30 [1] : vector<16x16xf32> to vector<16xf32>
    %97 = vector.shape_cast %96 : vector<16xf32> to vector<16x1xf32>
    %98 = tpu.reciprocal %97 {approx = true} : vector<16x1xf32> -> vector<16x1xf32>
    %99 = vector.broadcast %98 : vector<16x1xf32> to vector<16x16xf32>
    %100 = arith.mulf %95, %99 : vector<16x16xf32>
    %101 = vector.extract_strided_slice %27 {offsets = [0, 16], sizes = [16, 4], strides = [1, 1]} : vector<16x32xf32> to vector<16x4xf32>
    %cst_31 = arith.constant dense<0.000000e+00> : vector<16x4xf32>
    %102 = tpu.matmul %100, %101, %cst_31 {dimension_numbers = #tpu.dot_dimension_numbers<[1], [0], [0], [1], [0, 0, 1, 1], [], []>} : vector<16x16xf32>, vector<16x4xf32>, vector<16x4xf32> -> vector<16x4xf32>
    %103 = vector.extract_strided_slice %24 {offsets = [0, 20], sizes = [16, 4], strides = [1, 1]} : vector<16x32xf32> to vector<16x4xf32>
    %104 = vector.extract_strided_slice %26 {offsets = [20, 0], sizes = [4, 16], strides = [1, 1]} : vector<32x16xf32> to vector<4x16xf32>
    %cst_32 = arith.constant dense<0.000000e+00> : vector<16x16xf32>
    %105 = tpu.matmul %103, %104, %cst_32 {dimension_numbers = #tpu.dot_dimension_numbers<[1], [0], [0], [1], [0, 0, 1, 1], [], []>} : vector<16x4xf32>, vector<4x16xf32>, vector<16x16xf32> -> vector<16x16xf32>
    %cst_33 = arith.constant dense<0xFF800000> : vector<16xf32>
    %106 = vector.multi_reduction <maximumf>, %105, %cst_33 [1] : vector<16x16xf32> to vector<16xf32>
    %107 = vector.shape_cast %106 : vector<16xf32> to vector<16x1xf32>
    %108 = vector.broadcast %107 : vector<16x1xf32> to vector<16x16xf32>
    %109 = arith.subf %105, %108 : vector<16x16xf32>
    %110 = math.exp %109 : vector<16x16xf32>
    %cst_34 = arith.constant dense<0.000000e+00> : vector<16xf32>
    %111 = vector.multi_reduction <add>, %110, %cst_34 [1] : vector<16x16xf32> to vector<16xf32>
    %112 = vector.shape_cast %111 : vector<16xf32> to vector<16x1xf32>
    %113 = tpu.reciprocal %112 {approx = true} : vector<16x1xf32> -> vector<16x1xf32>
    %114 = vector.broadcast %113 : vector<16x1xf32> to vector<16x16xf32>
    %115 = arith.mulf %110, %114 : vector<16x16xf32>
    %116 = vector.extract_strided_slice %27 {offsets = [0, 20], sizes = [16, 4], strides = [1, 1]} : vector<16x32xf32> to vector<16x4xf32>
    %cst_35 = arith.constant dense<0.000000e+00> : vector<16x4xf32>
    %117 = tpu.matmul %115, %116, %cst_35 {dimension_numbers = #tpu.dot_dimension_numbers<[1], [0], [0], [1], [0, 0, 1, 1], [], []>} : vector<16x16xf32>, vector<16x4xf32>, vector<16x4xf32> -> vector<16x4xf32>
    %118 = vector.extract_strided_slice %24 {offsets = [0, 24], sizes = [16, 4], strides = [1, 1]} : vector<16x32xf32> to vector<16x4xf32>
    %119 = vector.extract_strided_slice %26 {offsets = [24, 0], sizes = [4, 16], strides = [1, 1]} : vector<32x16xf32> to vector<4x16xf32>
    %cst_36 = arith.constant dense<0.000000e+00> : vector<16x16xf32>
    %120 = tpu.matmul %118, %119, %cst_36 {dimension_numbers = #tpu.dot_dimension_numbers<[1], [0], [0], [1], [0, 0, 1, 1], [], []>} : vector<16x4xf32>, vector<4x16xf32>, vector<16x16xf32> -> vector<16x16xf32>
    %cst_37 = arith.constant dense<0xFF800000> : vector<16xf32>
    %121 = vector.multi_reduction <maximumf>, %120, %cst_37 [1] : vector<16x16xf32> to vector<16xf32>
    %122 = vector.shape_cast %121 : vector<16xf32> to vector<16x1xf32>
    %123 = vector.broadcast %122 : vector<16x1xf32> to vector<16x16xf32>
    %124 = arith.subf %120, %123 : vector<16x16xf32>
    %125 = math.exp %124 : vector<16x16xf32>
    %cst_38 = arith.constant dense<0.000000e+00> : vector<16xf32>
    %126 = vector.multi_reduction <add>, %125, %cst_38 [1] : vector<16x16xf32> to vector<16xf32>
    %127 = vector.shape_cast %126 : vector<16xf32> to vector<16x1xf32>
    %128 = tpu.reciprocal %127 {approx = true} : vector<16x1xf32> -> vector<16x1xf32>
    %129 = vector.broadcast %128 : vector<16x1xf32> to vector<16x16xf32>
    %130 = arith.mulf %125, %129 : vector<16x16xf32>
    %131 = vector.extract_strided_slice %27 {offsets = [0, 24], sizes = [16, 4], strides = [1, 1]} : vector<16x32xf32> to vector<16x4xf32>
    %cst_39 = arith.constant dense<0.000000e+00> : vector<16x4xf32>
    %132 = tpu.matmul %130, %131, %cst_39 {dimension_numbers = #tpu.dot_dimension_numbers<[1], [0], [0], [1], [0, 0, 1, 1], [], []>} : vector<16x16xf32>, vector<16x4xf32>, vector<16x4xf32> -> vector<16x4xf32>
    %133 = vector.extract_strided_slice %24 {offsets = [0, 28], sizes = [16, 4], strides = [1, 1]} : vector<16x32xf32> to vector<16x4xf32>
    %134 = vector.extract_strided_slice %26 {offsets = [28, 0], sizes = [4, 16], strides = [1, 1]} : vector<32x16xf32> to vector<4x16xf32>
    %cst_40 = arith.constant dense<0.000000e+00> : vector<16x16xf32>
    %135 = tpu.matmul %133, %134, %cst_40 {dimension_numbers = #tpu.dot_dimension_numbers<[1], [0], [0], [1], [0, 0, 1, 1], [], []>} : vector<16x4xf32>, vector<4x16xf32>, vector<16x16xf32> -> vector<16x16xf32>
    %cst_41 = arith.constant dense<0xFF800000> : vector<16xf32>
    %136 = vector.multi_reduction <maximumf>, %135, %cst_41 [1] : vector<16x16xf32> to vector<16xf32>
    %137 = vector.shape_cast %136 : vector<16xf32> to vector<16x1xf32>
    %138 = vector.broadcast %137 : vector<16x1xf32> to vector<16x16xf32>
    %139 = arith.subf %135, %138 : vector<16x16xf32>
    %140 = math.exp %139 : vector<16x16xf32>
    %cst_42 = arith.constant dense<0.000000e+00> : vector<16xf32>
    %141 = vector.multi_reduction <add>, %140, %cst_42 [1] : vector<16x16xf32> to vector<16xf32>
    %142 = vector.shape_cast %141 : vector<16xf32> to vector<16x1xf32>
    %143 = tpu.reciprocal %142 {approx = true} : vector<16x1xf32> -> vector<16x1xf32>
    %144 = vector.broadcast %143 : vector<16x1xf32> to vector<16x16xf32>
    %145 = arith.mulf %140, %144 : vector<16x16xf32>
    %146 = vector.extract_strided_slice %27 {offsets = [0, 28], sizes = [16, 4], strides = [1, 1]} : vector<16x32xf32> to vector<16x4xf32>
    %cst_43 = arith.constant dense<0.000000e+00> : vector<16x4xf32>
    %147 = tpu.matmul %145, %146, %cst_43 {dimension_numbers = #tpu.dot_dimension_numbers<[1], [0], [0], [1], [0, 0, 1, 1], [], []>} : vector<16x16xf32>, vector<16x4xf32>, vector<16x4xf32> -> vector<16x4xf32>
    %148 = tpu.concatenate %42, %57, %72, %87, %102, %117, %132, %147 in 1 : vector<16x4xf32>, vector<16x4xf32>, vector<16x4xf32>, vector<16x4xf32>, vector<16x4xf32>, vector<16x4xf32>, vector<16x4xf32>, vector<16x4xf32> -> vector<16x32xf32>
    %149 = vector.extract_strided_slice %21 {offsets = [16, 0], sizes = [16, 32], strides = [1, 1]} : vector<32x32xf32> to vector<16x32xf32>
    %150 = vector.extract_strided_slice %22 {offsets = [16, 0], sizes = [16, 32], strides = [1, 1]} : vector<32x32xf32> to vector<16x32xf32>
    %151 = tpu.transpose %150, [1, 0] : vector<16x32xf32> -> vector<32x16xf32>
    %152 = vector.extract_strided_slice %23 {offsets = [16, 0], sizes = [16, 32], strides = [1, 1]} : vector<32x32xf32> to vector<16x32xf32>
    %153 = vector.extract_strided_slice %149 {offsets = [0, 0], sizes = [16, 4], strides = [1, 1]} : vector<16x32xf32> to vector<16x4xf32>
    %154 = vector.extract_strided_slice %151 {offsets = [0, 0], sizes = [4, 16], strides = [1, 1]} : vector<32x16xf32> to vector<4x16xf32>
    %cst_44 = arith.constant dense<0.000000e+00> : vector<16x16xf32>
    %155 = tpu.matmul %153, %154, %cst_44 {dimension_numbers = #tpu.dot_dimension_numbers<[1], [0], [0], [1], [0, 0, 1, 1], [], []>} : vector<16x4xf32>, vector<4x16xf32>, vector<16x16xf32> -> vector<16x16xf32>
    %cst_45 = arith.constant dense<0xFF800000> : vector<16xf32>
    %156 = vector.multi_reduction <maximumf>, %155, %cst_45 [1] : vector<16x16xf32> to vector<16xf32>
    %157 = vector.shape_cast %156 : vector<16xf32> to vector<16x1xf32>
    %158 = vector.broadcast %157 : vector<16x1xf32> to vector<16x16xf32>
    %159 = arith.subf %155, %158 : vector<16x16xf32>
    %160 = math.exp %159 : vector<16x16xf32>
    %cst_46 = arith.constant dense<0.000000e+00> : vector<16xf32>
    %161 = vector.multi_reduction <add>, %160, %cst_46 [1] : vector<16x16xf32> to vector<16xf32>
    %162 = vector.shape_cast %161 : vector<16xf32> to vector<16x1xf32>
    %163 = tpu.reciprocal %162 {approx = true} : vector<16x1xf32> -> vector<16x1xf32>
    %164 = vector.broadcast %163 : vector<16x1xf32> to vector<16x16xf32>
    %165 = arith.mulf %160, %164 : vector<16x16xf32>
    %166 = vector.extract_strided_slice %152 {offsets = [0, 0], sizes = [16, 4], strides = [1, 1]} : vector<16x32xf32> to vector<16x4xf32>
    %cst_47 = arith.constant dense<0.000000e+00> : vector<16x4xf32>
    %167 = tpu.matmul %165, %166, %cst_47 {dimension_numbers = #tpu.dot_dimension_numbers<[1], [0], [0], [1], [0, 0, 1, 1], [], []>} : vector<16x16xf32>, vector<16x4xf32>, vector<16x4xf32> -> vector<16x4xf32>
    %168 = vector.extract_strided_slice %149 {offsets = [0, 4], sizes = [16, 4], strides = [1, 1]} : vector<16x32xf32> to vector<16x4xf32>
    %169 = vector.extract_strided_slice %151 {offsets = [4, 0], sizes = [4, 16], strides = [1, 1]} : vector<32x16xf32> to vector<4x16xf32>
    %cst_48 = arith.constant dense<0.000000e+00> : vector<16x16xf32>
    %170 = tpu.matmul %168, %169, %cst_48 {dimension_numbers = #tpu.dot_dimension_numbers<[1], [0], [0], [1], [0, 0, 1, 1], [], []>} : vector<16x4xf32>, vector<4x16xf32>, vector<16x16xf32> -> vector<16x16xf32>
    %cst_49 = arith.constant dense<0xFF800000> : vector<16xf32>
    %171 = vector.multi_reduction <maximumf>, %170, %cst_49 [1] : vector<16x16xf32> to vector<16xf32>
    %172 = vector.shape_cast %171 : vector<16xf32> to vector<16x1xf32>
    %173 = vector.broadcast %172 : vector<16x1xf32> to vector<16x16xf32>
    %174 = arith.subf %170, %173 : vector<16x16xf32>
    %175 = math.exp %174 : vector<16x16xf32>
    %cst_50 = arith.constant dense<0.000000e+00> : vector<16xf32>
    %176 = vector.multi_reduction <add>, %175, %cst_50 [1] : vector<16x16xf32> to vector<16xf32>
    %177 = vector.shape_cast %176 : vector<16xf32> to vector<16x1xf32>
    %178 = tpu.reciprocal %177 {approx = true} : vector<16x1xf32> -> vector<16x1xf32>
    %179 = vector.broadcast %178 : vector<16x1xf32> to vector<16x16xf32>
    %180 = arith.mulf %175, %179 : vector<16x16xf32>
    %181 = vector.extract_strided_slice %152 {offsets = [0, 4], sizes = [16, 4], strides = [1, 1]} : vector<16x32xf32> to vector<16x4xf32>
    %cst_51 = arith.constant dense<0.000000e+00> : vector<16x4xf32>
    %182 = tpu.matmul %180, %181, %cst_51 {dimension_numbers = #tpu.dot_dimension_numbers<[1], [0], [0], [1], [0, 0, 1, 1], [], []>} : vector<16x16xf32>, vector<16x4xf32>, vector<16x4xf32> -> vector<16x4xf32>
    %183 = vector.extract_strided_slice %149 {offsets = [0, 8], sizes = [16, 4], strides = [1, 1]} : vector<16x32xf32> to vector<16x4xf32>
    %184 = vector.extract_strided_slice %151 {offsets = [8, 0], sizes = [4, 16], strides = [1, 1]} : vector<32x16xf32> to vector<4x16xf32>
    %cst_52 = arith.constant dense<0.000000e+00> : vector<16x16xf32>
    %185 = tpu.matmul %183, %184, %cst_52 {dimension_numbers = #tpu.dot_dimension_numbers<[1], [0], [0], [1], [0, 0, 1, 1], [], []>} : vector<16x4xf32>, vector<4x16xf32>, vector<16x16xf32> -> vector<16x16xf32>
    %cst_53 = arith.constant dense<0xFF800000> : vector<16xf32>
    %186 = vector.multi_reduction <maximumf>, %185, %cst_53 [1] : vector<16x16xf32> to vector<16xf32>
    %187 = vector.shape_cast %186 : vector<16xf32> to vector<16x1xf32>
    %188 = vector.broadcast %187 : vector<16x1xf32> to vector<16x16xf32>
    %189 = arith.subf %185, %188 : vector<16x16xf32>
    %190 = math.exp %189 : vector<16x16xf32>
    %cst_54 = arith.constant dense<0.000000e+00> : vector<16xf32>
    %191 = vector.multi_reduction <add>, %190, %cst_54 [1] : vector<16x16xf32> to vector<16xf32>
    %192 = vector.shape_cast %191 : vector<16xf32> to vector<16x1xf32>
    %193 = tpu.reciprocal %192 {approx = true} : vector<16x1xf32> -> vector<16x1xf32>
    %194 = vector.broadcast %193 : vector<16x1xf32> to vector<16x16xf32>
    %195 = arith.mulf %190, %194 : vector<16x16xf32>
    %196 = vector.extract_strided_slice %152 {offsets = [0, 8], sizes = [16, 4], strides = [1, 1]} : vector<16x32xf32> to vector<16x4xf32>
    %cst_55 = arith.constant dense<0.000000e+00> : vector<16x4xf32>
    %197 = tpu.matmul %195, %196, %cst_55 {dimension_numbers = #tpu.dot_dimension_numbers<[1], [0], [0], [1], [0, 0, 1, 1], [], []>} : vector<16x16xf32>, vector<16x4xf32>, vector<16x4xf32> -> vector<16x4xf32>
    %198 = vector.extract_strided_slice %149 {offsets = [0, 12], sizes = [16, 4], strides = [1, 1]} : vector<16x32xf32> to vector<16x4xf32>
    %199 = vector.extract_strided_slice %151 {offsets = [12, 0], sizes = [4, 16], strides = [1, 1]} : vector<32x16xf32> to vector<4x16xf32>
    %cst_56 = arith.constant dense<0.000000e+00> : vector<16x16xf32>
    %200 = tpu.matmul %198, %199, %cst_56 {dimension_numbers = #tpu.dot_dimension_numbers<[1], [0], [0], [1], [0, 0, 1, 1], [], []>} : vector<16x4xf32>, vector<4x16xf32>, vector<16x16xf32> -> vector<16x16xf32>
    %cst_57 = arith.constant dense<0xFF800000> : vector<16xf32>
    %201 = vector.multi_reduction <maximumf>, %200, %cst_57 [1] : vector<16x16xf32> to vector<16xf32>
    %202 = vector.shape_cast %201 : vector<16xf32> to vector<16x1xf32>
    %203 = vector.broadcast %202 : vector<16x1xf32> to vector<16x16xf32>
    %204 = arith.subf %200, %203 : vector<16x16xf32>
    %205 = math.exp %204 : vector<16x16xf32>
    %cst_58 = arith.constant dense<0.000000e+00> : vector<16xf32>
    %206 = vector.multi_reduction <add>, %205, %cst_58 [1] : vector<16x16xf32> to vector<16xf32>
    %207 = vector.shape_cast %206 : vector<16xf32> to vector<16x1xf32>
    %208 = tpu.reciprocal %207 {approx = true} : vector<16x1xf32> -> vector<16x1xf32>
    %209 = vector.broadcast %208 : vector<16x1xf32> to vector<16x16xf32>
    %210 = arith.mulf %205, %209 : vector<16x16xf32>
    %211 = vector.extract_strided_slice %152 {offsets = [0, 12], sizes = [16, 4], strides = [1, 1]} : vector<16x32xf32> to vector<16x4xf32>
    %cst_59 = arith.constant dense<0.000000e+00> : vector<16x4xf32>
    %212 = tpu.matmul %210, %211, %cst_59 {dimension_numbers = #tpu.dot_dimension_numbers<[1], [0], [0], [1], [0, 0, 1, 1], [], []>} : vector<16x16xf32>, vector<16x4xf32>, vector<16x4xf32> -> vector<16x4xf32>
    %213 = vector.extract_strided_slice %149 {offsets = [0, 16], sizes = [16, 4], strides = [1, 1]} : vector<16x32xf32> to vector<16x4xf32>
    %214 = vector.extract_strided_slice %151 {offsets = [16, 0], sizes = [4, 16], strides = [1, 1]} : vector<32x16xf32> to vector<4x16xf32>
    %cst_60 = arith.constant dense<0.000000e+00> : vector<16x16xf32>
    %215 = tpu.matmul %213, %214, %cst_60 {dimension_numbers = #tpu.dot_dimension_numbers<[1], [0], [0], [1], [0, 0, 1, 1], [], []>} : vector<16x4xf32>, vector<4x16xf32>, vector<16x16xf32> -> vector<16x16xf32>
    %cst_61 = arith.constant dense<0xFF800000> : vector<16xf32>
    %216 = vector.multi_reduction <maximumf>, %215, %cst_61 [1] : vector<16x16xf32> to vector<16xf32>
    %217 = vector.shape_cast %216 : vector<16xf32> to vector<16x1xf32>
    %218 = vector.broadcast %217 : vector<16x1xf32> to vector<16x16xf32>
    %219 = arith.subf %215, %218 : vector<16x16xf32>
    %220 = math.exp %219 : vector<16x16xf32>
    %cst_62 = arith.constant dense<0.000000e+00> : vector<16xf32>
    %221 = vector.multi_reduction <add>, %220, %cst_62 [1] : vector<16x16xf32> to vector<16xf32>
    %222 = vector.shape_cast %221 : vector<16xf32> to vector<16x1xf32>
    %223 = tpu.reciprocal %222 {approx = true} : vector<16x1xf32> -> vector<16x1xf32>
    %224 = vector.broadcast %223 : vector<16x1xf32> to vector<16x16xf32>
    %225 = arith.mulf %220, %224 : vector<16x16xf32>
    %226 = vector.extract_strided_slice %152 {offsets = [0, 16], sizes = [16, 4], strides = [1, 1]} : vector<16x32xf32> to vector<16x4xf32>
    %cst_63 = arith.constant dense<0.000000e+00> : vector<16x4xf32>
    %227 = tpu.matmul %225, %226, %cst_63 {dimension_numbers = #tpu.dot_dimension_numbers<[1], [0], [0], [1], [0, 0, 1, 1], [], []>} : vector<16x16xf32>, vector<16x4xf32>, vector<16x4xf32> -> vector<16x4xf32>
    %228 = vector.extract_strided_slice %149 {offsets = [0, 20], sizes = [16, 4], strides = [1, 1]} : vector<16x32xf32> to vector<16x4xf32>
    %229 = vector.extract_strided_slice %151 {offsets = [20, 0], sizes = [4, 16], strides = [1, 1]} : vector<32x16xf32> to vector<4x16xf32>
    %cst_64 = arith.constant dense<0.000000e+00> : vector<16x16xf32>
    %230 = tpu.matmul %228, %229, %cst_64 {dimension_numbers = #tpu.dot_dimension_numbers<[1], [0], [0], [1], [0, 0, 1, 1], [], []>} : vector<16x4xf32>, vector<4x16xf32>, vector<16x16xf32> -> vector<16x16xf32>
    %cst_65 = arith.constant dense<0xFF800000> : vector<16xf32>
    %231 = vector.multi_reduction <maximumf>, %230, %cst_65 [1] : vector<16x16xf32> to vector<16xf32>
    %232 = vector.shape_cast %231 : vector<16xf32> to vector<16x1xf32>
    %233 = vector.broadcast %232 : vector<16x1xf32> to vector<16x16xf32>
    %234 = arith.subf %230, %233 : vector<16x16xf32>
    %235 = math.exp %234 : vector<16x16xf32>
    %cst_66 = arith.constant dense<0.000000e+00> : vector<16xf32>
    %236 = vector.multi_reduction <add>, %235, %cst_66 [1] : vector<16x16xf32> to vector<16xf32>
    %237 = vector.shape_cast %236 : vector<16xf32> to vector<16x1xf32>
    %238 = tpu.reciprocal %237 {approx = true} : vector<16x1xf32> -> vector<16x1xf32>
    %239 = vector.broadcast %238 : vector<16x1xf32> to vector<16x16xf32>
    %240 = arith.mulf %235, %239 : vector<16x16xf32>
    %241 = vector.extract_strided_slice %152 {offsets = [0, 20], sizes = [16, 4], strides = [1, 1]} : vector<16x32xf32> to vector<16x4xf32>
    %cst_67 = arith.constant dense<0.000000e+00> : vector<16x4xf32>
    %242 = tpu.matmul %240, %241, %cst_67 {dimension_numbers = #tpu.dot_dimension_numbers<[1], [0], [0], [1], [0, 0, 1, 1], [], []>} : vector<16x16xf32>, vector<16x4xf32>, vector<16x4xf32> -> vector<16x4xf32>
    %243 = vector.extract_strided_slice %149 {offsets = [0, 24], sizes = [16, 4], strides = [1, 1]} : vector<16x32xf32> to vector<16x4xf32>
    %244 = vector.extract_strided_slice %151 {offsets = [24, 0], sizes = [4, 16], strides = [1, 1]} : vector<32x16xf32> to vector<4x16xf32>
    %cst_68 = arith.constant dense<0.000000e+00> : vector<16x16xf32>
    %245 = tpu.matmul %243, %244, %cst_68 {dimension_numbers = #tpu.dot_dimension_numbers<[1], [0], [0], [1], [0, 0, 1, 1], [], []>} : vector<16x4xf32>, vector<4x16xf32>, vector<16x16xf32> -> vector<16x16xf32>
    %cst_69 = arith.constant dense<0xFF800000> : vector<16xf32>
    %246 = vector.multi_reduction <maximumf>, %245, %cst_69 [1] : vector<16x16xf32> to vector<16xf32>
    %247 = vector.shape_cast %246 : vector<16xf32> to vector<16x1xf32>
    %248 = vector.broadcast %247 : vector<16x1xf32> to vector<16x16xf32>
    %249 = arith.subf %245, %248 : vector<16x16xf32>
    %250 = math.exp %249 : vector<16x16xf32>
    %cst_70 = arith.constant dense<0.000000e+00> : vector<16xf32>
    %251 = vector.multi_reduction <add>, %250, %cst_70 [1] : vector<16x16xf32> to vector<16xf32>
    %252 = vector.shape_cast %251 : vector<16xf32> to vector<16x1xf32>
    %253 = tpu.reciprocal %252 {approx = true} : vector<16x1xf32> -> vector<16x1xf32>
    %254 = vector.broadcast %253 : vector<16x1xf32> to vector<16x16xf32>
    %255 = arith.mulf %250, %254 : vector<16x16xf32>
    %256 = vector.extract_strided_slice %152 {offsets = [0, 24], sizes = [16, 4], strides = [1, 1]} : vector<16x32xf32> to vector<16x4xf32>
    %cst_71 = arith.constant dense<0.000000e+00> : vector<16x4xf32>
    %257 = tpu.matmul %255, %256, %cst_71 {dimension_numbers = #tpu.dot_dimension_numbers<[1], [0], [0], [1], [0, 0, 1, 1], [], []>} : vector<16x16xf32>, vector<16x4xf32>, vector<16x4xf32> -> vector<16x4xf32>
    %258 = vector.extract_strided_slice %149 {offsets = [0, 28], sizes = [16, 4], strides = [1, 1]} : vector<16x32xf32> to vector<16x4xf32>
    %259 = vector.extract_strided_slice %151 {offsets = [28, 0], sizes = [4, 16], strides = [1, 1]} : vector<32x16xf32> to vector<4x16xf32>
    %cst_72 = arith.constant dense<0.000000e+00> : vector<16x16xf32>
    %260 = tpu.matmul %258, %259, %cst_72 {dimension_numbers = #tpu.dot_dimension_numbers<[1], [0], [0], [1], [0, 0, 1, 1], [], []>} : vector<16x4xf32>, vector<4x16xf32>, vector<16x16xf32> -> vector<16x16xf32>
    %cst_73 = arith.constant dense<0xFF800000> : vector<16xf32>
    %261 = vector.multi_reduction <maximumf>, %260, %cst_73 [1] : vector<16x16xf32> to vector<16xf32>
    %262 = vector.shape_cast %261 : vector<16xf32> to vector<16x1xf32>
    %263 = vector.broadcast %262 : vector<16x1xf32> to vector<16x16xf32>
    %264 = arith.subf %260, %263 : vector<16x16xf32>
    %265 = math.exp %264 : vector<16x16xf32>
    %cst_74 = arith.constant dense<0.000000e+00> : vector<16xf32>
    %266 = vector.multi_reduction <add>, %265, %cst_74 [1] : vector<16x16xf32> to vector<16xf32>
    %267 = vector.shape_cast %266 : vector<16xf32> to vector<16x1xf32>
    %268 = tpu.reciprocal %267 {approx = true} : vector<16x1xf32> -> vector<16x1xf32>
    %269 = vector.broadcast %268 : vector<16x1xf32> to vector<16x16xf32>
    %270 = arith.mulf %265, %269 : vector<16x16xf32>
    %271 = vector.extract_strided_slice %152 {offsets = [0, 28], sizes = [16, 4], strides = [1, 1]} : vector<16x32xf32> to vector<16x4xf32>
    %cst_75 = arith.constant dense<0.000000e+00> : vector<16x4xf32>
    %272 = tpu.matmul %270, %271, %cst_75 {dimension_numbers = #tpu.dot_dimension_numbers<[1], [0], [0], [1], [0, 0, 1, 1], [], []>} : vector<16x16xf32>, vector<16x4xf32>, vector<16x4xf32> -> vector<16x4xf32>
    %273 = tpu.concatenate %167, %182, %197, %212, %227, %242, %257, %272 in 1 : vector<16x4xf32>, vector<16x4xf32>, vector<16x4xf32>, vector<16x4xf32>, vector<16x4xf32>, vector<16x4xf32>, vector<16x4xf32>, vector<16x4xf32> -> vector<16x32xf32>
    %274 = tpu.concatenate %148, %273 in 0 : vector<16x32xf32>, vector<16x32xf32> -> vector<32x32xf32>
    %c0_76 = arith.constant 0 : index
    %c0_77 = arith.constant 0 : index
    %c0_78 = arith.constant 0 : index
    %275 = vector.load %arg4[%c0_76, %c0_77, %c0_78] : memref<1x32x32xf32, #tpu.memory_space<vmem>>, vector<1x32x32xf32>
    %276 = vector.shape_cast %275 : vector<1x32x32xf32> to vector<32x32xf32>
    %cst_79 = arith.constant dense<0.000000e+00> : vector<32x32xf32>
    %277 = tpu.matmul %274, %276, %cst_79 {dimension_numbers = #tpu.dot_dimension_numbers<[1], [0], [0], [1], [0, 0, 1, 1], [], []>} : vector<32x32xf32>, vector<32x32xf32>, vector<32x32xf32> -> vector<32x32xf32>
    %278 = vector.broadcast %6 : vector<1x32xf32> to vector<32x32xf32>
    %279 = arith.addf %277, %278 : vector<32x32xf32>
    %280 = arith.addf %3, %279 : vector<32x32xf32>
    %cst_80 = arith.constant dense<0.000000e+00> : vector<32xf32>
    %281 = vector.multi_reduction <add>, %280, %cst_80 [1] : vector<32x32xf32> to vector<32xf32>
    %282 = vector.shape_cast %281 : vector<32xf32> to vector<32x1xf32>
    %cst_81 = arith.constant 3.200000e+01 : f32
    %283 = vector.broadcast %cst_81 : f32 to vector<32x1xf32>
    %284 = arith.divf %282, %283 : vector<32x1xf32>
    %285 = vector.broadcast %284 : vector<32x1xf32> to vector<32x32xf32>
    %286 = arith.subf %280, %285 : vector<32x32xf32>
    %287 = arith.mulf %286, %286 : vector<32x32xf32>
    %cst_82 = arith.constant dense<0.000000e+00> : vector<32xf32>
    %288 = vector.multi_reduction <add>, %287, %cst_82 [1] : vector<32x32xf32> to vector<32xf32>
    %289 = vector.shape_cast %288 : vector<32xf32> to vector<32x1xf32>
    %cst_83 = arith.constant 3.200000e+01 : f32
    %290 = vector.broadcast %cst_83 : f32 to vector<32x1xf32>
    %291 = arith.divf %289, %290 : vector<32x1xf32>
    %292 = vector.broadcast %284 : vector<32x1xf32> to vector<32x32xf32>
    %293 = arith.subf %280, %292 : vector<32x32xf32>
    %cst_84 = arith.constant 9.99999974E-6 : f32
    %294 = vector.broadcast %cst_84 : f32 to vector<32x1xf32>
    %295 = arith.addf %291, %294 : vector<32x1xf32>
    %296 = math.rsqrt %295 : vector<32x1xf32>
    %297 = vector.broadcast %296 : vector<32x1xf32> to vector<32x32xf32>
    %298 = arith.mulf %293, %297 : vector<32x32xf32>
    %299 = vector.broadcast %7 : vector<1x32xf32> to vector<32x32xf32>
    %300 = arith.mulf %298, %299 : vector<32x32xf32>
    %301 = vector.broadcast %8 : vector<1x32xf32> to vector<32x32xf32>
    %302 = arith.addf %300, %301 : vector<32x32xf32>
    %303 = arith.truncf %302 : vector<32x32xf32> to vector<32x32xbf16>
    %c0_85 = arith.constant 0 : index
    %c0_86 = arith.constant 0 : index
    %c0_87 = arith.constant 0 : index
    %304 = vector.load %arg6[%c0_85, %c0_86, %c0_87] : memref<1x32x2048xbf16, #tpu.memory_space<vmem>>, vector<1x32x2048xbf16>
    %305 = vector.shape_cast %304 : vector<1x32x2048xbf16> to vector<32x2048xbf16>
    %cst_88 = arith.constant dense<0.000000e+00> : vector<32x2048xf32>
    %306 = tpu.matmul %303, %305, %cst_88 {dimension_numbers = #tpu.dot_dimension_numbers<[1], [0], [0], [1], [0, 0, 1, 1], [], []>} : vector<32x32xbf16>, vector<32x2048xbf16>, vector<32x2048xf32> -> vector<32x2048xf32>
    %c0_89 = arith.constant 0 : index
    %c0_90 = arith.constant 0 : index
    %c0_91 = arith.constant 0 : index
    %307 = vector.load %arg7[%c0_89, %c0_90, %c0_91] : memref<1x1x2048xf32, #tpu.memory_space<vmem>>, vector<1x1x2048xf32>
    %308 = vector.shape_cast %307 : vector<1x1x2048xf32> to vector<1x2048xf32>
    %309 = vector.broadcast %308 : vector<1x2048xf32> to vector<32x2048xf32>
    %310 = arith.addf %306, %309 : vector<32x2048xf32>
    %cst_92 = arith.constant 0.000000e+00 : f32
    %311 = vector.broadcast %cst_92 : f32 to vector<32x2048xf32>
    %312 = arith.maximumf %310, %311 : vector<32x2048xf32>
    %313 = arith.truncf %312 : vector<32x2048xf32> to vector<32x2048xbf16>
    %c0_93 = arith.constant 0 : index
    %c0_94 = arith.constant 0 : index
    %c0_95 = arith.constant 0 : index
    %314 = vector.load %arg8[%c0_93, %c0_94, %c0_95] : memref<1x2048x32xbf16, #tpu.memory_space<vmem>>, vector<1x2048x32xbf16>
    %315 = vector.shape_cast %314 : vector<1x2048x32xbf16> to vector<2048x32xbf16>
    %cst_96 = arith.constant dense<0.000000e+00> : vector<32x32xf32>
    %316 = tpu.matmul %313, %315, %cst_96 {dimension_numbers = #tpu.dot_dimension_numbers<[1], [0], [0], [1], [0, 0, 1, 1], [], []>} : vector<32x2048xbf16>, vector<2048x32xbf16>, vector<32x32xf32> -> vector<32x32xf32>
    %317 = vector.broadcast %9 : vector<1x32xf32> to vector<32x32xf32>
    %318 = arith.addf %316, %317 : vector<32x32xf32>
    %319 = arith.addf %302, %318 : vector<32x32xf32>
    %cst_97 = arith.constant dense<0.000000e+00> : vector<32xf32>
    %320 = vector.multi_reduction <add>, %319, %cst_97 [1] : vector<32x32xf32> to vector<32xf32>
    %321 = vector.shape_cast %320 : vector<32xf32> to vector<32x1xf32>
    %cst_98 = arith.constant 3.200000e+01 : f32
    %322 = vector.broadcast %cst_98 : f32 to vector<32x1xf32>
    %323 = arith.divf %321, %322 : vector<32x1xf32>
    %324 = vector.broadcast %323 : vector<32x1xf32> to vector<32x32xf32>
    %325 = arith.subf %319, %324 : vector<32x32xf32>
    %326 = arith.mulf %325, %325 : vector<32x32xf32>
    %cst_99 = arith.constant dense<0.000000e+00> : vector<32xf32>
    %327 = vector.multi_reduction <add>, %326, %cst_99 [1] : vector<32x32xf32> to vector<32xf32>
    %328 = vector.shape_cast %327 : vector<32xf32> to vector<32x1xf32>
    %cst_100 = arith.constant 3.200000e+01 : f32
    %329 = vector.broadcast %cst_100 : f32 to vector<32x1xf32>
    %330 = arith.divf %328, %329 : vector<32x1xf32>
    %331 = vector.broadcast %323 : vector<32x1xf32> to vector<32x32xf32>
    %332 = arith.subf %319, %331 : vector<32x32xf32>
    %cst_101 = arith.constant 9.99999974E-6 : f32
    %333 = vector.broadcast %cst_101 : f32 to vector<32x1xf32>
    %334 = arith.addf %330, %333 : vector<32x1xf32>
    %335 = math.rsqrt %334 : vector<32x1xf32>
    %336 = vector.broadcast %335 : vector<32x1xf32> to vector<32x32xf32>
    %337 = arith.mulf %332, %336 : vector<32x32xf32>
    %338 = vector.broadcast %10 : vector<1x32xf32> to vector<32x32xf32>
    %339 = arith.mulf %337, %338 : vector<32x32xf32>
    %340 = vector.broadcast %11 : vector<1x32xf32> to vector<32x32xf32>
    %341 = arith.addf %339, %340 : vector<32x32xf32>
    %c0_102 = arith.constant 0 : index
    %c0_103 = arith.constant 0 : index
    %342 = vector.load %arg10[%c0_102, %c0_103] : memref<32x32xf32, #tpu.memory_space<vmem>>, vector<32x32xf32>
    tpu.vector_store %arg10[%c0_102, %c0_103], %341 {strides = array<i32>} : memref<32x32xf32, #tpu.memory_space<vmem>>, vector<32x32xf32>,
    %c3_i32 = arith.constant 3 : i32
    %343 = arith.cmpi eq, %arg0, %c3_i32 : i32
    %344 = arith.extui %343 : i1 to i32
    %c0_i32_104 = arith.constant 0 : i32
    %345 = arith.cmpi ne, %344, %c0_i32_104 : i32
    scf.if %345 {
      %c0_105 = arith.constant 0 : index
      %c0_106 = arith.constant 0 : index
      %346 = vector.load %arg9[%c0_105, %c0_106] : memref<32x32xf32, #tpu.memory_space<vmem>>, vector<32x32xf32>
      tpu.vector_store %arg9[%c0_105, %c0_106], %341 {strides = array<i32>} : memref<32x32xf32, #tpu.memory_space<vmem>>, vector<32x32xf32>,
    } else {
    }
    return
  }
  func.func @transform_0(%arg0: i32) -> (i32, i32) {
    %c0_i32 = arith.constant 0 : i32
    %c0_i32_0 = arith.constant 0 : i32
    %c0_i32_1 = arith.constant 0 : i32
    return %c0_i32, %c0_i32_0 : i32, i32
  }
  func.func @transform_1(%arg0: i32) -> (i32, i32, i32) {
    %c0_i32 = arith.constant 0 : i32
    %c0_i32_0 = arith.constant 0 : i32
    %c0_i32_1 = arith.constant 0 : i32
    return %arg0, %c0_i32, %c0_i32_0 : i32, i32, i32
  }
  func.func @transform_2(%arg0: i32) -> (i32, i32, i32) {
    %c0_i32 = arith.constant 0 : i32
    %c0_i32_0 = arith.constant 0 : i32
    %c0_i32_1 = arith.constant 0 : i32
    return %arg0, %c0_i32, %c0_i32_0 : i32, i32, i32
  }
  func.func @transform_3(%arg0: i32) -> (i32, i32, i32) {
    %c0_i32 = arith.constant 0 : i32
    %c0_i32_0 = arith.constant 0 : i32
    %c0_i32_1 = arith.constant 0 : i32
    return %arg0, %c0_i32, %c0_i32_0 : i32, i32, i32
  }
  func.func @transform_4(%arg0: i32) -> (i32, i32, i32) {
    %c0_i32 = arith.constant 0 : i32
    %c0_i32_0 = arith.constant 0 : i32
    %c0_i32_1 = arith.constant 0 : i32
    return %arg0, %c0_i32, %c0_i32_0 : i32, i32, i32
  }
  func.func @transform_5(%arg0: i32) -> (i32, i32, i32) {
    %c0_i32 = arith.constant 0 : i32
    %c0_i32_0 = arith.constant 0 : i32
    %c0_i32_1 = arith.constant 0 : i32
    return %arg0, %c0_i32, %c0_i32_0 : i32, i32, i32
  }
  func.func @transform_6(%arg0: i32) -> (i32, i32, i32) {
    %c0_i32 = arith.constant 0 : i32
    %c0_i32_0 = arith.constant 0 : i32
    %c0_i32_1 = arith.constant 0 : i32
    return %arg0, %c0_i32, %c0_i32_0 : i32, i32, i32
  }
  func.func @transform_7(%arg0: i32) -> (i32, i32, i32) {
    %c0_i32 = arith.constant 0 : i32
    %c0_i32_0 = arith.constant 0 : i32
    %c0_i32_1 = arith.constant 0 : i32
    return %arg0, %c0_i32, %c0_i32_0 : i32, i32, i32
  }
  func.func @transform_8(%arg0: i32) -> (i32, i32) {
    %c0_i32 = arith.constant 0 : i32
    %c0_i32_0 = arith.constant 0 : i32
    %c0_i32_1 = arith.constant 0 : i32
    return %c0_i32, %c0_i32_0 : i32, i32
  }
}

</mosaic_0001>

<llo_original>
// kernel: spatial_encoder_forward.1
$region0: #{spatial_encoder_forward.1}
  #allocation0 [shape = 'u32[]', space=smem, size = 0x4, offset = 0x4, fixed_abs, tag = 'smem constant byte address 0x4 - core index']
  #allocation1 [shape = 'u32[144,128]{1,0:T(1,128)}', space=vmem, size = 0x12000, scoped, tag = 'internal scratch']
  #allocation2 [shape = 'f32[32,32]{1,0:T(8,128)}', space=vmem, size = 0x4000, scoped, tag = 'scratch operand']
  %s0 = inlined_call_operand.vmem [shape: f32[32,32], index: 0, kind: input, shape index: {}]
  %s1 = inlined_call_operand.vmem [shape: f32[4,32,96], index: 1, kind: input, shape index: {}]
  %s2 = inlined_call_operand.vmem [shape: f32[4,1,96], index: 2, kind: input, shape index: {}]
  %s3 = inlined_call_operand.vmem [shape: f32[4,32,32], index: 3, kind: input, shape index: {}]
  %s4 = inlined_call_operand.vmem [shape: f32[4,6,32], index: 4, kind: input, shape index: {}]
  %s5 = inlined_call_operand.vmem [shape: bf16[4,32,2048], index: 5, kind: input, shape index: {}]
  %s6 = inlined_call_operand.vmem [shape: f32[4,1,2048], index: 6, kind: input, shape index: {}]
  %s7 = inlined_call_operand.vmem [shape: bf16[4,2048,32], index: 7, kind: input, shape index: {}]
  %s8 = inlined_call_operand.hbm [shape: f32[32,32], index: 8, kind: output, shape index: {}]
  %s9 = sld [smem:[#allocation0]]
  $region73: #{spatial_encoder_forward.1} parent=0
    _
  %s11 = ssub.s32 1, %s9
  %s12 = scalar_select 0, %s11, %s9
  $region1: #{spatial_encoder_forward.1} parent=0
    #allocation3 [shape = 'u8[16384]{0}', space=vmem, size = 0x4000, scoped, tag = 'output window, operand 0, single buffered']
    #allocation4 [shape = 's32[2]{0}', space=sflag, size = 0x8, scoped, tag = 'scoped memory for spatial_encoder_forward.1']
    %13 = vsyncpa [#allocation4], 0
    loop: start=0, step=1, limit=6
    $region2: #{spatial_encoder_forward.1} parent=1 // loop_pre_header
      _
    $region3: #{spatial_encoder_forward.1} parent=1 // loop_header
      %s15 = sphi 0, %s19
      %p16 = scmp.ge.s32.totalorder %s15, 6
      %s23 = sphi 0, %s23
      %s25 = sphi 0, %s23
      %s26 = sphi 0, %s25
      %s40 = sphi 0, %s26
      %s46 = sphi 0, %s48
      %s49 = sphi 0, %s46
      %s50 = sphi 0, %s49
      %s66 = sphi 0, %s50
      %s72 = sphi 0, %s74
      %s75 = sphi 0, %s72
      %s76 = sphi 0, %s75
      %s92 = sphi 0, %s76
      %s98 = sphi 0, %s100
      %s101 = sphi 0, %s98
      %s102 = sphi 0, %s101
      %s118 = sphi 0, %s102
      %s124 = sphi 0, %s126
      %s127 = sphi 0, %s124
      %s128 = sphi 0, %s127
      %s144 = sphi 0, %s128
      %s150 = sphi 0, %s152
      %s153 = sphi 0, %s150
      %s154 = sphi 0, %s153
      %s170 = sphi 0, %s154
      %s176 = sphi 0, %s178
      %s179 = sphi 0, %s176
      %s180 = sphi 0, %s179
      %s196 = sphi 0, %s180
      %s202 = sphi 0, %s204
      %s205 = sphi 0, %s202
      %s206 = sphi 0, %s205
      %s222 = sphi 0, %s206
      %s226 = sphi 0, %s226
      %s228 = sphi 0, %s226
      %s229 = sphi 0, %s228
      %s243 = sphi 0, %s229
    $region4: #{spatial_encoder_forward.1} parent=1 // loop_header_branch
      %18 = sbr.rel (%p16) target = $region8
    $region5: #{spatial_encoder_forward.1} parent=1 // loop_body
      %s20 = ssub.s32 %s15, 1
      %s21 = ssub.s32 %s15, 2
      %s22 = sadd.s32 %s15, 1
      %s24 = sadd.s32 %s23, 1
      %p27 = scmp.eq.s32.totalorder %s15, 3
      %p28 = scmp.ne.s32.totalorder %s23, %s25
      %p29 = scmp.eq.s32.totalorder %s15, 0
      %p30 = por %p28, %p29
      %p31 = scmp.ne.s32.totalorder %s23, %s25
      %p32 = scmp.eq.s32.totalorder %s20, 3
      %p33 = por %p31, %p32
      %p34 = scmp.ne.s32.totalorder %s25, %s26
      %p35 = scmp.eq.s32.totalorder %s20, 0
      %p36 = por %p34, %p35
      %p37 = scmp.ne.s32.totalorder %s25, %s26
      %p38 = scmp.eq.s32.totalorder %s21, 3
      %p39 = por %p37, %p38
      %p41 = scmp.ne.s32.totalorder %s26, %s40
      %p42 = scmp.eq.s32.totalorder %s21, 0
      %p43 = por %p41, %p42
      %s44 = ssub.s32 %s15, %s22
      %p45 = scmp.eq.s32.totalorder %s44, 0
      %s47 = sadd.s32 %s46, 1
      %s48 = scalar_select %p45, %s46, %s47
      %p51 = pneg %p45
      %p52 = scmp.eq.s32.totalorder %s15, 3
      %p53 = por %p51, %p52
      %p54 = scmp.ne.s32.totalorder %s46, %s49
      %p55 = scmp.eq.s32.totalorder %s15, 0
      %p56 = por %p54, %p55
      %p57 = scmp.ne.s32.totalorder %s46, %s49
      %p58 = scmp.eq.s32.totalorder %s20, 3
      %p59 = por %p57, %p58
      %p60 = scmp.ne.s32.totalorder %s49, %s50
      %p61 = scmp.eq.s32.totalorder %s20, 0
      %p62 = por %p60, %p61
      %p63 = scmp.ne.s32.totalorder %s49, %s50
      %p64 = scmp.eq.s32.totalorder %s21, 3
      %p65 = por %p63, %p64
      %p67 = scmp.ne.s32.totalorder %s50, %s66
      %p68 = scmp.eq.s32.totalorder %s21, 0
      %p69 = por %p67, %p68
      %s70 = ssub.s32 %s15, %s22
      %p71 = scmp.eq.s32.totalorder %s70, 0
      %s73 = sadd.s32 %s72, 1
      %s74 = scalar_select %p71, %s72, %s73
      %p77 = pneg %p71
      %p78 = scmp.eq.s32.totalorder %s15, 3
      %p79 = por %p77, %p78
      %p80 = scmp.ne.s32.totalorder %s72, %s75
      %p81 = scmp.eq.s32.totalorder %s15, 0
      %p82 = por %p80, %p81
      %p83 = scmp.ne.s32.totalorder %s72, %s75
      %p84 = scmp.eq.s32.totalorder %s20, 3
      %p85 = por %p83, %p84
      %p86 = scmp.ne.s32.totalorder %s75, %s76
      %p87 = scmp.eq.s32.totalorder %s20, 0
      %p88 = por %p86, %p87
      %p89 = scmp.ne.s32.totalorder %s75, %s76
      %p90 = scmp.eq.s32.totalorder %s21, 3
      %p91 = por %p89, %p90
      %p93 = scmp.ne.s32.totalorder %s76, %s92
      %p94 = scmp.eq.s32.totalorder %s21, 0
      %p95 = por %p93, %p94
      %s96 = ssub.s32 %s15, %s22
      %p97 = scmp.eq.s32.totalorder %s96, 0
      %s99 = sadd.s32 %s98, 1
      %s100 = scalar_select %p97, %s98, %s99
      %p103 = pneg %p97
      %p104 = scmp.eq.s32.totalorder %s15, 3
      %p105 = por %p103, %p104
      %p106 = scmp.ne.s32.totalorder %s98, %s101
      %p107 = scmp.eq.s32.totalorder %s15, 0
      %p108 = por %p106, %p107
      %p109 = scmp.ne.s32.totalorder %s98, %s101
      %p110 = scmp.eq.s32.totalorder %s20, 3
      %p111 = por %p109, %p110
      %p112 = scmp.ne.s32.totalorder %s101, %s102
      %p113 = scmp.eq.s32.totalorder %s20, 0
      %p114 = por %p112, %p113
      %p115 = scmp.ne.s32.totalorder %s101, %s102
      %p116 = scmp.eq.s32.totalorder %s21, 3
      %p117 = por %p115, %p116
      %p119 = scmp.ne.s32.totalorder %s102, %s118
      %p120 = scmp.eq.s32.totalorder %s21, 0
      %p121 = por %p119, %p120
      %s122 = ssub.s32 %s15, %s22
      %p123 = scmp.eq.s32.totalorder %s122, 0
      %s125 = sadd.s32 %s124, 1
      %s126 = scalar_select %p123, %s124, %s125
      %p129 = pneg %p123
      %p130 = scmp.eq.s32.totalorder %s15, 3
      %p131 = por %p129, %p130
      %p132 = scmp.ne.s32.totalorder %s124, %s127
      %p133 = scmp.eq.s32.totalorder %s15, 0
      %p134 = por %p132, %p133
      %p135 = scmp.ne.s32.totalorder %s124, %s127
      %p136 = scmp.eq.s32.totalorder %s20, 3
      %p137 = por %p135, %p136
      %p138 = scmp.ne.s32.totalorder %s127, %s128
      %p139 = scmp.eq.s32.totalorder %s20, 0
      %p140 = por %p138, %p139
      %p141 = scmp.ne.s32.totalorder %s127, %s128
      %p142 = scmp.eq.s32.totalorder %s21, 3
      %p143 = por %p141, %p142
      %p145 = scmp.ne.s32.totalorder %s128, %s144
      %p146 = scmp.eq.s32.totalorder %s21, 0
      %p147 = por %p145, %p146
      %s148 = ssub.s32 %s15, %s22
      %p149 = scmp.eq.s32.totalorder %s148, 0
      %s151 = sadd.s32 %s150, 1
      %s152 = scalar_select %p149, %s150, %s151
      %p155 = pneg %p149
      %p156 = scmp.eq.s32.totalorder %s15, 3
      %p157 = por %p155, %p156
      %p158 = scmp.ne.s32.totalorder %s150, %s153
      %p159 = scmp.eq.s32.totalorder %s15, 0
      %p160 = por %p158, %p159
      %p161 = scmp.ne.s32.totalorder %s150, %s153
      %p162 = scmp.eq.s32.totalorder %s20, 3
      %p163 = por %p161, %p162
      %p164 = scmp.ne.s32.totalorder %s153, %s154
      %p165 = scmp.eq.s32.totalorder %s20, 0
      %p166 = por %p164, %p165
      %p167 = scmp.ne.s32.totalorder %s153, %s154
      %p168 = scmp.eq.s32.totalorder %s21, 3
      %p169 = por %p167, %p168
      %p171 = scmp.ne.s32.totalorder %s154, %s170
      %p172 = scmp.eq.s32.totalorder %s21, 0
      %p173 = por %p171, %p172
      %s174 = ssub.s32 %s15, %s22
      %p175 = scmp.eq.s32.totalorder %s174, 0
      %s177 = sadd.s32 %s176, 1
      %s178 = scalar_select %p175, %s176, %s177
      %p181 = pneg %p175
      %p182 = scmp.eq.s32.totalorder %s15, 3
      %p183 = por %p181, %p182
      %p184 = scmp.ne.s32.totalorder %s176, %s179
      %p185 = scmp.eq.s32.totalorder %s15, 0
      %p186 = por %p184, %p185
      %p187 = scmp.ne.s32.totalorder %s176, %s179
      %p188 = scmp.eq.s32.totalorder %s20, 3
      %p189 = por %p187, %p188
      %p190 = scmp.ne.s32.totalorder %s179, %s180
      %p191 = scmp.eq.s32.totalorder %s20, 0
      %p192 = por %p190, %p191
      %p193 = scmp.ne.s32.totalorder %s179, %s180
      %p194 = scmp.eq.s32.totalorder %s21, 3
      %p195 = por %p193, %p194
      %p197 = scmp.ne.s32.totalorder %s180, %s196
      %p198 = scmp.eq.s32.totalorder %s21, 0
      %p199 = por %p197, %p198
      %s200 = ssub.s32 %s15, %s22
      %p201 = scmp.eq.s32.totalorder %s200, 0
      %s203 = sadd.s32 %s202, 1
      %s204 = scalar_select %p201, %s202, %s203
      %p207 = pneg %p201
      %p208 = scmp.eq.s32.totalorder %s15, 3
      %p209 = por %p207, %p208
      %p210 = scmp.ne.s32.totalorder %s202, %s205
      %p211 = scmp.eq.s32.totalorder %s15, 0
      %p212 = por %p210, %p211
      %p213 = scmp.ne.s32.totalorder %s202, %s205
      %p214 = scmp.eq.s32.totalorder %s20, 3
      %p215 = por %p213, %p214
      %p216 = scmp.ne.s32.totalorder %s205, %s206
      %p217 = scmp.eq.s32.totalorder %s20, 0
      %p218 = por %p216, %p217
      %p219 = scmp.ne.s32.totalorder %s205, %s206
      %p220 = scmp.eq.s32.totalorder %s21, 3
      %p221 = por %p219, %p220
      %p223 = scmp.ne.s32.totalorder %s206, %s222
      %p224 = scmp.eq.s32.totalorder %s21, 0
      %p225 = por %p223, %p224
      %s227 = sadd.s32 %s226, 1
      %p230 = scmp.eq.s32.totalorder %s15, 3
      %p231 = scmp.ne.s32.totalorder %s226, %s228
      %p232 = scmp.eq.s32.totalorder %s15, 0
      %p233 = por %p231, %p232
      %p234 = scmp.ne.s32.totalorder %s226, %s228
      %p235 = scmp.eq.s32.totalorder %s20, 3
      %p236 = por %p234, %p235
      %p237 = scmp.ne.s32.totalorder %s228, %s229
      %p238 = scmp.eq.s32.totalorder %s20, 0
      %p239 = por %p237, %p238
      %p240 = scmp.ne.s32.totalorder %s228, %s229
      %p241 = scmp.eq.s32.totalorder %s21, 3
      %p242 = por %p240, %p241
      %p244 = scmp.ne.s32.totalorder %s229, %s243
      %p245 = scmp.eq.s32.totalorder %s21, 0
      %p246 = por %p244, %p245
      %p247 = scmp.le.s32.totalorder 1, %s15
      %p248 = scmp.lt.s32.totalorder %s15, 5
      %p249 = pnand %p247, %p248
      %p250 = pneg %p249
      // Predicated region
      $region9: #{spatial_encoder_forward.1} parent=5 // pred_check
        _
      $region10: #{spatial_encoder_forward.1} parent=5 // pred_check_branch
        %252 = sbr.rel (%p249) target = $region12
      $region11: #{spatial_encoder_forward.1} parent=5 // pred_region
        %s253 = ssub.s32 %s15, 1
        // Predicated region
        $region13: #{spatial_encoder_forward.1} parent=11 // pred_check
          %p254 = pneg %p36
        $region14: #{spatial_encoder_forward.1} parent=11 // pred_check_branch
          %256 = sbr.rel (%p254) target = $region16
        $region15: #{spatial_encoder_forward.1} parent=11 // pred_region
          _
        $region16: #{spatial_encoder_forward.1} parent=11 // pred_fallthru
          _
      $region12: #{spatial_encoder_forward.1} parent=5 // pred_fallthru
        _
      %p257 = scmp.lt.s32.totalorder %s15, 4
      // Predicated region
      $region17: #{spatial_encoder_forward.1} parent=5 // pred_check
        %p258 = pneg %p257
      $region18: #{spatial_encoder_forward.1} parent=5 // pred_check_branch
        %260 = sbr.rel (%p258) target = $region20
      $region19: #{spatial_encoder_forward.1} parent=5 // pred_region
        // Predicated region
        $region21: #{spatial_encoder_forward.1} parent=19 // pred_check
          %p261 = pneg %p56
        $region22: #{spatial_encoder_forward.1} parent=19 // pred_check_branch
          %263 = sbr.rel (%p261) target = $region24
        $region23: #{spatial_encoder_forward.1} parent=19 // pred_region
          %p264 = scmp.lt.s32.totalorder %s15, 3
          %s265 = scalar_select %p264, %s15, 3
          %s266 = smul.addr %s265, 4
          %s267 = smul.addr %s266, 8
          %s268 = scalar_lea.vmem %s1, %s267
        $region24: #{spatial_encoder_forward.1} parent=19 // pred_fallthru
          _
        // Predicated region
        $region25: #{spatial_encoder_forward.1} parent=19 // pred_check
          %p269 = pneg %p82
        $region26: #{spatial_encoder_forward.1} parent=19 // pred_check_branch
          %271 = sbr.rel (%p269) target = $region28
        $region27: #{spatial_encoder_forward.1} parent=19 // pred_region
          %p272 = scmp.lt.s32.totalorder %s15, 3
          %s273 = scalar_select %p272, %s15, 3
          %s274 = scalar_lea.vmem %s2, %s273
        $region28: #{spatial_encoder_forward.1} parent=19 // pred_fallthru
          _
        // Predicated region
        $region29: #{spatial_encoder_forward.1} parent=19 // pred_check
          %p275 = pneg %p108
        $region30: #{spatial_encoder_forward.1} parent=19 // pred_check_branch
          %277 = sbr.rel (%p275) target = $region32
        $region31: #{spatial_encoder_forward.1} parent=19 // pred_region
          %p278 = scmp.lt.s32.totalorder %s15, 3
          %s279 = scalar_select %p278, %s15, 3
          %s280 = smul.addr %s279, 4
          %s281 = smul.addr %s280, 8
          %s282 = scalar_lea.vmem %s3, %s281
        $region32: #{spatial_encoder_forward.1} parent=19 // pred_fallthru
          _
        // Predicated region
        $region33: #{spatial_encoder_forward.1} parent=19 // pred_check
          %p283 = pneg %p134
        $region34: #{spatial_encoder_forward.1} parent=19 // pred_check_branch
          %285 = sbr.rel (%p283) target = $region36
        $region35: #{spatial_encoder_forward.1} parent=19 // pred_region
          %p286 = scmp.lt.s32.totalorder %s15, 3
          %s287 = scalar_select %p286, %s15, 3
          %s288 = smul.addr %s287, 8
          %s289 = scalar_lea.vmem %s4, %s288
        $region36: #{spatial_encoder_forward.1} parent=19 // pred_fallthru
          _
        // Predicated region
        $region37: #{spatial_encoder_forward.1} parent=19 // pred_check
          %p290 = pneg %p160
        $region38: #{spatial_encoder_forward.1} parent=19 // pred_check_branch
          %292 = sbr.rel (%p290) target = $region40
        $region39: #{spatial_encoder_forward.1} parent=19 // pred_region
          %p293 = scmp.lt.s32.totalorder %s15, 3
          %s294 = scalar_select %p293, %s15, 3
          %s295 = smul.addr %s294, 64
          %s296 = smul.addr %s295, 4
          %s297 = scalar_lea.vmem %s5, %s296
        $region40: #{spatial_encoder_forward.1} parent=19 // pred_fallthru
          _
        // Predicated region
        $region41: #{spatial_encoder_forward.1} parent=19 // pred_check
          %p298 = pneg %p186
        $region42: #{spatial_encoder_forward.1} parent=19 // pred_check_branch
          %300 = sbr.rel (%p298) target = $region44
        $region43: #{spatial_encoder_forward.1} parent=19 // pred_region
          %p301 = scmp.lt.s32.totalorder %s15, 3
          %s302 = scalar_select %p301, %s15, 3
          %s303 = smul.addr %s302, 16
          %s304 = scalar_lea.vmem %s6, %s303
        $region44: #{spatial_encoder_forward.1} parent=19 // pred_fallthru
          _
        // Predicated region
        $region45: #{spatial_encoder_forward.1} parent=19 // pred_check
          %p305 = pneg %p212
        $region46: #{spatial_encoder_forward.1} parent=19 // pred_check_branch
          %307 = sbr.rel (%p305) target = $region48
        $region47: #{spatial_encoder_forward.1} parent=19 // pred_region
          %p308 = scmp.lt.s32.totalorder %s15, 3
          %s309 = scalar_select %p308, %s15, 3
          %s310 = smul.addr %s309, 256
          %s311 = smul.addr %s310, 4
          %s312 = scalar_lea.vmem %s7, %s311
        $region48: #{spatial_encoder_forward.1} parent=19 // pred_fallthru
          _
      $region20: #{spatial_encoder_forward.1} parent=5 // pred_fallthru
        _
      %p313 = scmp.le.s32.totalorder 1, %s15
      %p314 = scmp.lt.s32.totalorder %s15, 5
      %p315 = pnand %p313, %p314
      %p316 = pneg %p315
      // Predicated region
      $region49: #{spatial_encoder_forward.1} parent=5 // pred_check
        _
      $region50: #{spatial_encoder_forward.1} parent=5 // pred_check_branch
        %318 = sbr.rel (%p315) target = $region52
      $region51: #{spatial_encoder_forward.1} parent=5 // pred_region
        %s319 = ssub.s32 %s15, 1
        %p320 = pneg %p36
        %p321 = pneg %p33
        %p322 = scmp.lt.s32.totalorder %s20, 3
        %s323 = scalar_select %p322, %s20, 3
        %s324 = smul.addr %s323, 4
        %s325 = smul.addr %s324, 8
        %s326 = scalar_lea.vmem %s1, %s325
        %p327 = pneg %p62
        %p328 = pneg %p59
        %p329 = scmp.lt.s32.totalorder %s20, 3
        %s330 = scalar_select %p329, %s20, 3
        %s331 = scalar_lea.vmem %s2, %s330
        %p332 = pneg %p88
        %p333 = pneg %p85
        %p334 = scmp.lt.s32.totalorder %s20, 3
        %s335 = scalar_select %p334, %s20, 3
        %s336 = smul.addr %s335, 4
        %s337 = smul.addr %s336, 8
        %s338 = scalar_lea.vmem %s3, %s337
        %p339 = pneg %p114
        %p340 = pneg %p111
        %p341 = scmp.lt.s32.totalorder %s20, 3
        %s342 = scalar_select %p341, %s20, 3
        %s343 = smul.addr %s342, 8
        %s344 = scalar_lea.vmem %s4, %s343
        %p345 = pneg %p140
        %p346 = pneg %p137
        %p347 = scmp.lt.s32.totalorder %s20, 3
        %s348 = scalar_select %p347, %s20, 3
        %s349 = smul.addr %s348, 64
        %s350 = smul.addr %s349, 4
        %s351 = scalar_lea.vmem %s5, %s350
        %p352 = pneg %p166
        %p353 = pneg %p163
        %p354 = scmp.lt.s32.totalorder %s20, 3
        %s355 = scalar_select %p354, %s20, 3
        %s356 = smul.addr %s355, 16
        %s357 = scalar_lea.vmem %s6, %s356
        %p358 = pneg %p192
        %p359 = pneg %p189
        %p360 = scmp.lt.s32.totalorder %s20, 3
        %s361 = scalar_select %p360, %s20, 3
        %s362 = smul.addr %s361, 256
        %s363 = smul.addr %s362, 4
        %s364 = scalar_lea.vmem %s7, %s363
        %p365 = pneg %p218
        %p366 = pneg %p215
        %p367 = pneg %p239
        %p368 = pneg %p236
        %p369 = scmp.lt.s32.totalorder %s20, 3
        %s370 = scalar_select %p369, %s20, 3
        %s371 = smul.addr %s370, 4
        %s372 = smul.addr %s371, 8
        %s373 = scalar_lea.vmem %s1, %s372
        %p374 = scmp.lt.s32.totalorder %s20, 3
        %s375 = scalar_select %p374, %s20, 3
        %s376 = scalar_lea.vmem %s2, %s375
        %p377 = scmp.lt.s32.totalorder %s20, 3
        %s378 = scalar_select %p377, %s20, 3
        %s379 = smul.addr %s378, 4
        %s380 = smul.addr %s379, 8
        %s381 = scalar_lea.vmem %s3, %s380
        %p382 = scmp.lt.s32.totalorder %s20, 3
        %s383 = scalar_select %p382, %s20, 3
        %s384 = smul.addr %s383, 8
        %s385 = scalar_lea.vmem %s4, %s384
        %p386 = scmp.lt.s32.totalorder %s20, 3
        %s387 = scalar_select %p386, %s20, 3
        %s388 = smul.addr %s387, 64
        %s389 = smul.addr %s388, 4
        %s390 = scalar_lea.vmem %s5, %s389
        %p391 = scmp.lt.s32.totalorder %s20, 3
        %s392 = scalar_select %p391, %s20, 3
        %s393 = smul.addr %s392, 16
        %s394 = scalar_lea.vmem %s6, %s393
        %p395 = scmp.lt.s32.totalorder %s20, 3
        %s396 = scalar_select %p395, %s20, 3
        %s397 = smul.addr %s396, 256
        %s398 = smul.addr %s397, 4
        %s399 = scalar_lea.vmem %s7, %s398
        %p401 = scmp.eq.s32.totalorder %s20, 0
        // Predicated region
        $region53: #{spatial_encoder_forward.1} parent=51 // pred_check
          %p402 = pneg %p401
        $region54: #{spatial_encoder_forward.1} parent=51 // pred_check_branch
          %404 = sbr.rel (%p402) target = $region56
        $region55: #{spatial_encoder_forward.1} parent=51 // pred_region
          %v405 = vld [vmem:[%s0] sm:$0xff]
          %v406 = vld [vmem:[%s0 + $0x8] sm:$0xff]
          %v407 = vld [vmem:[%s0 + $0x10] sm:$0xff]
          %v408 = vld [vmem:[%s0 + $0x18] sm:$0xff]
          %vm409 = vcmask 261120
          %410 = vst.msk [vmem:[#allocation2] sm:$0xff] %vm409, %v405
          %411 = vst.msk [vmem:[#allocation2 + $0x8] sm:$0xff] %vm409, %v406
          %412 = vst.msk [vmem:[#allocation2 + $0x10] sm:$0xff] %vm409, %v407
          %413 = vst.msk [vmem:[#allocation2 + $0x18] sm:$0xff] %vm409, %v408
        $region56: #{spatial_encoder_forward.1} parent=51 // pred_fallthru
          _
        %v414 = vld [vmem:[#allocation2] sm:$0xff]
        %v415 = vld [vmem:[#allocation2 + $0x8] sm:$0xff]
        %v416 = vld [vmem:[#allocation2 + $0x10] sm:$0xff]
        %v417 = vld [vmem:[#allocation2 + $0x18] sm:$0xff]
        %v418 = vld [vmem:[%s385] sm:$0x3f]
        %v419 = vld [vmem:[%s373] sm:$0xff]
        %v420 = vld [vmem:[%s373 + $0x8] sm:$0xff]
        %v421 = vld [vmem:[%s373 + $0x10] sm:$0xff]
        %v422 = vld [vmem:[%s373 + $0x18] sm:$0xff]
        %v423 = vld [vmem:[%s376] sm:$0x1]
        %v425 = vlaneseq
        %v426 = vshrl.u32 %v425, 7
        %v427 = vsub.s32 0, %v426
        %v428 = vrot.slane %v423, %v427
        %vm430 = vcmask 261120
        %v432 = vsel %vm430, %v414, 0
        %v435 = vsel %vm430, %v415, 0
        %v438 = vsel %vm430, %v416, 0
        %v441 = vsel %vm430, %v417, 0
        %443 = vmatprep.subr.mxu0 0.0
        %444 = vmatpush1.msra.mxu0 %v419
        %445 = vmatprep.subr.mxu0 0.0
        %446 = vmatpush1.msra.mxu0 %v420
        %447 = vmatprep.subr.mxu0 0.0
        %448 = vmatpush1.msra.mxu0 %v421
        %449 = vmatprep.subr.mxu0 0.0
        %450 = vmatpush1.msra.mxu0 %v422
        %451 = vmatprep.subr.mxu0 0.0
        %452 = vmatpush1.msra.mxu0 0.0
        %453 = vmatprep.subr.mxu0 0.0
        %454 = vmatpush1.msra.mxu0 0.0
        %455 = vmatprep.subr.mxu0 0.0
        %456 = vmatpush1.msra.mxu0 0.0
        %457 = vmatprep.subr.mxu0 0.0
        %458 = vmatpush1.msra.mxu0 0.0
        %459 = vmatprep.subr.mxu0 0.0
        %460 = vmatpush1.msra.mxu0 0.0
        %461 = vmatprep.subr.mxu0 0.0
        %462 = vmatpush1.msra.mxu0 0.0
        %463 = vmatprep.subr.mxu0 0.0
        %464 = vmatpush1.msra.mxu0 0.0
        %465 = vmatprep.subr.mxu0 0.0
        %466 = vmatpush1.msra.mxu0 0.0
        %467 = vmatprep.subr.mxu0 0.0
        %468 = vmatpush1.msra.mxu0 0.0
        %469 = vmatprep.subr.mxu0 0.0
        %470 = vmatpush1.msra.mxu0 0.0
        %471 = vmatprep.subr.mxu0 0.0
        %472 = vmatpush1.msra.mxu0 0.0
        %473 = vmatprep.subr.mxu0 0.0
        %474 = vmatpush1.msra.mxu0 0.0
        %475 = vmatprep.subr.mxu0 0.0
        %476 = vmatpush1.msra.mxu0 0.0
        %477 = vmatprep.subr.mxu0 0.0
        %478 = vmatpush1.msra.mxu0 0.0
        %479 = vmatprep.subr.mxu0 0.0
        %480 = vmatpush1.msra.mxu0 0.0
        %481 = vmatprep.subr.mxu0 0.0
        %482 = vmatpush1.msra.mxu0 0.0
        %483 = vmatprep.subr.mxu0 0.0
        %484 = vmatpush1.msra.mxu0 0.0
        %485 = vmatprep.subr.mxu0 0.0
        %486 = vmatpush1.msra.mxu0 0.0
        %487 = vmatprep.subr.mxu0 0.0
        %488 = vmatpush1.msra.mxu0 0.0
        %489 = vmatprep.subr.mxu0 0.0
        %490 = vmatpush1.msra.mxu0 0.0
        %491 = vmatprep.subr.mxu0 0.0
        %492 = vmatpush1.msra.mxu0 0.0
        %493 = vmatprep.subr.mxu0 0.0
        %494 = vmatpush1.msra.mxu0 0.0
        %495 = vmatprep.subr.mxu0 0.0
        %496 = vmatpush1.msra.mxu0 0.0
        %497 = vmatprep.subr.mxu0 0.0
        %498 = vmatpush1.msra.mxu0 0.0
        %499 = vmatprep.subr.mxu0 0.0
        %500 = vmatpush1.msra.mxu0 0.0
        %501 = vmatprep.subr.mxu0 0.0
        %502 = vmatpush1.msra.mxu0 0.0
        %503 = vmatprep.subr.mxu0 0.0
        %504 = vmatpush1.msra.mxu0 0.0
        %505 = vmatprep.subr.mxu0 0.0
        %506 = vmatpush1.msra.mxu0 0.0
        %507 = vmatprep.mubr.f32.mxu0 0.0
        %508 = vmatmul.mubr.f32.gmra.mrb[0].mxu0 %v432
        %v509 = vpop.f32.mrb[0].mxu0
        %v510 = vadd.f32 %v428, %v509
        %v511 = vpop.f32.mrb[0].mxu0
        %512 = vmatprep.mubr.f32.mxu0 0.0
        %513 = vmatmul.mubr.f32.gmra.mrb[0].mxu0 %v435
        %v514 = vpop.f32.mrb[0].mxu0
        %v515 = vadd.f32 %v428, %v514
        %v516 = vpop.f32.mrb[0].mxu0
        %517 = vmatprep.mubr.f32.mxu0 0.0
        %518 = vmatmul.mubr.f32.gmra.mrb[0].mxu0 %v438
        %v519 = vpop.f32.mrb[0].mxu0
        %v520 = vadd.f32 %v428, %v519
        %v521 = vpop.f32.mrb[0].mxu0
        %522 = vmatprep.mubr.f32.mxu0 0.0
        %523 = vmatmul.mubr.f32.gmra.mrb[0].mxu0 %v441
        %v524 = vpop.f32.mrb[0].mxu0
        %v525 = vadd.f32 %v428, %v524
        %v526 = vpop.f32.mrb[0].mxu0
        %527 = vdwg.mxu0
        %v528 = vmul.f32 %v510, 0.5
        %v529 = vmul.f32 %v515, 0.5
        %v530 = vmul.f32 %v520, 0.5
        %v531 = vmul.f32 %v525, 0.5
        %534 = vrot.lane.b32.xlu0 %v510, 96
        %v535 = vpop.permute.xlu0 %534
        %536 = vrot.lane.b32.xlu0 %v515, 96
        %v537 = vpop.permute.xlu0 %536
        %vm538 = vcmask 31744
        %v540 = vsel %vm538, %v528, 0
        %v543 = vsel %vm538, %v529, 0
        %v545 = vsel %vm538, %v535, 0
        %v547 = vsel %vm538, %v537, 0
        %549 = vmatprep.subr.mxu0 0.0
        %550 = vmatpush1.xpose.msra.mxu0 %v545
        %551 = vmatprep.subr.mxu0 0.0
        %552 = vmatpush1.xpose.msra.mxu0 %v547
        %553 = vmatprep.subr.mxu0 0.0
        %554 = vmatpush1.xpose.msra.mxu0 0.0
        %555 = vmatprep.subr.mxu0 0.0
        %556 = vmatpush1.xpose.msra.mxu0 0.0
        %557 = vmatprep.subr.mxu0 0.0
        %558 = vmatpush1.xpose.msra.mxu0 0.0
        %559 = vmatprep.subr.mxu0 0.0
        %560 = vmatpush1.xpose.msra.mxu0 0.0
        %561 = vmatprep.subr.mxu0 0.0
        %562 = vmatpush1.xpose.msra.mxu0 0.0
        %563 = vmatprep.subr.mxu0 0.0
        %564 = vmatpush1.xpose.msra.mxu0 0.0
        %565 = vmatprep.subr.mxu0 0.0
        %566 = vmatpush1.xpose.msra.mxu0 0.0
        %567 = vmatprep.subr.mxu0 0.0
        %568 = vmatpush1.xpose.msra.mxu0 0.0
        %569 = vmatprep.subr.mxu0 0.0
        %570 = vmatpush1.xpose.msra.mxu0 0.0
        %571 = vmatprep.subr.mxu0 0.0
        %572 = vmatpush1.xpose.msra.mxu0 0.0
        %573 = vmatprep.subr.mxu0 0.0
        %574 = vmatpush1.xpose.msra.mxu0 0.0
        %575 = vmatprep.subr.mxu0 0.0
        %576 = vmatpush1.xpose.msra.mxu0 0.0
        %577 = vmatprep.subr.mxu0 0.0
        %578 = vmatpush1.xpose.msra.mxu0 0.0
        %579 = vmatprep.subr.mxu0 0.0
        %580 = vmatpush1.xpose.msra.mxu0 0.0
        %581 = vmatprep.subr.mxu0 0.0
        %582 = vmatpush1.xpose.msra.mxu0 0.0
        %583 = vmatprep.subr.mxu0 0.0
        %584 = vmatpush1.xpose.msra.mxu0 0.0
        %585 = vmatprep.subr.mxu0 0.0
        %586 = vmatpush1.xpose.msra.mxu0 0.0
        %587 = vmatprep.subr.mxu0 0.0
        %588 = vmatpush1.xpose.msra.mxu0 0.0
        %589 = vmatprep.subr.mxu0 0.0
        %590 = vmatpush1.xpose.msra.mxu0 0.0
        %591 = vmatprep.subr.mxu0 0.0
        %592 = vmatpush1.xpose.msra.mxu0 0.0
        %593 = vmatprep.subr.mxu0 0.0
        %594 = vmatpush1.xpose.msra.mxu0 0.0
        %595 = vmatprep.subr.mxu0 0.0
        %596 = vmatpush1.xpose.msra.mxu0 0.0
        %597 = vmatprep.subr.mxu0 0.0
        %598 = vmatpush1.xpose.msra.mxu0 0.0
        %599 = vmatprep.subr.mxu0 0.0
        %600 = vmatpush1.xpose.msra.mxu0 0.0
        %601 = vmatprep.subr.mxu0 0.0
        %602 = vmatpush1.xpose.msra.mxu0 0.0
        %603 = vmatprep.subr.mxu0 0.0
        %604 = vmatpush1.xpose.msra.mxu0 0.0
        %605 = vmatprep.subr.mxu0 0.0
        %606 = vmatpush1.xpose.msra.mxu0 0.0
        %607 = vmatprep.subr.mxu0 0.0
        %608 = vmatpush1.xpose.msra.mxu0 0.0
        %609 = vmatprep.subr.mxu0 0.0
        %610 = vmatpush1.xpose.msra.mxu0 0.0
        %611 = vmatprep.subr.mxu0 0.0
        %612 = vmatpush1.xpose.msra.mxu0 0.0
        %613 = vmatprep.mubr.f32.mxu0 0.0
        %614 = vmatmul.mubr.f32.gmra.mrb[0].mxu0 %v540
        %v615 = vpop.f32.mrb[0].mxu0
        %v616 = vadd.f32 0.0, %v615
        %v617 = vpop.f32.mrb[0].mxu0
        %618 = vmatprep.mubr.f32.mxu0 0.0
        %619 = vmatmul.mubr.f32.gmra.mrb[0].mxu0 %v543
        %v620 = vpop.f32.mrb[0].mxu0
        %v621 = vadd.f32 0.0, %v620
        %v622 = vpop.f32.mrb[0].mxu0
        %623 = vdwg.mxu0
        %vm624 = vcmask 130048
        %v625 = vsel %vm624, %v616, -inf
        %626 = vmax.xlane.f32.xlu0 %v625
        %v627 = vpop.xlane.xlu0 %626
        %v628 = vsel %vm624, %v621, -inf
        %629 = vmax.xlane.f32.xlu0 %v628
        %v630 = vpop.xlane.xlu0 %629
        %v631 = vsub.f32 %v616, %v627
        %v632 = vsub.f32 %v621, %v630
        %v633 = vmul.f32 %v631, 1.442695
        %v634 = vpow.pop %v633
        %v635 = vmul.f32 %v632, 1.442695
        %v636 = vpow.pop %v635
        %v637 = vsel %vm624, %v634, 0.0
        %638 = vadd.xlane.f32.xlu0 %v637
        %v639 = vpop.xlane.xlu0 %638
        %v640 = vsel %vm624, %v636, 0.0
        %641 = vadd.xlane.f32.xlu0 %v640
        %v642 = vpop.xlane.xlu0 %641
        %v643 = vrcp.pop %v639
        %v644 = vrcp.pop %v642
        %v645 = vmul.f32 %v634, %v643
        %v646 = vmul.f32 %v636, %v644
        %647 = vrot.lane.b32.xlu0 %v510, 64
        %v648 = vpop.permute.xlu0 %647
        %649 = vrot.lane.b32.xlu0 %v515, 64
        %v650 = vpop.permute.xlu0 %649
        %v654 = vsel %vm624, %v645, 0
        %v657 = vsel %vm624, %v646, 0
        %659 = vmatprep.subr.mxu0 0.0
        %660 = vmatpush1.msra.mxu0 %v648
        %661 = vmatprep.subr.mxu0 0.0
        %662 = vmatpush1.msra.mxu0 %v650
        %663 = vmatprep.subr.mxu0 0.0
        %664 = vmatpush1.msra.mxu0 0.0
        %665 = vmatprep.subr.mxu0 0.0
        %666 = vmatpush1.msra.mxu0 0.0
        %667 = vmatprep.subr.mxu0 0.0
        %668 = vmatpush1.msra.mxu0 0.0
        %669 = vmatprep.subr.mxu0 0.0
        %670 = vmatpush1.msra.mxu0 0.0
        %671 = vmatprep.subr.mxu0 0.0
        %672 = vmatpush1.msra.mxu0 0.0
        %673 = vmatprep.subr.mxu0 0.0
        %674 = vmatpush1.msra.mxu0 0.0
        %675 = vmatprep.subr.mxu0 0.0
        %676 = vmatpush1.msra.mxu0 0.0
        %677 = vmatprep.subr.mxu0 0.0
        %678 = vmatpush1.msra.mxu0 0.0
        %679 = vmatprep.subr.mxu0 0.0
        %680 = vmatpush1.msra.mxu0 0.0
        %681 = vmatprep.subr.mxu0 0.0
        %682 = vmatpush1.msra.mxu0 0.0
        %683 = vmatprep.subr.mxu0 0.0
        %684 = vmatpush1.msra.mxu0 0.0
        %685 = vmatprep.subr.mxu0 0.0
        %686 = vmatpush1.msra.mxu0 0.0
        %687 = vmatprep.subr.mxu0 0.0
        %688 = vmatpush1.msra.mxu0 0.0
        %689 = vmatprep.subr.mxu0 0.0
        %690 = vmatpush1.msra.mxu0 0.0
        %691 = vmatprep.subr.mxu0 0.0
        %692 = vmatpush1.msra.mxu0 0.0
        %693 = vmatprep.subr.mxu0 0.0
        %694 = vmatpush1.msra.mxu0 0.0
        %695 = vmatprep.subr.mxu0 0.0
        %696 = vmatpush1.msra.mxu0 0.0
        %697 = vmatprep.subr.mxu0 0.0
        %698 = vmatpush1.msra.mxu0 0.0
        %699 = vmatprep.subr.mxu0 0.0
        %700 = vmatpush1.msra.mxu0 0.0
        %701 = vmatprep.subr.mxu0 0.0
        %702 = vmatpush1.msra.mxu0 0.0
        %703 = vmatprep.subr.mxu0 0.0
        %704 = vmatpush1.msra.mxu0 0.0
        %705 = vmatprep.subr.mxu0 0.0
        %706 = vmatpush1.msra.mxu0 0.0
        %707 = vmatprep.subr.mxu0 0.0
        %708 = vmatpush1.msra.mxu0 0.0
        %709 = vmatprep.subr.mxu0 0.0
        %710 = vmatpush1.msra.mxu0 0.0
        %711 = vmatprep.subr.mxu0 0.0
        %712 = vmatpush1.msra.mxu0 0.0
        %713 = vmatprep.subr.mxu0 0.0
        %714 = vmatpush1.msra.mxu0 0.0
        %715 = vmatprep.subr.mxu0 0.0
        %716 = vmatpush1.msra.mxu0 0.0
        %717 = vmatprep.subr.mxu0 0.0
        %718 = vmatpush1.msra.mxu0 0.0
        %719 = vmatprep.subr.mxu0 0.0
        %720 = vmatpush1.msra.mxu0 0.0
        %721 = vmatprep.subr.mxu0 0.0
        %722 = vmatpush1.msra.mxu0 0.0
        %723 = vmatprep.mubr.f32.mxu0 0.0
        %724 = vmatmul.mubr.f32.gmra.mrb[0].mxu0 %v654
        %v725 = vpop.f32.mrb[0].mxu0
        %v726 = vadd.f32 0.0, %v725
        %v727 = vpop.f32.mrb[0].mxu0
        %728 = vmatprep.mubr.f32.mxu0 0.0
        %729 = vmatmul.mubr.f32.gmra.mrb[0].mxu0 %v657
        %v730 = vpop.f32.mrb[0].mxu0
        %v731 = vadd.f32 0.0, %v730
        %v732 = vpop.f32.mrb[0].mxu0
        %733 = vdwg.mxu0
        %734 = vrot.lane.b32.xlu0 %v528, 124
        %v735 = vpop.permute.xlu0 %734
        %736 = vrot.lane.b32.xlu0 %v529, 124
        %v737 = vpop.permute.xlu0 %736
        %738 = vrot.lane.b32.xlu0 %v510, 92
        %v739 = vpop.permute.xlu0 %738
        %740 = vrot.lane.b32.xlu0 %v515, 92
        %v741 = vpop.permute.xlu0 %740
        %v742 = vsel %vm538, %v735, 0
        %v744 = vsel %vm538, %v737, 0
        %v746 = vsel %vm538, %v739, 0
        %v748 = vsel %vm538, %v741, 0
        %750 = vmatprep.subr.mxu0 0.0
        %751 = vmatpush1.xpose.msra.mxu0 %v746
        %752 = vmatprep.subr.mxu0 0.0
        %753 = vmatpush1.xpose.msra.mxu0 %v748
        %754 = vmatprep.subr.mxu0 0.0
        %755 = vmatpush1.xpose.msra.mxu0 0.0
        %756 = vmatprep.subr.mxu0 0.0
        %757 = vmatpush1.xpose.msra.mxu0 0.0
        %758 = vmatprep.subr.mxu0 0.0
        %759 = vmatpush1.xpose.msra.mxu0 0.0
        %760 = vmatprep.subr.mxu0 0.0
        %761 = vmatpush1.xpose.msra.mxu0 0.0
        %762 = vmatprep.subr.mxu0 0.0
        %763 = vmatpush1.xpose.msra.mxu0 0.0
        %764 = vmatprep.subr.mxu0 0.0
        %765 = vmatpush1.xpose.msra.mxu0 0.0
        %766 = vmatprep.subr.mxu0 0.0
        %767 = vmatpush1.xpose.msra.mxu0 0.0
        %768 = vmatprep.subr.mxu0 0.0
        %769 = vmatpush1.xpose.msra.mxu0 0.0
        %770 = vmatprep.subr.mxu0 0.0
        %771 = vmatpush1.xpose.msra.mxu0 0.0
        %772 = vmatprep.subr.mxu0 0.0
        %773 = vmatpush1.xpose.msra.mxu0 0.0
        %774 = vmatprep.subr.mxu0 0.0
        %775 = vmatpush1.xpose.msra.mxu0 0.0
        %776 = vmatprep.subr.mxu0 0.0
        %777 = vmatpush1.xpose.msra.mxu0 0.0
        %778 = vmatprep.subr.mxu0 0.0
        %779 = vmatpush1.xpose.msra.mxu0 0.0
        %780 = vmatprep.subr.mxu0 0.0
        %781 = vmatpush1.xpose.msra.mxu0 0.0
        %782 = vmatprep.subr.mxu0 0.0
        %783 = vmatpush1.xpose.msra.mxu0 0.0
        %784 = vmatprep.subr.mxu0 0.0
        %785 = vmatpush1.xpose.msra.mxu0 0.0
        %786 = vmatprep.subr.mxu0 0.0
        %787 = vmatpush1.xpose.msra.mxu0 0.0
        %788 = vmatprep.subr.mxu0 0.0
        %789 = vmatpush1.xpose.msra.mxu0 0.0
        %790 = vmatprep.subr.mxu0 0.0
        %791 = vmatpush1.xpose.msra.mxu0 0.0
        %792 = vmatprep.subr.mxu0 0.0
        %793 = vmatpush1.xpose.msra.mxu0 0.0
        %794 = vmatprep.subr.mxu0 0.0
        %795 = vmatpush1.xpose.msra.mxu0 0.0
        %796 = vmatprep.subr.mxu0 0.0
        %797 = vmatpush1.xpose.msra.mxu0 0.0
        %798 = vmatprep.subr.mxu0 0.0
        %799 = vmatpush1.xpose.msra.mxu0 0.0
        %800 = vmatprep.subr.mxu0 0.0
        %801 = vmatpush1.xpose.msra.mxu0 0.0
        %802 = vmatprep.subr.mxu0 0.0
        %803 = vmatpush1.xpose.msra.mxu0 0.0
        %804 = vmatprep.subr.mxu0 0.0
        %805 = vmatpush1.xpose.msra.mxu0 0.0
        %806 = vmatprep.subr.mxu0 0.0
        %807 = vmatpush1.xpose.msra.mxu0 0.0
        %808 = vmatprep.subr.mxu0 0.0
        %809 = vmatpush1.xpose.msra.mxu0 0.0
        %810 = vmatprep.subr.mxu0 0.0
        %811 = vmatpush1.xpose.msra.mxu0 0.0
        %812 = vmatprep.subr.mxu0 0.0
        %813 = vmatpush1.xpose.msra.mxu0 0.0
        %814 = vmatprep.mubr.f32.mxu0 0.0
        %815 = vmatmul.mubr.f32.gmra.mrb[0].mxu0 %v742
        %v816 = vpop.f32.mrb[0].mxu0
        %v817 = vadd.f32 0.0, %v816
        %v818 = vpop.f32.mrb[0].mxu0
        %819 = vmatprep.mubr.f32.mxu0 0.0
        %820 = vmatmul.mubr.f32.gmra.mrb[0].mxu0 %v744
        %v821 = vpop.f32.mrb[0].mxu0
        %v822 = vadd.f32 0.0, %v821
        %v823 = vpop.f32.mrb[0].mxu0
        %824 = vdwg.mxu0
        %v825 = vsel %vm624, %v817, -inf
        %826 = vmax.xlane.f32.xlu0 %v825
        %v827 = vpop.xlane.xlu0 %826
        %v828 = vsel %vm624, %v822, -inf
        %829 = vmax.xlane.f32.xlu0 %v828
        %v830 = vpop.xlane.xlu0 %829
        %v831 = vsub.f32 %v817, %v827
        %v832 = vsub.f32 %v822, %v830
        %v833 = vmul.f32 %v831, 1.442695
        %v834 = vpow.pop %v833
        %v835 = vmul.f32 %v832, 1.442695
        %v836 = vpow.pop %v835
        %v837 = vsel %vm624, %v834, 0.0
        %838 = vadd.xlane.f32.xlu0 %v837
        %v839 = vpop.xlane.xlu0 %838
        %v840 = vsel %vm624, %v836, 0.0
        %841 = vadd.xlane.f32.xlu0 %v840
        %v842 = vpop.xlane.xlu0 %841
        %v843 = vrcp.pop %v839
        %v844 = vrcp.pop %v842
        %v845 = vmul.f32 %v834, %v843
        %v846 = vmul.f32 %v836, %v844
        %847 = vrot.lane.b32.xlu0 %v510, 60
        %v848 = vpop.permute.xlu0 %847
        %849 = vrot.lane.b32.xlu0 %v515, 60
        %v850 = vpop.permute.xlu0 %849
        %v854 = vsel %vm624, %v845, 0
        %v857 = vsel %vm624, %v846, 0
        %859 = vmatprep.subr.mxu0 0.0
        %860 = vmatpush1.msra.mxu0 %v848
        %861 = vmatprep.subr.mxu0 0.0
        %862 = vmatpush1.msra.mxu0 %v850
        %863 = vmatprep.subr.mxu0 0.0
        %864 = vmatpush1.msra.mxu0 0.0
        %865 = vmatprep.subr.mxu0 0.0
        %866 = vmatpush1.msra.mxu0 0.0
        %867 = vmatprep.subr.mxu0 0.0
        %868 = vmatpush1.msra.mxu0 0.0
        %869 = vmatprep.subr.mxu0 0.0
        %870 = vmatpush1.msra.mxu0 0.0
        %871 = vmatprep.subr.mxu0 0.0
        %872 = vmatpush1.msra.mxu0 0.0
        %873 = vmatprep.subr.mxu0 0.0
        %874 = vmatpush1.msra.mxu0 0.0
        %875 = vmatprep.subr.mxu0 0.0
        %876 = vmatpush1.msra.mxu0 0.0
        %877 = vmatprep.subr.mxu0 0.0
        %878 = vmatpush1.msra.mxu0 0.0
        %879 = vmatprep.subr.mxu0 0.0
        %880 = vmatpush1.msra.mxu0 0.0
        %881 = vmatprep.subr.mxu0 0.0
        %882 = vmatpush1.msra.mxu0 0.0
        %883 = vmatprep.subr.mxu0 0.0
        %884 = vmatpush1.msra.mxu0 0.0
        %885 = vmatprep.subr.mxu0 0.0
        %886 = vmatpush1.msra.mxu0 0.0
        %887 = vmatprep.subr.mxu0 0.0
        %888 = vmatpush1.msra.mxu0 0.0
        %889 = vmatprep.subr.mxu0 0.0
        %890 = vmatpush1.msra.mxu0 0.0
        %891 = vmatprep.subr.mxu0 0.0
        %892 = vmatpush1.msra.mxu0 0.0
        %893 = vmatprep.subr.mxu0 0.0
        %894 = vmatpush1.msra.mxu0 0.0
        %895 = vmatprep.subr.mxu0 0.0
        %896 = vmatpush1.msra.mxu0 0.0
        %897 = vmatprep.subr.mxu0 0.0
        %898 = vmatpush1.msra.mxu0 0.0
        %899 = vmatprep.subr.mxu0 0.0
        %900 = vmatpush1.msra.mxu0 0.0
        %901 = vmatprep.subr.mxu0 0.0
        %902 = vmatpush1.msra.mxu0 0.0
        %903 = vmatprep.subr.mxu0 0.0
        %904 = vmatpush1.msra.mxu0 0.0
        %905 = vmatprep.subr.mxu0 0.0
        %906 = vmatpush1.msra.mxu0 0.0
        %907 = vmatprep.subr.mxu0 0.0
        %908 = vmatpush1.msra.mxu0 0.0
        %909 = vmatprep.subr.mxu0 0.0
        %910 = vmatpush1.msra.mxu0 0.0
        %911 = vmatprep.subr.mxu0 0.0
        %912 = vmatpush1.msra.mxu0 0.0
        %913 = vmatprep.subr.mxu0 0.0
        %914 = vmatpush1.msra.mxu0 0.0
        %915 = vmatprep.subr.mxu0 0.0
        %916 = vmatpush1.msra.mxu0 0.0
        %917 = vmatprep.subr.mxu0 0.0
        %918 = vmatpush1.msra.mxu0 0.0
        %919 = vmatprep.subr.mxu0 0.0
        %920 = vmatpush1.msra.mxu0 0.0
        %921 = vmatprep.subr.mxu0 0.0
        %922 = vmatpush1.msra.mxu0 0.0
        %923 = vmatprep.mubr.f32.mxu0 0.0
        %924 = vmatmul.mubr.f32.gmra.mrb[0].mxu0 %v854
        %v925 = vpop.f32.mrb[0].mxu0
        %v926 = vadd.f32 0.0, %v925
        %v927 = vpop.f32.mrb[0].mxu0
        %928 = vmatprep.mubr.f32.mxu0 0.0
        %929 = vmatmul.mubr.f32.gmra.mrb[0].mxu0 %v857
        %v930 = vpop.f32.mrb[0].mxu0
        %v931 = vadd.f32 0.0, %v930
        %v932 = vpop.f32.mrb[0].mxu0
        %933 = vdwg.mxu0
        %934 = vrot.lane.b32.xlu0 %v528, 120
        %v935 = vpop.permute.xlu0 %934
        %936 = vrot.lane.b32.xlu0 %v529, 120
        %v937 = vpop.permute.xlu0 %936
        %938 = vrot.lane.b32.xlu0 %v510, 88
        %v939 = vpop.permute.xlu0 %938
        %940 = vrot.lane.b32.xlu0 %v515, 88
        %v941 = vpop.permute.xlu0 %940
        %v942 = vsel %vm538, %v935, 0
        %v944 = vsel %vm538, %v937, 0
        %v946 = vsel %vm538, %v939, 0
        %v948 = vsel %vm538, %v941, 0
        %950 = vmatprep.subr.mxu0 0.0
        %951 = vmatpush1.xpose.msra.mxu0 %v946
        %952 = vmatprep.subr.mxu0 0.0
        %953 = vmatpush1.xpose.msra.mxu0 %v948
        %954 = vmatprep.subr.mxu0 0.0
        %955 = vmatpush1.xpose.msra.mxu0 0.0
        %956 = vmatprep.subr.mxu0 0.0
        %957 = vmatpush1.xpose.msra.mxu0 0.0
        %958 = vmatprep.subr.mxu0 0.0
        %959 = vmatpush1.xpose.msra.mxu0 0.0
        %960 = vmatprep.subr.mxu0 0.0
        %961 = vmatpush1.xpose.msra.mxu0 0.0
        %962 = vmatprep.subr.mxu0 0.0
        %963 = vmatpush1.xpose.msra.mxu0 0.0
        %964 = vmatprep.subr.mxu0 0.0
        %965 = vmatpush1.xpose.msra.mxu0 0.0
        %966 = vmatprep.subr.mxu0 0.0
        %967 = vmatpush1.xpose.msra.mxu0 0.0
        %968 = vmatprep.subr.mxu0 0.0
        %969 = vmatpush1.xpose.msra.mxu0 0.0
        %970 = vmatprep.subr.mxu0 0.0
        %971 = vmatpush1.xpose.msra.mxu0 0.0
        %972 = vmatprep.subr.mxu0 0.0
        %973 = vmatpush1.xpose.msra.mxu0 0.0
        %974 = vmatprep.subr.mxu0 0.0
        %975 = vmatpush1.xpose.msra.mxu0 0.0
        %976 = vmatprep.subr.mxu0 0.0
        %977 = vmatpush1.xpose.msra.mxu0 0.0
        %978 = vmatprep.subr.mxu0 0.0
        %979 = vmatpush1.xpose.msra.mxu0 0.0
        %980 = vmatprep.subr.mxu0 0.0
        %981 = vmatpush1.xpose.msra.mxu0 0.0
        %982 = vmatprep.subr.mxu0 0.0
        %983 = vmatpush1.xpose.msra.mxu0 0.0
        %984 = vmatprep.subr.mxu0 0.0
        %985 = vmatpush1.xpose.msra.mxu0 0.0
        %986 = vmatprep.subr.mxu0 0.0
        %987 = vmatpush1.xpose.msra.mxu0 0.0
        %988 = vmatprep.subr.mxu0 0.0
        %989 = vmatpush1.xpose.msra.mxu0 0.0
        %990 = vmatprep.subr.mxu0 0.0
        %991 = vmatpush1.xpose.msra.mxu0 0.0
        %992 = vmatprep.subr.mxu0 0.0
        %993 = vmatpush1.xpose.msra.mxu0 0.0
        %994 = vmatprep.subr.mxu0 0.0
        %995 = vmatpush1.xpose.msra.mxu0 0.0
        %996 = vmatprep.subr.mxu0 0.0
        %997 = vmatpush1.xpose.msra.mxu0 0.0
        %998 = vmatprep.subr.mxu0 0.0
        %999 = vmatpush1.xpose.msra.mxu0 0.0
        %1000 = vmatprep.subr.mxu0 0.0
        %1001 = vmatpush1.xpose.msra.mxu0 0.0
        %1002 = vmatprep.subr.mxu0 0.0
        %1003 = vmatpush1.xpose.msra.mxu0 0.0
        %1004 = vmatprep.subr.mxu0 0.0
        %1005 = vmatpush1.xpose.msra.mxu0 0.0
        %1006 = vmatprep.subr.mxu0 0.0
        %1007 = vmatpush1.xpose.msra.mxu0 0.0
        %1008 = vmatprep.subr.mxu0 0.0
        %1009 = vmatpush1.xpose.msra.mxu0 0.0
        %1010 = vmatprep.subr.mxu0 0.0
        %1011 = vmatpush1.xpose.msra.mxu0 0.0
        %1012 = vmatprep.subr.mxu0 0.0
        %1013 = vmatpush1.xpose.msra.mxu0 0.0
        %1014 = vmatprep.mubr.f32.mxu0 0.0
        %1015 = vmatmul.mubr.f32.gmra.mrb[0].mxu0 %v942
        %v1016 = vpop.f32.mrb[0].mxu0
        %v1017 = vadd.f32 0.0, %v1016
        %v1018 = vpop.f32.mrb[0].mxu0
        %1019 = vmatprep.mubr.f32.mxu0 0.0
        %1020 = vmatmul.mubr.f32.gmra.mrb[0].mxu0 %v944
        %v1021 = vpop.f32.mrb[0].mxu0
        %v1022 = vadd.f32 0.0, %v1021
        %v1023 = vpop.f32.mrb[0].mxu0
        %1024 = vdwg.mxu0
        %v1025 = vsel %vm624, %v1017, -inf
        %1026 = vmax.xlane.f32.xlu0 %v1025
        %v1027 = vpop.xlane.xlu0 %1026
        %v1028 = vsel %vm624, %v1022, -inf
        %1029 = vmax.xlane.f32.xlu0 %v1028
        %v1030 = vpop.xlane.xlu0 %1029
        %v1031 = vsub.f32 %v1017, %v1027
        %v1032 = vsub.f32 %v1022, %v1030
        %v1033 = vmul.f32 %v1031, 1.442695
        %v1034 = vpow.pop %v1033
        %v1035 = vmul.f32 %v1032, 1.442695
        %v1036 = vpow.pop %v1035
        %v1037 = vsel %vm624, %v1034, 0.0
        %1038 = vadd.xlane.f32.xlu0 %v1037
        %v1039 = vpop.xlane.xlu0 %1038
        %v1040 = vsel %vm624, %v1036, 0.0
        %1041 = vadd.xlane.f32.xlu0 %v1040
        %v1042 = vpop.xlane.xlu0 %1041
        %v1043 = vrcp.pop %v1039
        %v1044 = vrcp.pop %v1042
        %v1045 = vmul.f32 %v1034, %v1043
        %v1046 = vmul.f32 %v1036, %v1044
        %1047 = vrot.lane.b32.xlu0 %v510, 56
        %v1048 = vpop.permute.xlu0 %1047
        %1049 = vrot.lane.b32.xlu0 %v515, 56
        %v1050 = vpop.permute.xlu0 %1049
        %v1054 = vsel %vm624, %v1045, 0
        %v1057 = vsel %vm624, %v1046, 0
        %1059 = vmatprep.subr.mxu0 0.0
        %1060 = vmatpush1.msra.mxu0 %v1048
        %1061 = vmatprep.subr.mxu0 0.0
        %1062 = vmatpush1.msra.mxu0 %v1050
        %1063 = vmatprep.subr.mxu0 0.0
        %1064 = vmatpush1.msra.mxu0 0.0
        %1065 = vmatprep.subr.mxu0 0.0
        %1066 = vmatpush1.msra.mxu0 0.0
        %1067 = vmatprep.subr.mxu0 0.0
        %1068 = vmatpush1.msra.mxu0 0.0
        %1069 = vmatprep.subr.mxu0 0.0
        %1070 = vmatpush1.msra.mxu0 0.0
        %1071 = vmatprep.subr.mxu0 0.0
        %1072 = vmatpush1.msra.mxu0 0.0
        %1073 = vmatprep.subr.mxu0 0.0
        %1074 = vmatpush1.msra.mxu0 0.0
        %1075 = vmatprep.subr.mxu0 0.0
        %1076 = vmatpush1.msra.mxu0 0.0
        %1077 = vmatprep.subr.mxu0 0.0
        %1078 = vmatpush1.msra.mxu0 0.0
        %1079 = vmatprep.subr.mxu0 0.0
        %1080 = vmatpush1.msra.mxu0 0.0
        %1081 = vmatprep.subr.mxu0 0.0
        %1082 = vmatpush1.msra.mxu0 0.0
        %1083 = vmatprep.subr.mxu0 0.0
        %1084 = vmatpush1.msra.mxu0 0.0
        %1085 = vmatprep.subr.mxu0 0.0
        %1086 = vmatpush1.msra.mxu0 0.0
        %1087 = vmatprep.subr.mxu0 0.0
        %1088 = vmatpush1.msra.mxu0 0.0
        %1089 = vmatprep.subr.mxu0 0.0
        %1090 = vmatpush1.msra.mxu0 0.0
        %1091 = vmatprep.subr.mxu0 0.0
        %1092 = vmatpush1.msra.mxu0 0.0
        %1093 = vmatprep.subr.mxu0 0.0
        %1094 = vmatpush1.msra.mxu0 0.0
        %1095 = vmatprep.subr.mxu0 0.0
        %1096 = vmatpush1.msra.mxu0 0.0
        %1097 = vmatprep.subr.mxu0 0.0
        %1098 = vmatpush1.msra.mxu0 0.0
        %1099 = vmatprep.subr.mxu0 0.0
        %1100 = vmatpush1.msra.mxu0 0.0
        %1101 = vmatprep.subr.mxu0 0.0
        %1102 = vmatpush1.msra.mxu0 0.0
        %1103 = vmatprep.subr.mxu0 0.0
        %1104 = vmatpush1.msra.mxu0 0.0
        %1105 = vmatprep.subr.mxu0 0.0
        %1106 = vmatpush1.msra.mxu0 0.0
        %1107 = vmatprep.subr.mxu0 0.0
        %1108 = vmatpush1.msra.mxu0 0.0
        %1109 = vmatprep.subr.mxu0 0.0
        %1110 = vmatpush1.msra.mxu0 0.0
        %1111 = vmatprep.subr.mxu0 0.0
        %1112 = vmatpush1.msra.mxu0 0.0
        %1113 = vmatprep.subr.mxu0 0.0
        %1114 = vmatpush1.msra.mxu0 0.0
        %1115 = vmatprep.subr.mxu0 0.0
        %1116 = vmatpush1.msra.mxu0 0.0
        %1117 = vmatprep.subr.mxu0 0.0
        %1118 = vmatpush1.msra.mxu0 0.0
        %1119 = vmatprep.subr.mxu0 0.0
        %1120 = vmatpush1.msra.mxu0 0.0
        %1121 = vmatprep.subr.mxu0 0.0
        %1122 = vmatpush1.msra.mxu0 0.0
        %1123 = vmatprep.mubr.f32.mxu0 0.0
        %1124 = vmatmul.mubr.f32.gmra.mrb[0].mxu0 %v1054
        %v1125 = vpop.f32.mrb[0].mxu0
        %v1126 = vadd.f32 0.0, %v1125
        %v1127 = vpop.f32.mrb[0].mxu0
        %1128 = vmatprep.mubr.f32.mxu0 0.0
        %1129 = vmatmul.mubr.f32.gmra.mrb[0].mxu0 %v1057
        %v1130 = vpop.f32.mrb[0].mxu0
        %v1131 = vadd.f32 0.0, %v1130
        %v1132 = vpop.f32.mrb[0].mxu0
        %1133 = vdwg.mxu0
        %1134 = vrot.lane.b32.xlu0 %v528, 116
        %v1135 = vpop.permute.xlu0 %1134
        %1136 = vrot.lane.b32.xlu0 %v529, 116
        %v1137 = vpop.permute.xlu0 %1136
        %1138 = vrot.lane.b32.xlu0 %v510, 84
        %v1139 = vpop.permute.xlu0 %1138
        %1140 = vrot.lane.b32.xlu0 %v515, 84
        %v1141 = vpop.permute.xlu0 %1140
        %v1142 = vsel %vm538, %v1135, 0
        %v1144 = vsel %vm538, %v1137, 0
        %v1146 = vsel %vm538, %v1139, 0
        %v1148 = vsel %vm538, %v1141, 0
        %1150 = vmatprep.subr.mxu0 0.0
        %1151 = vmatpush1.xpose.msra.mxu0 %v1146
        %1152 = vmatprep.subr.mxu0 0.0
        %1153 = vmatpush1.xpose.msra.mxu0 %v1148
        %1154 = vmatprep.subr.mxu0 0.0
        %1155 = vmatpush1.xpose.msra.mxu0 0.0
        %1156 = vmatprep.subr.mxu0 0.0
        %1157 = vmatpush1.xpose.msra.mxu0 0.0
        %1158 = vmatprep.subr.mxu0 0.0
        %1159 = vmatpush1.xpose.msra.mxu0 0.0
        %1160 = vmatprep.subr.mxu0 0.0
        %1161 = vmatpush1.xpose.msra.mxu0 0.0
        %1162 = vmatprep.subr.mxu0 0.0
        %1163 = vmatpush1.xpose.msra.mxu0 0.0
        %1164 = vmatprep.subr.mxu0 0.0
        %1165 = vmatpush1.xpose.msra.mxu0 0.0
        %1166 = vmatprep.subr.mxu0 0.0
        %1167 = vmatpush1.xpose.msra.mxu0 0.0
        %1168 = vmatprep.subr.mxu0 0.0
        %1169 = vmatpush1.xpose.msra.mxu0 0.0
        %1170 = vmatprep.subr.mxu0 0.0
        %1171 = vmatpush1.xpose.msra.mxu0 0.0
        %1172 = vmatprep.subr.mxu0 0.0
        %1173 = vmatpush1.xpose.msra.mxu0 0.0
        %1174 = vmatprep.subr.mxu0 0.0
        %1175 = vmatpush1.xpose.msra.mxu0 0.0
        %1176 = vmatprep.subr.mxu0 0.0
        %1177 = vmatpush1.xpose.msra.mxu0 0.0
        %1178 = vmatprep.subr.mxu0 0.0
        %1179 = vmatpush1.xpose.msra.mxu0 0.0
        %1180 = vmatprep.subr.mxu0 0.0
        %1181 = vmatpush1.xpose.msra.mxu0 0.0
        %1182 = vmatprep.subr.mxu0 0.0
        %1183 = vmatpush1.xpose.msra.mxu0 0.0
        %1184 = vmatprep.subr.mxu0 0.0
        %1185 = vmatpush1.xpose.msra.mxu0 0.0
        %1186 = vmatprep.subr.mxu0 0.0
        %1187 = vmatpush1.xpose.msra.mxu0 0.0
        %1188 = vmatprep.subr.mxu0 0.0
        %1189 = vmatpush1.xpose.msra.mxu0 0.0
        %1190 = vmatprep.subr.mxu0 0.0
        %1191 = vmatpush1.xpose.msra.mxu0 0.0
        %1192 = vmatprep.subr.mxu0 0.0
        %1193 = vmatpush1.xpose.msra.mxu0 0.0
        %1194 = vmatprep.subr.mxu0 0.0
        %1195 = vmatpush1.xpose.msra.mxu0 0.0
        %1196 = vmatprep.subr.mxu0 0.0
        %1197 = vmatpush1.xpose.msra.mxu0 0.0
        %1198 = vmatprep.subr.mxu0 0.0
        %1199 = vmatpush1.xpose.msra.mxu0 0.0
        %1200 = vmatprep.subr.mxu0 0.0
        %1201 = vmatpush1.xpose.msra.mxu0 0.0
        %1202 = vmatprep.subr.mxu0 0.0
        %1203 = vmatpush1.xpose.msra.mxu0 0.0
        %1204 = vmatprep.subr.mxu0 0.0
        %1205 = vmatpush1.xpose.msra.mxu0 0.0
        %1206 = vmatprep.subr.mxu0 0.0
        %1207 = vmatpush1.xpose.msra.mxu0 0.0
        %1208 = vmatprep.subr.mxu0 0.0
        %1209 = vmatpush1.xpose.msra.mxu0 0.0
        %1210 = vmatprep.subr.mxu0 0.0
        %1211 = vmatpush1.xpose.msra.mxu0 0.0
        %1212 = vmatprep.subr.mxu0 0.0
        %1213 = vmatpush1.xpose.msra.mxu0 0.0
        %1214 = vmatprep.mubr.f32.mxu0 0.0
        %1215 = vmatmul.mubr.f32.gmra.mrb[0].mxu0 %v1142
        %v1216 = vpop.f32.mrb[0].mxu0
        %v1217 = vadd.f32 0.0, %v1216
        %v1218 = vpop.f32.mrb[0].mxu0
        %1219 = vmatprep.mubr.f32.mxu0 0.0
        %1220 = vmatmul.mubr.f32.gmra.mrb[0].mxu0 %v1144
        %v1221 = vpop.f32.mrb[0].mxu0
        %v1222 = vadd.f32 0.0, %v1221
        %v1223 = vpop.f32.mrb[0].mxu0
        %1224 = vdwg.mxu0
        %v1225 = vsel %vm624, %v1217, -inf
        %1226 = vmax.xlane.f32.xlu0 %v1225
        %v1227 = vpop.xlane.xlu0 %1226
        %v1228 = vsel %vm624, %v1222, -inf
        %1229 = vmax.xlane.f32.xlu0 %v1228
        %v1230 = vpop.xlane.xlu0 %1229
        %v1231 = vsub.f32 %v1217, %v1227
        %v1232 = vsub.f32 %v1222, %v1230
        %v1233 = vmul.f32 %v1231, 1.442695
        %v1234 = vpow.pop %v1233
        %v1235 = vmul.f32 %v1232, 1.442695
        %v1236 = vpow.pop %v1235
        %v1237 = vsel %vm624, %v1234, 0.0
        %1238 = vadd.xlane.f32.xlu0 %v1237
        %v1239 = vpop.xlane.xlu0 %1238
        %v1240 = vsel %vm624, %v1236, 0.0
        %1241 = vadd.xlane.f32.xlu0 %v1240
        %v1242 = vpop.xlane.xlu0 %1241
        %v1243 = vrcp.pop %v1239
        %v1244 = vrcp.pop %v1242
        %v1245 = vmul.f32 %v1234, %v1243
        %v1246 = vmul.f32 %v1236, %v1244
        %1247 = vrot.lane.b32.xlu0 %v510, 52
        %v1248 = vpop.permute.xlu0 %1247
        %1249 = vrot.lane.b32.xlu0 %v515, 52
        %v1250 = vpop.permute.xlu0 %1249
        %v1254 = vsel %vm624, %v1245, 0
        %v1257 = vsel %vm624, %v1246, 0
        %1259 = vmatprep.subr.mxu0 0.0
        %1260 = vmatpush1.msra.mxu0 %v1248
        %1261 = vmatprep.subr.mxu0 0.0
        %1262 = vmatpush1.msra.mxu0 %v1250
        %1263 = vmatprep.subr.mxu0 0.0
        %1264 = vmatpush1.msra.mxu0 0.0
        %1265 = vmatprep.subr.mxu0 0.0
        %1266 = vmatpush1.msra.mxu0 0.0
        %1267 = vmatprep.subr.mxu0 0.0
        %1268 = vmatpush1.msra.mxu0 0.0
        %1269 = vmatprep.subr.mxu0 0.0
        %1270 = vmatpush1.msra.mxu0 0.0
        %1271 = vmatprep.subr.mxu0 0.0
        %1272 = vmatpush1.msra.mxu0 0.0
        %1273 = vmatprep.subr.mxu0 0.0
        %1274 = vmatpush1.msra.mxu0 0.0
        %1275 = vmatprep.subr.mxu0 0.0
        %1276 = vmatpush1.msra.mxu0 0.0
        %1277 = vmatprep.subr.mxu0 0.0
        %1278 = vmatpush1.msra.mxu0 0.0
        %1279 = vmatprep.subr.mxu0 0.0
        %1280 = vmatpush1.msra.mxu0 0.0
        %1281 = vmatprep.subr.mxu0 0.0
        %1282 = vmatpush1.msra.mxu0 0.0
        %1283 = vmatprep.subr.mxu0 0.0
        %1284 = vmatpush1.msra.mxu0 0.0
        %1285 = vmatprep.subr.mxu0 0.0
        %1286 = vmatpush1.msra.mxu0 0.0
        %1287 = vmatprep.subr.mxu0 0.0
        %1288 = vmatpush1.msra.mxu0 0.0
        %1289 = vmatprep.subr.mxu0 0.0
        %1290 = vmatpush1.msra.mxu0 0.0
        %1291 = vmatprep.subr.mxu0 0.0
        %1292 = vmatpush1.msra.mxu0 0.0
        %1293 = vmatprep.subr.mxu0 0.0
        %1294 = vmatpush1.msra.mxu0 0.0
        %1295 = vmatprep.subr.mxu0 0.0
        %1296 = vmatpush1.msra.mxu0 0.0
        %1297 = vmatprep.subr.mxu0 0.0
        %1298 = vmatpush1.msra.mxu0 0.0
        %1299 = vmatprep.subr.mxu0 0.0
        %1300 = vmatpush1.msra.mxu0 0.0
        %1301 = vmatprep.subr.mxu0 0.0
        %1302 = vmatpush1.msra.mxu0 0.0
        %1303 = vmatprep.subr.mxu0 0.0
        %1304 = vmatpush1.msra.mxu0 0.0
        %1305 = vmatprep.subr.mxu0 0.0
        %1306 = vmatpush1.msra.mxu0 0.0
        %1307 = vmatprep.subr.mxu0 0.0
        %1308 = vmatpush1.msra.mxu0 0.0
        %1309 = vmatprep.subr.mxu0 0.0
        %1310 = vmatpush1.msra.mxu0 0.0
        %1311 = vmatprep.subr.mxu0 0.0
        %1312 = vmatpush1.msra.mxu0 0.0
        %1313 = vmatprep.subr.mxu0 0.0
        %1314 = vmatpush1.msra.mxu0 0.0
        %1315 = vmatprep.subr.mxu0 0.0
        %1316 = vmatpush1.msra.mxu0 0.0
        %1317 = vmatprep.subr.mxu0 0.0
        %1318 = vmatpush1.msra.mxu0 0.0
        %1319 = vmatprep.subr.mxu0 0.0
        %1320 = vmatpush1.msra.mxu0 0.0
        %1321 = vmatprep.subr.mxu0 0.0
        %1322 = vmatpush1.msra.mxu0 0.0
        %1323 = vmatprep.mubr.f32.mxu0 0.0
        %1324 = vmatmul.mubr.f32.gmra.mrb[0].mxu0 %v1254
        %v1325 = vpop.f32.mrb[0].mxu0
        %v1326 = vadd.f32 0.0, %v1325
        %v1327 = vpop.f32.mrb[0].mxu0
        %1328 = vmatprep.mubr.f32.mxu0 0.0
        %1329 = vmatmul.mubr.f32.gmra.mrb[0].mxu0 %v1257
        %v1330 = vpop.f32.mrb[0].mxu0
        %v1331 = vadd.f32 0.0, %v1330
        %v1332 = vpop.f32.mrb[0].mxu0
        %1333 = vdwg.mxu0
        %1334 = vrot.lane.b32.xlu0 %v528, 112
        %v1335 = vpop.permute.xlu0 %1334
        %1336 = vrot.lane.b32.xlu0 %v529, 112
        %v1337 = vpop.permute.xlu0 %1336
        %1338 = vrot.lane.b32.xlu0 %v510, 80
        %v1339 = vpop.permute.xlu0 %1338
        %1340 = vrot.lane.b32.xlu0 %v515, 80
        %v1341 = vpop.permute.xlu0 %1340
        %v1342 = vsel %vm538, %v1335, 0
        %v1344 = vsel %vm538, %v1337, 0
        %v1346 = vsel %vm538, %v1339, 0
        %v1348 = vsel %vm538, %v1341, 0
        %1350 = vmatprep.subr.mxu0 0.0
        %1351 = vmatpush1.xpose.msra.mxu0 %v1346
        %1352 = vmatprep.subr.mxu0 0.0
        %1353 = vmatpush1.xpose.msra.mxu0 %v1348
        %1354 = vmatprep.subr.mxu0 0.0
        %1355 = vmatpush1.xpose.msra.mxu0 0.0
        %1356 = vmatprep.subr.mxu0 0.0
        %1357 = vmatpush1.xpose.msra.mxu0 0.0
        %1358 = vmatprep.subr.mxu0 0.0
        %1359 = vmatpush1.xpose.msra.mxu0 0.0
        %1360 = vmatprep.subr.mxu0 0.0
        %1361 = vmatpush1.xpose.msra.mxu0 0.0
        %1362 = vmatprep.subr.mxu0 0.0
        %1363 = vmatpush1.xpose.msra.mxu0 0.0
        %1364 = vmatprep.subr.mxu0 0.0
        %1365 = vmatpush1.xpose.msra.mxu0 0.0
        %1366 = vmatprep.subr.mxu0 0.0
        %1367 = vmatpush1.xpose.msra.mxu0 0.0
        %1368 = vmatprep.subr.mxu0 0.0
        %1369 = vmatpush1.xpose.msra.mxu0 0.0
        %1370 = vmatprep.subr.mxu0 0.0
        %1371 = vmatpush1.xpose.msra.mxu0 0.0
        %1372 = vmatprep.subr.mxu0 0.0
        %1373 = vmatpush1.xpose.msra.mxu0 0.0
        %1374 = vmatprep.subr.mxu0 0.0
        %1375 = vmatpush1.xpose.msra.mxu0 0.0
        %1376 = vmatprep.subr.mxu0 0.0
        %1377 = vmatpush1.xpose.msra.mxu0 0.0
        %1378 = vmatprep.subr.mxu0 0.0
        %1379 = vmatpush1.xpose.msra.mxu0 0.0
        %1380 = vmatprep.subr.mxu0 0.0
        %1381 = vmatpush1.xpose.msra.mxu0 0.0
        %1382 = vmatprep.subr.mxu0 0.0
        %1383 = vmatpush1.xpose.msra.mxu0 0.0
        %1384 = vmatprep.subr.mxu0 0.0
        %1385 = vmatpush1.xpose.msra.mxu0 0.0
        %1386 = vmatprep.subr.mxu0 0.0
        %1387 = vmatpush1.xpose.msra.mxu0 0.0
        %1388 = vmatprep.subr.mxu0 0.0
        %1389 = vmatpush1.xpose.msra.mxu0 0.0
        %1390 = vmatprep.subr.mxu0 0.0
        %1391 = vmatpush1.xpose.msra.mxu0 0.0
        %1392 = vmatprep.subr.mxu0 0.0
        %1393 = vmatpush1.xpose.msra.mxu0 0.0
        %1394 = vmatprep.subr.mxu0 0.0
        %1395 = vmatpush1.xpose.msra.mxu0 0.0
        %1396 = vmatprep.subr.mxu0 0.0
        %1397 = vmatpush1.xpose.msra.mxu0 0.0
        %1398 = vmatprep.subr.mxu0 0.0
        %1399 = vmatpush1.xpose.msra.mxu0 0.0
        %1400 = vmatprep.subr.mxu0 0.0
        %1401 = vmatpush1.xpose.msra.mxu0 0.0
        %1402 = vmatprep.subr.mxu0 0.0
        %1403 = vmatpush1.xpose.msra.mxu0 0.0
        %1404 = vmatprep.subr.mxu0 0.0
        %1405 = vmatpush1.xpose.msra.mxu0 0.0
        %1406 = vmatprep.subr.mxu0 0.0
        %1407 = vmatpush1.xpose.msra.mxu0 0.0
        %1408 = vmatprep.subr.mxu0 0.0
        %1409 = vmatpush1.xpose.msra.mxu0 0.0
        %1410 = vmatprep.subr.mxu0 0.0
        %1411 = vmatpush1.xpose.msra.mxu0 0.0
        %1412 = vmatprep.subr.mxu0 0.0
        %1413 = vmatpush1.xpose.msra.mxu0 0.0
        %1414 = vmatprep.mubr.f32.mxu0 0.0
        %1415 = vmatmul.mubr.f32.gmra.mrb[0].mxu0 %v1342
        %v1416 = vpop.f32.mrb[0].mxu0
        %v1417 = vadd.f32 0.0, %v1416
        %v1418 = vpop.f32.mrb[0].mxu0
        %1419 = vmatprep.mubr.f32.mxu0 0.0
        %1420 = vmatmul.mubr.f32.gmra.mrb[0].mxu0 %v1344
        %v1421 = vpop.f32.mrb[0].mxu0
        %v1422 = vadd.f32 0.0, %v1421
        %v1423 = vpop.f32.mrb[0].mxu0
        %1424 = vdwg.mxu0
        %v1425 = vsel %vm624, %v1417, -inf
        %1426 = vmax.xlane.f32.xlu0 %v1425
        %v1427 = vpop.xlane.xlu0 %1426
        %v1428 = vsel %vm624, %v1422, -inf
        %1429 = vmax.xlane.f32.xlu0 %v1428
        %v1430 = vpop.xlane.xlu0 %1429
        %v1431 = vsub.f32 %v1417, %v1427
        %v1432 = vsub.f32 %v1422, %v1430
        %v1433 = vmul.f32 %v1431, 1.442695
        %v1434 = vpow.pop %v1433
        %v1435 = vmul.f32 %v1432, 1.442695
        %v1436 = vpow.pop %v1435
        %v1437 = vsel %vm624, %v1434, 0.0
        %1438 = vadd.xlane.f32.xlu0 %v1437
        %v1439 = vpop.xlane.xlu0 %1438
        %v1440 = vsel %vm624, %v1436, 0.0
        %1441 = vadd.xlane.f32.xlu0 %v1440
        %v1442 = vpop.xlane.xlu0 %1441
        %v1443 = vrcp.pop %v1439
        %v1444 = vrcp.pop %v1442
        %v1445 = vmul.f32 %v1434, %v1443
        %v1446 = vmul.f32 %v1436, %v1444
        %1447 = vrot.lane.b32.xlu0 %v510, 48
        %v1448 = vpop.permute.xlu0 %1447
        %1449 = vrot.lane.b32.xlu0 %v515, 48
        %v1450 = vpop.permute.xlu0 %1449
        %v1454 = vsel %vm624, %v1445, 0
        %v1457 = vsel %vm624, %v1446, 0
        %1459 = vmatprep.subr.mxu0 0.0
        %1460 = vmatpush1.msra.mxu0 %v1448
        %1461 = vmatprep.subr.mxu0 0.0
        %1462 = vmatpush1.msra.mxu0 %v1450
        %1463 = vmatprep.subr.mxu0 0.0
        %1464 = vmatpush1.msra.mxu0 0.0
        %1465 = vmatprep.subr.mxu0 0.0
        %1466 = vmatpush1.msra.mxu0 0.0
        %1467 = vmatprep.subr.mxu0 0.0
        %1468 = vmatpush1.msra.mxu0 0.0
        %1469 = vmatprep.subr.mxu0 0.0
        %1470 = vmatpush1.msra.mxu0 0.0
        %1471 = vmatprep.subr.mxu0 0.0
        %1472 = vmatpush1.msra.mxu0 0.0
        %1473 = vmatprep.subr.mxu0 0.0
        %1474 = vmatpush1.msra.mxu0 0.0
        %1475 = vmatprep.subr.mxu0 0.0
        %1476 = vmatpush1.msra.mxu0 0.0
        %1477 = vmatprep.subr.mxu0 0.0
        %1478 = vmatpush1.msra.mxu0 0.0
        %1479 = vmatprep.subr.mxu0 0.0
        %1480 = vmatpush1.msra.mxu0 0.0
        %1481 = vmatprep.subr.mxu0 0.0
        %1482 = vmatpush1.msra.mxu0 0.0
        %1483 = vmatprep.subr.mxu0 0.0
        %1484 = vmatpush1.msra.mxu0 0.0
        %1485 = vmatprep.subr.mxu0 0.0
        %1486 = vmatpush1.msra.mxu0 0.0
        %1487 = vmatprep.subr.mxu0 0.0
        %1488 = vmatpush1.msra.mxu0 0.0
        %1489 = vmatprep.subr.mxu0 0.0
        %1490 = vmatpush1.msra.mxu0 0.0
        %1491 = vmatprep.subr.mxu0 0.0
        %1492 = vmatpush1.msra.mxu0 0.0
        %1493 = vmatprep.subr.mxu0 0.0
        %1494 = vmatpush1.msra.mxu0 0.0
        %1495 = vmatprep.subr.mxu0 0.0
        %1496 = vmatpush1.msra.mxu0 0.0
        %1497 = vmatprep.subr.mxu0 0.0
        %1498 = vmatpush1.msra.mxu0 0.0
        %1499 = vmatprep.subr.mxu0 0.0
        %1500 = vmatpush1.msra.mxu0 0.0
        %1501 = vmatprep.subr.mxu0 0.0
        %1502 = vmatpush1.msra.mxu0 0.0
        %1503 = vmatprep.subr.mxu0 0.0
        %1504 = vmatpush1.msra.mxu0 0.0
        %1505 = vmatprep.subr.mxu0 0.0
        %1506 = vmatpush1.msra.mxu0 0.0
        %1507 = vmatprep.subr.mxu0 0.0
        %1508 = vmatpush1.msra.mxu0 0.0
        %1509 = vmatprep.subr.mxu0 0.0
        %1510 = vmatpush1.msra.mxu0 0.0
        %1511 = vmatprep.subr.mxu0 0.0
        %1512 = vmatpush1.msra.mxu0 0.0
        %1513 = vmatprep.subr.mxu0 0.0
        %1514 = vmatpush1.msra.mxu0 0.0
        %1515 = vmatprep.subr.mxu0 0.0
        %1516 = vmatpush1.msra.mxu0 0.0
        %1517 = vmatprep.subr.mxu0 0.0
        %1518 = vmatpush1.msra.mxu0 0.0
        %1519 = vmatprep.subr.mxu0 0.0
        %1520 = vmatpush1.msra.mxu0 0.0
        %1521 = vmatprep.subr.mxu0 0.0
        %1522 = vmatpush1.msra.mxu0 0.0
        %1523 = vmatprep.mubr.f32.mxu0 0.0
        %1524 = vmatmul.mubr.f32.gmra.mrb[0].mxu0 %v1454
        %v1525 = vpop.f32.mrb[0].mxu0
        %v1526 = vadd.f32 0.0, %v1525
        %v1527 = vpop.f32.mrb[0].mxu0
        %1528 = vmatprep.mubr.f32.mxu0 0.0
        %1529 = vmatmul.mubr.f32.gmra.mrb[0].mxu0 %v1457
        %v1530 = vpop.f32.mrb[0].mxu0
        %v1531 = vadd.f32 0.0, %v1530
        %v1532 = vpop.f32.mrb[0].mxu0
        %1533 = vdwg.mxu0
        %1534 = vrot.lane.b32.xlu0 %v528, 108
        %v1535 = vpop.permute.xlu0 %1534
        %1536 = vrot.lane.b32.xlu0 %v529, 108
        %v1537 = vpop.permute.xlu0 %1536
        %1538 = vrot.lane.b32.xlu0 %v510, 76
        %v1539 = vpop.permute.xlu0 %1538
        %1540 = vrot.lane.b32.xlu0 %v515, 76
        %v1541 = vpop.permute.xlu0 %1540
        %v1542 = vsel %vm538, %v1535, 0
        %v1544 = vsel %vm538, %v1537, 0
        %v1546 = vsel %vm538, %v1539, 0
        %v1548 = vsel %vm538, %v1541, 0
        %1550 = vmatprep.subr.mxu0 0.0
        %1551 = vmatpush1.xpose.msra.mxu0 %v1546
        %1552 = vmatprep.subr.mxu0 0.0
        %1553 = vmatpush1.xpose.msra.mxu0 %v1548
        %1554 = vmatprep.subr.mxu0 0.0
        %1555 = vmatpush1.xpose.msra.mxu0 0.0
        %1556 = vmatprep.subr.mxu0 0.0
        %1557 = vmatpush1.xpose.msra.mxu0 0.0
        %1558 = vmatprep.subr.mxu0 0.0
        %1559 = vmatpush1.xpose.msra.mxu0 0.0
        %1560 = vmatprep.subr.mxu0 0.0
        %1561 = vmatpush1.xpose.msra.mxu0 0.0
        %1562 = vmatprep.subr.mxu0 0.0
        %1563 = vmatpush1.xpose.msra.mxu0 0.0
        %1564 = vmatprep.subr.mxu0 0.0
        %1565 = vmatpush1.xpose.msra.mxu0 0.0
        %1566 = vmatprep.subr.mxu0 0.0
        %1567 = vmatpush1.xpose.msra.mxu0 0.0
        %1568 = vmatprep.subr.mxu0 0.0
        %1569 = vmatpush1.xpose.msra.mxu0 0.0
        %1570 = vmatprep.subr.mxu0 0.0
        %1571 = vmatpush1.xpose.msra.mxu0 0.0
        %1572 = vmatprep.subr.mxu0 0.0
        %1573 = vmatpush1.xpose.msra.mxu0 0.0
        %1574 = vmatprep.subr.mxu0 0.0
        %1575 = vmatpush1.xpose.msra.mxu0 0.0
        %1576 = vmatprep.subr.mxu0 0.0
        %1577 = vmatpush1.xpose.msra.mxu0 0.0
        %1578 = vmatprep.subr.mxu0 0.0
        %1579 = vmatpush1.xpose.msra.mxu0 0.0
        %1580 = vmatprep.subr.mxu0 0.0
        %1581 = vmatpush1.xpose.msra.mxu0 0.0
        %1582 = vmatprep.subr.mxu0 0.0
        %1583 = vmatpush1.xpose.msra.mxu0 0.0
        %1584 = vmatprep.subr.mxu0 0.0
        %1585 = vmatpush1.xpose.msra.mxu0 0.0
        %1586 = vmatprep.subr.mxu0 0.0
        %1587 = vmatpush1.xpose.msra.mxu0 0.0
        %1588 = vmatprep.subr.mxu0 0.0
        %1589 = vmatpush1.xpose.msra.mxu0 0.0
        %1590 = vmatprep.subr.mxu0 0.0
        %1591 = vmatpush1.xpose.msra.mxu0 0.0
        %1592 = vmatprep.subr.mxu0 0.0
        %1593 = vmatpush1.xpose.msra.mxu0 0.0
        %1594 = vmatprep.subr.mxu0 0.0
        %1595 = vmatpush1.xpose.msra.mxu0 0.0
        %1596 = vmatprep.subr.mxu0 0.0
        %1597 = vmatpush1.xpose.msra.mxu0 0.0
        %1598 = vmatprep.subr.mxu0 0.0
        %1599 = vmatpush1.xpose.msra.mxu0 0.0
        %1600 = vmatprep.subr.mxu0 0.0
        %1601 = vmatpush1.xpose.msra.mxu0 0.0
        %1602 = vmatprep.subr.mxu0 0.0
        %1603 = vmatpush1.xpose.msra.mxu0 0.0
        %1604 = vmatprep.subr.mxu0 0.0
        %1605 = vmatpush1.xpose.msra.mxu0 0.0
        %1606 = vmatprep.subr.mxu0 0.0
        %1607 = vmatpush1.xpose.msra.mxu0 0.0
        %1608 = vmatprep.subr.mxu0 0.0
        %1609 = vmatpush1.xpose.msra.mxu0 0.0
        %1610 = vmatprep.subr.mxu0 0.0
        %1611 = vmatpush1.xpose.msra.mxu0 0.0
        %1612 = vmatprep.subr.mxu0 0.0
        %1613 = vmatpush1.xpose.msra.mxu0 0.0
        %1614 = vmatprep.mubr.f32.mxu0 0.0
        %1615 = vmatmul.mubr.f32.gmra.mrb[0].mxu0 %v1542
        %v1616 = vpop.f32.mrb[0].mxu0
        %v1617 = vadd.f32 0.0, %v1616
        %v1618 = vpop.f32.mrb[0].mxu0
        %1619 = vmatprep.mubr.f32.mxu0 0.0
        %1620 = vmatmul.mubr.f32.gmra.mrb[0].mxu0 %v1544
        %v1621 = vpop.f32.mrb[0].mxu0
        %v1622 = vadd.f32 0.0, %v1621
        %v1623 = vpop.f32.mrb[0].mxu0
        %1624 = vdwg.mxu0
        %v1625 = vsel %vm624, %v1617, -inf
        %1626 = vmax.xlane.f32.xlu0 %v1625
        %v1627 = vpop.xlane.xlu0 %1626
        %v1628 = vsel %vm624, %v1622, -inf
        %1629 = vmax.xlane.f32.xlu0 %v1628
        %v1630 = vpop.xlane.xlu0 %1629
        %v1631 = vsub.f32 %v1617, %v1627
        %v1632 = vsub.f32 %v1622, %v1630
        %v1633 = vmul.f32 %v1631, 1.442695
        %v1634 = vpow.pop %v1633
        %v1635 = vmul.f32 %v1632, 1.442695
        %v1636 = vpow.pop %v1635
        %v1637 = vsel %vm624, %v1634, 0.0
        %1638 = vadd.xlane.f32.xlu0 %v1637
        %v1639 = vpop.xlane.xlu0 %1638
        %v1640 = vsel %vm624, %v1636, 0.0
        %1641 = vadd.xlane.f32.xlu0 %v1640
        %v1642 = vpop.xlane.xlu0 %1641
        %v1643 = vrcp.pop %v1639
        %v1644 = vrcp.pop %v1642
        %v1645 = vmul.f32 %v1634, %v1643
        %v1646 = vmul.f32 %v1636, %v1644
        %1647 = vrot.lane.b32.xlu0 %v510, 44
        %v1648 = vpop.permute.xlu0 %1647
        %1649 = vrot.lane.b32.xlu0 %v515, 44
        %v1650 = vpop.permute.xlu0 %1649
        %v1654 = vsel %vm624, %v1645, 0
        %v1657 = vsel %vm624, %v1646, 0
        %1659 = vmatprep.subr.mxu0 0.0
        %1660 = vmatpush1.msra.mxu0 %v1648
        %1661 = vmatprep.subr.mxu0 0.0
        %1662 = vmatpush1.msra.mxu0 %v1650
        %1663 = vmatprep.subr.mxu0 0.0
        %1664 = vmatpush1.msra.mxu0 0.0
        %1665 = vmatprep.subr.mxu0 0.0
        %1666 = vmatpush1.msra.mxu0 0.0
        %1667 = vmatprep.subr.mxu0 0.0
        %1668 = vmatpush1.msra.mxu0 0.0
        %1669 = vmatprep.subr.mxu0 0.0
        %1670 = vmatpush1.msra.mxu0 0.0
        %1671 = vmatprep.subr.mxu0 0.0
        %1672 = vmatpush1.msra.mxu0 0.0
        %1673 = vmatprep.subr.mxu0 0.0
        %1674 = vmatpush1.msra.mxu0 0.0
        %1675 = vmatprep.subr.mxu0 0.0
        %1676 = vmatpush1.msra.mxu0 0.0
        %1677 = vmatprep.subr.mxu0 0.0
        %1678 = vmatpush1.msra.mxu0 0.0
        %1679 = vmatprep.subr.mxu0 0.0
        %1680 = vmatpush1.msra.mxu0 0.0
        %1681 = vmatprep.subr.mxu0 0.0
        %1682 = vmatpush1.msra.mxu0 0.0
        %1683 = vmatprep.subr.mxu0 0.0
        %1684 = vmatpush1.msra.mxu0 0.0
        %1685 = vmatprep.subr.mxu0 0.0
        %1686 = vmatpush1.msra.mxu0 0.0
        %1687 = vmatprep.subr.mxu0 0.0
        %1688 = vmatpush1.msra.mxu0 0.0
        %1689 = vmatprep.subr.mxu0 0.0
        %1690 = vmatpush1.msra.mxu0 0.0
        %1691 = vmatprep.subr.mxu0 0.0
        %1692 = vmatpush1.msra.mxu0 0.0
        %1693 = vmatprep.subr.mxu0 0.0
        %1694 = vmatpush1.msra.mxu0 0.0
        %1695 = vmatprep.subr.mxu0 0.0
        %1696 = vmatpush1.msra.mxu0 0.0
        %1697 = vmatprep.subr.mxu0 0.0
        %1698 = vmatpush1.msra.mxu0 0.0
        %1699 = vmatprep.subr.mxu0 0.0
        %1700 = vmatpush1.msra.mxu0 0.0
        %1701 = vmatprep.subr.mxu0 0.0
        %1702 = vmatpush1.msra.mxu0 0.0
        %1703 = vmatprep.subr.mxu0 0.0
        %1704 = vmatpush1.msra.mxu0 0.0
        %1705 = vmatprep.subr.mxu0 0.0
        %1706 = vmatpush1.msra.mxu0 0.0
        %1707 = vmatprep.subr.mxu0 0.0
        %1708 = vmatpush1.msra.mxu0 0.0
        %1709 = vmatprep.subr.mxu0 0.0
        %1710 = vmatpush1.msra.mxu0 0.0
        %1711 = vmatprep.subr.mxu0 0.0
        %1712 = vmatpush1.msra.mxu0 0.0
        %1713 = vmatprep.subr.mxu0 0.0
        %1714 = vmatpush1.msra.mxu0 0.0
        %1715 = vmatprep.subr.mxu0 0.0
        %1716 = vmatpush1.msra.mxu0 0.0
        %1717 = vmatprep.subr.mxu0 0.0
        %1718 = vmatpush1.msra.mxu0 0.0
        %1719 = vmatprep.subr.mxu0 0.0
        %1720 = vmatpush1.msra.mxu0 0.0
        %1721 = vmatprep.subr.mxu0 0.0
        %1722 = vmatpush1.msra.mxu0 0.0
        %1723 = vmatprep.mubr.f32.mxu0 0.0
        %1724 = vmatmul.mubr.f32.gmra.mrb[0].mxu0 %v1654
        %v1725 = vpop.f32.mrb[0].mxu0
        %v1726 = vadd.f32 0.0, %v1725
        %v1727 = vpop.f32.mrb[0].mxu0
        %1728 = vmatprep.mubr.f32.mxu0 0.0
        %1729 = vmatmul.mubr.f32.gmra.mrb[0].mxu0 %v1657
        %v1730 = vpop.f32.mrb[0].mxu0
        %v1731 = vadd.f32 0.0, %v1730
        %v1732 = vpop.f32.mrb[0].mxu0
        %1733 = vdwg.mxu0
        %1734 = vrot.lane.b32.xlu0 %v528, 104
        %v1735 = vpop.permute.xlu0 %1734
        %1736 = vrot.lane.b32.xlu0 %v529, 104
        %v1737 = vpop.permute.xlu0 %1736
        %1738 = vrot.lane.b32.xlu0 %v510, 72
        %v1739 = vpop.permute.xlu0 %1738
        %1740 = vrot.lane.b32.xlu0 %v515, 72
        %v1741 = vpop.permute.xlu0 %1740
        %v1742 = vsel %vm538, %v1735, 0
        %v1744 = vsel %vm538, %v1737, 0
        %v1746 = vsel %vm538, %v1739, 0
        %v1748 = vsel %vm538, %v1741, 0
        %1750 = vmatprep.subr.mxu0 0.0
        %1751 = vmatpush1.xpose.msra.mxu0 %v1746
        %1752 = vmatprep.subr.mxu0 0.0
        %1753 = vmatpush1.xpose.msra.mxu0 %v1748
        %1754 = vmatprep.subr.mxu0 0.0
        %1755 = vmatpush1.xpose.msra.mxu0 0.0
        %1756 = vmatprep.subr.mxu0 0.0
        %1757 = vmatpush1.xpose.msra.mxu0 0.0
        %1758 = vmatprep.subr.mxu0 0.0
        %1759 = vmatpush1.xpose.msra.mxu0 0.0
        %1760 = vmatprep.subr.mxu0 0.0
        %1761 = vmatpush1.xpose.msra.mxu0 0.0
        %1762 = vmatprep.subr.mxu0 0.0
        %1763 = vmatpush1.xpose.msra.mxu0 0.0
        %1764 = vmatprep.subr.mxu0 0.0
        %1765 = vmatpush1.xpose.msra.mxu0 0.0
        %1766 = vmatprep.subr.mxu0 0.0
        %1767 = vmatpush1.xpose.msra.mxu0 0.0
        %1768 = vmatprep.subr.mxu0 0.0
        %1769 = vmatpush1.xpose.msra.mxu0 0.0
        %1770 = vmatprep.subr.mxu0 0.0
        %1771 = vmatpush1.xpose.msra.mxu0 0.0
        %1772 = vmatprep.subr.mxu0 0.0
        %1773 = vmatpush1.xpose.msra.mxu0 0.0
        %1774 = vmatprep.subr.mxu0 0.0
        %1775 = vmatpush1.xpose.msra.mxu0 0.0
        %1776 = vmatprep.subr.mxu0 0.0
        %1777 = vmatpush1.xpose.msra.mxu0 0.0
        %1778 = vmatprep.subr.mxu0 0.0
        %1779 = vmatpush1.xpose.msra.mxu0 0.0
        %1780 = vmatprep.subr.mxu0 0.0
        %1781 = vmatpush1.xpose.msra.mxu0 0.0
        %1782 = vmatprep.subr.mxu0 0.0
        %1783 = vmatpush1.xpose.msra.mxu0 0.0
        %1784 = vmatprep.subr.mxu0 0.0
        %1785 = vmatpush1.xpose.msra.mxu0 0.0
        %1786 = vmatprep.subr.mxu0 0.0
        %1787 = vmatpush1.xpose.msra.mxu0 0.0
        %1788 = vmatprep.subr.mxu0 0.0
        %1789 = vmatpush1.xpose.msra.mxu0 0.0
        %1790 = vmatprep.subr.mxu0 0.0
        %1791 = vmatpush1.xpose.msra.mxu0 0.0
        %1792 = vmatprep.subr.mxu0 0.0
        %1793 = vmatpush1.xpose.msra.mxu0 0.0
        %1794 = vmatprep.subr.mxu0 0.0
        %1795 = vmatpush1.xpose.msra.mxu0 0.0
        %1796 = vmatprep.subr.mxu0 0.0
        %1797 = vmatpush1.xpose.msra.mxu0 0.0
        %1798 = vmatprep.subr.mxu0 0.0
        %1799 = vmatpush1.xpose.msra.mxu0 0.0
        %1800 = vmatprep.subr.mxu0 0.0
        %1801 = vmatpush1.xpose.msra.mxu0 0.0
        %1802 = vmatprep.subr.mxu0 0.0
        %1803 = vmatpush1.xpose.msra.mxu0 0.0
        %1804 = vmatprep.subr.mxu0 0.0
        %1805 = vmatpush1.xpose.msra.mxu0 0.0
        %1806 = vmatprep.subr.mxu0 0.0
        %1807 = vmatpush1.xpose.msra.mxu0 0.0
        %1808 = vmatprep.subr.mxu0 0.0
        %1809 = vmatpush1.xpose.msra.mxu0 0.0
        %1810 = vmatprep.subr.mxu0 0.0
        %1811 = vmatpush1.xpose.msra.mxu0 0.0
        %1812 = vmatprep.subr.mxu0 0.0
        %1813 = vmatpush1.xpose.msra.mxu0 0.0
        %1814 = vmatprep.mubr.f32.mxu0 0.0
        %1815 = vmatmul.mubr.f32.gmra.mrb[0].mxu0 %v1742
        %v1816 = vpop.f32.mrb[0].mxu0
        %v1817 = vadd.f32 0.0, %v1816
        %v1818 = vpop.f32.mrb[0].mxu0
        %1819 = vmatprep.mubr.f32.mxu0 0.0
        %1820 = vmatmul.mubr.f32.gmra.mrb[0].mxu0 %v1744
        %v1821 = vpop.f32.mrb[0].mxu0
        %v1822 = vadd.f32 0.0, %v1821
        %v1823 = vpop.f32.mrb[0].mxu0
        %1824 = vdwg.mxu0
        %v1825 = vsel %vm624, %v1817, -inf
        %1826 = vmax.xlane.f32.xlu0 %v1825
        %v1827 = vpop.xlane.xlu0 %1826
        %v1828 = vsel %vm624, %v1822, -inf
        %1829 = vmax.xlane.f32.xlu0 %v1828
        %v1830 = vpop.xlane.xlu0 %1829
        %v1831 = vsub.f32 %v1817, %v1827
        %v1832 = vsub.f32 %v1822, %v1830
        %v1833 = vmul.f32 %v1831, 1.442695
        %v1834 = vpow.pop %v1833
        %v1835 = vmul.f32 %v1832, 1.442695
        %v1836 = vpow.pop %v1835
        %v1837 = vsel %vm624, %v1834, 0.0
        %1838 = vadd.xlane.f32.xlu0 %v1837
        %v1839 = vpop.xlane.xlu0 %1838
        %v1840 = vsel %vm624, %v1836, 0.0
        %1841 = vadd.xlane.f32.xlu0 %v1840
        %v1842 = vpop.xlane.xlu0 %1841
        %v1843 = vrcp.pop %v1839
        %v1844 = vrcp.pop %v1842
        %v1845 = vmul.f32 %v1834, %v1843
        %v1846 = vmul.f32 %v1836, %v1844
        %1847 = vrot.lane.b32.xlu0 %v510, 40
        %v1848 = vpop.permute.xlu0 %1847
        %1849 = vrot.lane.b32.xlu0 %v515, 40
        %v1850 = vpop.permute.xlu0 %1849
        %v1854 = vsel %vm624, %v1845, 0
        %v1857 = vsel %vm624, %v1846, 0
        %1859 = vmatprep.subr.mxu0 0.0
        %1860 = vmatpush1.msra.mxu0 %v1848
        %1861 = vmatprep.subr.mxu0 0.0
        %1862 = vmatpush1.msra.mxu0 %v1850
        %1863 = vmatprep.subr.mxu0 0.0
        %1864 = vmatpush1.msra.mxu0 0.0
        %1865 = vmatprep.subr.mxu0 0.0
        %1866 = vmatpush1.msra.mxu0 0.0
        %1867 = vmatprep.subr.mxu0 0.0
        %1868 = vmatpush1.msra.mxu0 0.0
        %1869 = vmatprep.subr.mxu0 0.0
        %1870 = vmatpush1.msra.mxu0 0.0
        %1871 = vmatprep.subr.mxu0 0.0
        %1872 = vmatpush1.msra.mxu0 0.0
        %1873 = vmatprep.subr.mxu0 0.0
        %1874 = vmatpush1.msra.mxu0 0.0
        %1875 = vmatprep.subr.mxu0 0.0
        %1876 = vmatpush1.msra.mxu0 0.0
        %1877 = vmatprep.subr.mxu0 0.0
        %1878 = vmatpush1.msra.mxu0 0.0
        %1879 = vmatprep.subr.mxu0 0.0
        %1880 = vmatpush1.msra.mxu0 0.0
        %1881 = vmatprep.subr.mxu0 0.0
        %1882 = vmatpush1.msra.mxu0 0.0
        %1883 = vmatprep.subr.mxu0 0.0
        %1884 = vmatpush1.msra.mxu0 0.0
        %1885 = vmatprep.subr.mxu0 0.0
        %1886 = vmatpush1.msra.mxu0 0.0
        %1887 = vmatprep.subr.mxu0 0.0
        %1888 = vmatpush1.msra.mxu0 0.0
        %1889 = vmatprep.subr.mxu0 0.0
        %1890 = vmatpush1.msra.mxu0 0.0
        %1891 = vmatprep.subr.mxu0 0.0
        %1892 = vmatpush1.msra.mxu0 0.0
        %1893 = vmatprep.subr.mxu0 0.0
        %1894 = vmatpush1.msra.mxu0 0.0
        %1895 = vmatprep.subr.mxu0 0.0
        %1896 = vmatpush1.msra.mxu0 0.0
        %1897 = vmatprep.subr.mxu0 0.0
        %1898 = vmatpush1.msra.mxu0 0.0
        %1899 = vmatprep.subr.mxu0 0.0
        %1900 = vmatpush1.msra.mxu0 0.0
        %1901 = vmatprep.subr.mxu0 0.0
        %1902 = vmatpush1.msra.mxu0 0.0
        %1903 = vmatprep.subr.mxu0 0.0
        %1904 = vmatpush1.msra.mxu0 0.0
        %1905 = vmatprep.subr.mxu0 0.0
        %1906 = vmatpush1.msra.mxu0 0.0
        %1907 = vmatprep.subr.mxu0 0.0
        %1908 = vmatpush1.msra.mxu0 0.0
        %1909 = vmatprep.subr.mxu0 0.0
        %1910 = vmatpush1.msra.mxu0 0.0
        %1911 = vmatprep.subr.mxu0 0.0
        %1912 = vmatpush1.msra.mxu0 0.0
        %1913 = vmatprep.subr.mxu0 0.0
        %1914 = vmatpush1.msra.mxu0 0.0
        %1915 = vmatprep.subr.mxu0 0.0
        %1916 = vmatpush1.msra.mxu0 0.0
        %1917 = vmatprep.subr.mxu0 0.0
        %1918 = vmatpush1.msra.mxu0 0.0
        %1919 = vmatprep.subr.mxu0 0.0
        %1920 = vmatpush1.msra.mxu0 0.0
        %1921 = vmatprep.subr.mxu0 0.0
        %1922 = vmatpush1.msra.mxu0 0.0
        %1923 = vmatprep.mubr.f32.mxu0 0.0
        %1924 = vmatmul.mubr.f32.gmra.mrb[0].mxu0 %v1854
        %v1925 = vpop.f32.mrb[0].mxu0
        %v1926 = vadd.f32 0.0, %v1925
        %v1927 = vpop.f32.mrb[0].mxu0
        %1928 = vmatprep.mubr.f32.mxu0 0.0
        %1929 = vmatmul.mubr.f32.gmra.mrb[0].mxu0 %v1857
        %v1930 = vpop.f32.mrb[0].mxu0
        %v1931 = vadd.f32 0.0, %v1930
        %v1932 = vpop.f32.mrb[0].mxu0
        %1933 = vdwg.mxu0
        %1934 = vrot.lane.b32.xlu0 %v528, 100
        %v1935 = vpop.permute.xlu0 %1934
        %1936 = vrot.lane.b32.xlu0 %v529, 100
        %v1937 = vpop.permute.xlu0 %1936
        %1938 = vrot.lane.b32.xlu0 %v510, 68
        %v1939 = vpop.permute.xlu0 %1938
        %1940 = vrot.lane.b32.xlu0 %v515, 68
        %v1941 = vpop.permute.xlu0 %1940
        %v1942 = vsel %vm538, %v1935, 0
        %v1944 = vsel %vm538, %v1937, 0
        %v1946 = vsel %vm538, %v1939, 0
        %v1948 = vsel %vm538, %v1941, 0
        %1950 = vmatprep.subr.mxu0 0.0
        %1951 = vmatpush1.xpose.msra.mxu0 %v1946
        %1952 = vmatprep.subr.mxu0 0.0
        %1953 = vmatpush1.xpose.msra.mxu0 %v1948
        %1954 = vmatprep.subr.mxu0 0.0
        %1955 = vmatpush1.xpose.msra.mxu0 0.0
        %1956 = vmatprep.subr.mxu0 0.0
        %1957 = vmatpush1.xpose.msra.mxu0 0.0
        %1958 = vmatprep.subr.mxu0 0.0
        %1959 = vmatpush1.xpose.msra.mxu0 0.0
        %1960 = vmatprep.subr.mxu0 0.0
        %1961 = vmatpush1.xpose.msra.mxu0 0.0
        %1962 = vmatprep.subr.mxu0 0.0
        %1963 = vmatpush1.xpose.msra.mxu0 0.0
        %1964 = vmatprep.subr.mxu0 0.0
        %1965 = vmatpush1.xpose.msra.mxu0 0.0
        %1966 = vmatprep.subr.mxu0 0.0
        %1967 = vmatpush1.xpose.msra.mxu0 0.0
        %1968 = vmatprep.subr.mxu0 0.0
        %1969 = vmatpush1.xpose.msra.mxu0 0.0
        %1970 = vmatprep.subr.mxu0 0.0
        %1971 = vmatpush1.xpose.msra.mxu0 0.0
        %1972 = vmatprep.subr.mxu0 0.0
        %1973 = vmatpush1.xpose.msra.mxu0 0.0
        %1974 = vmatprep.subr.mxu0 0.0
        %1975 = vmatpush1.xpose.msra.mxu0 0.0
        %1976 = vmatprep.subr.mxu0 0.0
        %1977 = vmatpush1.xpose.msra.mxu0 0.0
        %1978 = vmatprep.subr.mxu0 0.0
        %1979 = vmatpush1.xpose.msra.mxu0 0.0
        %1980 = vmatprep.subr.mxu0 0.0
        %1981 = vmatpush1.xpose.msra.mxu0 0.0
        %1982 = vmatprep.subr.mxu0 0.0
        %1983 = vmatpush1.xpose.msra.mxu0 0.0
        %1984 = vmatprep.subr.mxu0 0.0
        %1985 = vmatpush1.xpose.msra.mxu0 0.0
        %1986 = vmatprep.subr.mxu0 0.0
        %1987 = vmatpush1.xpose.msra.mxu0 0.0
        %1988 = vmatprep.subr.mxu0 0.0
        %1989 = vmatpush1.xpose.msra.mxu0 0.0
        %1990 = vmatprep.subr.mxu0 0.0
        %1991 = vmatpush1.xpose.msra.mxu0 0.0
        %1992 = vmatprep.subr.mxu0 0.0
        %1993 = vmatpush1.xpose.msra.mxu0 0.0
        %1994 = vmatprep.subr.mxu0 0.0
        %1995 = vmatpush1.xpose.msra.mxu0 0.0
        %1996 = vmatprep.subr.mxu0 0.0
        %1997 = vmatpush1.xpose.msra.mxu0 0.0
        %1998 = vmatprep.subr.mxu0 0.0
        %1999 = vmatpush1.xpose.msra.mxu0 0.0
        %2000 = vmatprep.subr.mxu0 0.0
        %2001 = vmatpush1.xpose.msra.mxu0 0.0
        %2002 = vmatprep.subr.mxu0 0.0
        %2003 = vmatpush1.xpose.msra.mxu0 0.0
        %2004 = vmatprep.subr.mxu0 0.0
        %2005 = vmatpush1.xpose.msra.mxu0 0.0
        %2006 = vmatprep.subr.mxu0 0.0
        %2007 = vmatpush1.xpose.msra.mxu0 0.0
        %2008 = vmatprep.subr.mxu0 0.0
        %2009 = vmatpush1.xpose.msra.mxu0 0.0
        %2010 = vmatprep.subr.mxu0 0.0
        %2011 = vmatpush1.xpose.msra.mxu0 0.0
        %2012 = vmatprep.subr.mxu0 0.0
        %2013 = vmatpush1.xpose.msra.mxu0 0.0
        %2014 = vmatprep.mubr.f32.mxu0 0.0
        %2015 = vmatmul.mubr.f32.gmra.mrb[0].mxu0 %v1942
        %v2016 = vpop.f32.mrb[0].mxu0
        %v2017 = vadd.f32 0.0, %v2016
        %v2018 = vpop.f32.mrb[0].mxu0
        %2019 = vmatprep.mubr.f32.mxu0 0.0
        %2020 = vmatmul.mubr.f32.gmra.mrb[0].mxu0 %v1944
        %v2021 = vpop.f32.mrb[0].mxu0
        %v2022 = vadd.f32 0.0, %v2021
        %v2023 = vpop.f32.mrb[0].mxu0
        %2024 = vdwg.mxu0
        %v2025 = vsel %vm624, %v2017, -inf
        %2026 = vmax.xlane.f32.xlu0 %v2025
        %v2027 = vpop.xlane.xlu0 %2026
        %v2028 = vsel %vm624, %v2022, -inf
        %2029 = vmax.xlane.f32.xlu0 %v2028
        %v2030 = vpop.xlane.xlu0 %2029
        %v2031 = vsub.f32 %v2017, %v2027
        %v2032 = vsub.f32 %v2022, %v2030
        %v2033 = vmul.f32 %v2031, 1.442695
        %v2034 = vpow.pop %v2033
        %v2035 = vmul.f32 %v2032, 1.442695
        %v2036 = vpow.pop %v2035
        %v2037 = vsel %vm624, %v2034, 0.0
        %2038 = vadd.xlane.f32.xlu0 %v2037
        %v2039 = vpop.xlane.xlu0 %2038
        %v2040 = vsel %vm624, %v2036, 0.0
        %2041 = vadd.xlane.f32.xlu0 %v2040
        %v2042 = vpop.xlane.xlu0 %2041
        %v2043 = vrcp.pop %v2039
        %v2044 = vrcp.pop %v2042
        %v2045 = vmul.f32 %v2034, %v2043
        %v2046 = vmul.f32 %v2036, %v2044
        %2047 = vrot.lane.b32.xlu0 %v510, 36
        %v2048 = vpop.permute.xlu0 %2047
        %2049 = vrot.lane.b32.xlu0 %v515, 36
        %v2050 = vpop.permute.xlu0 %2049
        %v2054 = vsel %vm624, %v2045, 0
        %v2057 = vsel %vm624, %v2046, 0
        %2059 = vmatprep.subr.mxu0 0.0
        %2060 = vmatpush1.msra.mxu0 %v2048
        %2061 = vmatprep.subr.mxu0 0.0
        %2062 = vmatpush1.msra.mxu0 %v2050
        %2063 = vmatprep.subr.mxu0 0.0
        %2064 = vmatpush1.msra.mxu0 0.0
        %2065 = vmatprep.subr.mxu0 0.0
        %2066 = vmatpush1.msra.mxu0 0.0
        %2067 = vmatprep.subr.mxu0 0.0
        %2068 = vmatpush1.msra.mxu0 0.0
        %2069 = vmatprep.subr.mxu0 0.0
        %2070 = vmatpush1.msra.mxu0 0.0
        %2071 = vmatprep.subr.mxu0 0.0
        %2072 = vmatpush1.msra.mxu0 0.0
        %2073 = vmatprep.subr.mxu0 0.0
        %2074 = vmatpush1.msra.mxu0 0.0
        %2075 = vmatprep.subr.mxu0 0.0
        %2076 = vmatpush1.msra.mxu0 0.0
        %2077 = vmatprep.subr.mxu0 0.0
        %2078 = vmatpush1.msra.mxu0 0.0
        %2079 = vmatprep.subr.mxu0 0.0
        %2080 = vmatpush1.msra.mxu0 0.0
        %2081 = vmatprep.subr.mxu0 0.0
        %2082 = vmatpush1.msra.mxu0 0.0
        %2083 = vmatprep.subr.mxu0 0.0
        %2084 = vmatpush1.msra.mxu0 0.0
        %2085 = vmatprep.subr.mxu0 0.0
        %2086 = vmatpush1.msra.mxu0 0.0
        %2087 = vmatprep.subr.mxu0 0.0
        %2088 = vmatpush1.msra.mxu0 0.0
        %2089 = vmatprep.subr.mxu0 0.0
        %2090 = vmatpush1.msra.mxu0 0.0
        %2091 = vmatprep.subr.mxu0 0.0
        %2092 = vmatpush1.msra.mxu0 0.0
        %2093 = vmatprep.subr.mxu0 0.0
        %2094 = vmatpush1.msra.mxu0 0.0
        %2095 = vmatprep.subr.mxu0 0.0
        %2096 = vmatpush1.msra.mxu0 0.0
        %2097 = vmatprep.subr.mxu0 0.0
        %2098 = vmatpush1.msra.mxu0 0.0
        %2099 = vmatprep.subr.mxu0 0.0
        %2100 = vmatpush1.msra.mxu0 0.0
        %2101 = vmatprep.subr.mxu0 0.0
        %2102 = vmatpush1.msra.mxu0 0.0
        %2103 = vmatprep.subr.mxu0 0.0
        %2104 = vmatpush1.msra.mxu0 0.0
        %2105 = vmatprep.subr.mxu0 0.0
        %2106 = vmatpush1.msra.mxu0 0.0
        %2107 = vmatprep.subr.mxu0 0.0
        %2108 = vmatpush1.msra.mxu0 0.0
        %2109 = vmatprep.subr.mxu0 0.0
        %2110 = vmatpush1.msra.mxu0 0.0
        %2111 = vmatprep.subr.mxu0 0.0
        %2112 = vmatpush1.msra.mxu0 0.0
        %2113 = vmatprep.subr.mxu0 0.0
        %2114 = vmatpush1.msra.mxu0 0.0
        %2115 = vmatprep.subr.mxu0 0.0
        %2116 = vmatpush1.msra.mxu0 0.0
        %2117 = vmatprep.subr.mxu0 0.0
        %2118 = vmatpush1.msra.mxu0 0.0
        %2119 = vmatprep.subr.mxu0 0.0
        %2120 = vmatpush1.msra.mxu0 0.0
        %2121 = vmatprep.subr.mxu0 0.0
        %2122 = vmatpush1.msra.mxu0 0.0
        %2123 = vmatprep.mubr.f32.mxu0 0.0
        %2124 = vmatmul.mubr.f32.gmra.mrb[0].mxu0 %v2054
        %v2125 = vpop.f32.mrb[0].mxu0
        %v2126 = vadd.f32 0.0, %v2125
        %v2127 = vpop.f32.mrb[0].mxu0
        %2128 = vmatprep.mubr.f32.mxu0 0.0
        %2129 = vmatmul.mubr.f32.gmra.mrb[0].mxu0 %v2057
        %v2130 = vpop.f32.mrb[0].mxu0
        %v2131 = vadd.f32 0.0, %v2130
        %v2132 = vpop.f32.mrb[0].mxu0
        %2133 = vdwg.mxu0
        %2136 = vrot.lane.b32.xlu0 %v926, 4
        %v2137 = vpop.permute.xlu0 %2136
        %2138 = vrot.lane.b32.xlu0 %v931, 4
        %v2139 = vpop.permute.xlu0 %2138
        %2144 = vrot.lane.b32.xlu0 %v1126, 8
        %v2145 = vpop.permute.xlu0 %2144
        %2146 = vrot.lane.b32.xlu0 %v1131, 8
        %v2147 = vpop.permute.xlu0 %2146
        %2152 = vrot.lane.b32.xlu0 %v1326, 12
        %v2153 = vpop.permute.xlu0 %2152
        %2154 = vrot.lane.b32.xlu0 %v1331, 12
        %v2155 = vpop.permute.xlu0 %2154
        %2160 = vrot.lane.b32.xlu0 %v1526, 16
        %v2161 = vpop.permute.xlu0 %2160
        %2162 = vrot.lane.b32.xlu0 %v1531, 16
        %v2163 = vpop.permute.xlu0 %2162
        %2168 = vrot.lane.b32.xlu0 %v1726, 20
        %v2169 = vpop.permute.xlu0 %2168
        %2170 = vrot.lane.b32.xlu0 %v1731, 20
        %v2171 = vpop.permute.xlu0 %2170
        %2176 = vrot.lane.b32.xlu0 %v1926, 24
        %v2177 = vpop.permute.xlu0 %2176
        %2178 = vrot.lane.b32.xlu0 %v1931, 24
        %v2179 = vpop.permute.xlu0 %2178
        %2184 = vrot.lane.b32.xlu0 %v2126, 28
        %v2185 = vpop.permute.xlu0 %2184
        %2186 = vrot.lane.b32.xlu0 %v2131, 28
        %v2187 = vpop.permute.xlu0 %2186
        %v2190 = vsel %vm538, %v726, %v2137
        %v2191 = vsel %vm538, %v731, %v2139
        %vm2192 = vcmask 64512
        %v2193 = vsel %vm2192, %v2190, %v2145
        %v2194 = vsel %vm2192, %v2191, %v2147
        %vm2195 = vcmask 97280
        %v2196 = vsel %vm2195, %v2193, %v2153
        %v2197 = vsel %vm2195, %v2194, %v2155
        %v2198 = vsel %vm624, %v2196, %v2161
        %v2199 = vsel %vm624, %v2197, %v2163
        %vm2200 = vcmask 162816
        %v2201 = vsel %vm2200, %v2198, %v2169
        %v2202 = vsel %vm2200, %v2199, %v2171
        %vm2203 = vcmask 195584
        %v2204 = vsel %vm2203, %v2201, %v2177
        %v2205 = vsel %vm2203, %v2202, %v2179
        %vm2206 = vcmask 228352
        %v2207 = vsel %vm2206, %v2204, %v2185
        %v2208 = vsel %vm2206, %v2205, %v2187
        %2211 = vrot.lane.b32.xlu0 %v520, 96
        %v2212 = vpop.permute.xlu0 %2211
        %2213 = vrot.lane.b32.xlu0 %v525, 96
        %v2214 = vpop.permute.xlu0 %2213
        %v2216 = vsel %vm538, %v530, 0
        %v2219 = vsel %vm538, %v531, 0
        %v2221 = vsel %vm538, %v2212, 0
        %v2223 = vsel %vm538, %v2214, 0
        %2225 = vmatprep.subr.mxu0 0.0
        %2226 = vmatpush1.xpose.msra.mxu0 %v2221
        %2227 = vmatprep.subr.mxu0 0.0
        %2228 = vmatpush1.xpose.msra.mxu0 %v2223
        %2229 = vmatprep.subr.mxu0 0.0
        %2230 = vmatpush1.xpose.msra.mxu0 0.0
        %2231 = vmatprep.subr.mxu0 0.0
        %2232 = vmatpush1.xpose.msra.mxu0 0.0
        %2233 = vmatprep.subr.mxu0 0.0
        %2234 = vmatpush1.xpose.msra.mxu0 0.0
        %2235 = vmatprep.subr.mxu0 0.0
        %2236 = vmatpush1.xpose.msra.mxu0 0.0
        %2237 = vmatprep.subr.mxu0 0.0
        %2238 = vmatpush1.xpose.msra.mxu0 0.0
        %2239 = vmatprep.subr.mxu0 0.0
        %2240 = vmatpush1.xpose.msra.mxu0 0.0
        %2241 = vmatprep.subr.mxu0 0.0
        %2242 = vmatpush1.xpose.msra.mxu0 0.0
        %2243 = vmatprep.subr.mxu0 0.0
        %2244 = vmatpush1.xpose.msra.mxu0 0.0
        %2245 = vmatprep.subr.mxu0 0.0
        %2246 = vmatpush1.xpose.msra.mxu0 0.0
        %2247 = vmatprep.subr.mxu0 0.0
        %2248 = vmatpush1.xpose.msra.mxu0 0.0
        %2249 = vmatprep.subr.mxu0 0.0
        %2250 = vmatpush1.xpose.msra.mxu0 0.0
        %2251 = vmatprep.subr.mxu0 0.0
        %2252 = vmatpush1.xpose.msra.mxu0 0.0
        %2253 = vmatprep.subr.mxu0 0.0
        %2254 = vmatpush1.xpose.msra.mxu0 0.0
        %2255 = vmatprep.subr.mxu0 0.0
        %2256 = vmatpush1.xpose.msra.mxu0 0.0
        %2257 = vmatprep.subr.mxu0 0.0
        %2258 = vmatpush1.xpose.msra.mxu0 0.0
        %2259 = vmatprep.subr.mxu0 0.0
        %2260 = vmatpush1.xpose.msra.mxu0 0.0
        %2261 = vmatprep.subr.mxu0 0.0
        %2262 = vmatpush1.xpose.msra.mxu0 0.0
        %2263 = vmatprep.subr.mxu0 0.0
        %2264 = vmatpush1.xpose.msra.mxu0 0.0
        %2265 = vmatprep.subr.mxu0 0.0
        %2266 = vmatpush1.xpose.msra.mxu0 0.0
        %2267 = vmatprep.subr.mxu0 0.0
        %2268 = vmatpush1.xpose.msra.mxu0 0.0
        %2269 = vmatprep.subr.mxu0 0.0
        %2270 = vmatpush1.xpose.msra.mxu0 0.0
        %2271 = vmatprep.subr.mxu0 0.0
        %2272 = vmatpush1.xpose.msra.mxu0 0.0
        %2273 = vmatprep.subr.mxu0 0.0
        %2274 = vmatpush1.xpose.msra.mxu0 0.0
        %2275 = vmatprep.subr.mxu0 0.0
        %2276 = vmatpush1.xpose.msra.mxu0 0.0
        %2277 = vmatprep.subr.mxu0 0.0
        %2278 = vmatpush1.xpose.msra.mxu0 0.0
        %2279 = vmatprep.subr.mxu0 0.0
        %2280 = vmatpush1.xpose.msra.mxu0 0.0
        %2281 = vmatprep.subr.mxu0 0.0
        %2282 = vmatpush1.xpose.msra.mxu0 0.0
        %2283 = vmatprep.subr.mxu0 0.0
        %2284 = vmatpush1.xpose.msra.mxu0 0.0
        %2285 = vmatprep.subr.mxu0 0.0
        %2286 = vmatpush1.xpose.msra.mxu0 0.0
        %2287 = vmatprep.subr.mxu0 0.0
        %2288 = vmatpush1.xpose.msra.mxu0 0.0
        %2289 = vmatprep.mubr.f32.mxu0 0.0
        %2290 = vmatmul.mubr.f32.gmra.mrb[0].mxu0 %v2216
        %v2291 = vpop.f32.mrb[0].mxu0
        %v2292 = vadd.f32 0.0, %v2291
        %v2293 = vpop.f32.mrb[0].mxu0
        %2294 = vmatprep.mubr.f32.mxu0 0.0
        %2295 = vmatmul.mubr.f32.gmra.mrb[0].mxu0 %v2219
        %v2296 = vpop.f32.mrb[0].mxu0
        %v2297 = vadd.f32 0.0, %v2296
        %v2298 = vpop.f32.mrb[0].mxu0
        %2299 = vdwg.mxu0
        %v2300 = vsel %vm624, %v2292, -inf
        %2301 = vmax.xlane.f32.xlu0 %v2300
        %v2302 = vpop.xlane.xlu0 %2301
        %v2303 = vsel %vm624, %v2297, -inf
        %2304 = vmax.xlane.f32.xlu0 %v2303
        %v2305 = vpop.xlane.xlu0 %2304
        %v2306 = vsub.f32 %v2292, %v2302
        %v2307 = vsub.f32 %v2297, %v2305
        %v2308 = vmul.f32 %v2306, 1.442695
        %v2309 = vpow.pop %v2308
        %v2310 = vmul.f32 %v2307, 1.442695
        %v2311 = vpow.pop %v2310
        %v2312 = vsel %vm624, %v2309, 0.0
        %2313 = vadd.xlane.f32.xlu0 %v2312
        %v2314 = vpop.xlane.xlu0 %2313
        %v2315 = vsel %vm624, %v2311, 0.0
        %2316 = vadd.xlane.f32.xlu0 %v2315
        %v2317 = vpop.xlane.xlu0 %2316
        %v2318 = vrcp.pop %v2314
        %v2319 = vrcp.pop %v2317
        %v2320 = vmul.f32 %v2309, %v2318
        %v2321 = vmul.f32 %v2311, %v2319
        %2322 = vrot.lane.b32.xlu0 %v520, 64
        %v2323 = vpop.permute.xlu0 %2322
        %2324 = vrot.lane.b32.xlu0 %v525, 64
        %v2325 = vpop.permute.xlu0 %2324
        %v2329 = vsel %vm624, %v2320, 0
        %v2332 = vsel %vm624, %v2321, 0
        %2334 = vmatprep.subr.mxu0 0.0
        %2335 = vmatpush1.msra.mxu0 %v2323
        %2336 = vmatprep.subr.mxu0 0.0
        %2337 = vmatpush1.msra.mxu0 %v2325
        %2338 = vmatprep.subr.mxu0 0.0
        %2339 = vmatpush1.msra.mxu0 0.0
        %2340 = vmatprep.subr.mxu0 0.0
        %2341 = vmatpush1.msra.mxu0 0.0
        %2342 = vmatprep.subr.mxu0 0.0
        %2343 = vmatpush1.msra.mxu0 0.0
        %2344 = vmatprep.subr.mxu0 0.0
        %2345 = vmatpush1.msra.mxu0 0.0
        %2346 = vmatprep.subr.mxu0 0.0
        %2347 = vmatpush1.msra.mxu0 0.0
        %2348 = vmatprep.subr.mxu0 0.0
        %2349 = vmatpush1.msra.mxu0 0.0
        %2350 = vmatprep.subr.mxu0 0.0
        %2351 = vmatpush1.msra.mxu0 0.0
        %2352 = vmatprep.subr.mxu0 0.0
        %2353 = vmatpush1.msra.mxu0 0.0
        %2354 = vmatprep.subr.mxu0 0.0
        %2355 = vmatpush1.msra.mxu0 0.0
        %2356 = vmatprep.subr.mxu0 0.0
        %2357 = vmatpush1.msra.mxu0 0.0
        %2358 = vmatprep.subr.mxu0 0.0
        %2359 = vmatpush1.msra.mxu0 0.0
        %2360 = vmatprep.subr.mxu0 0.0
        %2361 = vmatpush1.msra.mxu0 0.0
        %2362 = vmatprep.subr.mxu0 0.0
        %2363 = vmatpush1.msra.mxu0 0.0
        %2364 = vmatprep.subr.mxu0 0.0
        %2365 = vmatpush1.msra.mxu0 0.0
        %2366 = vmatprep.subr.mxu0 0.0
        %2367 = vmatpush1.msra.mxu0 0.0
        %2368 = vmatprep.subr.mxu0 0.0
        %2369 = vmatpush1.msra.mxu0 0.0
        %2370 = vmatprep.subr.mxu0 0.0
        %2371 = vmatpush1.msra.mxu0 0.0
        %2372 = vmatprep.subr.mxu0 0.0
        %2373 = vmatpush1.msra.mxu0 0.0
        %2374 = vmatprep.subr.mxu0 0.0
        %2375 = vmatpush1.msra.mxu0 0.0
        %2376 = vmatprep.subr.mxu0 0.0
        %2377 = vmatpush1.msra.mxu0 0.0
        %2378 = vmatprep.subr.mxu0 0.0
        %2379 = vmatpush1.msra.mxu0 0.0
        %2380 = vmatprep.subr.mxu0 0.0
        %2381 = vmatpush1.msra.mxu0 0.0
        %2382 = vmatprep.subr.mxu0 0.0
        %2383 = vmatpush1.msra.mxu0 0.0
        %2384 = vmatprep.subr.mxu0 0.0
        %2385 = vmatpush1.msra.mxu0 0.0
        %2386 = vmatprep.subr.mxu0 0.0
        %2387 = vmatpush1.msra.mxu0 0.0
        %2388 = vmatprep.subr.mxu0 0.0
        %2389 = vmatpush1.msra.mxu0 0.0
        %2390 = vmatprep.subr.mxu0 0.0
        %2391 = vmatpush1.msra.mxu0 0.0
        %2392 = vmatprep.subr.mxu0 0.0
        %2393 = vmatpush1.msra.mxu0 0.0
        %2394 = vmatprep.subr.mxu0 0.0
        %2395 = vmatpush1.msra.mxu0 0.0
        %2396 = vmatprep.subr.mxu0 0.0
        %2397 = vmatpush1.msra.mxu0 0.0
        %2398 = vmatprep.mubr.f32.mxu0 0.0
        %2399 = vmatmul.mubr.f32.gmra.mrb[0].mxu0 %v2329
        %v2400 = vpop.f32.mrb[0].mxu0
        %v2401 = vadd.f32 0.0, %v2400
        %v2402 = vpop.f32.mrb[0].mxu0
        %2403 = vmatprep.mubr.f32.mxu0 0.0
        %2404 = vmatmul.mubr.f32.gmra.mrb[0].mxu0 %v2332
        %v2405 = vpop.f32.mrb[0].mxu0
        %v2406 = vadd.f32 0.0, %v2405
        %v2407 = vpop.f32.mrb[0].mxu0
        %2408 = vdwg.mxu0
        %2409 = vrot.lane.b32.xlu0 %v530, 124
        %v2410 = vpop.permute.xlu0 %2409
        %2411 = vrot.lane.b32.xlu0 %v531, 124
        %v2412 = vpop.permute.xlu0 %2411
        %2413 = vrot.lane.b32.xlu0 %v520, 92
        %v2414 = vpop.permute.xlu0 %2413
        %2415 = vrot.lane.b32.xlu0 %v525, 92
        %v2416 = vpop.permute.xlu0 %2415
        %v2417 = vsel %vm538, %v2410, 0
        %v2419 = vsel %vm538, %v2412, 0
        %v2421 = vsel %vm538, %v2414, 0
        %v2423 = vsel %vm538, %v2416, 0
        %2425 = vmatprep.subr.mxu0 0.0
        %2426 = vmatpush1.xpose.msra.mxu0 %v2421
        %2427 = vmatprep.subr.mxu0 0.0
        %2428 = vmatpush1.xpose.msra.mxu0 %v2423
        %2429 = vmatprep.subr.mxu0 0.0
        %2430 = vmatpush1.xpose.msra.mxu0 0.0
        %2431 = vmatprep.subr.mxu0 0.0
        %2432 = vmatpush1.xpose.msra.mxu0 0.0
        %2433 = vmatprep.subr.mxu0 0.0
        %2434 = vmatpush1.xpose.msra.mxu0 0.0
        %2435 = vmatprep.subr.mxu0 0.0
        %2436 = vmatpush1.xpose.msra.mxu0 0.0
        %2437 = vmatprep.subr.mxu0 0.0
        %2438 = vmatpush1.xpose.msra.mxu0 0.0
        %2439 = vmatprep.subr.mxu0 0.0
        %2440 = vmatpush1.xpose.msra.mxu0 0.0
        %2441 = vmatprep.subr.mxu0 0.0
        %2442 = vmatpush1.xpose.msra.mxu0 0.0
        %2443 = vmatprep.subr.mxu0 0.0
        %2444 = vmatpush1.xpose.msra.mxu0 0.0
        %2445 = vmatprep.subr.mxu0 0.0
        %2446 = vmatpush1.xpose.msra.mxu0 0.0
        %2447 = vmatprep.subr.mxu0 0.0
        %2448 = vmatpush1.xpose.msra.mxu0 0.0
        %2449 = vmatprep.subr.mxu0 0.0
        %2450 = vmatpush1.xpose.msra.mxu0 0.0
        %2451 = vmatprep.subr.mxu0 0.0
        %2452 = vmatpush1.xpose.msra.mxu0 0.0
        %2453 = vmatprep.subr.mxu0 0.0
        %2454 = vmatpush1.xpose.msra.mxu0 0.0
        %2455 = vmatprep.subr.mxu0 0.0
        %2456 = vmatpush1.xpose.msra.mxu0 0.0
        %2457 = vmatprep.subr.mxu0 0.0
        %2458 = vmatpush1.xpose.msra.mxu0 0.0
        %2459 = vmatprep.subr.mxu0 0.0
        %2460 = vmatpush1.xpose.msra.mxu0 0.0
        %2461 = vmatprep.subr.mxu0 0.0
        %2462 = vmatpush1.xpose.msra.mxu0 0.0
        %2463 = vmatprep.subr.mxu0 0.0
        %2464 = vmatpush1.xpose.msra.mxu0 0.0
        %2465 = vmatprep.subr.mxu0 0.0
        %2466 = vmatpush1.xpose.msra.mxu0 0.0
        %2467 = vmatprep.subr.mxu0 0.0
        %2468 = vmatpush1.xpose.msra.mxu0 0.0
        %2469 = vmatprep.subr.mxu0 0.0
        %2470 = vmatpush1.xpose.msra.mxu0 0.0
        %2471 = vmatprep.subr.mxu0 0.0
        %2472 = vmatpush1.xpose.msra.mxu0 0.0
        %2473 = vmatprep.subr.mxu0 0.0
        %2474 = vmatpush1.xpose.msra.mxu0 0.0
        %2475 = vmatprep.subr.mxu0 0.0
        %2476 = vmatpush1.xpose.msra.mxu0 0.0
        %2477 = vmatprep.subr.mxu0 0.0
        %2478 = vmatpush1.xpose.msra.mxu0 0.0
        %2479 = vmatprep.subr.mxu0 0.0
        %2480 = vmatpush1.xpose.msra.mxu0 0.0
        %2481 = vmatprep.subr.mxu0 0.0
        %2482 = vmatpush1.xpose.msra.mxu0 0.0
        %2483 = vmatprep.subr.mxu0 0.0
        %2484 = vmatpush1.xpose.msra.mxu0 0.0
        %2485 = vmatprep.subr.mxu0 0.0
        %2486 = vmatpush1.xpose.msra.mxu0 0.0
        %2487 = vmatprep.subr.mxu0 0.0
        %2488 = vmatpush1.xpose.msra.mxu0 0.0
        %2489 = vmatprep.mubr.f32.mxu0 0.0
        %2490 = vmatmul.mubr.f32.gmra.mrb[0].mxu0 %v2417
        %v2491 = vpop.f32.mrb[0].mxu0
        %v2492 = vadd.f32 0.0, %v2491
        %v2493 = vpop.f32.mrb[0].mxu0
        %2494 = vmatprep.mubr.f32.mxu0 0.0
        %2495 = vmatmul.mubr.f32.gmra.mrb[0].mxu0 %v2419
        %v2496 = vpop.f32.mrb[0].mxu0
        %v2497 = vadd.f32 0.0, %v2496
        %v2498 = vpop.f32.mrb[0].mxu0
        %2499 = vdwg.mxu0
        %v2500 = vsel %vm624, %v2492, -inf
        %2501 = vmax.xlane.f32.xlu0 %v2500
        %v2502 = vpop.xlane.xlu0 %2501
        %v2503 = vsel %vm624, %v2497, -inf
        %2504 = vmax.xlane.f32.xlu0 %v2503
        %v2505 = vpop.xlane.xlu0 %2504
        %v2506 = vsub.f32 %v2492, %v2502
        %v2507 = vsub.f32 %v2497, %v2505
        %v2508 = vmul.f32 %v2506, 1.442695
        %v2509 = vpow.pop %v2508
        %v2510 = vmul.f32 %v2507, 1.442695
        %v2511 = vpow.pop %v2510
        %v2512 = vsel %vm624, %v2509, 0.0
        %2513 = vadd.xlane.f32.xlu0 %v2512
        %v2514 = vpop.xlane.xlu0 %2513
        %v2515 = vsel %vm624, %v2511, 0.0
        %2516 = vadd.xlane.f32.xlu0 %v2515
        %v2517 = vpop.xlane.xlu0 %2516
        %v2518 = vrcp.pop %v2514
        %v2519 = vrcp.pop %v2517
        %v2520 = vmul.f32 %v2509, %v2518
        %v2521 = vmul.f32 %v2511, %v2519
        %2522 = vrot.lane.b32.xlu0 %v520, 60
        %v2523 = vpop.permute.xlu0 %2522
        %2524 = vrot.lane.b32.xlu0 %v525, 60
        %v2525 = vpop.permute.xlu0 %2524
        %v2529 = vsel %vm624, %v2520, 0
        %v2532 = vsel %vm624, %v2521, 0
        %2534 = vmatprep.subr.mxu0 0.0
        %2535 = vmatpush1.msra.mxu0 %v2523
        %2536 = vmatprep.subr.mxu0 0.0
        %2537 = vmatpush1.msra.mxu0 %v2525
        %2538 = vmatprep.subr.mxu0 0.0
        %2539 = vmatpush1.msra.mxu0 0.0
        %2540 = vmatprep.subr.mxu0 0.0
        %2541 = vmatpush1.msra.mxu0 0.0
        %2542 = vmatprep.subr.mxu0 0.0
        %2543 = vmatpush1.msra.mxu0 0.0
        %2544 = vmatprep.subr.mxu0 0.0
        %2545 = vmatpush1.msra.mxu0 0.0
        %2546 = vmatprep.subr.mxu0 0.0
        %2547 = vmatpush1.msra.mxu0 0.0
        %2548 = vmatprep.subr.mxu0 0.0
        %2549 = vmatpush1.msra.mxu0 0.0
        %2550 = vmatprep.subr.mxu0 0.0
        %2551 = vmatpush1.msra.mxu0 0.0
        %2552 = vmatprep.subr.mxu0 0.0
        %2553 = vmatpush1.msra.mxu0 0.0
        %2554 = vmatprep.subr.mxu0 0.0
        %2555 = vmatpush1.msra.mxu0 0.0
        %2556 = vmatprep.subr.mxu0 0.0
        %2557 = vmatpush1.msra.mxu0 0.0
        %2558 = vmatprep.subr.mxu0 0.0
        %2559 = vmatpush1.msra.mxu0 0.0
        %2560 = vmatprep.subr.mxu0 0.0
        %2561 = vmatpush1.msra.mxu0 0.0
        %2562 = vmatprep.subr.mxu0 0.0
        %2563 = vmatpush1.msra.mxu0 0.0
        %2564 = vmatprep.subr.mxu0 0.0
        %2565 = vmatpush1.msra.mxu0 0.0
        %2566 = vmatprep.subr.mxu0 0.0
        %2567 = vmatpush1.msra.mxu0 0.0
        %2568 = vmatprep.subr.mxu0 0.0
        %2569 = vmatpush1.msra.mxu0 0.0
        %2570 = vmatprep.subr.mxu0 0.0
        %2571 = vmatpush1.msra.mxu0 0.0
        %2572 = vmatprep.subr.mxu0 0.0
        %2573 = vmatpush1.msra.mxu0 0.0
        %2574 = vmatprep.subr.mxu0 0.0
        %2575 = vmatpush1.msra.mxu0 0.0
        %2576 = vmatprep.subr.mxu0 0.0
        %2577 = vmatpush1.msra.mxu0 0.0
        %2578 = vmatprep.subr.mxu0 0.0
        %2579 = vmatpush1.msra.mxu0 0.0
        %2580 = vmatprep.subr.mxu0 0.0
        %2581 = vmatpush1.msra.mxu0 0.0
        %2582 = vmatprep.subr.mxu0 0.0
        %2583 = vmatpush1.msra.mxu0 0.0
        %2584 = vmatprep.subr.mxu0 0.0
        %2585 = vmatpush1.msra.mxu0 0.0
        %2586 = vmatprep.subr.mxu0 0.0
        %2587 = vmatpush1.msra.mxu0 0.0
        %2588 = vmatprep.subr.mxu0 0.0
        %2589 = vmatpush1.msra.mxu0 0.0
        %2590 = vmatprep.subr.mxu0 0.0
        %2591 = vmatpush1.msra.mxu0 0.0
        %2592 = vmatprep.subr.mxu0 0.0
        %2593 = vmatpush1.msra.mxu0 0.0
        %2594 = vmatprep.subr.mxu0 0.0
        %2595 = vmatpush1.msra.mxu0 0.0
        %2596 = vmatprep.subr.mxu0 0.0
        %2597 = vmatpush1.msra.mxu0 0.0
        %2598 = vmatprep.mubr.f32.mxu0 0.0
        %2599 = vmatmul.mubr.f32.gmra.mrb[0].mxu0 %v2529
        %v2600 = vpop.f32.mrb[0].mxu0
        %v2601 = vadd.f32 0.0, %v2600
        %v2602 = vpop.f32.mrb[0].mxu0
        %2603 = vmatprep.mubr.f32.mxu0 0.0
        %2604 = vmatmul.mubr.f32.gmra.mrb[0].mxu0 %v2532
        %v2605 = vpop.f32.mrb[0].mxu0
        %v2606 = vadd.f32 0.0, %v2605
        %v2607 = vpop.f32.mrb[0].mxu0
        %2608 = vdwg.mxu0
        %2609 = vrot.lane.b32.xlu0 %v530, 120
        %v2610 = vpop.permute.xlu0 %2609
        %2611 = vrot.lane.b32.xlu0 %v531, 120
        %v2612 = vpop.permute.xlu0 %2611
        %2613 = vrot.lane.b32.xlu0 %v520, 88
        %v2614 = vpop.permute.xlu0 %2613
        %2615 = vrot.lane.b32.xlu0 %v525, 88
        %v2616 = vpop.permute.xlu0 %2615
        %v2617 = vsel %vm538, %v2610, 0
        %v2619 = vsel %vm538, %v2612, 0
        %v2621 = vsel %vm538, %v2614, 0
        %v2623 = vsel %vm538, %v2616, 0
        %2625 = vmatprep.subr.mxu0 0.0
        %2626 = vmatpush1.xpose.msra.mxu0 %v2621
        %2627 = vmatprep.subr.mxu0 0.0
        %2628 = vmatpush1.xpose.msra.mxu0 %v2623
        %2629 = vmatprep.subr.mxu0 0.0
        %2630 = vmatpush1.xpose.msra.mxu0 0.0
        %2631 = vmatprep.subr.mxu0 0.0
        %2632 = vmatpush1.xpose.msra.mxu0 0.0
        %2633 = vmatprep.subr.mxu0 0.0
        %2634 = vmatpush1.xpose.msra.mxu0 0.0
        %2635 = vmatprep.subr.mxu0 0.0
        %2636 = vmatpush1.xpose.msra.mxu0 0.0
        %2637 = vmatprep.subr.mxu0 0.0
        %2638 = vmatpush1.xpose.msra.mxu0 0.0
        %2639 = vmatprep.subr.mxu0 0.0
        %2640 = vmatpush1.xpose.msra.mxu0 0.0
        %2641 = vmatprep.subr.mxu0 0.0
        %2642 = vmatpush1.xpose.msra.mxu0 0.0
        %2643 = vmatprep.subr.mxu0 0.0
        %2644 = vmatpush1.xpose.msra.mxu0 0.0
        %2645 = vmatprep.subr.mxu0 0.0
        %2646 = vmatpush1.xpose.msra.mxu0 0.0
        %2647 = vmatprep.subr.mxu0 0.0
        %2648 = vmatpush1.xpose.msra.mxu0 0.0
        %2649 = vmatprep.subr.mxu0 0.0
        %2650 = vmatpush1.xpose.msra.mxu0 0.0
        %2651 = vmatprep.subr.mxu0 0.0
        %2652 = vmatpush1.xpose.msra.mxu0 0.0
        %2653 = vmatprep.subr.mxu0 0.0
        %2654 = vmatpush1.xpose.msra.mxu0 0.0
        %2655 = vmatprep.subr.mxu0 0.0
        %2656 = vmatpush1.xpose.msra.mxu0 0.0
        %2657 = vmatprep.subr.mxu0 0.0
        %2658 = vmatpush1.xpose.msra.mxu0 0.0
        %2659 = vmatprep.subr.mxu0 0.0
        %2660 = vmatpush1.xpose.msra.mxu0 0.0
        %2661 = vmatprep.subr.mxu0 0.0
        %2662 = vmatpush1.xpose.msra.mxu0 0.0
        %2663 = vmatprep.subr.mxu0 0.0
        %2664 = vmatpush1.xpose.msra.mxu0 0.0
        %2665 = vmatprep.subr.mxu0 0.0
        %2666 = vmatpush1.xpose.msra.mxu0 0.0
        %2667 = vmatprep.subr.mxu0 0.0
        %2668 = vmatpush1.xpose.msra.mxu0 0.0
        %2669 = vmatprep.subr.mxu0 0.0
        %2670 = vmatpush1.xpose.msra.mxu0 0.0
        %2671 = vmatprep.subr.mxu0 0.0
        %2672 = vmatpush1.xpose.msra.mxu0 0.0
        %2673 = vmatprep.subr.mxu0 0.0
        %2674 = vmatpush1.xpose.msra.mxu0 0.0
        %2675 = vmatprep.subr.mxu0 0.0
        %2676 = vmatpush1.xpose.msra.mxu0 0.0
        %2677 = vmatprep.subr.mxu0 0.0
        %2678 = vmatpush1.xpose.msra.mxu0 0.0
        %2679 = vmatprep.subr.mxu0 0.0
        %2680 = vmatpush1.xpose.msra.mxu0 0.0
        %2681 = vmatprep.subr.mxu0 0.0
        %2682 = vmatpush1.xpose.msra.mxu0 0.0
        %2683 = vmatprep.subr.mxu0 0.0
        %2684 = vmatpush1.xpose.msra.mxu0 0.0
        %2685 = vmatprep.subr.mxu0 0.0
        %2686 = vmatpush1.xpose.msra.mxu0 0.0
        %2687 = vmatprep.subr.mxu0 0.0
        %2688 = vmatpush1.xpose.msra.mxu0 0.0
        %2689 = vmatprep.mubr.f32.mxu0 0.0
        %2690 = vmatmul.mubr.f32.gmra.mrb[0].mxu0 %v2617
        %v2691 = vpop.f32.mrb[0].mxu0
        %v2692 = vadd.f32 0.0, %v2691
        %v2693 = vpop.f32.mrb[0].mxu0
        %2694 = vmatprep.mubr.f32.mxu0 0.0
        %2695 = vmatmul.mubr.f32.gmra.mrb[0].mxu0 %v2619
        %v2696 = vpop.f32.mrb[0].mxu0
        %v2697 = vadd.f32 0.0, %v2696
        %v2698 = vpop.f32.mrb[0].mxu0
        %2699 = vdwg.mxu0
        %v2700 = vsel %vm624, %v2692, -inf
        %2701 = vmax.xlane.f32.xlu0 %v2700
        %v2702 = vpop.xlane.xlu0 %2701
        %v2703 = vsel %vm624, %v2697, -inf
        %2704 = vmax.xlane.f32.xlu0 %v2703
        %v2705 = vpop.xlane.xlu0 %2704
        %v2706 = vsub.f32 %v2692, %v2702
        %v2707 = vsub.f32 %v2697, %v2705
        %v2708 = vmul.f32 %v2706, 1.442695
        %v2709 = vpow.pop %v2708
        %v2710 = vmul.f32 %v2707, 1.442695
        %v2711 = vpow.pop %v2710
        %v2712 = vsel %vm624, %v2709, 0.0
        %2713 = vadd.xlane.f32.xlu0 %v2712
        %v2714 = vpop.xlane.xlu0 %2713
        %v2715 = vsel %vm624, %v2711, 0.0
        %2716 = vadd.xlane.f32.xlu0 %v2715
        %v2717 = vpop.xlane.xlu0 %2716
        %v2718 = vrcp.pop %v2714
        %v2719 = vrcp.pop %v2717
        %v2720 = vmul.f32 %v2709, %v2718
        %v2721 = vmul.f32 %v2711, %v2719
        %2722 = vrot.lane.b32.xlu0 %v520, 56
        %v2723 = vpop.permute.xlu0 %2722
        %2724 = vrot.lane.b32.xlu0 %v525, 56
        %v2725 = vpop.permute.xlu0 %2724
        %v2729 = vsel %vm624, %v2720, 0
        %v2732 = vsel %vm624, %v2721, 0
        %2734 = vmatprep.subr.mxu0 0.0
        %2735 = vmatpush1.msra.mxu0 %v2723
        %2736 = vmatprep.subr.mxu0 0.0
        %2737 = vmatpush1.msra.mxu0 %v2725
        %2738 = vmatprep.subr.mxu0 0.0
        %2739 = vmatpush1.msra.mxu0 0.0
        %2740 = vmatprep.subr.mxu0 0.0
        %2741 = vmatpush1.msra.mxu0 0.0
        %2742 = vmatprep.subr.mxu0 0.0
        %2743 = vmatpush1.msra.mxu0 0.0
        %2744 = vmatprep.subr.mxu0 0.0
        %2745 = vmatpush1.msra.mxu0 0.0
        %2746 = vmatprep.subr.mxu0 0.0
        %2747 = vmatpush1.msra.mxu0 0.0
        %2748 = vmatprep.subr.mxu0 0.0
        %2749 = vmatpush1.msra.mxu0 0.0
        %2750 = vmatprep.subr.mxu0 0.0
        %2751 = vmatpush1.msra.mxu0 0.0
        %2752 = vmatprep.subr.mxu0 0.0
        %2753 = vmatpush1.msra.mxu0 0.0
        %2754 = vmatprep.subr.mxu0 0.0
        %2755 = vmatpush1.msra.mxu0 0.0
        %2756 = vmatprep.subr.mxu0 0.0
        %2757 = vmatpush1.msra.mxu0 0.0
        %2758 = vmatprep.subr.mxu0 0.0
        %2759 = vmatpush1.msra.mxu0 0.0
        %2760 = vmatprep.subr.mxu0 0.0
        %2761 = vmatpush1.msra.mxu0 0.0
        %2762 = vmatprep.subr.mxu0 0.0
        %2763 = vmatpush1.msra.mxu0 0.0
        %2764 = vmatprep.subr.mxu0 0.0
        %2765 = vmatpush1.msra.mxu0 0.0
        %2766 = vmatprep.subr.mxu0 0.0
        %2767 = vmatpush1.msra.mxu0 0.0
        %2768 = vmatprep.subr.mxu0 0.0
        %2769 = vmatpush1.msra.mxu0 0.0
        %2770 = vmatprep.subr.mxu0 0.0
        %2771 = vmatpush1.msra.mxu0 0.0
        %2772 = vmatprep.subr.mxu0 0.0
        %2773 = vmatpush1.msra.mxu0 0.0
        %2774 = vmatprep.subr.mxu0 0.0
        %2775 = vmatpush1.msra.mxu0 0.0
        %2776 = vmatprep.subr.mxu0 0.0
        %2777 = vmatpush1.msra.mxu0 0.0
        %2778 = vmatprep.subr.mxu0 0.0
        %2779 = vmatpush1.msra.mxu0 0.0
        %2780 = vmatprep.subr.mxu0 0.0
        %2781 = vmatpush1.msra.mxu0 0.0
        %2782 = vmatprep.subr.mxu0 0.0
        %2783 = vmatpush1.msra.mxu0 0.0
        %2784 = vmatprep.subr.mxu0 0.0
        %2785 = vmatpush1.msra.mxu0 0.0
        %2786 = vmatprep.subr.mxu0 0.0
        %2787 = vmatpush1.msra.mxu0 0.0
        %2788 = vmatprep.subr.mxu0 0.0
        %2789 = vmatpush1.msra.mxu0 0.0
        %2790 = vmatprep.subr.mxu0 0.0
        %2791 = vmatpush1.msra.mxu0 0.0
        %2792 = vmatprep.subr.mxu0 0.0
        %2793 = vmatpush1.msra.mxu0 0.0
        %2794 = vmatprep.subr.mxu0 0.0
        %2795 = vmatpush1.msra.mxu0 0.0
        %2796 = vmatprep.subr.mxu0 0.0
        %2797 = vmatpush1.msra.mxu0 0.0
        %2798 = vmatprep.mubr.f32.mxu0 0.0
        %2799 = vmatmul.mubr.f32.gmra.mrb[0].mxu0 %v2729
        %v2800 = vpop.f32.mrb[0].mxu0
        %v2801 = vadd.f32 0.0, %v2800
        %v2802 = vpop.f32.mrb[0].mxu0
        %2803 = vmatprep.mubr.f32.mxu0 0.0
        %2804 = vmatmul.mubr.f32.gmra.mrb[0].mxu0 %v2732
        %v2805 = vpop.f32.mrb[0].mxu0
        %v2806 = vadd.f32 0.0, %v2805
        %v2807 = vpop.f32.mrb[0].mxu0
        %2808 = vdwg.mxu0
        %2809 = vrot.lane.b32.xlu0 %v530, 116
        %v2810 = vpop.permute.xlu0 %2809
        %2811 = vrot.lane.b32.xlu0 %v531, 116
        %v2812 = vpop.permute.xlu0 %2811
        %2813 = vrot.lane.b32.xlu0 %v520, 84
        %v2814 = vpop.permute.xlu0 %2813
        %2815 = vrot.lane.b32.xlu0 %v525, 84
        %v2816 = vpop.permute.xlu0 %2815
        %v2817 = vsel %vm538, %v2810, 0
        %v2819 = vsel %vm538, %v2812, 0
        %v2821 = vsel %vm538, %v2814, 0
        %v2823 = vsel %vm538, %v2816, 0
        %2825 = vmatprep.subr.mxu0 0.0
        %2826 = vmatpush1.xpose.msra.mxu0 %v2821
        %2827 = vmatprep.subr.mxu0 0.0
        %2828 = vmatpush1.xpose.msra.mxu0 %v2823
        %2829 = vmatprep.subr.mxu0 0.0
        %2830 = vmatpush1.xpose.msra.mxu0 0.0
        %2831 = vmatprep.subr.mxu0 0.0
        %2832 = vmatpush1.xpose.msra.mxu0 0.0
        %2833 = vmatprep.subr.mxu0 0.0
        %2834 = vmatpush1.xpose.msra.mxu0 0.0
        %2835 = vmatprep.subr.mxu0 0.0
        %2836 = vmatpush1.xpose.msra.mxu0 0.0
        %2837 = vmatprep.subr.mxu0 0.0
        %2838 = vmatpush1.xpose.msra.mxu0 0.0
        %2839 = vmatprep.subr.mxu0 0.0
        %2840 = vmatpush1.xpose.msra.mxu0 0.0
        %2841 = vmatprep.subr.mxu0 0.0
        %2842 = vmatpush1.xpose.msra.mxu0 0.0
        %2843 = vmatprep.subr.mxu0 0.0
        %2844 = vmatpush1.xpose.msra.mxu0 0.0
        %2845 = vmatprep.subr.mxu0 0.0
        %2846 = vmatpush1.xpose.msra.mxu0 0.0
        %2847 = vmatprep.subr.mxu0 0.0
        %2848 = vmatpush1.xpose.msra.mxu0 0.0
        %2849 = vmatprep.subr.mxu0 0.0
        %2850 = vmatpush1.xpose.msra.mxu0 0.0
        %2851 = vmatprep.subr.mxu0 0.0
        %2852 = vmatpush1.xpose.msra.mxu0 0.0
        %2853 = vmatprep.subr.mxu0 0.0
        %2854 = vmatpush1.xpose.msra.mxu0 0.0
        %2855 = vmatprep.subr.mxu0 0.0
        %2856 = vmatpush1.xpose.msra.mxu0 0.0
        %2857 = vmatprep.subr.mxu0 0.0
        %2858 = vmatpush1.xpose.msra.mxu0 0.0
        %2859 = vmatprep.subr.mxu0 0.0
        %2860 = vmatpush1.xpose.msra.mxu0 0.0
        %2861 = vmatprep.subr.mxu0 0.0
        %2862 = vmatpush1.xpose.msra.mxu0 0.0
        %2863 = vmatprep.subr.mxu0 0.0
        %2864 = vmatpush1.xpose.msra.mxu0 0.0
        %2865 = vmatprep.subr.mxu0 0.0
        %2866 = vmatpush1.xpose.msra.mxu0 0.0
        %2867 = vmatprep.subr.mxu0 0.0
        %2868 = vmatpush1.xpose.msra.mxu0 0.0
        %2869 = vmatprep.subr.mxu0 0.0
        %2870 = vmatpush1.xpose.msra.mxu0 0.0
        %2871 = vmatprep.subr.mxu0 0.0
        %2872 = vmatpush1.xpose.msra.mxu0 0.0
        %2873 = vmatprep.subr.mxu0 0.0
        %2874 = vmatpush1.xpose.msra.mxu0 0.0
        %2875 = vmatprep.subr.mxu0 0.0
        %2876 = vmatpush1.xpose.msra.mxu0 0.0
        %2877 = vmatprep.subr.mxu0 0.0
        %2878 = vmatpush1.xpose.msra.mxu0 0.0
        %2879 = vmatprep.subr.mxu0 0.0
        %2880 = vmatpush1.xpose.msra.mxu0 0.0
        %2881 = vmatprep.subr.mxu0 0.0
        %2882 = vmatpush1.xpose.msra.mxu0 0.0
        %2883 = vmatprep.subr.mxu0 0.0
        %2884 = vmatpush1.xpose.msra.mxu0 0.0
        %2885 = vmatprep.subr.mxu0 0.0
        %2886 = vmatpush1.xpose.msra.mxu0 0.0
        %2887 = vmatprep.subr.mxu0 0.0
        %2888 = vmatpush1.xpose.msra.mxu0 0.0
        %2889 = vmatprep.mubr.f32.mxu0 0.0
        %2890 = vmatmul.mubr.f32.gmra.mrb[0].mxu0 %v2817
        %v2891 = vpop.f32.mrb[0].mxu0
        %v2892 = vadd.f32 0.0, %v2891
        %v2893 = vpop.f32.mrb[0].mxu0
        %2894 = vmatprep.mubr.f32.mxu0 0.0
        %2895 = vmatmul.mubr.f32.gmra.mrb[0].mxu0 %v2819
        %v2896 = vpop.f32.mrb[0].mxu0
        %v2897 = vadd.f32 0.0, %v2896
        %v2898 = vpop.f32.mrb[0].mxu0
        %2899 = vdwg.mxu0
        %v2900 = vsel %vm624, %v2892, -inf
        %2901 = vmax.xlane.f32.xlu0 %v2900
        %v2902 = vpop.xlane.xlu0 %2901
        %v2903 = vsel %vm624, %v2897, -inf
        %2904 = vmax.xlane.f32.xlu0 %v2903
        %v2905 = vpop.xlane.xlu0 %2904
        %v2906 = vsub.f32 %v2892, %v2902
        %v2907 = vsub.f32 %v2897, %v2905
        %v2908 = vmul.f32 %v2906, 1.442695
        %v2909 = vpow.pop %v2908
        %v2910 = vmul.f32 %v2907, 1.442695
        %v2911 = vpow.pop %v2910
        %v2912 = vsel %vm624, %v2909, 0.0
        %2913 = vadd.xlane.f32.xlu0 %v2912
        %v2914 = vpop.xlane.xlu0 %2913
        %v2915 = vsel %vm624, %v2911, 0.0
        %2916 = vadd.xlane.f32.xlu0 %v2915
        %v2917 = vpop.xlane.xlu0 %2916
        %v2918 = vrcp.pop %v2914
        %v2919 = vrcp.pop %v2917
        %v2920 = vmul.f32 %v2909, %v2918
        %v2921 = vmul.f32 %v2911, %v2919
        %2922 = vrot.lane.b32.xlu0 %v520, 52
        %v2923 = vpop.permute.xlu0 %2922
        %2924 = vrot.lane.b32.xlu0 %v525, 52
        %v2925 = vpop.permute.xlu0 %2924
        %v2929 = vsel %vm624, %v2920, 0
        %v2932 = vsel %vm624, %v2921, 0
        %2934 = vmatprep.subr.mxu0 0.0
        %2935 = vmatpush1.msra.mxu0 %v2923
        %2936 = vmatprep.subr.mxu0 0.0
        %2937 = vmatpush1.msra.mxu0 %v2925
        %2938 = vmatprep.subr.mxu0 0.0
        %2939 = vmatpush1.msra.mxu0 0.0
        %2940 = vmatprep.subr.mxu0 0.0
        %2941 = vmatpush1.msra.mxu0 0.0
        %2942 = vmatprep.subr.mxu0 0.0
        %2943 = vmatpush1.msra.mxu0 0.0
        %2944 = vmatprep.subr.mxu0 0.0
        %2945 = vmatpush1.msra.mxu0 0.0
        %2946 = vmatprep.subr.mxu0 0.0
        %2947 = vmatpush1.msra.mxu0 0.0
        %2948 = vmatprep.subr.mxu0 0.0
        %2949 = vmatpush1.msra.mxu0 0.0
        %2950 = vmatprep.subr.mxu0 0.0
        %2951 = vmatpush1.msra.mxu0 0.0
        %2952 = vmatprep.subr.mxu0 0.0
        %2953 = vmatpush1.msra.mxu0 0.0
        %2954 = vmatprep.subr.mxu0 0.0
        %2955 = vmatpush1.msra.mxu0 0.0
        %2956 = vmatprep.subr.mxu0 0.0
        %2957 = vmatpush1.msra.mxu0 0.0
        %2958 = vmatprep.subr.mxu0 0.0
        %2959 = vmatpush1.msra.mxu0 0.0
        %2960 = vmatprep.subr.mxu0 0.0
        %2961 = vmatpush1.msra.mxu0 0.0
        %2962 = vmatprep.subr.mxu0 0.0
        %2963 = vmatpush1.msra.mxu0 0.0
        %2964 = vmatprep.subr.mxu0 0.0
        %2965 = vmatpush1.msra.mxu0 0.0
        %2966 = vmatprep.subr.mxu0 0.0
        %2967 = vmatpush1.msra.mxu0 0.0
        %2968 = vmatprep.subr.mxu0 0.0
        %2969 = vmatpush1.msra.mxu0 0.0
        %2970 = vmatprep.subr.mxu0 0.0
        %2971 = vmatpush1.msra.mxu0 0.0
        %2972 = vmatprep.subr.mxu0 0.0
        %2973 = vmatpush1.msra.mxu0 0.0
        %2974 = vmatprep.subr.mxu0 0.0
        %2975 = vmatpush1.msra.mxu0 0.0
        %2976 = vmatprep.subr.mxu0 0.0
        %2977 = vmatpush1.msra.mxu0 0.0
        %2978 = vmatprep.subr.mxu0 0.0
        %2979 = vmatpush1.msra.mxu0 0.0
        %2980 = vmatprep.subr.mxu0 0.0
        %2981 = vmatpush1.msra.mxu0 0.0
        %2982 = vmatprep.subr.mxu0 0.0
        %2983 = vmatpush1.msra.mxu0 0.0
        %2984 = vmatprep.subr.mxu0 0.0
        %2985 = vmatpush1.msra.mxu0 0.0
        %2986 = vmatprep.subr.mxu0 0.0
        %2987 = vmatpush1.msra.mxu0 0.0
        %2988 = vmatprep.subr.mxu0 0.0
        %2989 = vmatpush1.msra.mxu0 0.0
        %2990 = vmatprep.subr.mxu0 0.0
        %2991 = vmatpush1.msra.mxu0 0.0
        %2992 = vmatprep.subr.mxu0 0.0
        %2993 = vmatpush1.msra.mxu0 0.0
        %2994 = vmatprep.subr.mxu0 0.0
        %2995 = vmatpush1.msra.mxu0 0.0
        %2996 = vmatprep.subr.mxu0 0.0
        %2997 = vmatpush1.msra.mxu0 0.0
        %2998 = vmatprep.mubr.f32.mxu0 0.0
        %2999 = vmatmul.mubr.f32.gmra.mrb[0].mxu0 %v2929
        %v3000 = vpop.f32.mrb[0].mxu0
        %v3001 = vadd.f32 0.0, %v3000
        %v3002 = vpop.f32.mrb[0].mxu0
        %3003 = vmatprep.mubr.f32.mxu0 0.0
        %3004 = vmatmul.mubr.f32.gmra.mrb[0].mxu0 %v2932
        %v3005 = vpop.f32.mrb[0].mxu0
        %v3006 = vadd.f32 0.0, %v3005
        %v3007 = vpop.f32.mrb[0].mxu0
        %3008 = vdwg.mxu0
        %3009 = vrot.lane.b32.xlu0 %v530, 112
        %v3010 = vpop.permute.xlu0 %3009
        %3011 = vrot.lane.b32.xlu0 %v531, 112
        %v3012 = vpop.permute.xlu0 %3011
        %3013 = vrot.lane.b32.xlu0 %v520, 80
        %v3014 = vpop.permute.xlu0 %3013
        %3015 = vrot.lane.b32.xlu0 %v525, 80
        %v3016 = vpop.permute.xlu0 %3015
        %v3017 = vsel %vm538, %v3010, 0
        %v3019 = vsel %vm538, %v3012, 0
        %v3021 = vsel %vm538, %v3014, 0
        %v3023 = vsel %vm538, %v3016, 0
        %3025 = vmatprep.subr.mxu0 0.0
        %3026 = vmatpush1.xpose.msra.mxu0 %v3021
        %3027 = vmatprep.subr.mxu0 0.0
        %3028 = vmatpush1.xpose.msra.mxu0 %v3023
        %3029 = vmatprep.subr.mxu0 0.0
        %3030 = vmatpush1.xpose.msra.mxu0 0.0
        %3031 = vmatprep.subr.mxu0 0.0
        %3032 = vmatpush1.xpose.msra.mxu0 0.0
        %3033 = vmatprep.subr.mxu0 0.0
        %3034 = vmatpush1.xpose.msra.mxu0 0.0
        %3035 = vmatprep.subr.mxu0 0.0
        %3036 = vmatpush1.xpose.msra.mxu0 0.0
        %3037 = vmatprep.subr.mxu0 0.0
        %3038 = vmatpush1.xpose.msra.mxu0 0.0
        %3039 = vmatprep.subr.mxu0 0.0
        %3040 = vmatpush1.xpose.msra.mxu0 0.0
        %3041 = vmatprep.subr.mxu0 0.0
        %3042 = vmatpush1.xpose.msra.mxu0 0.0
        %3043 = vmatprep.subr.mxu0 0.0
        %3044 = vmatpush1.xpose.msra.mxu0 0.0
        %3045 = vmatprep.subr.mxu0 0.0
        %3046 = vmatpush1.xpose.msra.mxu0 0.0
        %3047 = vmatprep.subr.mxu0 0.0
        %3048 = vmatpush1.xpose.msra.mxu0 0.0
        %3049 = vmatprep.subr.mxu0 0.0
        %3050 = vmatpush1.xpose.msra.mxu0 0.0
        %3051 = vmatprep.subr.mxu0 0.0
        %3052 = vmatpush1.xpose.msra.mxu0 0.0
        %3053 = vmatprep.subr.mxu0 0.0
        %3054 = vmatpush1.xpose.msra.mxu0 0.0
        %3055 = vmatprep.subr.mxu0 0.0
        %3056 = vmatpush1.xpose.msra.mxu0 0.0
        %3057 = vmatprep.subr.mxu0 0.0
        %3058 = vmatpush1.xpose.msra.mxu0 0.0
        %3059 = vmatprep.subr.mxu0 0.0
        %3060 = vmatpush1.xpose.msra.mxu0 0.0
        %3061 = vmatprep.subr.mxu0 0.0
        %3062 = vmatpush1.xpose.msra.mxu0 0.0
        %3063 = vmatprep.subr.mxu0 0.0
        %3064 = vmatpush1.xpose.msra.mxu0 0.0
        %3065 = vmatprep.subr.mxu0 0.0
        %3066 = vmatpush1.xpose.msra.mxu0 0.0
        %3067 = vmatprep.subr.mxu0 0.0
        %3068 = vmatpush1.xpose.msra.mxu0 0.0
        %3069 = vmatprep.subr.mxu0 0.0
        %3070 = vmatpush1.xpose.msra.mxu0 0.0
        %3071 = vmatprep.subr.mxu0 0.0
        %3072 = vmatpush1.xpose.msra.mxu0 0.0
        %3073 = vmatprep.subr.mxu0 0.0
        %3074 = vmatpush1.xpose.msra.mxu0 0.0
        %3075 = vmatprep.subr.mxu0 0.0
        %3076 = vmatpush1.xpose.msra.mxu0 0.0
        %3077 = vmatprep.subr.mxu0 0.0
        %3078 = vmatpush1.xpose.msra.mxu0 0.0
        %3079 = vmatprep.subr.mxu0 0.0
        %3080 = vmatpush1.xpose.msra.mxu0 0.0
        %3081 = vmatprep.subr.mxu0 0.0
        %3082 = vmatpush1.xpose.msra.mxu0 0.0
        %3083 = vmatprep.subr.mxu0 0.0
        %3084 = vmatpush1.xpose.msra.mxu0 0.0
        %3085 = vmatprep.subr.mxu0 0.0
        %3086 = vmatpush1.xpose.msra.mxu0 0.0
        %3087 = vmatprep.subr.mxu0 0.0
        %3088 = vmatpush1.xpose.msra.mxu0 0.0
        %3089 = vmatprep.mubr.f32.mxu0 0.0
        %3090 = vmatmul.mubr.f32.gmra.mrb[0].mxu0 %v3017
        %v3091 = vpop.f32.mrb[0].mxu0
        %v3092 = vadd.f32 0.0, %v3091
        %v3093 = vpop.f32.mrb[0].mxu0
        %3094 = vmatprep.mubr.f32.mxu0 0.0
        %3095 = vmatmul.mubr.f32.gmra.mrb[0].mxu0 %v3019
        %v3096 = vpop.f32.mrb[0].mxu0
        %v3097 = vadd.f32 0.0, %v3096
        %v3098 = vpop.f32.mrb[0].mxu0
        %3099 = vdwg.mxu0
        %v3100 = vsel %vm624, %v3092, -inf
        %3101 = vmax.xlane.f32.xlu0 %v3100
        %v3102 = vpop.xlane.xlu0 %3101
        %v3103 = vsel %vm624, %v3097, -inf
        %3104 = vmax.xlane.f32.xlu0 %v3103
        %v3105 = vpop.xlane.xlu0 %3104
        %v3106 = vsub.f32 %v3092, %v3102
        %v3107 = vsub.f32 %v3097, %v3105
        %v3108 = vmul.f32 %v3106, 1.442695
        %v3109 = vpow.pop %v3108
        %v3110 = vmul.f32 %v3107, 1.442695
        %v3111 = vpow.pop %v3110
        %v3112 = vsel %vm624, %v3109, 0.0
        %3113 = vadd.xlane.f32.xlu0 %v3112
        %v3114 = vpop.xlane.xlu0 %3113
        %v3115 = vsel %vm624, %v3111, 0.0
        %3116 = vadd.xlane.f32.xlu0 %v3115
        %v3117 = vpop.xlane.xlu0 %3116
        %v3118 = vrcp.pop %v3114
        %v3119 = vrcp.pop %v3117
        %v3120 = vmul.f32 %v3109, %v3118
        %v3121 = vmul.f32 %v3111, %v3119
        %3122 = vrot.lane.b32.xlu0 %v520, 48
        %v3123 = vpop.permute.xlu0 %3122
        %3124 = vrot.lane.b32.xlu0 %v525, 48
        %v3125 = vpop.permute.xlu0 %3124
        %v3129 = vsel %vm624, %v3120, 0
        %v3132 = vsel %vm624, %v3121, 0
        %3134 = vmatprep.subr.mxu0 0.0
        %3135 = vmatpush1.msra.mxu0 %v3123
        %3136 = vmatprep.subr.mxu0 0.0
        %3137 = vmatpush1.msra.mxu0 %v3125
        %3138 = vmatprep.subr.mxu0 0.0
        %3139 = vmatpush1.msra.mxu0 0.0
        %3140 = vmatprep.subr.mxu0 0.0
        %3141 = vmatpush1.msra.mxu0 0.0
        %3142 = vmatprep.subr.mxu0 0.0
        %3143 = vmatpush1.msra.mxu0 0.0
        %3144 = vmatprep.subr.mxu0 0.0
        %3145 = vmatpush1.msra.mxu0 0.0
        %3146 = vmatprep.subr.mxu0 0.0
        %3147 = vmatpush1.msra.mxu0 0.0
        %3148 = vmatprep.subr.mxu0 0.0
        %3149 = vmatpush1.msra.mxu0 0.0
        %3150 = vmatprep.subr.mxu0 0.0
        %3151 = vmatpush1.msra.mxu0 0.0
        %3152 = vmatprep.subr.mxu0 0.0
        %3153 = vmatpush1.msra.mxu0 0.0
        %3154 = vmatprep.subr.mxu0 0.0
        %3155 = vmatpush1.msra.mxu0 0.0
        %3156 = vmatprep.subr.mxu0 0.0
        %3157 = vmatpush1.msra.mxu0 0.0
        %3158 = vmatprep.subr.mxu0 0.0
        %3159 = vmatpush1.msra.mxu0 0.0
        %3160 = vmatprep.subr.mxu0 0.0
        %3161 = vmatpush1.msra.mxu0 0.0
        %3162 = vmatprep.subr.mxu0 0.0
        %3163 = vmatpush1.msra.mxu0 0.0
        %3164 = vmatprep.subr.mxu0 0.0
        %3165 = vmatpush1.msra.mxu0 0.0
        %3166 = vmatprep.subr.mxu0 0.0
        %3167 = vmatpush1.msra.mxu0 0.0
        %3168 = vmatprep.subr.mxu0 0.0
        %3169 = vmatpush1.msra.mxu0 0.0
        %3170 = vmatprep.subr.mxu0 0.0
        %3171 = vmatpush1.msra.mxu0 0.0
        %3172 = vmatprep.subr.mxu0 0.0
        %3173 = vmatpush1.msra.mxu0 0.0
        %3174 = vmatprep.subr.mxu0 0.0
        %3175 = vmatpush1.msra.mxu0 0.0
        %3176 = vmatprep.subr.mxu0 0.0
        %3177 = vmatpush1.msra.mxu0 0.0
        %3178 = vmatprep.subr.mxu0 0.0
        %3179 = vmatpush1.msra.mxu0 0.0
        %3180 = vmatprep.subr.mxu0 0.0
        %3181 = vmatpush1.msra.mxu0 0.0
        %3182 = vmatprep.subr.mxu0 0.0
        %3183 = vmatpush1.msra.mxu0 0.0
        %3184 = vmatprep.subr.mxu0 0.0
        %3185 = vmatpush1.msra.mxu0 0.0
        %3186 = vmatprep.subr.mxu0 0.0
        %3187 = vmatpush1.msra.mxu0 0.0
        %3188 = vmatprep.subr.mxu0 0.0
        %3189 = vmatpush1.msra.mxu0 0.0
        %3190 = vmatprep.subr.mxu0 0.0
        %3191 = vmatpush1.msra.mxu0 0.0
        %3192 = vmatprep.subr.mxu0 0.0
        %3193 = vmatpush1.msra.mxu0 0.0
        %3194 = vmatprep.subr.mxu0 0.0
        %3195 = vmatpush1.msra.mxu0 0.0
        %3196 = vmatprep.subr.mxu0 0.0
        %3197 = vmatpush1.msra.mxu0 0.0
        %3198 = vmatprep.mubr.f32.mxu0 0.0
        %3199 = vmatmul.mubr.f32.gmra.mrb[0].mxu0 %v3129
        %v3200 = vpop.f32.mrb[0].mxu0
        %v3201 = vadd.f32 0.0, %v3200
        %v3202 = vpop.f32.mrb[0].mxu0
        %3203 = vmatprep.mubr.f32.mxu0 0.0
        %3204 = vmatmul.mubr.f32.gmra.mrb[0].mxu0 %v3132
        %v3205 = vpop.f32.mrb[0].mxu0
        %v3206 = vadd.f32 0.0, %v3205
        %v3207 = vpop.f32.mrb[0].mxu0
        %3208 = vdwg.mxu0
        %3209 = vrot.lane.b32.xlu0 %v530, 108
        %v3210 = vpop.permute.xlu0 %3209
        %3211 = vrot.lane.b32.xlu0 %v531, 108
        %v3212 = vpop.permute.xlu0 %3211
        %3213 = vrot.lane.b32.xlu0 %v520, 76
        %v3214 = vpop.permute.xlu0 %3213
        %3215 = vrot.lane.b32.xlu0 %v525, 76
        %v3216 = vpop.permute.xlu0 %3215
        %v3217 = vsel %vm538, %v3210, 0
        %v3219 = vsel %vm538, %v3212, 0
        %v3221 = vsel %vm538, %v3214, 0
        %v3223 = vsel %vm538, %v3216, 0
        %3225 = vmatprep.subr.mxu0 0.0
        %3226 = vmatpush1.xpose.msra.mxu0 %v3221
        %3227 = vmatprep.subr.mxu0 0.0
        %3228 = vmatpush1.xpose.msra.mxu0 %v3223
        %3229 = vmatprep.subr.mxu0 0.0
        %3230 = vmatpush1.xpose.msra.mxu0 0.0
        %3231 = vmatprep.subr.mxu0 0.0
        %3232 = vmatpush1.xpose.msra.mxu0 0.0
        %3233 = vmatprep.subr.mxu0 0.0
        %3234 = vmatpush1.xpose.msra.mxu0 0.0
        %3235 = vmatprep.subr.mxu0 0.0
        %3236 = vmatpush1.xpose.msra.mxu0 0.0
        %3237 = vmatprep.subr.mxu0 0.0
        %3238 = vmatpush1.xpose.msra.mxu0 0.0
        %3239 = vmatprep.subr.mxu0 0.0
        %3240 = vmatpush1.xpose.msra.mxu0 0.0
        %3241 = vmatprep.subr.mxu0 0.0
        %3242 = vmatpush1.xpose.msra.mxu0 0.0
        %3243 = vmatprep.subr.mxu0 0.0
        %3244 = vmatpush1.xpose.msra.mxu0 0.0
        %3245 = vmatprep.subr.mxu0 0.0
        %3246 = vmatpush1.xpose.msra.mxu0 0.0
        %3247 = vmatprep.subr.mxu0 0.0
        %3248 = vmatpush1.xpose.msra.mxu0 0.0
        %3249 = vmatprep.subr.mxu0 0.0
        %3250 = vmatpush1.xpose.msra.mxu0 0.0
        %3251 = vmatprep.subr.mxu0 0.0
        %3252 = vmatpush1.xpose.msra.mxu0 0.0
        %3253 = vmatprep.subr.mxu0 0.0
        %3254 = vmatpush1.xpose.msra.mxu0 0.0
        %3255 = vmatprep.subr.mxu0 0.0
        %3256 = vmatpush1.xpose.msra.mxu0 0.0
        %3257 = vmatprep.subr.mxu0 0.0
        %3258 = vmatpush1.xpose.msra.mxu0 0.0
        %3259 = vmatprep.subr.mxu0 0.0
        %3260 = vmatpush1.xpose.msra.mxu0 0.0
        %3261 = vmatprep.subr.mxu0 0.0
        %3262 = vmatpush1.xpose.msra.mxu0 0.0
        %3263 = vmatprep.subr.mxu0 0.0
        %3264 = vmatpush1.xpose.msra.mxu0 0.0
        %3265 = vmatprep.subr.mxu0 0.0
        %3266 = vmatpush1.xpose.msra.mxu0 0.0
        %3267 = vmatprep.subr.mxu0 0.0
        %3268 = vmatpush1.xpose.msra.mxu0 0.0
        %3269 = vmatprep.subr.mxu0 0.0
        %3270 = vmatpush1.xpose.msra.mxu0 0.0
        %3271 = vmatprep.subr.mxu0 0.0
        %3272 = vmatpush1.xpose.msra.mxu0 0.0
        %3273 = vmatprep.subr.mxu0 0.0
        %3274 = vmatpush1.xpose.msra.mxu0 0.0
        %3275 = vmatprep.subr.mxu0 0.0
        %3276 = vmatpush1.xpose.msra.mxu0 0.0
        %3277 = vmatprep.subr.mxu0 0.0
        %3278 = vmatpush1.xpose.msra.mxu0 0.0
        %3279 = vmatprep.subr.mxu0 0.0
        %3280 = vmatpush1.xpose.msra.mxu0 0.0
        %3281 = vmatprep.subr.mxu0 0.0
        %3282 = vmatpush1.xpose.msra.mxu0 0.0
        %3283 = vmatprep.subr.mxu0 0.0
        %3284 = vmatpush1.xpose.msra.mxu0 0.0
        %3285 = vmatprep.subr.mxu0 0.0
        %3286 = vmatpush1.xpose.msra.mxu0 0.0
        %3287 = vmatprep.subr.mxu0 0.0
        %3288 = vmatpush1.xpose.msra.mxu0 0.0
        %3289 = vmatprep.mubr.f32.mxu0 0.0
        %3290 = vmatmul.mubr.f32.gmra.mrb[0].mxu0 %v3217
        %v3291 = vpop.f32.mrb[0].mxu0
        %v3292 = vadd.f32 0.0, %v3291
        %v3293 = vpop.f32.mrb[0].mxu0
        %3294 = vmatprep.mubr.f32.mxu0 0.0
        %3295 = vmatmul.mubr.f32.gmra.mrb[0].mxu0 %v3219
        %v3296 = vpop.f32.mrb[0].mxu0
        %v3297 = vadd.f32 0.0, %v3296
        %v3298 = vpop.f32.mrb[0].mxu0
        %3299 = vdwg.mxu0
        %v3300 = vsel %vm624, %v3292, -inf
        %3301 = vmax.xlane.f32.xlu0 %v3300
        %v3302 = vpop.xlane.xlu0 %3301
        %v3303 = vsel %vm624, %v3297, -inf
        %3304 = vmax.xlane.f32.xlu0 %v3303
        %v3305 = vpop.xlane.xlu0 %3304
        %v3306 = vsub.f32 %v3292, %v3302
        %v3307 = vsub.f32 %v3297, %v3305
        %v3308 = vmul.f32 %v3306, 1.442695
        %v3309 = vpow.pop %v3308
        %v3310 = vmul.f32 %v3307, 1.442695
        %v3311 = vpow.pop %v3310
        %v3312 = vsel %vm624, %v3309, 0.0
        %3313 = vadd.xlane.f32.xlu0 %v3312
        %v3314 = vpop.xlane.xlu0 %3313
        %v3315 = vsel %vm624, %v3311, 0.0
        %3316 = vadd.xlane.f32.xlu0 %v3315
        %v3317 = vpop.xlane.xlu0 %3316
        %v3318 = vrcp.pop %v3314
        %v3319 = vrcp.pop %v3317
        %v3320 = vmul.f32 %v3309, %v3318
        %v3321 = vmul.f32 %v3311, %v3319
        %3322 = vrot.lane.b32.xlu0 %v520, 44
        %v3323 = vpop.permute.xlu0 %3322
        %3324 = vrot.lane.b32.xlu0 %v525, 44
        %v3325 = vpop.permute.xlu0 %3324
        %v3329 = vsel %vm624, %v3320, 0
        %v3332 = vsel %vm624, %v3321, 0
        %3334 = vmatprep.subr.mxu0 0.0
        %3335 = vmatpush1.msra.mxu0 %v3323
        %3336 = vmatprep.subr.mxu0 0.0
        %3337 = vmatpush1.msra.mxu0 %v3325
        %3338 = vmatprep.subr.mxu0 0.0
        %3339 = vmatpush1.msra.mxu0 0.0
        %3340 = vmatprep.subr.mxu0 0.0
        %3341 = vmatpush1.msra.mxu0 0.0
        %3342 = vmatprep.subr.mxu0 0.0
        %3343 = vmatpush1.msra.mxu0 0.0
        %3344 = vmatprep.subr.mxu0 0.0
        %3345 = vmatpush1.msra.mxu0 0.0
        %3346 = vmatprep.subr.mxu0 0.0
        %3347 = vmatpush1.msra.mxu0 0.0
        %3348 = vmatprep.subr.mxu0 0.0
        %3349 = vmatpush1.msra.mxu0 0.0
        %3350 = vmatprep.subr.mxu0 0.0
        %3351 = vmatpush1.msra.mxu0 0.0
        %3352 = vmatprep.subr.mxu0 0.0
        %3353 = vmatpush1.msra.mxu0 0.0
        %3354 = vmatprep.subr.mxu0 0.0
        %3355 = vmatpush1.msra.mxu0 0.0
        %3356 = vmatprep.subr.mxu0 0.0
        %3357 = vmatpush1.msra.mxu0 0.0
        %3358 = vmatprep.subr.mxu0 0.0
        %3359 = vmatpush1.msra.mxu0 0.0
        %3360 = vmatprep.subr.mxu0 0.0
        %3361 = vmatpush1.msra.mxu0 0.0
        %3362 = vmatprep.subr.mxu0 0.0
        %3363 = vmatpush1.msra.mxu0 0.0
        %3364 = vmatprep.subr.mxu0 0.0
        %3365 = vmatpush1.msra.mxu0 0.0
        %3366 = vmatprep.subr.mxu0 0.0
        %3367 = vmatpush1.msra.mxu0 0.0
        %3368 = vmatprep.subr.mxu0 0.0
        %3369 = vmatpush1.msra.mxu0 0.0
        %3370 = vmatprep.subr.mxu0 0.0
        %3371 = vmatpush1.msra.mxu0 0.0
        %3372 = vmatprep.subr.mxu0 0.0
        %3373 = vmatpush1.msra.mxu0 0.0
        %3374 = vmatprep.subr.mxu0 0.0
        %3375 = vmatpush1.msra.mxu0 0.0
        %3376 = vmatprep.subr.mxu0 0.0
        %3377 = vmatpush1.msra.mxu0 0.0
        %3378 = vmatprep.subr.mxu0 0.0
        %3379 = vmatpush1.msra.mxu0 0.0
        %3380 = vmatprep.subr.mxu0 0.0
        %3381 = vmatpush1.msra.mxu0 0.0
        %3382 = vmatprep.subr.mxu0 0.0
        %3383 = vmatpush1.msra.mxu0 0.0
        %3384 = vmatprep.subr.mxu0 0.0
        %3385 = vmatpush1.msra.mxu0 0.0
        %3386 = vmatprep.subr.mxu0 0.0
        %3387 = vmatpush1.msra.mxu0 0.0
        %3388 = vmatprep.subr.mxu0 0.0
        %3389 = vmatpush1.msra.mxu0 0.0
        %3390 = vmatprep.subr.mxu0 0.0
        %3391 = vmatpush1.msra.mxu0 0.0
        %3392 = vmatprep.subr.mxu0 0.0
        %3393 = vmatpush1.msra.mxu0 0.0
        %3394 = vmatprep.subr.mxu0 0.0
        %3395 = vmatpush1.msra.mxu0 0.0
        %3396 = vmatprep.subr.mxu0 0.0
        %3397 = vmatpush1.msra.mxu0 0.0
        %3398 = vmatprep.mubr.f32.mxu0 0.0
        %3399 = vmatmul.mubr.f32.gmra.mrb[0].mxu0 %v3329
        %v3400 = vpop.f32.mrb[0].mxu0
        %v3401 = vadd.f32 0.0, %v3400
        %v3402 = vpop.f32.mrb[0].mxu0
        %3403 = vmatprep.mubr.f32.mxu0 0.0
        %3404 = vmatmul.mubr.f32.gmra.mrb[0].mxu0 %v3332
        %v3405 = vpop.f32.mrb[0].mxu0
        %v3406 = vadd.f32 0.0, %v3405
        %v3407 = vpop.f32.mrb[0].mxu0
        %3408 = vdwg.mxu0
        %3409 = vrot.lane.b32.xlu0 %v530, 104
        %v3410 = vpop.permute.xlu0 %3409
        %3411 = vrot.lane.b32.xlu0 %v531, 104
        %v3412 = vpop.permute.xlu0 %3411
        %3413 = vrot.lane.b32.xlu0 %v520, 72
        %v3414 = vpop.permute.xlu0 %3413
        %3415 = vrot.lane.b32.xlu0 %v525, 72
        %v3416 = vpop.permute.xlu0 %3415
        %v3417 = vsel %vm538, %v3410, 0
        %v3419 = vsel %vm538, %v3412, 0
        %v3421 = vsel %vm538, %v3414, 0
        %v3423 = vsel %vm538, %v3416, 0
        %3425 = vmatprep.subr.mxu0 0.0
        %3426 = vmatpush1.xpose.msra.mxu0 %v3421
        %3427 = vmatprep.subr.mxu0 0.0
        %3428 = vmatpush1.xpose.msra.mxu0 %v3423
        %3429 = vmatprep.subr.mxu0 0.0
        %3430 = vmatpush1.xpose.msra.mxu0 0.0
        %3431 = vmatprep.subr.mxu0 0.0
        %3432 = vmatpush1.xpose.msra.mxu0 0.0
        %3433 = vmatprep.subr.mxu0 0.0
        %3434 = vmatpush1.xpose.msra.mxu0 0.0
        %3435 = vmatprep.subr.mxu0 0.0
        %3436 = vmatpush1.xpose.msra.mxu0 0.0
        %3437 = vmatprep.subr.mxu0 0.0
        %3438 = vmatpush1.xpose.msra.mxu0 0.0
        %3439 = vmatprep.subr.mxu0 0.0
        %3440 = vmatpush1.xpose.msra.mxu0 0.0
        %3441 = vmatprep.subr.mxu0 0.0
        %3442 = vmatpush1.xpose.msra.mxu0 0.0
        %3443 = vmatprep.subr.mxu0 0.0
        %3444 = vmatpush1.xpose.msra.mxu0 0.0
        %3445 = vmatprep.subr.mxu0 0.0
        %3446 = vmatpush1.xpose.msra.mxu0 0.0
        %3447 = vmatprep.subr.mxu0 0.0
        %3448 = vmatpush1.xpose.msra.mxu0 0.0
        %3449 = vmatprep.subr.mxu0 0.0
        %3450 = vmatpush1.xpose.msra.mxu0 0.0
        %3451 = vmatprep.subr.mxu0 0.0
        %3452 = vmatpush1.xpose.msra.mxu0 0.0
        %3453 = vmatprep.subr.mxu0 0.0
        %3454 = vmatpush1.xpose.msra.mxu0 0.0
        %3455 = vmatprep.subr.mxu0 0.0
        %3456 = vmatpush1.xpose.msra.mxu0 0.0
        %3457 = vmatprep.subr.mxu0 0.0
        %3458 = vmatpush1.xpose.msra.mxu0 0.0
        %3459 = vmatprep.subr.mxu0 0.0
        %3460 = vmatpush1.xpose.msra.mxu0 0.0
        %3461 = vmatprep.subr.mxu0 0.0
        %3462 = vmatpush1.xpose.msra.mxu0 0.0
        %3463 = vmatprep.subr.mxu0 0.0
        %3464 = vmatpush1.xpose.msra.mxu0 0.0
        %3465 = vmatprep.subr.mxu0 0.0
        %3466 = vmatpush1.xpose.msra.mxu0 0.0
        %3467 = vmatprep.subr.mxu0 0.0
        %3468 = vmatpush1.xpose.msra.mxu0 0.0
        %3469 = vmatprep.subr.mxu0 0.0
        %3470 = vmatpush1.xpose.msra.mxu0 0.0
        %3471 = vmatprep.subr.mxu0 0.0
        %3472 = vmatpush1.xpose.msra.mxu0 0.0
        %3473 = vmatprep.subr.mxu0 0.0
        %3474 = vmatpush1.xpose.msra.mxu0 0.0
        %3475 = vmatprep.subr.mxu0 0.0
        %3476 = vmatpush1.xpose.msra.mxu0 0.0
        %3477 = vmatprep.subr.mxu0 0.0
        %3478 = vmatpush1.xpose.msra.mxu0 0.0
        %3479 = vmatprep.subr.mxu0 0.0
        %3480 = vmatpush1.xpose.msra.mxu0 0.0
        %3481 = vmatprep.subr.mxu0 0.0
        %3482 = vmatpush1.xpose.msra.mxu0 0.0
        %3483 = vmatprep.subr.mxu0 0.0
        %3484 = vmatpush1.xpose.msra.mxu0 0.0
        %3485 = vmatprep.subr.mxu0 0.0
        %3486 = vmatpush1.xpose.msra.mxu0 0.0
        %3487 = vmatprep.subr.mxu0 0.0
        %3488 = vmatpush1.xpose.msra.mxu0 0.0
        %3489 = vmatprep.mubr.f32.mxu0 0.0
        %3490 = vmatmul.mubr.f32.gmra.mrb[0].mxu0 %v3417
        %v3491 = vpop.f32.mrb[0].mxu0
        %v3492 = vadd.f32 0.0, %v3491
        %v3493 = vpop.f32.mrb[0].mxu0
        %3494 = vmatprep.mubr.f32.mxu0 0.0
        %3495 = vmatmul.mubr.f32.gmra.mrb[0].mxu0 %v3419
        %v3496 = vpop.f32.mrb[0].mxu0
        %v3497 = vadd.f32 0.0, %v3496
        %v3498 = vpop.f32.mrb[0].mxu0
        %3499 = vdwg.mxu0
        %v3500 = vsel %vm624, %v3492, -inf
        %3501 = vmax.xlane.f32.xlu0 %v3500
        %v3502 = vpop.xlane.xlu0 %3501
        %v3503 = vsel %vm624, %v3497, -inf
        %3504 = vmax.xlane.f32.xlu0 %v3503
        %v3505 = vpop.xlane.xlu0 %3504
        %v3506 = vsub.f32 %v3492, %v3502
        %v3507 = vsub.f32 %v3497, %v3505
        %v3508 = vmul.f32 %v3506, 1.442695
        %v3509 = vpow.pop %v3508
        %v3510 = vmul.f32 %v3507, 1.442695
        %v3511 = vpow.pop %v3510
        %v3512 = vsel %vm624, %v3509, 0.0
        %3513 = vadd.xlane.f32.xlu0 %v3512
        %v3514 = vpop.xlane.xlu0 %3513
        %v3515 = vsel %vm624, %v3511, 0.0
        %3516 = vadd.xlane.f32.xlu0 %v3515
        %v3517 = vpop.xlane.xlu0 %3516
        %v3518 = vrcp.pop %v3514
        %v3519 = vrcp.pop %v3517
        %v3520 = vmul.f32 %v3509, %v3518
        %v3521 = vmul.f32 %v3511, %v3519
        %3522 = vrot.lane.b32.xlu0 %v520, 40
        %v3523 = vpop.permute.xlu0 %3522
        %3524 = vrot.lane.b32.xlu0 %v525, 40
        %v3525 = vpop.permute.xlu0 %3524
        %v3529 = vsel %vm624, %v3520, 0
        %v3532 = vsel %vm624, %v3521, 0
        %3534 = vmatprep.subr.mxu0 0.0
        %3535 = vmatpush1.msra.mxu0 %v3523
        %3536 = vmatprep.subr.mxu0 0.0
        %3537 = vmatpush1.msra.mxu0 %v3525
        %3538 = vmatprep.subr.mxu0 0.0
        %3539 = vmatpush1.msra.mxu0 0.0
        %3540 = vmatprep.subr.mxu0 0.0
        %3541 = vmatpush1.msra.mxu0 0.0
        %3542 = vmatprep.subr.mxu0 0.0
        %3543 = vmatpush1.msra.mxu0 0.0
        %3544 = vmatprep.subr.mxu0 0.0
        %3545 = vmatpush1.msra.mxu0 0.0
        %3546 = vmatprep.subr.mxu0 0.0
        %3547 = vmatpush1.msra.mxu0 0.0
        %3548 = vmatprep.subr.mxu0 0.0
        %3549 = vmatpush1.msra.mxu0 0.0
        %3550 = vmatprep.subr.mxu0 0.0
        %3551 = vmatpush1.msra.mxu0 0.0
        %3552 = vmatprep.subr.mxu0 0.0
        %3553 = vmatpush1.msra.mxu0 0.0
        %3554 = vmatprep.subr.mxu0 0.0
        %3555 = vmatpush1.msra.mxu0 0.0
        %3556 = vmatprep.subr.mxu0 0.0
        %3557 = vmatpush1.msra.mxu0 0.0
        %3558 = vmatprep.subr.mxu0 0.0
        %3559 = vmatpush1.msra.mxu0 0.0
        %3560 = vmatprep.subr.mxu0 0.0
        %3561 = vmatpush1.msra.mxu0 0.0
        %3562 = vmatprep.subr.mxu0 0.0
        %3563 = vmatpush1.msra.mxu0 0.0
        %3564 = vmatprep.subr.mxu0 0.0
        %3565 = vmatpush1.msra.mxu0 0.0
        %3566 = vmatprep.subr.mxu0 0.0
        %3567 = vmatpush1.msra.mxu0 0.0
        %3568 = vmatprep.subr.mxu0 0.0
        %3569 = vmatpush1.msra.mxu0 0.0
        %3570 = vmatprep.subr.mxu0 0.0
        %3571 = vmatpush1.msra.mxu0 0.0
        %3572 = vmatprep.subr.mxu0 0.0
        %3573 = vmatpush1.msra.mxu0 0.0
        %3574 = vmatprep.subr.mxu0 0.0
        %3575 = vmatpush1.msra.mxu0 0.0
        %3576 = vmatprep.subr.mxu0 0.0
        %3577 = vmatpush1.msra.mxu0 0.0
        %3578 = vmatprep.subr.mxu0 0.0
        %3579 = vmatpush1.msra.mxu0 0.0
        %3580 = vmatprep.subr.mxu0 0.0
        %3581 = vmatpush1.msra.mxu0 0.0
        %3582 = vmatprep.subr.mxu0 0.0
        %3583 = vmatpush1.msra.mxu0 0.0
        %3584 = vmatprep.subr.mxu0 0.0
        %3585 = vmatpush1.msra.mxu0 0.0
        %3586 = vmatprep.subr.mxu0 0.0
        %3587 = vmatpush1.msra.mxu0 0.0
        %3588 = vmatprep.subr.mxu0 0.0
        %3589 = vmatpush1.msra.mxu0 0.0
        %3590 = vmatprep.subr.mxu0 0.0
        %3591 = vmatpush1.msra.mxu0 0.0
        %3592 = vmatprep.subr.mxu0 0.0
        %3593 = vmatpush1.msra.mxu0 0.0
        %3594 = vmatprep.subr.mxu0 0.0
        %3595 = vmatpush1.msra.mxu0 0.0
        %3596 = vmatprep.subr.mxu0 0.0
        %3597 = vmatpush1.msra.mxu0 0.0
        %3598 = vmatprep.mubr.f32.mxu0 0.0
        %3599 = vmatmul.mubr.f32.gmra.mrb[0].mxu0 %v3529
        %v3600 = vpop.f32.mrb[0].mxu0
        %v3601 = vadd.f32 0.0, %v3600
        %v3602 = vpop.f32.mrb[0].mxu0
        %3603 = vmatprep.mubr.f32.mxu0 0.0
        %3604 = vmatmul.mubr.f32.gmra.mrb[0].mxu0 %v3532
        %v3605 = vpop.f32.mrb[0].mxu0
        %v3606 = vadd.f32 0.0, %v3605
        %v3607 = vpop.f32.mrb[0].mxu0
        %3608 = vdwg.mxu0
        %3609 = vrot.lane.b32.xlu0 %v530, 100
        %v3610 = vpop.permute.xlu0 %3609
        %3611 = vrot.lane.b32.xlu0 %v531, 100
        %v3612 = vpop.permute.xlu0 %3611
        %3613 = vrot.lane.b32.xlu0 %v520, 68
        %v3614 = vpop.permute.xlu0 %3613
        %3615 = vrot.lane.b32.xlu0 %v525, 68
        %v3616 = vpop.permute.xlu0 %3615
        %v3617 = vsel %vm538, %v3610, 0
        %v3619 = vsel %vm538, %v3612, 0
        %v3621 = vsel %vm538, %v3614, 0
        %v3623 = vsel %vm538, %v3616, 0
        %3625 = vmatprep.subr.mxu0 0.0
        %3626 = vmatpush1.xpose.msra.mxu0 %v3621
        %3627 = vmatprep.subr.mxu0 0.0
        %3628 = vmatpush1.xpose.msra.mxu0 %v3623
        %3629 = vmatprep.subr.mxu0 0.0
        %3630 = vmatpush1.xpose.msra.mxu0 0.0
        %3631 = vmatprep.subr.mxu0 0.0
        %3632 = vmatpush1.xpose.msra.mxu0 0.0
        %3633 = vmatprep.subr.mxu0 0.0
        %3634 = vmatpush1.xpose.msra.mxu0 0.0
        %3635 = vmatprep.subr.mxu0 0.0
        %3636 = vmatpush1.xpose.msra.mxu0 0.0
        %3637 = vmatprep.subr.mxu0 0.0
        %3638 = vmatpush1.xpose.msra.mxu0 0.0
        %3639 = vmatprep.subr.mxu0 0.0
        %3640 = vmatpush1.xpose.msra.mxu0 0.0
        %3641 = vmatprep.subr.mxu0 0.0
        %3642 = vmatpush1.xpose.msra.mxu0 0.0
        %3643 = vmatprep.subr.mxu0 0.0
        %3644 = vmatpush1.xpose.msra.mxu0 0.0
        %3645 = vmatprep.subr.mxu0 0.0
        %3646 = vmatpush1.xpose.msra.mxu0 0.0
        %3647 = vmatprep.subr.mxu0 0.0
        %3648 = vmatpush1.xpose.msra.mxu0 0.0
        %3649 = vmatprep.subr.mxu0 0.0
        %3650 = vmatpush1.xpose.msra.mxu0 0.0
        %3651 = vmatprep.subr.mxu0 0.0
        %3652 = vmatpush1.xpose.msra.mxu0 0.0
        %3653 = vmatprep.subr.mxu0 0.0
        %3654 = vmatpush1.xpose.msra.mxu0 0.0
        %3655 = vmatprep.subr.mxu0 0.0
        %3656 = vmatpush1.xpose.msra.mxu0 0.0
        %3657 = vmatprep.subr.mxu0 0.0
        %3658 = vmatpush1.xpose.msra.mxu0 0.0
        %3659 = vmatprep.subr.mxu0 0.0
        %3660 = vmatpush1.xpose.msra.mxu0 0.0
        %3661 = vmatprep.subr.mxu0 0.0
        %3662 = vmatpush1.xpose.msra.mxu0 0.0
        %3663 = vmatprep.subr.mxu0 0.0
        %3664 = vmatpush1.xpose.msra.mxu0 0.0
        %3665 = vmatprep.subr.mxu0 0.0
        %3666 = vmatpush1.xpose.msra.mxu0 0.0
        %3667 = vmatprep.subr.mxu0 0.0
        %3668 = vmatpush1.xpose.msra.mxu0 0.0
        %3669 = vmatprep.subr.mxu0 0.0
        %3670 = vmatpush1.xpose.msra.mxu0 0.0
        %3671 = vmatprep.subr.mxu0 0.0
        %3672 = vmatpush1.xpose.msra.mxu0 0.0
        %3673 = vmatprep.subr.mxu0 0.0
        %3674 = vmatpush1.xpose.msra.mxu0 0.0
        %3675 = vmatprep.subr.mxu0 0.0
        %3676 = vmatpush1.xpose.msra.mxu0 0.0
        %3677 = vmatprep.subr.mxu0 0.0
        %3678 = vmatpush1.xpose.msra.mxu0 0.0
        %3679 = vmatprep.subr.mxu0 0.0
        %3680 = vmatpush1.xpose.msra.mxu0 0.0
        %3681 = vmatprep.subr.mxu0 0.0
        %3682 = vmatpush1.xpose.msra.mxu0 0.0
        %3683 = vmatprep.subr.mxu0 0.0
        %3684 = vmatpush1.xpose.msra.mxu0 0.0
        %3685 = vmatprep.subr.mxu0 0.0
        %3686 = vmatpush1.xpose.msra.mxu0 0.0
        %3687 = vmatprep.subr.mxu0 0.0
        %3688 = vmatpush1.xpose.msra.mxu0 0.0
        %3689 = vmatprep.mubr.f32.mxu0 0.0
        %3690 = vmatmul.mubr.f32.gmra.mrb[0].mxu0 %v3617
        %v3691 = vpop.f32.mrb[0].mxu0
        %v3692 = vadd.f32 0.0, %v3691
        %v3693 = vpop.f32.mrb[0].mxu0
        %3694 = vmatprep.mubr.f32.mxu0 0.0
        %3695 = vmatmul.mubr.f32.gmra.mrb[0].mxu0 %v3619
        %v3696 = vpop.f32.mrb[0].mxu0
        %v3697 = vadd.f32 0.0, %v3696
        %v3698 = vpop.f32.mrb[0].mxu0
        %3699 = vdwg.mxu0
        %v3700 = vsel %vm624, %v3692, -inf
        %3701 = vmax.xlane.f32.xlu0 %v3700
        %v3702 = vpop.xlane.xlu0 %3701
        %v3703 = vsel %vm624, %v3697, -inf
        %3704 = vmax.xlane.f32.xlu0 %v3703
        %v3705 = vpop.xlane.xlu0 %3704
        %v3706 = vsub.f32 %v3692, %v3702
        %v3707 = vsub.f32 %v3697, %v3705
        %v3708 = vmul.f32 %v3706, 1.442695
        %v3709 = vpow.pop %v3708
        %v3710 = vmul.f32 %v3707, 1.442695
        %v3711 = vpow.pop %v3710
        %v3712 = vsel %vm624, %v3709, 0.0
        %3713 = vadd.xlane.f32.xlu0 %v3712
        %v3714 = vpop.xlane.xlu0 %3713
        %v3715 = vsel %vm624, %v3711, 0.0
        %3716 = vadd.xlane.f32.xlu0 %v3715
        %v3717 = vpop.xlane.xlu0 %3716
        %v3718 = vrcp.pop %v3714
        %v3719 = vrcp.pop %v3717
        %v3720 = vmul.f32 %v3709, %v3718
        %v3721 = vmul.f32 %v3711, %v3719
        %3722 = vrot.lane.b32.xlu0 %v520, 36
        %v3723 = vpop.permute.xlu0 %3722
        %3724 = vrot.lane.b32.xlu0 %v525, 36
        %v3725 = vpop.permute.xlu0 %3724
        %v3729 = vsel %vm624, %v3720, 0
        %v3732 = vsel %vm624, %v3721, 0
        %3734 = vmatprep.subr.mxu0 0.0
        %3735 = vmatpush1.msra.mxu0 %v3723
        %3736 = vmatprep.subr.mxu0 0.0
        %3737 = vmatpush1.msra.mxu0 %v3725
        %3738 = vmatprep.subr.mxu0 0.0
        %3739 = vmatpush1.msra.mxu0 0.0
        %3740 = vmatprep.subr.mxu0 0.0
        %3741 = vmatpush1.msra.mxu0 0.0
        %3742 = vmatprep.subr.mxu0 0.0
        %3743 = vmatpush1.msra.mxu0 0.0
        %3744 = vmatprep.subr.mxu0 0.0
        %3745 = vmatpush1.msra.mxu0 0.0
        %3746 = vmatprep.subr.mxu0 0.0
        %3747 = vmatpush1.msra.mxu0 0.0
        %3748 = vmatprep.subr.mxu0 0.0
        %3749 = vmatpush1.msra.mxu0 0.0
        %3750 = vmatprep.subr.mxu0 0.0
        %3751 = vmatpush1.msra.mxu0 0.0
        %3752 = vmatprep.subr.mxu0 0.0
        %3753 = vmatpush1.msra.mxu0 0.0
        %3754 = vmatprep.subr.mxu0 0.0
        %3755 = vmatpush1.msra.mxu0 0.0
        %3756 = vmatprep.subr.mxu0 0.0
        %3757 = vmatpush1.msra.mxu0 0.0
        %3758 = vmatprep.subr.mxu0 0.0
        %3759 = vmatpush1.msra.mxu0 0.0
        %3760 = vmatprep.subr.mxu0 0.0
        %3761 = vmatpush1.msra.mxu0 0.0
        %3762 = vmatprep.subr.mxu0 0.0
        %3763 = vmatpush1.msra.mxu0 0.0
        %3764 = vmatprep.subr.mxu0 0.0
        %3765 = vmatpush1.msra.mxu0 0.0
        %3766 = vmatprep.subr.mxu0 0.0
        %3767 = vmatpush1.msra.mxu0 0.0
        %3768 = vmatprep.subr.mxu0 0.0
        %3769 = vmatpush1.msra.mxu0 0.0
        %3770 = vmatprep.subr.mxu0 0.0
        %3771 = vmatpush1.msra.mxu0 0.0
        %3772 = vmatprep.subr.mxu0 0.0
        %3773 = vmatpush1.msra.mxu0 0.0
        %3774 = vmatprep.subr.mxu0 0.0
        %3775 = vmatpush1.msra.mxu0 0.0
        %3776 = vmatprep.subr.mxu0 0.0
        %3777 = vmatpush1.msra.mxu0 0.0
        %3778 = vmatprep.subr.mxu0 0.0
        %3779 = vmatpush1.msra.mxu0 0.0
        %3780 = vmatprep.subr.mxu0 0.0
        %3781 = vmatpush1.msra.mxu0 0.0
        %3782 = vmatprep.subr.mxu0 0.0
        %3783 = vmatpush1.msra.mxu0 0.0
        %3784 = vmatprep.subr.mxu0 0.0
        %3785 = vmatpush1.msra.mxu0 0.0
        %3786 = vmatprep.subr.mxu0 0.0
        %3787 = vmatpush1.msra.mxu0 0.0
        %3788 = vmatprep.subr.mxu0 0.0
        %3789 = vmatpush1.msra.mxu0 0.0
        %3790 = vmatprep.subr.mxu0 0.0
        %3791 = vmatpush1.msra.mxu0 0.0
        %3792 = vmatprep.subr.mxu0 0.0
        %3793 = vmatpush1.msra.mxu0 0.0
        %3794 = vmatprep.subr.mxu0 0.0
        %3795 = vmatpush1.msra.mxu0 0.0
        %3796 = vmatprep.subr.mxu0 0.0
        %3797 = vmatpush1.msra.mxu0 0.0
        %3798 = vmatprep.mubr.f32.mxu0 0.0
        %3799 = vmatmul.mubr.f32.gmra.mrb[0].mxu0 %v3729
        %v3800 = vpop.f32.mrb[0].mxu0
        %v3801 = vadd.f32 0.0, %v3800
        %v3802 = vpop.f32.mrb[0].mxu0
        %3803 = vmatprep.mubr.f32.mxu0 0.0
        %3804 = vmatmul.mubr.f32.gmra.mrb[0].mxu0 %v3732
        %v3805 = vpop.f32.mrb[0].mxu0
        %v3806 = vadd.f32 0.0, %v3805
        %v3807 = vpop.f32.mrb[0].mxu0
        %3808 = vdwg.mxu0
        %3811 = vrot.lane.b32.xlu0 %v2601, 4
        %v3812 = vpop.permute.xlu0 %3811
        %3813 = vrot.lane.b32.xlu0 %v2606, 4
        %v3814 = vpop.permute.xlu0 %3813
        %3819 = vrot.lane.b32.xlu0 %v2801, 8
        %v3820 = vpop.permute.xlu0 %3819
        %3821 = vrot.lane.b32.xlu0 %v2806, 8
        %v3822 = vpop.permute.xlu0 %3821
        %3827 = vrot.lane.b32.xlu0 %v3001, 12
        %v3828 = vpop.permute.xlu0 %3827
        %3829 = vrot.lane.b32.xlu0 %v3006, 12
        %v3830 = vpop.permute.xlu0 %3829
        %3835 = vrot.lane.b32.xlu0 %v3201, 16
        %v3836 = vpop.permute.xlu0 %3835
        %3837 = vrot.lane.b32.xlu0 %v3206, 16
        %v3838 = vpop.permute.xlu0 %3837
        %3843 = vrot.lane.b32.xlu0 %v3401, 20
        %v3844 = vpop.permute.xlu0 %3843
        %3845 = vrot.lane.b32.xlu0 %v3406, 20
        %v3846 = vpop.permute.xlu0 %3845
        %3851 = vrot.lane.b32.xlu0 %v3601, 24
        %v3852 = vpop.permute.xlu0 %3851
        %3853 = vrot.lane.b32.xlu0 %v3606, 24
        %v3854 = vpop.permute.xlu0 %3853
        %3859 = vrot.lane.b32.xlu0 %v3801, 28
        %v3860 = vpop.permute.xlu0 %3859
        %3861 = vrot.lane.b32.xlu0 %v3806, 28
        %v3862 = vpop.permute.xlu0 %3861
        %v3865 = vsel %vm538, %v2401, %v3812
        %v3866 = vsel %vm538, %v2406, %v3814
        %v3867 = vsel %vm2192, %v3865, %v3820
        %v3868 = vsel %vm2192, %v3866, %v3822
        %v3869 = vsel %vm2195, %v3867, %v3828
        %v3870 = vsel %vm2195, %v3868, %v3830
        %v3871 = vsel %vm624, %v3869, %v3836
        %v3872 = vsel %vm624, %v3870, %v3838
        %v3873 = vsel %vm2200, %v3871, %v3844
        %v3874 = vsel %vm2200, %v3872, %v3846
        %v3875 = vsel %vm2203, %v3873, %v3852
        %v3876 = vsel %vm2203, %v3874, %v3854
        %v3877 = vsel %vm2206, %v3875, %v3860
        %v3878 = vsel %vm2206, %v3876, %v3862
        %v3879 = vld [vmem:[%s381] sm:$0xff]
        %v3880 = vld [vmem:[%s381 + $0x8] sm:$0xff]
        %v3881 = vld [vmem:[%s381 + $0x10] sm:$0xff]
        %v3882 = vld [vmem:[%s381 + $0x18] sm:$0xff]
        %v3883 = vlaneseq
        %v3884 = vshrl.u32 %v3883, 7
        %v3885 = vsub.s32 0, %v3884
        %v3886 = vrot.slane %v418, %v3885
        %v3888 = vsel %vm430, %v2207, 0
        %v3891 = vsel %vm430, %v2208, 0
        %v3894 = vsel %vm430, %v3877, 0
        %v3897 = vsel %vm430, %v3878, 0
        %3899 = vmatprep.subr.mxu0 0.0
        %3900 = vmatpush1.msra.mxu0 %v3879
        %3901 = vmatprep.subr.mxu0 0.0
        %3902 = vmatpush1.msra.mxu0 %v3880
        %3903 = vmatprep.subr.mxu0 0.0
        %3904 = vmatpush1.msra.mxu0 %v3881
        %3905 = vmatprep.subr.mxu0 0.0
        %3906 = vmatpush1.msra.mxu0 %v3882
        %3907 = vmatprep.subr.mxu0 0.0
        %3908 = vmatpush1.msra.mxu0 0.0
        %3909 = vmatprep.subr.mxu0 0.0
        %3910 = vmatpush1.msra.mxu0 0.0
        %3911 = vmatprep.subr.mxu0 0.0
        %3912 = vmatpush1.msra.mxu0 0.0
        %3913 = vmatprep.subr.mxu0 0.0
        %3914 = vmatpush1.msra.mxu0 0.0
        %3915 = vmatprep.subr.mxu0 0.0
        %3916 = vmatpush1.msra.mxu0 0.0
        %3917 = vmatprep.subr.mxu0 0.0
        %3918 = vmatpush1.msra.mxu0 0.0
        %3919 = vmatprep.subr.mxu0 0.0
        %3920 = vmatpush1.msra.mxu0 0.0
        %3921 = vmatprep.subr.mxu0 0.0
        %3922 = vmatpush1.msra.mxu0 0.0
        %3923 = vmatprep.subr.mxu0 0.0
        %3924 = vmatpush1.msra.mxu0 0.0
        %3925 = vmatprep.subr.mxu0 0.0
        %3926 = vmatpush1.msra.mxu0 0.0
        %3927 = vmatprep.subr.mxu0 0.0
        %3928 = vmatpush1.msra.mxu0 0.0
        %3929 = vmatprep.subr.mxu0 0.0
        %3930 = vmatpush1.msra.mxu0 0.0
        %3931 = vmatprep.subr.mxu0 0.0
        %3932 = vmatpush1.msra.mxu0 0.0
        %3933 = vmatprep.subr.mxu0 0.0
        %3934 = vmatpush1.msra.mxu0 0.0
        %3935 = vmatprep.subr.mxu0 0.0
        %3936 = vmatpush1.msra.mxu0 0.0
        %3937 = vmatprep.subr.mxu0 0.0
        %3938 = vmatpush1.msra.mxu0 0.0
        %3939 = vmatprep.subr.mxu0 0.0
        %3940 = vmatpush1.msra.mxu0 0.0
        %3941 = vmatprep.subr.mxu0 0.0
        %3942 = vmatpush1.msra.mxu0 0.0
        %3943 = vmatprep.subr.mxu0 0.0
        %3944 = vmatpush1.msra.mxu0 0.0
        %3945 = vmatprep.subr.mxu0 0.0
        %3946 = vmatpush1.msra.mxu0 0.0
        %3947 = vmatprep.subr.mxu0 0.0
        %3948 = vmatpush1.msra.mxu0 0.0
        %3949 = vmatprep.subr.mxu0 0.0
        %3950 = vmatpush1.msra.mxu0 0.0
        %3951 = vmatprep.subr.mxu0 0.0
        %3952 = vmatpush1.msra.mxu0 0.0
        %3953 = vmatprep.subr.mxu0 0.0
        %3954 = vmatpush1.msra.mxu0 0.0
        %3955 = vmatprep.subr.mxu0 0.0
        %3956 = vmatpush1.msra.mxu0 0.0
        %3957 = vmatprep.subr.mxu0 0.0
        %3958 = vmatpush1.msra.mxu0 0.0
        %3959 = vmatprep.subr.mxu0 0.0
        %3960 = vmatpush1.msra.mxu0 0.0
        %3961 = vmatprep.subr.mxu0 0.0
        %3962 = vmatpush1.msra.mxu0 0.0
        %3963 = vmatprep.mubr.f32.mxu0 0.0
        %3964 = vmatmul.mubr.f32.gmra.mrb[0].mxu0 %v3888
        %v3965 = vpop.f32.mrb[0].mxu0
        %v3966 = vadd.f32 %v3886, %v3965
        %v3967 = vpop.f32.mrb[0].mxu0
        %3968 = vmatprep.mubr.f32.mxu0 0.0
        %3969 = vmatmul.mubr.f32.gmra.mrb[0].mxu0 %v3891
        %v3970 = vpop.f32.mrb[0].mxu0
        %v3971 = vadd.f32 %v3886, %v3970
        %v3972 = vpop.f32.mrb[0].mxu0
        %3973 = vmatprep.mubr.f32.mxu0 0.0
        %3974 = vmatmul.mubr.f32.gmra.mrb[0].mxu0 %v3894
        %v3975 = vpop.f32.mrb[0].mxu0
        %v3976 = vadd.f32 %v3886, %v3975
        %v3977 = vpop.f32.mrb[0].mxu0
        %3978 = vmatprep.mubr.f32.mxu0 0.0
        %3979 = vmatmul.mubr.f32.gmra.mrb[0].mxu0 %v3897
        %v3980 = vpop.f32.mrb[0].mxu0
        %v3981 = vadd.f32 %v3886, %v3980
        %v3982 = vpop.f32.mrb[0].mxu0
        %3983 = vdwg.mxu0
        %v3984 = vadd.f32 %v414, %v3966
        %v3985 = vadd.f32 %v415, %v3971
        %v3986 = vadd.f32 %v416, %v3976
        %v3987 = vadd.f32 %v417, %v3981
        %v3988 = vsel %vm430, %v3984, 0.0
        %3989 = vadd.xlane.f32.xlu0 %v3988
        %v3990 = vpop.xlane.xlu0 %3989
        %v3991 = vsel %vm430, %v3985, 0.0
        %3992 = vadd.xlane.f32.xlu0 %v3991
        %v3993 = vpop.xlane.xlu0 %3992
        %v3994 = vsel %vm430, %v3986, 0.0
        %3995 = vadd.xlane.f32.xlu0 %v3994
        %v3996 = vpop.xlane.xlu0 %3995
        %v3997 = vsel %vm430, %v3987, 0.0
        %3998 = vadd.xlane.f32.xlu0 %v3997
        %v3999 = vpop.xlane.xlu0 %3998
        %v4000 = vrcp.pop 32.0
        %v4001 = vmul.f32 %v3990, %v4000
        %v4002 = vmul.f32 %v3993, %v4000
        %v4003 = vmul.f32 %v3996, %v4000
        %v4004 = vmul.f32 %v3999, %v4000
        %v4005 = vsub.f32 %v3984, %v4001
        %v4006 = vsub.f32 %v3985, %v4002
        %v4007 = vsub.f32 %v3986, %v4003
        %v4008 = vsub.f32 %v3987, %v4004
        %v4009 = vmul.f32 %v4005, %v4005
        %v4010 = vmul.f32 %v4006, %v4006
        %v4011 = vmul.f32 %v4007, %v4007
        %v4012 = vmul.f32 %v4008, %v4008
        %v4013 = vsel %vm430, %v4009, 0.0
        %4014 = vadd.xlane.f32.xlu0 %v4013
        %v4015 = vpop.xlane.xlu0 %4014
        %v4016 = vsel %vm430, %v4010, 0.0
        %4017 = vadd.xlane.f32.xlu0 %v4016
        %v4018 = vpop.xlane.xlu0 %4017
        %v4019 = vsel %vm430, %v4011, 0.0
        %4020 = vadd.xlane.f32.xlu0 %v4019
        %v4021 = vpop.xlane.xlu0 %4020
        %v4022 = vsel %vm430, %v4012, 0.0
        %4023 = vadd.xlane.f32.xlu0 %v4022
        %v4024 = vpop.xlane.xlu0 %4023
        %v4025 = vmul.f32 %v4015, %v4000
        %v4026 = vmul.f32 %v4018, %v4000
        %v4027 = vmul.f32 %v4021, %v4000
        %v4028 = vmul.f32 %v4024, %v4000
        %v4029 = vadd.f32 %v4025, 1e-05
        %v4030 = vadd.f32 %v4026, 1e-05
        %v4031 = vadd.f32 %v4027, 1e-05
        %v4032 = vadd.f32 %v4028, 1e-05
        %v4033 = vrsqrt.pop %v4029
        %v4034 = vrsqrt.pop %v4030
        %v4035 = vrsqrt.pop %v4031
        %v4036 = vrsqrt.pop %v4032
        %v4037 = vmul.f32 %v4005, %v4033
        %v4038 = vmul.f32 %v4006, %v4034
        %v4039 = vmul.f32 %v4007, %v4035
        %v4040 = vmul.f32 %v4008, %v4036
        %v4041 = vlaneseq
        %v4042 = vshrl.u32 %v4041, 7
        %v4043 = vsub.s32 1, %v4042
        %v4044 = vrot.slane %v418, %v4043
        %v4045 = vmul.f32 %v4037, %v4044
        %v4046 = vmul.f32 %v4038, %v4044
        %v4047 = vmul.f32 %v4039, %v4044
        %v4048 = vmul.f32 %v4040, %v4044
        %v4049 = vlaneseq
        %v4050 = vshrl.u32 %v4049, 7
        %v4051 = vsub.s32 2, %v4050
        %v4052 = vrot.slane %v418, %v4051
        %v4053 = vadd.f32 %v4045, %v4052
        %v4054 = vadd.f32 %v4046, %v4052
        %v4055 = vadd.f32 %v4047, %v4052
        %v4056 = vadd.f32 %v4048, %v4052
        %v4057 = vpack.c.bf16 %v4054, %v4053
        %v4058 = vpack.c.bf16 %v4056, %v4055
        %v4059 = vld [vmem:[%s390] sm:$0xff]
        %v4060 = vld [vmem:[%s390 + $0x8] sm:$0xff]
        %v4061 = vld [vmem:[%s390 + $0x10] sm:$0xff]
        %v4062 = vld [vmem:[%s390 + $0x18] sm:$0xff]
        %v4063 = vld [vmem:[%s390 + $0x20] sm:$0xff]
        %v4064 = vld [vmem:[%s390 + $0x28] sm:$0xff]
        %v4065 = vld [vmem:[%s390 + $0x30] sm:$0xff]
        %v4066 = vld [vmem:[%s390 + $0x38] sm:$0xff]
        %v4067 = vld [vmem:[%s390 + $0x40] sm:$0xff]
        %v4068 = vld [vmem:[%s390 + $0x48] sm:$0xff]
        %v4069 = vld [vmem:[%s390 + $0x50] sm:$0xff]
        %v4070 = vld [vmem:[%s390 + $0x58] sm:$0xff]
        %v4071 = vld [vmem:[%s390 + $0x60] sm:$0xff]
        %v4072 = vld [vmem:[%s390 + $0x68] sm:$0xff]
        %v4073 = vld [vmem:[%s390 + $0x70] sm:$0xff]
        %v4074 = vld [vmem:[%s390 + $0x78] sm:$0xff]
        %v4075 = vld [vmem:[%s390 + $0x80] sm:$0xff]
        %v4076 = vld [vmem:[%s390 + $0x88] sm:$0xff]
        %v4077 = vld [vmem:[%s390 + $0x90] sm:$0xff]
        %v4078 = vld [vmem:[%s390 + $0x98] sm:$0xff]
        %v4079 = vld [vmem:[%s390 + $0xa0] sm:$0xff]
        %v4080 = vld [vmem:[%s390 + $0xa8] sm:$0xff]
        %v4081 = vld [vmem:[%s390 + $0xb0] sm:$0xff]
        %v4082 = vld [vmem:[%s390 + $0xb8] sm:$0xff]
        %v4083 = vld [vmem:[%s390 + $0xc0] sm:$0xff]
        %v4084 = vld [vmem:[%s390 + $0xc8] sm:$0xff]
        %v4085 = vld [vmem:[%s390 + $0xd0] sm:$0xff]
        %v4086 = vld [vmem:[%s390 + $0xd8] sm:$0xff]
        %v4087 = vld [vmem:[%s390 + $0xe0] sm:$0xff]
        %v4088 = vld [vmem:[%s390 + $0xe8] sm:$0xff]
        %v4089 = vld [vmem:[%s390 + $0xf0] sm:$0xff]
        %v4090 = vld [vmem:[%s390 + $0xf8] sm:$0xff]
        %v4091 = vld [vmem:[%s394] sm:$0xff]
        %v4092 = vld [vmem:[%s394 + $0x8] sm:$0xff]
        %v4095 = vlaneseq
        %v4096 = vshrl.u32 %v4095, 7
        %v4097 = vsub.s32 0, %v4096
        %v4098 = vrot.slane %v4091, %v4097
        %v4099 = vlaneseq
        %v4100 = vshrl.u32 %v4099, 7
        %v4101 = vsub.s32 1, %v4100
        %v4102 = vrot.slane %v4091, %v4101
        %v4103 = vlaneseq
        %v4104 = vshrl.u32 %v4103, 7
        %v4105 = vsub.s32 2, %v4104
        %v4106 = vrot.slane %v4091, %v4105
        %v4107 = vlaneseq
        %v4108 = vshrl.u32 %v4107, 7
        %v4109 = vsub.s32 3, %v4108
        %v4110 = vrot.slane %v4091, %v4109
        %v4111 = vlaneseq
        %v4112 = vshrl.u32 %v4111, 7
        %v4113 = vsub.s32 4, %v4112
        %v4114 = vrot.slane %v4091, %v4113
        %v4115 = vlaneseq
        %v4116 = vshrl.u32 %v4115, 7
        %v4117 = vsub.s32 5, %v4116
        %v4118 = vrot.slane %v4091, %v4117
        %v4119 = vlaneseq
        %v4120 = vshrl.u32 %v4119, 7
        %v4121 = vsub.s32 6, %v4120
        %v4122 = vrot.slane %v4091, %v4121
        %v4123 = vlaneseq
        %v4124 = vshrl.u32 %v4123, 7
        %v4125 = vsub.s32 7, %v4124
        %v4126 = vrot.slane %v4091, %v4125
        %v4127 = vlaneseq
        %v4128 = vshrl.u32 %v4127, 7
        %v4129 = vsub.s32 0, %v4128
        %v4130 = vrot.slane %v4092, %v4129
        %v4131 = vlaneseq
        %v4132 = vshrl.u32 %v4131, 7
        %v4133 = vsub.s32 1, %v4132
        %v4134 = vrot.slane %v4092, %v4133
        %v4135 = vlaneseq
        %v4136 = vshrl.u32 %v4135, 7
        %v4137 = vsub.s32 2, %v4136
        %v4138 = vrot.slane %v4092, %v4137
        %v4139 = vlaneseq
        %v4140 = vshrl.u32 %v4139, 7
        %v4141 = vsub.s32 3, %v4140
        %v4142 = vrot.slane %v4092, %v4141
        %v4143 = vlaneseq
        %v4144 = vshrl.u32 %v4143, 7
        %v4145 = vsub.s32 4, %v4144
        %v4146 = vrot.slane %v4092, %v4145
        %v4147 = vlaneseq
        %v4148 = vshrl.u32 %v4147, 7
        %v4149 = vsub.s32 5, %v4148
        %v4150 = vrot.slane %v4092, %v4149
        %v4151 = vlaneseq
        %v4152 = vshrl.u32 %v4151, 7
        %v4153 = vsub.s32 6, %v4152
        %v4154 = vrot.slane %v4092, %v4153
        %v4155 = vlaneseq
        %v4156 = vshrl.u32 %v4155, 7
        %v4157 = vsub.s32 7, %v4156
        %v4158 = vrot.slane %v4092, %v4157
        %v4207 = vunpack.c.l.b16 %v4059
        %v4208 = vunpack.c.h.b16 %v4059
        %v4209 = vunpack.c.l.b16 %v4060
        %v4210 = vunpack.c.h.b16 %v4060
        %v4211 = vunpack.c.l.b16 %v4061
        %v4212 = vunpack.c.h.b16 %v4061
        %v4213 = vunpack.c.l.b16 %v4062
        %v4214 = vunpack.c.h.b16 %v4062
        %v4215 = vunpack.c.l.b16 %v4063
        %v4216 = vunpack.c.h.b16 %v4063
        %v4217 = vunpack.c.l.b16 %v4064
        %v4218 = vunpack.c.h.b16 %v4064
        %v4219 = vunpack.c.l.b16 %v4065
        %v4220 = vunpack.c.h.b16 %v4065
        %v4221 = vunpack.c.l.b16 %v4066
        %v4222 = vunpack.c.h.b16 %v4066
        %v4223 = vunpack.c.l.b16 %v4067
        %v4224 = vunpack.c.h.b16 %v4067
        %v4225 = vunpack.c.l.b16 %v4068
        %v4226 = vunpack.c.h.b16 %v4068
        %v4227 = vunpack.c.l.b16 %v4069
        %v4228 = vunpack.c.h.b16 %v4069
        %v4229 = vunpack.c.l.b16 %v4070
        %v4230 = vunpack.c.h.b16 %v4070
        %v4231 = vunpack.c.l.b16 %v4071
        %v4232 = vunpack.c.h.b16 %v4071
        %v4233 = vunpack.c.l.b16 %v4072
        %v4234 = vunpack.c.h.b16 %v4072
        %v4235 = vunpack.c.l.b16 %v4073
        %v4236 = vunpack.c.h.b16 %v4073
        %v4237 = vunpack.c.l.b16 %v4074
        %v4238 = vunpack.c.h.b16 %v4074
        %v4239 = vunpack.c.l.b16 %v4075
        %v4240 = vunpack.c.h.b16 %v4075
        %v4241 = vunpack.c.l.b16 %v4076
        %v4242 = vunpack.c.h.b16 %v4076
        %v4243 = vunpack.c.l.b16 %v4077
        %v4244 = vunpack.c.h.b16 %v4077
        %v4245 = vunpack.c.l.b16 %v4078
        %v4246 = vunpack.c.h.b16 %v4078
        %v4247 = vunpack.c.l.b16 %v4079
        %v4248 = vunpack.c.h.b16 %v4079
        %v4249 = vunpack.c.l.b16 %v4080
        %v4250 = vunpack.c.h.b16 %v4080
        %v4251 = vunpack.c.l.b16 %v4081
        %v4252 = vunpack.c.h.b16 %v4081
        %v4253 = vunpack.c.l.b16 %v4082
        %v4254 = vunpack.c.h.b16 %v4082
        %v4255 = vunpack.c.l.b16 %v4083
        %v4256 = vunpack.c.h.b16 %v4083
        %v4257 = vunpack.c.l.b16 %v4084
        %v4258 = vunpack.c.h.b16 %v4084
        %v4259 = vunpack.c.l.b16 %v4085
        %v4260 = vunpack.c.h.b16 %v4085
        %v4261 = vunpack.c.l.b16 %v4086
        %v4262 = vunpack.c.h.b16 %v4086
        %v4263 = vunpack.c.l.b16 %v4087
        %v4264 = vunpack.c.h.b16 %v4087
        %v4265 = vunpack.c.l.b16 %v4088
        %v4266 = vunpack.c.h.b16 %v4088
        %v4267 = vunpack.c.l.b16 %v4089
        %v4268 = vunpack.c.h.b16 %v4089
        %v4269 = vunpack.c.l.b16 %v4090
        %v4270 = vunpack.c.h.b16 %v4090
        %v4271 = vpack.c.b16 %v4223, %v4207
        %v4272 = vpack.c.b16 %v4224, %v4208
        %v4273 = vpack.c.b16 %v4225, %v4209
        %v4274 = vpack.c.b16 %v4226, %v4210
        %v4275 = vpack.c.b16 %v4227, %v4211
        %v4276 = vpack.c.b16 %v4228, %v4212
        %v4277 = vpack.c.b16 %v4229, %v4213
        %v4278 = vpack.c.b16 %v4230, %v4214
        %v4279 = vpack.c.b16 %v4231, %v4215
        %v4280 = vpack.c.b16 %v4232, %v4216
        %v4281 = vpack.c.b16 %v4233, %v4217
        %v4282 = vpack.c.b16 %v4234, %v4218
        %v4283 = vpack.c.b16 %v4235, %v4219
        %v4284 = vpack.c.b16 %v4236, %v4220
        %v4285 = vpack.c.b16 %v4237, %v4221
        %v4286 = vpack.c.b16 %v4238, %v4222
        %v4287 = vpack.c.b16 %v4255, %v4239
        %v4288 = vpack.c.b16 %v4256, %v4240
        %v4289 = vpack.c.b16 %v4257, %v4241
        %v4290 = vpack.c.b16 %v4258, %v4242
        %v4291 = vpack.c.b16 %v4259, %v4243
        %v4292 = vpack.c.b16 %v4260, %v4244
        %v4293 = vpack.c.b16 %v4261, %v4245
        %v4294 = vpack.c.b16 %v4262, %v4246
        %v4295 = vpack.c.b16 %v4263, %v4247
        %v4296 = vpack.c.b16 %v4264, %v4248
        %v4297 = vpack.c.b16 %v4265, %v4249
        %v4298 = vpack.c.b16 %v4266, %v4250
        %v4299 = vpack.c.b16 %v4267, %v4251
        %v4300 = vpack.c.b16 %v4268, %v4252
        %v4301 = vpack.c.b16 %v4269, %v4253
        %v4302 = vpack.c.b16 %v4270, %v4254
        %v4336 = vsel %vm430, %v4057, 0
        %v4339 = vsel %vm430, %v4058, 0
        %4341 = vmatprep.subr.bf16.mxu0 %v4272
        %4342 = vmatpush1.bf16.msra.mxu0 %v4271
        %4343 = vmatprep.subr.bf16.mxu0 %v4288
        %4344 = vmatpush1.bf16.msra.mxu0 %v4287
        %4345 = vmatprep.subr.bf16.mxu0 0
        %4346 = vmatpush1.bf16.msra.mxu0 0
        %4347 = vmatprep.subr.bf16.mxu0 0
        %4348 = vmatpush1.bf16.msra.mxu0 0
        %4349 = vmatprep.subr.bf16.mxu0 0
        %4350 = vmatpush1.bf16.msra.mxu0 0
        %4351 = vmatprep.subr.bf16.mxu0 0
        %4352 = vmatpush1.bf16.msra.mxu0 0
        %4353 = vmatprep.subr.bf16.mxu0 0
        %4354 = vmatpush1.bf16.msra.mxu0 0
        %4355 = vmatprep.subr.bf16.mxu0 0
        %4356 = vmatpush1.bf16.msra.mxu0 0
        %4357 = vmatprep.subr.bf16.mxu0 0
        %4358 = vmatpush1.bf16.msra.mxu0 0
        %4359 = vmatprep.subr.bf16.mxu0 0
        %4360 = vmatpush1.bf16.msra.mxu0 0
        %4361 = vmatprep.subr.bf16.mxu0 0
        %4362 = vmatpush1.bf16.msra.mxu0 0
        %4363 = vmatprep.subr.bf16.mxu0 0
        %4364 = vmatpush1.bf16.msra.mxu0 0
        %4365 = vmatprep.subr.bf16.mxu0 0
        %4366 = vmatpush1.bf16.msra.mxu0 0
        %4367 = vmatprep.subr.bf16.mxu0 0
        %4368 = vmatpush1.bf16.msra.mxu0 0
        %4369 = vmatprep.subr.bf16.mxu0 0
        %4370 = vmatpush1.bf16.msra.mxu0 0
        %4371 = vmatprep.subr.bf16.mxu0 0
        %4372 = vmatpush1.bf16.msra.mxu0 0
        %4373 = vmatprep.mubr.bf16.mxu0 0
        %4374 = vmatmul.mubr.bf16.gmra.mrb[0].mxu0 %v4336
        %v4375 = vpop.f32.mrb[0].mxu0
        %v4376 = vadd.f32 %v4098, %v4375
        %v4377 = vpop.f32.mrb[0].mxu0
        %v4378 = vadd.f32 %v4102, %v4377
        %v4379 = vpop.f32.mrb[0].mxu0
        %v4380 = vadd.f32 %v4098, %v4379
        %v4381 = vpop.f32.mrb[0].mxu0
        %v4382 = vadd.f32 %v4102, %v4381
        %4383 = vmatprep.mubr.bf16.mxu0 0
        %4384 = vmatmul.mubr.bf16.gmra.mrb[0].mxu0 %v4339
        %v4385 = vpop.f32.mrb[0].mxu0
        %v4386 = vadd.f32 %v4098, %v4385
        %v4387 = vpop.f32.mrb[0].mxu0
        %v4388 = vadd.f32 %v4102, %v4387
        %v4389 = vpop.f32.mrb[0].mxu0
        %v4390 = vadd.f32 %v4098, %v4389
        %v4391 = vpop.f32.mrb[0].mxu0
        %v4392 = vadd.f32 %v4102, %v4391
        %4393 = vdwg.mxu0
        %4394 = vmatprep.subr.bf16.mxu0 %v4274
        %4395 = vmatpush1.bf16.msra.mxu0 %v4273
        %4396 = vmatprep.subr.bf16.mxu0 %v4290
        %4397 = vmatpush1.bf16.msra.mxu0 %v4289
        %4398 = vmatprep.subr.bf16.mxu0 0
        %4399 = vmatpush1.bf16.msra.mxu0 0
        %4400 = vmatprep.subr.bf16.mxu0 0
        %4401 = vmatpush1.bf16.msra.mxu0 0
        %4402 = vmatprep.subr.bf16.mxu0 0
        %4403 = vmatpush1.bf16.msra.mxu0 0
        %4404 = vmatprep.subr.bf16.mxu0 0
        %4405 = vmatpush1.bf16.msra.mxu0 0
        %4406 = vmatprep.subr.bf16.mxu0 0
        %4407 = vmatpush1.bf16.msra.mxu0 0
        %4408 = vmatprep.subr.bf16.mxu0 0
        %4409 = vmatpush1.bf16.msra.mxu0 0
        %4410 = vmatprep.subr.bf16.mxu0 0
        %4411 = vmatpush1.bf16.msra.mxu0 0
        %4412 = vmatprep.subr.bf16.mxu0 0
        %4413 = vmatpush1.bf16.msra.mxu0 0
        %4414 = vmatprep.subr.bf16.mxu0 0
        %4415 = vmatpush1.bf16.msra.mxu0 0
        %4416 = vmatprep.subr.bf16.mxu0 0
        %4417 = vmatpush1.bf16.msra.mxu0 0
        %4418 = vmatprep.subr.bf16.mxu0 0
        %4419 = vmatpush1.bf16.msra.mxu0 0
        %4420 = vmatprep.subr.bf16.mxu0 0
        %4421 = vmatpush1.bf16.msra.mxu0 0
        %4422 = vmatprep.subr.bf16.mxu0 0
        %4423 = vmatpush1.bf16.msra.mxu0 0
        %4424 = vmatprep.subr.bf16.mxu0 0
        %4425 = vmatpush1.bf16.msra.mxu0 0
        %4426 = vmatprep.mubr.bf16.mxu0 0
        %4427 = vmatmul.mubr.bf16.gmra.mrb[0].mxu0 %v4336
        %v4428 = vpop.f32.mrb[0].mxu0
        %v4429 = vadd.f32 %v4106, %v4428
        %v4430 = vpop.f32.mrb[0].mxu0
        %v4431 = vadd.f32 %v4110, %v4430
        %v4432 = vpop.f32.mrb[0].mxu0
        %v4433 = vadd.f32 %v4106, %v4432
        %v4434 = vpop.f32.mrb[0].mxu0
        %v4435 = vadd.f32 %v4110, %v4434
        %4436 = vmatprep.mubr.bf16.mxu0 0
        %4437 = vmatmul.mubr.bf16.gmra.mrb[0].mxu0 %v4339
        %v4438 = vpop.f32.mrb[0].mxu0
        %v4439 = vadd.f32 %v4106, %v4438
        %v4440 = vpop.f32.mrb[0].mxu0
        %v4441 = vadd.f32 %v4110, %v4440
        %v4442 = vpop.f32.mrb[0].mxu0
        %v4443 = vadd.f32 %v4106, %v4442
        %v4444 = vpop.f32.mrb[0].mxu0
        %v4445 = vadd.f32 %v4110, %v4444
        %4446 = vdwg.mxu0
        %4447 = vmatprep.subr.bf16.mxu0 %v4276
        %4448 = vmatpush1.bf16.msra.mxu0 %v4275
        %4449 = vmatprep.subr.bf16.mxu0 %v4292
        %4450 = vmatpush1.bf16.msra.mxu0 %v4291
        %4451 = vmatprep.subr.bf16.mxu0 0
        %4452 = vmatpush1.bf16.msra.mxu0 0
        %4453 = vmatprep.subr.bf16.mxu0 0
        %4454 = vmatpush1.bf16.msra.mxu0 0
        %4455 = vmatprep.subr.bf16.mxu0 0
        %4456 = vmatpush1.bf16.msra.mxu0 0
        %4457 = vmatprep.subr.bf16.mxu0 0
        %4458 = vmatpush1.bf16.msra.mxu0 0
        %4459 = vmatprep.subr.bf16.mxu0 0
        %4460 = vmatpush1.bf16.msra.mxu0 0
        %4461 = vmatprep.subr.bf16.mxu0 0
        %4462 = vmatpush1.bf16.msra.mxu0 0
        %4463 = vmatprep.subr.bf16.mxu0 0
        %4464 = vmatpush1.bf16.msra.mxu0 0
        %4465 = vmatprep.subr.bf16.mxu0 0
        %4466 = vmatpush1.bf16.msra.mxu0 0
        %4467 = vmatprep.subr.bf16.mxu0 0
        %4468 = vmatpush1.bf16.msra.mxu0 0
        %4469 = vmatprep.subr.bf16.mxu0 0
        %4470 = vmatpush1.bf16.msra.mxu0 0
        %4471 = vmatprep.subr.bf16.mxu0 0
        %4472 = vmatpush1.bf16.msra.mxu0 0
        %4473 = vmatprep.subr.bf16.mxu0 0
        %4474 = vmatpush1.bf16.msra.mxu0 0
        %4475 = vmatprep.subr.bf16.mxu0 0
        %4476 = vmatpush1.bf16.msra.mxu0 0
        %4477 = vmatprep.subr.bf16.mxu0 0
        %4478 = vmatpush1.bf16.msra.mxu0 0
        %4479 = vmatprep.mubr.bf16.mxu0 0
        %4480 = vmatmul.mubr.bf16.gmra.mrb[0].mxu0 %v4336
        %v4481 = vpop.f32.mrb[0].mxu0
        %v4482 = vadd.f32 %v4114, %v4481
        %v4483 = vpop.f32.mrb[0].mxu0
        %v4484 = vadd.f32 %v4118, %v4483
        %v4485 = vpop.f32.mrb[0].mxu0
        %v4486 = vadd.f32 %v4114, %v4485
        %v4487 = vpop.f32.mrb[0].mxu0
        %v4488 = vadd.f32 %v4118, %v4487
        %4489 = vmatprep.mubr.bf16.mxu0 0
        %4490 = vmatmul.mubr.bf16.gmra.mrb[0].mxu0 %v4339
        %v4491 = vpop.f32.mrb[0].mxu0
        %v4492 = vadd.f32 %v4114, %v4491
        %v4493 = vpop.f32.mrb[0].mxu0
        %v4494 = vadd.f32 %v4118, %v4493
        %v4495 = vpop.f32.mrb[0].mxu0
        %v4496 = vadd.f32 %v4114, %v4495
        %v4497 = vpop.f32.mrb[0].mxu0
        %v4498 = vadd.f32 %v4118, %v4497
        %4499 = vdwg.mxu0
        %4500 = vmatprep.subr.bf16.mxu0 %v4278
        %4501 = vmatpush1.bf16.msra.mxu0 %v4277
        %4502 = vmatprep.subr.bf16.mxu0 %v4294
        %4503 = vmatpush1.bf16.msra.mxu0 %v4293
        %4504 = vmatprep.subr.bf16.mxu0 0
        %4505 = vmatpush1.bf16.msra.mxu0 0
        %4506 = vmatprep.subr.bf16.mxu0 0
        %4507 = vmatpush1.bf16.msra.mxu0 0
        %4508 = vmatprep.subr.bf16.mxu0 0
        %4509 = vmatpush1.bf16.msra.mxu0 0
        %4510 = vmatprep.subr.bf16.mxu0 0
        %4511 = vmatpush1.bf16.msra.mxu0 0
        %4512 = vmatprep.subr.bf16.mxu0 0
        %4513 = vmatpush1.bf16.msra.mxu0 0
        %4514 = vmatprep.subr.bf16.mxu0 0
        %4515 = vmatpush1.bf16.msra.mxu0 0
        %4516 = vmatprep.subr.bf16.mxu0 0
        %4517 = vmatpush1.bf16.msra.mxu0 0
        %4518 = vmatprep.subr.bf16.mxu0 0
        %4519 = vmatpush1.bf16.msra.mxu0 0
        %4520 = vmatprep.subr.bf16.mxu0 0
        %4521 = vmatpush1.bf16.msra.mxu0 0
        %4522 = vmatprep.subr.bf16.mxu0 0
        %4523 = vmatpush1.bf16.msra.mxu0 0
        %4524 = vmatprep.subr.bf16.mxu0 0
        %4525 = vmatpush1.bf16.msra.mxu0 0
        %4526 = vmatprep.subr.bf16.mxu0 0
        %4527 = vmatpush1.bf16.msra.mxu0 0
        %4528 = vmatprep.subr.bf16.mxu0 0
        %4529 = vmatpush1.bf16.msra.mxu0 0
        %4530 = vmatprep.subr.bf16.mxu0 0
        %4531 = vmatpush1.bf16.msra.mxu0 0
        %4532 = vmatprep.mubr.bf16.mxu0 0
        %4533 = vmatmul.mubr.bf16.gmra.mrb[0].mxu0 %v4336
        %v4534 = vpop.f32.mrb[0].mxu0
        %v4535 = vadd.f32 %v4122, %v4534
        %v4536 = vpop.f32.mrb[0].mxu0
        %v4537 = vadd.f32 %v4126, %v4536
        %v4538 = vpop.f32.mrb[0].mxu0
        %v4539 = vadd.f32 %v4122, %v4538
        %v4540 = vpop.f32.mrb[0].mxu0
        %v4541 = vadd.f32 %v4126, %v4540
        %4542 = vmatprep.mubr.bf16.mxu0 0
        %4543 = vmatmul.mubr.bf16.gmra.mrb[0].mxu0 %v4339
        %v4544 = vpop.f32.mrb[0].mxu0
        %v4545 = vadd.f32 %v4122, %v4544
        %v4546 = vpop.f32.mrb[0].mxu0
        %v4547 = vadd.f32 %v4126, %v4546
        %v4548 = vpop.f32.mrb[0].mxu0
        %v4549 = vadd.f32 %v4122, %v4548
        %v4550 = vpop.f32.mrb[0].mxu0
        %v4551 = vadd.f32 %v4126, %v4550
        %4552 = vdwg.mxu0
        %4553 = vmatprep.subr.bf16.mxu0 %v4280
        %4554 = vmatpush1.bf16.msra.mxu0 %v4279
        %4555 = vmatprep.subr.bf16.mxu0 %v4296
        %4556 = vmatpush1.bf16.msra.mxu0 %v4295
        %4557 = vmatprep.subr.bf16.mxu0 0
        %4558 = vmatpush1.bf16.msra.mxu0 0
        %4559 = vmatprep.subr.bf16.mxu0 0
        %4560 = vmatpush1.bf16.msra.mxu0 0
        %4561 = vmatprep.subr.bf16.mxu0 0
        %4562 = vmatpush1.bf16.msra.mxu0 0
        %4563 = vmatprep.subr.bf16.mxu0 0
        %4564 = vmatpush1.bf16.msra.mxu0 0
        %4565 = vmatprep.subr.bf16.mxu0 0
        %4566 = vmatpush1.bf16.msra.mxu0 0
        %4567 = vmatprep.subr.bf16.mxu0 0
        %4568 = vmatpush1.bf16.msra.mxu0 0
        %4569 = vmatprep.subr.bf16.mxu0 0
        %4570 = vmatpush1.bf16.msra.mxu0 0
        %4571 = vmatprep.subr.bf16.mxu0 0
        %4572 = vmatpush1.bf16.msra.mxu0 0
        %4573 = vmatprep.subr.bf16.mxu0 0
        %4574 = vmatpush1.bf16.msra.mxu0 0
        %4575 = vmatprep.subr.bf16.mxu0 0
        %4576 = vmatpush1.bf16.msra.mxu0 0
        %4577 = vmatprep.subr.bf16.mxu0 0
        %4578 = vmatpush1.bf16.msra.mxu0 0
        %4579 = vmatprep.subr.bf16.mxu0 0
        %4580 = vmatpush1.bf16.msra.mxu0 0
        %4581 = vmatprep.subr.bf16.mxu0 0
        %4582 = vmatpush1.bf16.msra.mxu0 0
        %4583 = vmatprep.subr.bf16.mxu0 0
        %4584 = vmatpush1.bf16.msra.mxu0 0
        %4585 = vmatprep.mubr.bf16.mxu0 0
        %4586 = vmatmul.mubr.bf16.gmra.mrb[0].mxu0 %v4336
        %v4587 = vpop.f32.mrb[0].mxu0
        %v4588 = vadd.f32 %v4130, %v4587
        %v4589 = vpop.f32.mrb[0].mxu0
        %v4590 = vadd.f32 %v4134, %v4589
        %v4591 = vpop.f32.mrb[0].mxu0
        %v4592 = vadd.f32 %v4130, %v4591
        %v4593 = vpop.f32.mrb[0].mxu0
        %v4594 = vadd.f32 %v4134, %v4593
        %4595 = vmatprep.mubr.bf16.mxu0 0
        %4596 = vmatmul.mubr.bf16.gmra.mrb[0].mxu0 %v4339
        %v4597 = vpop.f32.mrb[0].mxu0
        %v4598 = vadd.f32 %v4130, %v4597
        %v4599 = vpop.f32.mrb[0].mxu0
        %v4600 = vadd.f32 %v4134, %v4599
        %v4601 = vpop.f32.mrb[0].mxu0
        %v4602 = vadd.f32 %v4130, %v4601
        %v4603 = vpop.f32.mrb[0].mxu0
        %v4604 = vadd.f32 %v4134, %v4603
        %4605 = vdwg.mxu0
        %4606 = vmatprep.subr.bf16.mxu0 %v4282
        %4607 = vmatpush1.bf16.msra.mxu0 %v4281
        %4608 = vmatprep.subr.bf16.mxu0 %v4298
        %4609 = vmatpush1.bf16.msra.mxu0 %v4297
        %4610 = vmatprep.subr.bf16.mxu0 0
        %4611 = vmatpush1.bf16.msra.mxu0 0
        %4612 = vmatprep.subr.bf16.mxu0 0
        %4613 = vmatpush1.bf16.msra.mxu0 0
        %4614 = vmatprep.subr.bf16.mxu0 0
        %4615 = vmatpush1.bf16.msra.mxu0 0
        %4616 = vmatprep.subr.bf16.mxu0 0
        %4617 = vmatpush1.bf16.msra.mxu0 0
        %4618 = vmatprep.subr.bf16.mxu0 0
        %4619 = vmatpush1.bf16.msra.mxu0 0
        %4620 = vmatprep.subr.bf16.mxu0 0
        %4621 = vmatpush1.bf16.msra.mxu0 0
        %4622 = vmatprep.subr.bf16.mxu0 0
        %4623 = vmatpush1.bf16.msra.mxu0 0
        %4624 = vmatprep.subr.bf16.mxu0 0
        %4625 = vmatpush1.bf16.msra.mxu0 0
        %4626 = vmatprep.subr.bf16.mxu0 0
        %4627 = vmatpush1.bf16.msra.mxu0 0
        %4628 = vmatprep.subr.bf16.mxu0 0
        %4629 = vmatpush1.bf16.msra.mxu0 0
        %4630 = vmatprep.subr.bf16.mxu0 0
        %4631 = vmatpush1.bf16.msra.mxu0 0
        %4632 = vmatprep.subr.bf16.mxu0 0
        %4633 = vmatpush1.bf16.msra.mxu0 0
        %4634 = vmatprep.subr.bf16.mxu0 0
        %4635 = vmatpush1.bf16.msra.mxu0 0
        %4636 = vmatprep.subr.bf16.mxu0 0
        %4637 = vmatpush1.bf16.msra.mxu0 0
        %4638 = vmatprep.mubr.bf16.mxu0 0
        %4639 = vmatmul.mubr.bf16.gmra.mrb[0].mxu0 %v4336
        %v4640 = vpop.f32.mrb[0].mxu0
        %v4641 = vadd.f32 %v4138, %v4640
        %v4642 = vpop.f32.mrb[0].mxu0
        %v4643 = vadd.f32 %v4142, %v4642
        %v4644 = vpop.f32.mrb[0].mxu0
        %v4645 = vadd.f32 %v4138, %v4644
        %v4646 = vpop.f32.mrb[0].mxu0
        %v4647 = vadd.f32 %v4142, %v4646
        %4648 = vmatprep.mubr.bf16.mxu0 0
        %4649 = vmatmul.mubr.bf16.gmra.mrb[0].mxu0 %v4339
        %v4650 = vpop.f32.mrb[0].mxu0
        %v4651 = vadd.f32 %v4138, %v4650
        %v4652 = vpop.f32.mrb[0].mxu0
        %v4653 = vadd.f32 %v4142, %v4652
        %v4654 = vpop.f32.mrb[0].mxu0
        %v4655 = vadd.f32 %v4138, %v4654
        %v4656 = vpop.f32.mrb[0].mxu0
        %v4657 = vadd.f32 %v4142, %v4656
        %4658 = vdwg.mxu0
        %4659 = vmatprep.subr.bf16.mxu0 %v4284
        %4660 = vmatpush1.bf16.msra.mxu0 %v4283
        %4661 = vmatprep.subr.bf16.mxu0 %v4300
        %4662 = vmatpush1.bf16.msra.mxu0 %v4299
        %4663 = vmatprep.subr.bf16.mxu0 0
        %4664 = vmatpush1.bf16.msra.mxu0 0
        %4665 = vmatprep.subr.bf16.mxu0 0
        %4666 = vmatpush1.bf16.msra.mxu0 0
        %4667 = vmatprep.subr.bf16.mxu0 0
        %4668 = vmatpush1.bf16.msra.mxu0 0
        %4669 = vmatprep.subr.bf16.mxu0 0
        %4670 = vmatpush1.bf16.msra.mxu0 0
        %4671 = vmatprep.subr.bf16.mxu0 0
        %4672 = vmatpush1.bf16.msra.mxu0 0
        %4673 = vmatprep.subr.bf16.mxu0 0
        %4674 = vmatpush1.bf16.msra.mxu0 0
        %4675 = vmatprep.subr.bf16.mxu0 0
        %4676 = vmatpush1.bf16.msra.mxu0 0
        %4677 = vmatprep.subr.bf16.mxu0 0
        %4678 = vmatpush1.bf16.msra.mxu0 0
        %4679 = vmatprep.subr.bf16.mxu0 0
        %4680 = vmatpush1.bf16.msra.mxu0 0
        %4681 = vmatprep.subr.bf16.mxu0 0
        %4682 = vmatpush1.bf16.msra.mxu0 0
        %4683 = vmatprep.subr.bf16.mxu0 0
        %4684 = vmatpush1.bf16.msra.mxu0 0
        %4685 = vmatprep.subr.bf16.mxu0 0
        %4686 = vmatpush1.bf16.msra.mxu0 0
        %4687 = vmatprep.subr.bf16.mxu0 0
        %4688 = vmatpush1.bf16.msra.mxu0 0
        %4689 = vmatprep.subr.bf16.mxu0 0
        %4690 = vmatpush1.bf16.msra.mxu0 0
        %4691 = vmatprep.mubr.bf16.mxu0 0
        %4692 = vmatmul.mubr.bf16.gmra.mrb[0].mxu0 %v4336
        %v4693 = vpop.f32.mrb[0].mxu0
        %v4694 = vadd.f32 %v4146, %v4693
        %v4695 = vpop.f32.mrb[0].mxu0
        %v4696 = vadd.f32 %v4150, %v4695
        %v4697 = vpop.f32.mrb[0].mxu0
        %v4698 = vadd.f32 %v4146, %v4697
        %v4699 = vpop.f32.mrb[0].mxu0
        %v4700 = vadd.f32 %v4150, %v4699
        %4701 = vmatprep.mubr.bf16.mxu0 0
        %4702 = vmatmul.mubr.bf16.gmra.mrb[0].mxu0 %v4339
        %v4703 = vpop.f32.mrb[0].mxu0
        %v4704 = vadd.f32 %v4146, %v4703
        %v4705 = vpop.f32.mrb[0].mxu0
        %v4706 = vadd.f32 %v4150, %v4705
        %v4707 = vpop.f32.mrb[0].mxu0
        %v4708 = vadd.f32 %v4146, %v4707
        %v4709 = vpop.f32.mrb[0].mxu0
        %v4710 = vadd.f32 %v4150, %v4709
        %4711 = vdwg.mxu0
        %4712 = vmatprep.subr.bf16.mxu0 %v4286
        %4713 = vmatpush1.bf16.msra.mxu0 %v4285
        %4714 = vmatprep.subr.bf16.mxu0 %v4302
        %4715 = vmatpush1.bf16.msra.mxu0 %v4301
        %4716 = vmatprep.subr.bf16.mxu0 0
        %4717 = vmatpush1.bf16.msra.mxu0 0
        %4718 = vmatprep.subr.bf16.mxu0 0
        %4719 = vmatpush1.bf16.msra.mxu0 0
        %4720 = vmatprep.subr.bf16.mxu0 0
        %4721 = vmatpush1.bf16.msra.mxu0 0
        %4722 = vmatprep.subr.bf16.mxu0 0
        %4723 = vmatpush1.bf16.msra.mxu0 0
        %4724 = vmatprep.subr.bf16.mxu0 0
        %4725 = vmatpush1.bf16.msra.mxu0 0
        %4726 = vmatprep.subr.bf16.mxu0 0
        %4727 = vmatpush1.bf16.msra.mxu0 0
        %4728 = vmatprep.subr.bf16.mxu0 0
        %4729 = vmatpush1.bf16.msra.mxu0 0
        %4730 = vmatprep.subr.bf16.mxu0 0
        %4731 = vmatpush1.bf16.msra.mxu0 0
        %4732 = vmatprep.subr.bf16.mxu0 0
        %4733 = vmatpush1.bf16.msra.mxu0 0
        %4734 = vmatprep.subr.bf16.mxu0 0
        %4735 = vmatpush1.bf16.msra.mxu0 0
        %4736 = vmatprep.subr.bf16.mxu0 0
        %4737 = vmatpush1.bf16.msra.mxu0 0
        %4738 = vmatprep.subr.bf16.mxu0 0
        %4739 = vmatpush1.bf16.msra.mxu0 0
        %4740 = vmatprep.subr.bf16.mxu0 0
        %4741 = vmatpush1.bf16.msra.mxu0 0
        %4742 = vmatprep.subr.bf16.mxu0 0
        %4743 = vmatpush1.bf16.msra.mxu0 0
        %4744 = vmatprep.mubr.bf16.mxu0 0
        %4745 = vmatmul.mubr.bf16.gmra.mrb[0].mxu0 %v4336
        %v4746 = vpop.f32.mrb[0].mxu0
        %v4747 = vadd.f32 %v4154, %v4746
        %v4748 = vpop.f32.mrb[0].mxu0
        %v4749 = vadd.f32 %v4158, %v4748
        %v4750 = vpop.f32.mrb[0].mxu0
        %v4751 = vadd.f32 %v4154, %v4750
        %v4752 = vpop.f32.mrb[0].mxu0
        %v4753 = vadd.f32 %v4158, %v4752
        %4754 = vmatprep.mubr.bf16.mxu0 0
        %4755 = vmatmul.mubr.bf16.gmra.mrb[0].mxu0 %v4339
        %v4756 = vpop.f32.mrb[0].mxu0
        %v4757 = vadd.f32 %v4154, %v4756
        %v4758 = vpop.f32.mrb[0].mxu0
        %v4759 = vadd.f32 %v4158, %v4758
        %v4760 = vpop.f32.mrb[0].mxu0
        %v4761 = vadd.f32 %v4154, %v4760
        %v4762 = vpop.f32.mrb[0].mxu0
        %v4763 = vadd.f32 %v4158, %v4762
        %4764 = vdwg.mxu0
        %v4765 = vmax.f32 %v4376, 0.0
        %v4766 = vmax.f32 %v4378, 0.0
        %v4767 = vmax.f32 %v4429, 0.0
        %v4768 = vmax.f32 %v4431, 0.0
        %v4769 = vmax.f32 %v4482, 0.0
        %v4770 = vmax.f32 %v4484, 0.0
        %v4771 = vmax.f32 %v4535, 0.0
        %v4772 = vmax.f32 %v4537, 0.0
        %v4773 = vmax.f32 %v4588, 0.0
        %v4774 = vmax.f32 %v4590, 0.0
        %v4775 = vmax.f32 %v4641, 0.0
        %v4776 = vmax.f32 %v4643, 0.0
        %v4777 = vmax.f32 %v4694, 0.0
        %v4778 = vmax.f32 %v4696, 0.0
        %v4779 = vmax.f32 %v4747, 0.0
        %v4780 = vmax.f32 %v4749, 0.0
        %v4781 = vmax.f32 %v4380, 0.0
        %v4782 = vmax.f32 %v4382, 0.0
        %v4783 = vmax.f32 %v4433, 0.0
        %v4784 = vmax.f32 %v4435, 0.0
        %v4785 = vmax.f32 %v4486, 0.0
        %v4786 = vmax.f32 %v4488, 0.0
        %v4787 = vmax.f32 %v4539, 0.0
        %v4788 = vmax.f32 %v4541, 0.0
        %v4789 = vmax.f32 %v4592, 0.0
        %v4790 = vmax.f32 %v4594, 0.0
        %v4791 = vmax.f32 %v4645, 0.0
        %v4792 = vmax.f32 %v4647, 0.0
        %v4793 = vmax.f32 %v4698, 0.0
        %v4794 = vmax.f32 %v4700, 0.0
        %v4795 = vmax.f32 %v4751, 0.0
        %v4796 = vmax.f32 %v4753, 0.0
        %v4797 = vmax.f32 %v4386, 0.0
        %v4798 = vmax.f32 %v4388, 0.0
        %v4799 = vmax.f32 %v4439, 0.0
        %v4800 = vmax.f32 %v4441, 0.0
        %v4801 = vmax.f32 %v4492, 0.0
        %v4802 = vmax.f32 %v4494, 0.0
        %v4803 = vmax.f32 %v4545, 0.0
        %v4804 = vmax.f32 %v4547, 0.0
        %v4805 = vmax.f32 %v4598, 0.0
        %v4806 = vmax.f32 %v4600, 0.0
        %v4807 = vmax.f32 %v4651, 0.0
        %v4808 = vmax.f32 %v4653, 0.0
        %v4809 = vmax.f32 %v4704, 0.0
        %v4810 = vmax.f32 %v4706, 0.0
        %v4811 = vmax.f32 %v4757, 0.0
        %v4812 = vmax.f32 %v4759, 0.0
        %v4813 = vmax.f32 %v4390, 0.0
        %v4814 = vmax.f32 %v4392, 0.0
        %v4815 = vmax.f32 %v4443, 0.0
        %v4816 = vmax.f32 %v4445, 0.0
        %v4817 = vmax.f32 %v4496, 0.0
        %v4818 = vmax.f32 %v4498, 0.0
        %v4819 = vmax.f32 %v4549, 0.0
        %v4820 = vmax.f32 %v4551, 0.0
        %v4821 = vmax.f32 %v4602, 0.0
        %v4822 = vmax.f32 %v4604, 0.0
        %v4823 = vmax.f32 %v4655, 0.0
        %v4824 = vmax.f32 %v4657, 0.0
        %v4825 = vmax.f32 %v4708, 0.0
        %v4826 = vmax.f32 %v4710, 0.0
        %v4827 = vmax.f32 %v4761, 0.0
        %v4828 = vmax.f32 %v4763, 0.0
        %v4829 = vpack.c.bf16 %v4781, %v4765
        %v4830 = vpack.c.bf16 %v4782, %v4766
        %v4831 = vpack.c.bf16 %v4783, %v4767
        %v4832 = vpack.c.bf16 %v4784, %v4768
        %v4833 = vpack.c.bf16 %v4785, %v4769
        %v4834 = vpack.c.bf16 %v4786, %v4770
        %v4835 = vpack.c.bf16 %v4787, %v4771
        %v4836 = vpack.c.bf16 %v4788, %v4772
        %v4837 = vpack.c.bf16 %v4789, %v4773
        %v4838 = vpack.c.bf16 %v4790, %v4774
        %v4839 = vpack.c.bf16 %v4791, %v4775
        %v4840 = vpack.c.bf16 %v4792, %v4776
        %v4841 = vpack.c.bf16 %v4793, %v4777
        %v4842 = vpack.c.bf16 %v4794, %v4778
        %v4843 = vpack.c.bf16 %v4795, %v4779
        %v4844 = vpack.c.bf16 %v4796, %v4780
        %v4845 = vpack.c.bf16 %v4813, %v4797
        %v4846 = vpack.c.bf16 %v4814, %v4798
        %v4847 = vpack.c.bf16 %v4815, %v4799
        %v4848 = vpack.c.bf16 %v4816, %v4800
        %v4849 = vpack.c.bf16 %v4817, %v4801
        %v4850 = vpack.c.bf16 %v4818, %v4802
        %v4851 = vpack.c.bf16 %v4819, %v4803
        %v4852 = vpack.c.bf16 %v4820, %v4804
        %v4853 = vpack.c.bf16 %v4821, %v4805
        %v4854 = vpack.c.bf16 %v4822, %v4806
        %v4855 = vpack.c.bf16 %v4823, %v4807
        %v4856 = vpack.c.bf16 %v4824, %v4808
        %v4857 = vpack.c.bf16 %v4825, %v4809
        %v4858 = vpack.c.bf16 %v4826, %v4810
        %v4859 = vpack.c.bf16 %v4827, %v4811
        %v4860 = vpack.c.bf16 %v4828, %v4812
        %v4861 = vld [vmem:[%s399] sm:$0xf]
        %v4862 = vld [vmem:[%s399 + $0x4] sm:$0xf]
        %v4863 = vld [vmem:[%s399 + $0x8] sm:$0xf]
        %v4864 = vld [vmem:[%s399 + $0xc] sm:$0xf]
        %v4865 = vld [vmem:[%s399 + $0x10] sm:$0xf]
        %v4866 = vld [vmem:[%s399 + $0x14] sm:$0xf]
        %v4867 = vld [vmem:[%s399 + $0x18] sm:$0xf]
        %v4868 = vld [vmem:[%s399 + $0x1c] sm:$0xf]
        %v4869 = vld [vmem:[%s399 + $0x20] sm:$0xf]
        %v4870 = vld [vmem:[%s399 + $0x24] sm:$0xf]
        %v4871 = vld [vmem:[%s399 + $0x28] sm:$0xf]
        %v4872 = vld [vmem:[%s399 + $0x2c] sm:$0xf]
        %v4873 = vld [vmem:[%s399 + $0x30] sm:$0xf]
        %v4874 = vld [vmem:[%s399 + $0x34] sm:$0xf]
        %v4875 = vld [vmem:[%s399 + $0x38] sm:$0xf]
        %v4876 = vld [vmem:[%s399 + $0x3c] sm:$0xf]
        %v4877 = vld [vmem:[%s399 + $0x40] sm:$0xf]
        %v4878 = vld [vmem:[%s399 + $0x44] sm:$0xf]
        %v4879 = vld [vmem:[%s399 + $0x48] sm:$0xf]
        %v4880 = vld [vmem:[%s399 + $0x4c] sm:$0xf]
        %v4881 = vld [vmem:[%s399 + $0x50] sm:$0xf]
        %v4882 = vld [vmem:[%s399 + $0x54] sm:$0xf]
        %v4883 = vld [vmem:[%s399 + $0x58] sm:$0xf]
        %v4884 = vld [vmem:[%s399 + $0x5c] sm:$0xf]
        %v4885 = vld [vmem:[%s399 + $0x60] sm:$0xf]
        %v4886 = vld [vmem:[%s399 + $0x64] sm:$0xf]
        %v4887 = vld [vmem:[%s399 + $0x68] sm:$0xf]
        %v4888 = vld [vmem:[%s399 + $0x6c] sm:$0xf]
        %v4889 = vld [vmem:[%s399 + $0x70] sm:$0xf]
        %v4890 = vld [vmem:[%s399 + $0x74] sm:$0xf]
        %v4891 = vld [vmem:[%s399 + $0x78] sm:$0xf]
        %v4892 = vld [vmem:[%s399 + $0x7c] sm:$0xf]
        %v4893 = vld [vmem:[%s399 + $0x80] sm:$0xf]
        %v4894 = vld [vmem:[%s399 + $0x84] sm:$0xf]
        %v4895 = vld [vmem:[%s399 + $0x88] sm:$0xf]
        %v4896 = vld [vmem:[%s399 + $0x8c] sm:$0xf]
        %v4897 = vld [vmem:[%s399 + $0x90] sm:$0xf]
        %v4898 = vld [vmem:[%s399 + $0x94] sm:$0xf]
        %v4899 = vld [vmem:[%s399 + $0x98] sm:$0xf]
        %v4900 = vld [vmem:[%s399 + $0x9c] sm:$0xf]
        %v4901 = vld [vmem:[%s399 + $0xa0] sm:$0xf]
        %v4902 = vld [vmem:[%s399 + $0xa4] sm:$0xf]
        %v4903 = vld [vmem:[%s399 + $0xa8] sm:$0xf]
        %v4904 = vld [vmem:[%s399 + $0xac] sm:$0xf]
        %v4905 = vld [vmem:[%s399 + $0xb0] sm:$0xf]
        %v4906 = vld [vmem:[%s399 + $0xb4] sm:$0xf]
        %v4907 = vld [vmem:[%s399 + $0xb8] sm:$0xf]
        %v4908 = vld [vmem:[%s399 + $0xbc] sm:$0xf]
        %v4909 = vld [vmem:[%s399 + $0xc0] sm:$0xf]
        %v4910 = vld [vmem:[%s399 + $0xc4] sm:$0xf]
        %v4911 = vld [vmem:[%s399 + $0xc8] sm:$0xf]
        %v4912 = vld [vmem:[%s399 + $0xcc] sm:$0xf]
        %v4913 = vld [vmem:[%s399 + $0xd0] sm:$0xf]
        %v4914 = vld [vmem:[%s399 + $0xd4] sm:$0xf]
        %v4915 = vld [vmem:[%s399 + $0xd8] sm:$0xf]
        %v4916 = vld [vmem:[%s399 + $0xdc] sm:$0xf]
        %v4917 = vld [vmem:[%s399 + $0xe0] sm:$0xf]
        %v4918 = vld [vmem:[%s399 + $0xe4] sm:$0xf]
        %v4919 = vld [vmem:[%s399 + $0xe8] sm:$0xf]
        %v4920 = vld [vmem:[%s399 + $0xec] sm:$0xf]
        %v4921 = vld [vmem:[%s399 + $0xf0] sm:$0xf]
        %v4922 = vld [vmem:[%s399 + $0xf4] sm:$0xf]
        %v4923 = vld [vmem:[%s399 + $0xf8] sm:$0xf]
        %v4924 = vld [vmem:[%s399 + $0xfc] sm:$0xf]
        %v4925 = vld [vmem:[%s399 + $0x100] sm:$0xf]
        %v4926 = vld [vmem:[%s399 + $0x104] sm:$0xf]
        %v4927 = vld [vmem:[%s399 + $0x108] sm:$0xf]
        %v4928 = vld [vmem:[%s399 + $0x10c] sm:$0xf]
        %v4929 = vld [vmem:[%s399 + $0x110] sm:$0xf]
        %v4930 = vld [vmem:[%s399 + $0x114] sm:$0xf]
        %v4931 = vld [vmem:[%s399 + $0x118] sm:$0xf]
        %v4932 = vld [vmem:[%s399 + $0x11c] sm:$0xf]
        %v4933 = vld [vmem:[%s399 + $0x120] sm:$0xf]
        %v4934 = vld [vmem:[%s399 + $0x124] sm:$0xf]
        %v4935 = vld [vmem:[%s399 + $0x128] sm:$0xf]
        %v4936 = vld [vmem:[%s399 + $0x12c] sm:$0xf]
        %v4937 = vld [vmem:[%s399 + $0x130] sm:$0xf]
        %v4938 = vld [vmem:[%s399 + $0x134] sm:$0xf]
        %v4939 = vld [vmem:[%s399 + $0x138] sm:$0xf]
        %v4940 = vld [vmem:[%s399 + $0x13c] sm:$0xf]
        %v4941 = vld [vmem:[%s399 + $0x140] sm:$0xf]
        %v4942 = vld [vmem:[%s399 + $0x144] sm:$0xf]
        %v4943 = vld [vmem:[%s399 + $0x148] sm:$0xf]
        %v4944 = vld [vmem:[%s399 + $0x14c] sm:$0xf]
        %v4945 = vld [vmem:[%s399 + $0x150] sm:$0xf]
        %v4946 = vld [vmem:[%s399 + $0x154] sm:$0xf]
        %v4947 = vld [vmem:[%s399 + $0x158] sm:$0xf]
        %v4948 = vld [vmem:[%s399 + $0x15c] sm:$0xf]
        %v4949 = vld [vmem:[%s399 + $0x160] sm:$0xf]
        %v4950 = vld [vmem:[%s399 + $0x164] sm:$0xf]
        %v4951 = vld [vmem:[%s399 + $0x168] sm:$0xf]
        %v4952 = vld [vmem:[%s399 + $0x16c] sm:$0xf]
        %v4953 = vld [vmem:[%s399 + $0x170] sm:$0xf]
        %v4954 = vld [vmem:[%s399 + $0x174] sm:$0xf]
        %v4955 = vld [vmem:[%s399 + $0x178] sm:$0xf]
        %v4956 = vld [vmem:[%s399 + $0x17c] sm:$0xf]
        %v4957 = vld [vmem:[%s399 + $0x180] sm:$0xf]
        %v4958 = vld [vmem:[%s399 + $0x184] sm:$0xf]
        %v4959 = vld [vmem:[%s399 + $0x188] sm:$0xf]
        %v4960 = vld [vmem:[%s399 + $0x18c] sm:$0xf]
        %v4961 = vld [vmem:[%s399 + $0x190] sm:$0xf]
        %v4962 = vld [vmem:[%s399 + $0x194] sm:$0xf]
        %v4963 = vld [vmem:[%s399 + $0x198] sm:$0xf]
        %v4964 = vld [vmem:[%s399 + $0x19c] sm:$0xf]
        %v4965 = vld [vmem:[%s399 + $0x1a0] sm:$0xf]
        %v4966 = vld [vmem:[%s399 + $0x1a4] sm:$0xf]
        %v4967 = vld [vmem:[%s399 + $0x1a8] sm:$0xf]
        %v4968 = vld [vmem:[%s399 + $0x1ac] sm:$0xf]
        %v4969 = vld [vmem:[%s399 + $0x1b0] sm:$0xf]
        %v4970 = vld [vmem:[%s399 + $0x1b4] sm:$0xf]
        %v4971 = vld [vmem:[%s399 + $0x1b8] sm:$0xf]
        %v4972 = vld [vmem:[%s399 + $0x1bc] sm:$0xf]
        %v4973 = vld [vmem:[%s399 + $0x1c0] sm:$0xf]
        %v4974 = vld [vmem:[%s399 + $0x1c4] sm:$0xf]
        %v4975 = vld [vmem:[%s399 + $0x1c8] sm:$0xf]
        %v4976 = vld [vmem:[%s399 + $0x1cc] sm:$0xf]
        %v4977 = vld [vmem:[%s399 + $0x1d0] sm:$0xf]
        %v4978 = vld [vmem:[%s399 + $0x1d4] sm:$0xf]
        %v4979 = vld [vmem:[%s399 + $0x1d8] sm:$0xf]
        %v4980 = vld [vmem:[%s399 + $0x1dc] sm:$0xf]
        %v4981 = vld [vmem:[%s399 + $0x1e0] sm:$0xf]
        %v4982 = vld [vmem:[%s399 + $0x1e4] sm:$0xf]
        %v4983 = vld [vmem:[%s399 + $0x1e8] sm:$0xf]
        %v4984 = vld [vmem:[%s399 + $0x1ec] sm:$0xf]
        %v4985 = vld [vmem:[%s399 + $0x1f0] sm:$0xf]
        %v4986 = vld [vmem:[%s399 + $0x1f4] sm:$0xf]
        %v4987 = vld [vmem:[%s399 + $0x1f8] sm:$0xf]
        %v4988 = vld [vmem:[%s399 + $0x1fc] sm:$0xf]
        %v4989 = vld [vmem:[%s399 + $0x200] sm:$0xf]
        %v4990 = vld [vmem:[%s399 + $0x204] sm:$0xf]
        %v4991 = vld [vmem:[%s399 + $0x208] sm:$0xf]
        %v4992 = vld [vmem:[%s399 + $0x20c] sm:$0xf]
        %v4993 = vld [vmem:[%s399 + $0x210] sm:$0xf]
        %v4994 = vld [vmem:[%s399 + $0x214] sm:$0xf]
        %v4995 = vld [vmem:[%s399 + $0x218] sm:$0xf]
        %v4996 = vld [vmem:[%s399 + $0x21c] sm:$0xf]
        %v4997 = vld [vmem:[%s399 + $0x220] sm:$0xf]
        %v4998 = vld [vmem:[%s399 + $0x224] sm:$0xf]
        %v4999 = vld [vmem:[%s399 + $0x228] sm:$0xf]
        %v5000 = vld [vmem:[%s399 + $0x22c] sm:$0xf]
        %v5001 = vld [vmem:[%s399 + $0x230] sm:$0xf]
        %v5002 = vld [vmem:[%s399 + $0x234] sm:$0xf]
        %v5003 = vld [vmem:[%s399 + $0x238] sm:$0xf]
        %v5004 = vld [vmem:[%s399 + $0x23c] sm:$0xf]
        %v5005 = vld [vmem:[%s399 + $0x240] sm:$0xf]
        %v5006 = vld [vmem:[%s399 + $0x244] sm:$0xf]
        %v5007 = vld [vmem:[%s399 + $0x248] sm:$0xf]
        %v5008 = vld [vmem:[%s399 + $0x24c] sm:$0xf]
        %v5009 = vld [vmem:[%s399 + $0x250] sm:$0xf]
        %v5010 = vld [vmem:[%s399 + $0x254] sm:$0xf]
        %v5011 = vld [vmem:[%s399 + $0x258] sm:$0xf]
        %v5012 = vld [vmem:[%s399 + $0x25c] sm:$0xf]
        %v5013 = vld [vmem:[%s399 + $0x260] sm:$0xf]
        %v5014 = vld [vmem:[%s399 + $0x264] sm:$0xf]
        %v5015 = vld [vmem:[%s399 + $0x268] sm:$0xf]
        %v5016 = vld [vmem:[%s399 + $0x26c] sm:$0xf]
        %v5017 = vld [vmem:[%s399 + $0x270] sm:$0xf]
        %v5018 = vld [vmem:[%s399 + $0x274] sm:$0xf]
        %v5019 = vld [vmem:[%s399 + $0x278] sm:$0xf]
        %v5020 = vld [vmem:[%s399 + $0x27c] sm:$0xf]
        %v5021 = vld [vmem:[%s399 + $0x280] sm:$0xf]
        %v5022 = vld [vmem:[%s399 + $0x284] sm:$0xf]
        %v5023 = vld [vmem:[%s399 + $0x288] sm:$0xf]
        %v5024 = vld [vmem:[%s399 + $0x28c] sm:$0xf]
        %v5025 = vld [vmem:[%s399 + $0x290] sm:$0xf]
        %v5026 = vld [vmem:[%s399 + $0x294] sm:$0xf]
        %v5027 = vld [vmem:[%s399 + $0x298] sm:$0xf]
        %v5028 = vld [vmem:[%s399 + $0x29c] sm:$0xf]
        %v5029 = vld [vmem:[%s399 + $0x2a0] sm:$0xf]
        %v5030 = vld [vmem:[%s399 + $0x2a4] sm:$0xf]
        %v5031 = vld [vmem:[%s399 + $0x2a8] sm:$0xf]
        %v5032 = vld [vmem:[%s399 + $0x2ac] sm:$0xf]
        %v5033 = vld [vmem:[%s399 + $0x2b0] sm:$0xf]
        %v5034 = vld [vmem:[%s399 + $0x2b4] sm:$0xf]
        %v5035 = vld [vmem:[%s399 + $0x2b8] sm:$0xf]
        %v5036 = vld [vmem:[%s399 + $0x2bc] sm:$0xf]
        %v5037 = vld [vmem:[%s399 + $0x2c0] sm:$0xf]
        %v5038 = vld [vmem:[%s399 + $0x2c4] sm:$0xf]
        %v5039 = vld [vmem:[%s399 + $0x2c8] sm:$0xf]
        %v5040 = vld [vmem:[%s399 + $0x2cc] sm:$0xf]
        %v5041 = vld [vmem:[%s399 + $0x2d0] sm:$0xf]
        %v5042 = vld [vmem:[%s399 + $0x2d4] sm:$0xf]
        %v5043 = vld [vmem:[%s399 + $0x2d8] sm:$0xf]
        %v5044 = vld [vmem:[%s399 + $0x2dc] sm:$0xf]
        %v5045 = vld [vmem:[%s399 + $0x2e0] sm:$0xf]
        %v5046 = vld [vmem:[%s399 + $0x2e4] sm:$0xf]
        %v5047 = vld [vmem:[%s399 + $0x2e8] sm:$0xf]
        %v5048 = vld [vmem:[%s399 + $0x2ec] sm:$0xf]
        %v5049 = vld [vmem:[%s399 + $0x2f0] sm:$0xf]
        %v5050 = vld [vmem:[%s399 + $0x2f4] sm:$0xf]
        %v5051 = vld [vmem:[%s399 + $0x2f8] sm:$0xf]
        %v5052 = vld [vmem:[%s399 + $0x2fc] sm:$0xf]
        %v5053 = vld [vmem:[%s399 + $0x300] sm:$0xf]
        %v5054 = vld [vmem:[%s399 + $0x304] sm:$0xf]
        %v5055 = vld [vmem:[%s399 + $0x308] sm:$0xf]
        %v5056 = vld [vmem:[%s399 + $0x30c] sm:$0xf]
        %v5057 = vld [vmem:[%s399 + $0x310] sm:$0xf]
        %v5058 = vld [vmem:[%s399 + $0x314] sm:$0xf]
        %v5059 = vld [vmem:[%s399 + $0x318] sm:$0xf]
        %v5060 = vld [vmem:[%s399 + $0x31c] sm:$0xf]
        %v5061 = vld [vmem:[%s399 + $0x320] sm:$0xf]
        %v5062 = vld [vmem:[%s399 + $0x324] sm:$0xf]
        %v5063 = vld [vmem:[%s399 + $0x328] sm:$0xf]
        %v5064 = vld [vmem:[%s399 + $0x32c] sm:$0xf]
        %v5065 = vld [vmem:[%s399 + $0x330] sm:$0xf]
        %v5066 = vld [vmem:[%s399 + $0x334] sm:$0xf]
        %v5067 = vld [vmem:[%s399 + $0x338] sm:$0xf]
        %v5068 = vld [vmem:[%s399 + $0x33c] sm:$0xf]
        %v5069 = vld [vmem:[%s399 + $0x340] sm:$0xf]
        %v5070 = vld [vmem:[%s399 + $0x344] sm:$0xf]
        %v5071 = vld [vmem:[%s399 + $0x348] sm:$0xf]
        %v5072 = vld [vmem:[%s399 + $0x34c] sm:$0xf]
        %v5073 = vld [vmem:[%s399 + $0x350] sm:$0xf]
        %v5074 = vld [vmem:[%s399 + $0x354] sm:$0xf]
        %v5075 = vld [vmem:[%s399 + $0x358] sm:$0xf]
        %v5076 = vld [vmem:[%s399 + $0x35c] sm:$0xf]
        %v5077 = vld [vmem:[%s399 + $0x360] sm:$0xf]
        %v5078 = vld [vmem:[%s399 + $0x364] sm:$0xf]
        %v5079 = vld [vmem:[%s399 + $0x368] sm:$0xf]
        %v5080 = vld [vmem:[%s399 + $0x36c] sm:$0xf]
        %v5081 = vld [vmem:[%s399 + $0x370] sm:$0xf]
        %v5082 = vld [vmem:[%s399 + $0x374] sm:$0xf]
        %v5083 = vld [vmem:[%s399 + $0x378] sm:$0xf]
        %v5084 = vld [vmem:[%s399 + $0x37c] sm:$0xf]
        %v5085 = vld [vmem:[%s399 + $0x380] sm:$0xf]
        %v5086 = vld [vmem:[%s399 + $0x384] sm:$0xf]
        %v5087 = vld [vmem:[%s399 + $0x388] sm:$0xf]
        %v5088 = vld [vmem:[%s399 + $0x38c] sm:$0xf]
        %v5089 = vld [vmem:[%s399 + $0x390] sm:$0xf]
        %v5090 = vld [vmem:[%s399 + $0x394] sm:$0xf]
        %v5091 = vld [vmem:[%s399 + $0x398] sm:$0xf]
        %v5092 = vld [vmem:[%s399 + $0x39c] sm:$0xf]
        %v5093 = vld [vmem:[%s399 + $0x3a0] sm:$0xf]
        %v5094 = vld [vmem:[%s399 + $0x3a4] sm:$0xf]
        %v5095 = vld [vmem:[%s399 + $0x3a8] sm:$0xf]
        %v5096 = vld [vmem:[%s399 + $0x3ac] sm:$0xf]
        %v5097 = vld [vmem:[%s399 + $0x3b0] sm:$0xf]
        %v5098 = vld [vmem:[%s399 + $0x3b4] sm:$0xf]
        %v5099 = vld [vmem:[%s399 + $0x3b8] sm:$0xf]
        %v5100 = vld [vmem:[%s399 + $0x3bc] sm:$0xf]
        %v5101 = vld [vmem:[%s399 + $0x3c0] sm:$0xf]
        %v5102 = vld [vmem:[%s399 + $0x3c4] sm:$0xf]
        %v5103 = vld [vmem:[%s399 + $0x3c8] sm:$0xf]
        %v5104 = vld [vmem:[%s399 + $0x3cc] sm:$0xf]
        %v5105 = vld [vmem:[%s399 + $0x3d0] sm:$0xf]
        %v5106 = vld [vmem:[%s399 + $0x3d4] sm:$0xf]
        %v5107 = vld [vmem:[%s399 + $0x3d8] sm:$0xf]
        %v5108 = vld [vmem:[%s399 + $0x3dc] sm:$0xf]
        %v5109 = vld [vmem:[%s399 + $0x3e0] sm:$0xf]
        %v5110 = vld [vmem:[%s399 + $0x3e4] sm:$0xf]
        %v5111 = vld [vmem:[%s399 + $0x3e8] sm:$0xf]
        %v5112 = vld [vmem:[%s399 + $0x3ec] sm:$0xf]
        %v5113 = vld [vmem:[%s399 + $0x3f0] sm:$0xf]
        %v5114 = vld [vmem:[%s399 + $0x3f4] sm:$0xf]
        %v5115 = vld [vmem:[%s399 + $0x3f8] sm:$0xf]
        %v5116 = vld [vmem:[%s399 + $0x3fc] sm:$0xf]
        %v5117 = vlaneseq
        %v5118 = vshrl.u32 %v5117, 7
        %v5119 = vsub.s32 3, %v5118
        %v5120 = vrot.slane %v418, %v5119
        %v5377 = vunpack.c.l.b16 %v4861
        %v5378 = vunpack.c.l.b16 %v4862
        %v5379 = vunpack.c.l.b16 %v4863
        %v5380 = vunpack.c.l.b16 %v4864
        %v5381 = vunpack.c.l.b16 %v4865
        %v5382 = vunpack.c.l.b16 %v4866
        %v5383 = vunpack.c.l.b16 %v4867
        %v5384 = vunpack.c.l.b16 %v4868
        %v5385 = vunpack.c.l.b16 %v4869
        %v5386 = vunpack.c.l.b16 %v4870
        %v5387 = vunpack.c.l.b16 %v4871
        %v5388 = vunpack.c.l.b16 %v4872
        %v5389 = vunpack.c.l.b16 %v4873
        %v5390 = vunpack.c.l.b16 %v4874
        %v5391 = vunpack.c.l.b16 %v4875
        %v5392 = vunpack.c.l.b16 %v4876
        %v5393 = vunpack.c.l.b16 %v4877
        %v5394 = vunpack.c.l.b16 %v4878
        %v5395 = vunpack.c.l.b16 %v4879
        %v5396 = vunpack.c.l.b16 %v4880
        %v5397 = vunpack.c.l.b16 %v4881
        %v5398 = vunpack.c.l.b16 %v4882
        %v5399 = vunpack.c.l.b16 %v4883
        %v5400 = vunpack.c.l.b16 %v4884
        %v5401 = vunpack.c.l.b16 %v4885
        %v5402 = vunpack.c.l.b16 %v4886
        %v5403 = vunpack.c.l.b16 %v4887
        %v5404 = vunpack.c.l.b16 %v4888
        %v5405 = vunpack.c.l.b16 %v4889
        %v5406 = vunpack.c.l.b16 %v4890
        %v5407 = vunpack.c.l.b16 %v4891
        %v5408 = vunpack.c.l.b16 %v4892
        %v5409 = vunpack.c.l.b16 %v4893
        %v5410 = vunpack.c.l.b16 %v4894
        %v5411 = vunpack.c.l.b16 %v4895
        %v5412 = vunpack.c.l.b16 %v4896
        %v5413 = vunpack.c.l.b16 %v4897
        %v5414 = vunpack.c.l.b16 %v4898
        %v5415 = vunpack.c.l.b16 %v4899
        %v5416 = vunpack.c.l.b16 %v4900
        %v5417 = vunpack.c.l.b16 %v4901
        %v5418 = vunpack.c.l.b16 %v4902
        %v5419 = vunpack.c.l.b16 %v4903
        %v5420 = vunpack.c.l.b16 %v4904
        %v5421 = vunpack.c.l.b16 %v4905
        %v5422 = vunpack.c.l.b16 %v4906
        %v5423 = vunpack.c.l.b16 %v4907
        %v5424 = vunpack.c.l.b16 %v4908
        %v5425 = vunpack.c.l.b16 %v4909
        %v5426 = vunpack.c.l.b16 %v4910
        %v5427 = vunpack.c.l.b16 %v4911
        %v5428 = vunpack.c.l.b16 %v4912
        %v5429 = vunpack.c.l.b16 %v4913
        %v5430 = vunpack.c.l.b16 %v4914
        %v5431 = vunpack.c.l.b16 %v4915
        %v5432 = vunpack.c.l.b16 %v4916
        %v5433 = vunpack.c.l.b16 %v4917
        %v5434 = vunpack.c.l.b16 %v4918
        %v5435 = vunpack.c.l.b16 %v4919
        %v5436 = vunpack.c.l.b16 %v4920
        %v5437 = vunpack.c.l.b16 %v4921
        %v5438 = vunpack.c.l.b16 %v4922
        %v5439 = vunpack.c.l.b16 %v4923
        %v5440 = vunpack.c.l.b16 %v4924
        %v5441 = vunpack.c.l.b16 %v4925
        %v5442 = vunpack.c.l.b16 %v4926
        %v5443 = vunpack.c.l.b16 %v4927
        %v5444 = vunpack.c.l.b16 %v4928
        %v5445 = vunpack.c.l.b16 %v4929
        %v5446 = vunpack.c.l.b16 %v4930
        %v5447 = vunpack.c.l.b16 %v4931
        %v5448 = vunpack.c.l.b16 %v4932
        %v5449 = vunpack.c.l.b16 %v4933
        %v5450 = vunpack.c.l.b16 %v4934
        %v5451 = vunpack.c.l.b16 %v4935
        %v5452 = vunpack.c.l.b16 %v4936
        %v5453 = vunpack.c.l.b16 %v4937
        %v5454 = vunpack.c.l.b16 %v4938
        %v5455 = vunpack.c.l.b16 %v4939
        %v5456 = vunpack.c.l.b16 %v4940
        %v5457 = vunpack.c.l.b16 %v4941
        %v5458 = vunpack.c.l.b16 %v4942
        %v5459 = vunpack.c.l.b16 %v4943
        %v5460 = vunpack.c.l.b16 %v4944
        %v5461 = vunpack.c.l.b16 %v4945
        %v5462 = vunpack.c.l.b16 %v4946
        %v5463 = vunpack.c.l.b16 %v4947
        %v5464 = vunpack.c.l.b16 %v4948
        %v5465 = vunpack.c.l.b16 %v4949
        %v5466 = vunpack.c.l.b16 %v4950
        %v5467 = vunpack.c.l.b16 %v4951
        %v5468 = vunpack.c.l.b16 %v4952
        %v5469 = vunpack.c.l.b16 %v4953
        %v5470 = vunpack.c.l.b16 %v4954
        %v5471 = vunpack.c.l.b16 %v4955
        %v5472 = vunpack.c.l.b16 %v4956
        %v5473 = vunpack.c.l.b16 %v4957
        %v5474 = vunpack.c.l.b16 %v4958
        %v5475 = vunpack.c.l.b16 %v4959
        %v5476 = vunpack.c.l.b16 %v4960
        %v5477 = vunpack.c.l.b16 %v4961
        %v5478 = vunpack.c.l.b16 %v4962
        %v5479 = vunpack.c.l.b16 %v4963
        %v5480 = vunpack.c.l.b16 %v4964
        %v5481 = vunpack.c.l.b16 %v4965
        %v5482 = vunpack.c.l.b16 %v4966
        %v5483 = vunpack.c.l.b16 %v4967
        %v5484 = vunpack.c.l.b16 %v4968
        %v5485 = vunpack.c.l.b16 %v4969
        %v5486 = vunpack.c.l.b16 %v4970
        %v5487 = vunpack.c.l.b16 %v4971
        %v5488 = vunpack.c.l.b16 %v4972
        %v5489 = vunpack.c.l.b16 %v4973
        %v5490 = vunpack.c.l.b16 %v4974
        %v5491 = vunpack.c.l.b16 %v4975
        %v5492 = vunpack.c.l.b16 %v4976
        %v5493 = vunpack.c.l.b16 %v4977
        %v5494 = vunpack.c.l.b16 %v4978
        %v5495 = vunpack.c.l.b16 %v4979
        %v5496 = vunpack.c.l.b16 %v4980
        %v5497 = vunpack.c.l.b16 %v4981
        %v5498 = vunpack.c.l.b16 %v4982
        %v5499 = vunpack.c.l.b16 %v4983
        %v5500 = vunpack.c.l.b16 %v4984
        %v5501 = vunpack.c.l.b16 %v4985
        %v5502 = vunpack.c.l.b16 %v4986
        %v5503 = vunpack.c.l.b16 %v4987
        %v5504 = vunpack.c.l.b16 %v4988
        %v5505 = vunpack.c.l.b16 %v4989
        %v5506 = vunpack.c.l.b16 %v4990
        %v5507 = vunpack.c.l.b16 %v4991
        %v5508 = vunpack.c.l.b16 %v4992
        %v5509 = vunpack.c.l.b16 %v4993
        %v5510 = vunpack.c.l.b16 %v4994
        %v5511 = vunpack.c.l.b16 %v4995
        %v5512 = vunpack.c.l.b16 %v4996
        %v5513 = vunpack.c.l.b16 %v4997
        %v5514 = vunpack.c.l.b16 %v4998
        %v5515 = vunpack.c.l.b16 %v4999
        %v5516 = vunpack.c.l.b16 %v5000
        %v5517 = vunpack.c.l.b16 %v5001
        %v5518 = vunpack.c.l.b16 %v5002
        %v5519 = vunpack.c.l.b16 %v5003
        %v5520 = vunpack.c.l.b16 %v5004
        %v5521 = vunpack.c.l.b16 %v5005
        %v5522 = vunpack.c.l.b16 %v5006
        %v5523 = vunpack.c.l.b16 %v5007
        %v5524 = vunpack.c.l.b16 %v5008
        %v5525 = vunpack.c.l.b16 %v5009
        %v5526 = vunpack.c.l.b16 %v5010
        %v5527 = vunpack.c.l.b16 %v5011
        %v5528 = vunpack.c.l.b16 %v5012
        %v5529 = vunpack.c.l.b16 %v5013
        %v5530 = vunpack.c.l.b16 %v5014
        %v5531 = vunpack.c.l.b16 %v5015
        %v5532 = vunpack.c.l.b16 %v5016
        %v5533 = vunpack.c.l.b16 %v5017
        %v5534 = vunpack.c.l.b16 %v5018
        %v5535 = vunpack.c.l.b16 %v5019
        %v5536 = vunpack.c.l.b16 %v5020
        %v5537 = vunpack.c.l.b16 %v5021
        %v5538 = vunpack.c.l.b16 %v5022
        %v5539 = vunpack.c.l.b16 %v5023
        %v5540 = vunpack.c.l.b16 %v5024
        %v5541 = vunpack.c.l.b16 %v5025
        %v5542 = vunpack.c.l.b16 %v5026
        %v5543 = vunpack.c.l.b16 %v5027
        %v5544 = vunpack.c.l.b16 %v5028
        %v5545 = vunpack.c.l.b16 %v5029
        %v5546 = vunpack.c.l.b16 %v5030
        %v5547 = vunpack.c.l.b16 %v5031
        %v5548 = vunpack.c.l.b16 %v5032
        %v5549 = vunpack.c.l.b16 %v5033
        %v5550 = vunpack.c.l.b16 %v5034
        %v5551 = vunpack.c.l.b16 %v5035
        %v5552 = vunpack.c.l.b16 %v5036
        %v5553 = vunpack.c.l.b16 %v5037
        %v5554 = vunpack.c.l.b16 %v5038
        %v5555 = vunpack.c.l.b16 %v5039
        %v5556 = vunpack.c.l.b16 %v5040
        %v5557 = vunpack.c.l.b16 %v5041
        %v5558 = vunpack.c.l.b16 %v5042
        %v5559 = vunpack.c.l.b16 %v5043
        %v5560 = vunpack.c.l.b16 %v5044
        %v5561 = vunpack.c.l.b16 %v5045
        %v5562 = vunpack.c.l.b16 %v5046
        %v5563 = vunpack.c.l.b16 %v5047
        %v5564 = vunpack.c.l.b16 %v5048
        %v5565 = vunpack.c.l.b16 %v5049
        %v5566 = vunpack.c.l.b16 %v5050
        %v5567 = vunpack.c.l.b16 %v5051
        %v5568 = vunpack.c.l.b16 %v5052
        %v5569 = vunpack.c.l.b16 %v5053
        %v5570 = vunpack.c.l.b16 %v5054
        %v5571 = vunpack.c.l.b16 %v5055
        %v5572 = vunpack.c.l.b16 %v5056
        %v5573 = vunpack.c.l.b16 %v5057
        %v5574 = vunpack.c.l.b16 %v5058
        %v5575 = vunpack.c.l.b16 %v5059
        %v5576 = vunpack.c.l.b16 %v5060
        %v5577 = vunpack.c.l.b16 %v5061
        %v5578 = vunpack.c.l.b16 %v5062
        %v5579 = vunpack.c.l.b16 %v5063
        %v5580 = vunpack.c.l.b16 %v5064
        %v5581 = vunpack.c.l.b16 %v5065
        %v5582 = vunpack.c.l.b16 %v5066
        %v5583 = vunpack.c.l.b16 %v5067
        %v5584 = vunpack.c.l.b16 %v5068
        %v5585 = vunpack.c.l.b16 %v5069
        %v5586 = vunpack.c.l.b16 %v5070
        %v5587 = vunpack.c.l.b16 %v5071
        %v5588 = vunpack.c.l.b16 %v5072
        %v5589 = vunpack.c.l.b16 %v5073
        %v5590 = vunpack.c.l.b16 %v5074
        %v5591 = vunpack.c.l.b16 %v5075
        %v5592 = vunpack.c.l.b16 %v5076
        %v5593 = vunpack.c.l.b16 %v5077
        %v5594 = vunpack.c.l.b16 %v5078
        %v5595 = vunpack.c.l.b16 %v5079
        %v5596 = vunpack.c.l.b16 %v5080
        %v5597 = vunpack.c.l.b16 %v5081
        %v5598 = vunpack.c.l.b16 %v5082
        %v5599 = vunpack.c.l.b16 %v5083
        %v5600 = vunpack.c.l.b16 %v5084
        %v5601 = vunpack.c.l.b16 %v5085
        %v5602 = vunpack.c.l.b16 %v5086
        %v5603 = vunpack.c.l.b16 %v5087
        %v5604 = vunpack.c.l.b16 %v5088
        %v5605 = vunpack.c.l.b16 %v5089
        %v5606 = vunpack.c.l.b16 %v5090
        %v5607 = vunpack.c.l.b16 %v5091
        %v5608 = vunpack.c.l.b16 %v5092
        %v5609 = vunpack.c.l.b16 %v5093
        %v5610 = vunpack.c.l.b16 %v5094
        %v5611 = vunpack.c.l.b16 %v5095
        %v5612 = vunpack.c.l.b16 %v5096
        %v5613 = vunpack.c.l.b16 %v5097
        %v5614 = vunpack.c.l.b16 %v5098
        %v5615 = vunpack.c.l.b16 %v5099
        %v5616 = vunpack.c.l.b16 %v5100
        %v5617 = vunpack.c.l.b16 %v5101
        %v5618 = vunpack.c.l.b16 %v5102
        %v5619 = vunpack.c.l.b16 %v5103
        %v5620 = vunpack.c.l.b16 %v5104
        %v5621 = vunpack.c.l.b16 %v5105
        %v5622 = vunpack.c.l.b16 %v5106
        %v5623 = vunpack.c.l.b16 %v5107
        %v5624 = vunpack.c.l.b16 %v5108
        %v5625 = vunpack.c.l.b16 %v5109
        %v5626 = vunpack.c.l.b16 %v5110
        %v5627 = vunpack.c.l.b16 %v5111
        %v5628 = vunpack.c.l.b16 %v5112
        %v5629 = vunpack.c.l.b16 %v5113
        %v5630 = vunpack.c.l.b16 %v5114
        %v5631 = vunpack.c.l.b16 %v5115
        %v5632 = vunpack.c.l.b16 %v5116
        %v5633 = vpack.c.b16 %v5378, %v5377
        %v5634 = vpack.c.b16 %v5380, %v5379
        %v5635 = vpack.c.b16 %v5382, %v5381
        %v5636 = vpack.c.b16 %v5384, %v5383
        %v5637 = vpack.c.b16 %v5386, %v5385
        %v5638 = vpack.c.b16 %v5388, %v5387
        %v5639 = vpack.c.b16 %v5390, %v5389
        %v5640 = vpack.c.b16 %v5392, %v5391
        %v5641 = vpack.c.b16 %v5394, %v5393
        %v5642 = vpack.c.b16 %v5396, %v5395
        %v5643 = vpack.c.b16 %v5398, %v5397
        %v5644 = vpack.c.b16 %v5400, %v5399
        %v5645 = vpack.c.b16 %v5402, %v5401
        %v5646 = vpack.c.b16 %v5404, %v5403
        %v5647 = vpack.c.b16 %v5406, %v5405
        %v5648 = vpack.c.b16 %v5408, %v5407
        %v5649 = vpack.c.b16 %v5410, %v5409
        %v5650 = vpack.c.b16 %v5412, %v5411
        %v5651 = vpack.c.b16 %v5414, %v5413
        %v5652 = vpack.c.b16 %v5416, %v5415
        %v5653 = vpack.c.b16 %v5418, %v5417
        %v5654 = vpack.c.b16 %v5420, %v5419
        %v5655 = vpack.c.b16 %v5422, %v5421
        %v5656 = vpack.c.b16 %v5424, %v5423
        %v5657 = vpack.c.b16 %v5426, %v5425
        %v5658 = vpack.c.b16 %v5428, %v5427
        %v5659 = vpack.c.b16 %v5430, %v5429
        %v5660 = vpack.c.b16 %v5432, %v5431
        %v5661 = vpack.c.b16 %v5434, %v5433
        %v5662 = vpack.c.b16 %v5436, %v5435
        %v5663 = vpack.c.b16 %v5438, %v5437
        %v5664 = vpack.c.b16 %v5440, %v5439
        %v5665 = vpack.c.b16 %v5442, %v5441
        %v5666 = vpack.c.b16 %v5444, %v5443
        %v5667 = vpack.c.b16 %v5446, %v5445
        %v5668 = vpack.c.b16 %v5448, %v5447
        %v5669 = vpack.c.b16 %v5450, %v5449
        %v5670 = vpack.c.b16 %v5452, %v5451
        %v5671 = vpack.c.b16 %v5454, %v5453
        %v5672 = vpack.c.b16 %v5456, %v5455
        %v5673 = vpack.c.b16 %v5458, %v5457
        %v5674 = vpack.c.b16 %v5460, %v5459
        %v5675 = vpack.c.b16 %v5462, %v5461
        %v5676 = vpack.c.b16 %v5464, %v5463
        %v5677 = vpack.c.b16 %v5466, %v5465
        %v5678 = vpack.c.b16 %v5468, %v5467
        %v5679 = vpack.c.b16 %v5470, %v5469
        %v5680 = vpack.c.b16 %v5472, %v5471
        %v5681 = vpack.c.b16 %v5474, %v5473
        %v5682 = vpack.c.b16 %v5476, %v5475
        %v5683 = vpack.c.b16 %v5478, %v5477
        %v5684 = vpack.c.b16 %v5480, %v5479
        %v5685 = vpack.c.b16 %v5482, %v5481
        %v5686 = vpack.c.b16 %v5484, %v5483
        %v5687 = vpack.c.b16 %v5486, %v5485
        %v5688 = vpack.c.b16 %v5488, %v5487
        %v5689 = vpack.c.b16 %v5490, %v5489
        %v5690 = vpack.c.b16 %v5492, %v5491
        %v5691 = vpack.c.b16 %v5494, %v5493
        %v5692 = vpack.c.b16 %v5496, %v5495
        %v5693 = vpack.c.b16 %v5498, %v5497
        %v5694 = vpack.c.b16 %v5500, %v5499
        %v5695 = vpack.c.b16 %v5502, %v5501
        %v5696 = vpack.c.b16 %v5504, %v5503
        %v5697 = vpack.c.b16 %v5506, %v5505
        %v5698 = vpack.c.b16 %v5508, %v5507
        %v5699 = vpack.c.b16 %v5510, %v5509
        %v5700 = vpack.c.b16 %v5512, %v5511
        %v5701 = vpack.c.b16 %v5514, %v5513
        %v5702 = vpack.c.b16 %v5516, %v5515
        %v5703 = vpack.c.b16 %v5518, %v5517
        %v5704 = vpack.c.b16 %v5520, %v5519
        %v5705 = vpack.c.b16 %v5522, %v5521
        %v5706 = vpack.c.b16 %v5524, %v5523
        %v5707 = vpack.c.b16 %v5526, %v5525
        %v5708 = vpack.c.b16 %v5528, %v5527
        %v5709 = vpack.c.b16 %v5530, %v5529
        %v5710 = vpack.c.b16 %v5532, %v5531
        %v5711 = vpack.c.b16 %v5534, %v5533
        %v5712 = vpack.c.b16 %v5536, %v5535
        %v5713 = vpack.c.b16 %v5538, %v5537
        %v5714 = vpack.c.b16 %v5540, %v5539
        %v5715 = vpack.c.b16 %v5542, %v5541
        %v5716 = vpack.c.b16 %v5544, %v5543
        %v5717 = vpack.c.b16 %v5546, %v5545
        %v5718 = vpack.c.b16 %v5548, %v5547
        %v5719 = vpack.c.b16 %v5550, %v5549
        %v5720 = vpack.c.b16 %v5552, %v5551
        %v5721 = vpack.c.b16 %v5554, %v5553
        %v5722 = vpack.c.b16 %v5556, %v5555
        %v5723 = vpack.c.b16 %v5558, %v5557
        %v5724 = vpack.c.b16 %v5560, %v5559
        %v5725 = vpack.c.b16 %v5562, %v5561
        %v5726 = vpack.c.b16 %v5564, %v5563
        %v5727 = vpack.c.b16 %v5566, %v5565
        %v5728 = vpack.c.b16 %v5568, %v5567
        %v5729 = vpack.c.b16 %v5570, %v5569
        %v5730 = vpack.c.b16 %v5572, %v5571
        %v5731 = vpack.c.b16 %v5574, %v5573
        %v5732 = vpack.c.b16 %v5576, %v5575
        %v5733 = vpack.c.b16 %v5578, %v5577
        %v5734 = vpack.c.b16 %v5580, %v5579
        %v5735 = vpack.c.b16 %v5582, %v5581
        %v5736 = vpack.c.b16 %v5584, %v5583
        %v5737 = vpack.c.b16 %v5586, %v5585
        %v5738 = vpack.c.b16 %v5588, %v5587
        %v5739 = vpack.c.b16 %v5590, %v5589
        %v5740 = vpack.c.b16 %v5592, %v5591
        %v5741 = vpack.c.b16 %v5594, %v5593
        %v5742 = vpack.c.b16 %v5596, %v5595
        %v5743 = vpack.c.b16 %v5598, %v5597
        %v5744 = vpack.c.b16 %v5600, %v5599
        %v5745 = vpack.c.b16 %v5602, %v5601
        %v5746 = vpack.c.b16 %v5604, %v5603
        %v5747 = vpack.c.b16 %v5606, %v5605
        %v5748 = vpack.c.b16 %v5608, %v5607
        %v5749 = vpack.c.b16 %v5610, %v5609
        %v5750 = vpack.c.b16 %v5612, %v5611
        %v5751 = vpack.c.b16 %v5614, %v5613
        %v5752 = vpack.c.b16 %v5616, %v5615
        %v5753 = vpack.c.b16 %v5618, %v5617
        %v5754 = vpack.c.b16 %v5620, %v5619
        %v5755 = vpack.c.b16 %v5622, %v5621
        %v5756 = vpack.c.b16 %v5624, %v5623
        %v5757 = vpack.c.b16 %v5626, %v5625
        %v5758 = vpack.c.b16 %v5628, %v5627
        %v5759 = vpack.c.b16 %v5630, %v5629
        %v5760 = vpack.c.b16 %v5632, %v5631
        %5889 = vmatprep.subr.bf16.mxu0 0
        %5890 = vmatpush1.bf16.msra.mxu0 %v5633
        %5891 = vmatprep.subr.bf16.mxu0 0
        %5892 = vmatpush1.bf16.msra.mxu0 %v5634
        %5893 = vmatprep.subr.bf16.mxu0 0
        %5894 = vmatpush1.bf16.msra.mxu0 %v5635
        %5895 = vmatprep.subr.bf16.mxu0 0
        %5896 = vmatpush1.bf16.msra.mxu0 %v5636
        %5897 = vmatprep.subr.bf16.mxu0 0
        %5898 = vmatpush1.bf16.msra.mxu0 %v5637
        %5899 = vmatprep.subr.bf16.mxu0 0
        %5900 = vmatpush1.bf16.msra.mxu0 %v5638
        %5901 = vmatprep.subr.bf16.mxu0 0
        %5902 = vmatpush1.bf16.msra.mxu0 %v5639
        %5903 = vmatprep.subr.bf16.mxu0 0
        %5904 = vmatpush1.bf16.msra.mxu0 %v5640
        %5905 = vmatprep.subr.bf16.mxu0 0
        %5906 = vmatpush1.bf16.msra.mxu0 %v5641
        %5907 = vmatprep.subr.bf16.mxu0 0
        %5908 = vmatpush1.bf16.msra.mxu0 %v5642
        %5909 = vmatprep.subr.bf16.mxu0 0
        %5910 = vmatpush1.bf16.msra.mxu0 %v5643
        %5911 = vmatprep.subr.bf16.mxu0 0
        %5912 = vmatpush1.bf16.msra.mxu0 %v5644
        %5913 = vmatprep.subr.bf16.mxu0 0
        %5914 = vmatpush1.bf16.msra.mxu0 %v5645
        %5915 = vmatprep.subr.bf16.mxu0 0
        %5916 = vmatpush1.bf16.msra.mxu0 %v5646
        %5917 = vmatprep.subr.bf16.mxu0 0
        %5918 = vmatpush1.bf16.msra.mxu0 %v5647
        %5919 = vmatprep.subr.bf16.mxu0 0
        %5920 = vmatpush1.bf16.msra.mxu0 %v5648
        %5921 = vmatprep.mubr.bf16.mxu0 %v4830
        %5922 = vmatmul.mubr.bf16.gmra.mrb[0].mxu0 %v4829
        %v5923 = vpop.f32.mrb[0].mxu0
        %v5924 = vadd.f32 %v5120, %v5923
        %v5925 = vpop.f32.mrb[0].mxu0
        %v5926 = vpop.f32.mrb[0].mxu0
        %v5927 = vadd.f32 %v5120, %v5926
        %v5928 = vpop.f32.mrb[0].mxu0
        %5929 = vmatprep.mubr.bf16.mxu0 %v4846
        %5930 = vmatmul.mubr.bf16.gmra.mrb[0].mxu0 %v4845
        %v5931 = vpop.f32.mrb[0].mxu0
        %v5932 = vadd.f32 %v5120, %v5931
        %v5933 = vpop.f32.mrb[0].mxu0
        %v5934 = vpop.f32.mrb[0].mxu0
        %v5935 = vadd.f32 %v5120, %v5934
        %v5936 = vpop.f32.mrb[0].mxu0
        %5937 = vdwg.mxu0
        %5938 = vmatprep.subr.bf16.mxu0 0
        %5939 = vmatpush1.bf16.msra.mxu0 %v5649
        %5940 = vmatprep.subr.bf16.mxu0 0
        %5941 = vmatpush1.bf16.msra.mxu0 %v5650
        %5942 = vmatprep.subr.bf16.mxu0 0
        %5943 = vmatpush1.bf16.msra.mxu0 %v5651
        %5944 = vmatprep.subr.bf16.mxu0 0
        %5945 = vmatpush1.bf16.msra.mxu0 %v5652
        %5946 = vmatprep.subr.bf16.mxu0 0
        %5947 = vmatpush1.bf16.msra.mxu0 %v5653
        %5948 = vmatprep.subr.bf16.mxu0 0
        %5949 = vmatpush1.bf16.msra.mxu0 %v5654
        %5950 = vmatprep.subr.bf16.mxu0 0
        %5951 = vmatpush1.bf16.msra.mxu0 %v5655
        %5952 = vmatprep.subr.bf16.mxu0 0
        %5953 = vmatpush1.bf16.msra.mxu0 %v5656
        %5954 = vmatprep.subr.bf16.mxu0 0
        %5955 = vmatpush1.bf16.msra.mxu0 %v5657
        %5956 = vmatprep.subr.bf16.mxu0 0
        %5957 = vmatpush1.bf16.msra.mxu0 %v5658
        %5958 = vmatprep.subr.bf16.mxu0 0
        %5959 = vmatpush1.bf16.msra.mxu0 %v5659
        %5960 = vmatprep.subr.bf16.mxu0 0
        %5961 = vmatpush1.bf16.msra.mxu0 %v5660
        %5962 = vmatprep.subr.bf16.mxu0 0
        %5963 = vmatpush1.bf16.msra.mxu0 %v5661
        %5964 = vmatprep.subr.bf16.mxu0 0
        %5965 = vmatpush1.bf16.msra.mxu0 %v5662
        %5966 = vmatprep.subr.bf16.mxu0 0
        %5967 = vmatpush1.bf16.msra.mxu0 %v5663
        %5968 = vmatprep.subr.bf16.mxu0 0
        %5969 = vmatpush1.bf16.msra.mxu0 %v5664
        %5970 = vmatprep.mubr.bf16.mxu0 %v4832
        %5971 = vmatmul.mubr.bf16.gmra.mrb[0].mxu0 %v4831
        %v5972 = vpop.f32.mrb[0].mxu0
        %v5973 = vadd.f32 %v5924, %v5972
        %v5974 = vpop.f32.mrb[0].mxu0
        %v5975 = vpop.f32.mrb[0].mxu0
        %v5976 = vadd.f32 %v5927, %v5975
        %v5977 = vpop.f32.mrb[0].mxu0
        %5978 = vmatprep.mubr.bf16.mxu0 %v4848
        %5979 = vmatmul.mubr.bf16.gmra.mrb[0].mxu0 %v4847
        %v5980 = vpop.f32.mrb[0].mxu0
        %v5981 = vadd.f32 %v5932, %v5980
        %v5982 = vpop.f32.mrb[0].mxu0
        %v5983 = vpop.f32.mrb[0].mxu0
        %v5984 = vadd.f32 %v5935, %v5983
        %v5985 = vpop.f32.mrb[0].mxu0
        %5986 = vdwg.mxu0
        %5987 = vmatprep.subr.bf16.mxu0 0
        %5988 = vmatpush1.bf16.msra.mxu0 %v5665
        %5989 = vmatprep.subr.bf16.mxu0 0
        %5990 = vmatpush1.bf16.msra.mxu0 %v5666
        %5991 = vmatprep.subr.bf16.mxu0 0
        %5992 = vmatpush1.bf16.msra.mxu0 %v5667
        %5993 = vmatprep.subr.bf16.mxu0 0
        %5994 = vmatpush1.bf16.msra.mxu0 %v5668
        %5995 = vmatprep.subr.bf16.mxu0 0
        %5996 = vmatpush1.bf16.msra.mxu0 %v5669
        %5997 = vmatprep.subr.bf16.mxu0 0
        %5998 = vmatpush1.bf16.msra.mxu0 %v5670
        %5999 = vmatprep.subr.bf16.mxu0 0
        %6000 = vmatpush1.bf16.msra.mxu0 %v5671
        %6001 = vmatprep.subr.bf16.mxu0 0
        %6002 = vmatpush1.bf16.msra.mxu0 %v5672
        %6003 = vmatprep.subr.bf16.mxu0 0
        %6004 = vmatpush1.bf16.msra.mxu0 %v5673
        %6005 = vmatprep.subr.bf16.mxu0 0
        %6006 = vmatpush1.bf16.msra.mxu0 %v5674
        %6007 = vmatprep.subr.bf16.mxu0 0
        %6008 = vmatpush1.bf16.msra.mxu0 %v5675
        %6009 = vmatprep.subr.bf16.mxu0 0
        %6010 = vmatpush1.bf16.msra.mxu0 %v5676
        %6011 = vmatprep.subr.bf16.mxu0 0
        %6012 = vmatpush1.bf16.msra.mxu0 %v5677
        %6013 = vmatprep.subr.bf16.mxu0 0
        %6014 = vmatpush1.bf16.msra.mxu0 %v5678
        %6015 = vmatprep.subr.bf16.mxu0 0
        %6016 = vmatpush1.bf16.msra.mxu0 %v5679
        %6017 = vmatprep.subr.bf16.mxu0 0
        %6018 = vmatpush1.bf16.msra.mxu0 %v5680
        %6019 = vmatprep.mubr.bf16.mxu0 %v4834
        %6020 = vmatmul.mubr.bf16.gmra.mrb[0].mxu0 %v4833
        %v6021 = vpop.f32.mrb[0].mxu0
        %v6022 = vadd.f32 %v5973, %v6021
        %v6023 = vpop.f32.mrb[0].mxu0
        %v6024 = vpop.f32.mrb[0].mxu0
        %v6025 = vadd.f32 %v5976, %v6024
        %v6026 = vpop.f32.mrb[0].mxu0
        %6027 = vmatprep.mubr.bf16.mxu0 %v4850
        %6028 = vmatmul.mubr.bf16.gmra.mrb[0].mxu0 %v4849
        %v6029 = vpop.f32.mrb[0].mxu0
        %v6030 = vadd.f32 %v5981, %v6029
        %v6031 = vpop.f32.mrb[0].mxu0
        %v6032 = vpop.f32.mrb[0].mxu0
        %v6033 = vadd.f32 %v5984, %v6032
        %v6034 = vpop.f32.mrb[0].mxu0
        %6035 = vdwg.mxu0
        %6036 = vmatprep.subr.bf16.mxu0 0
        %6037 = vmatpush1.bf16.msra.mxu0 %v5681
        %6038 = vmatprep.subr.bf16.mxu0 0
        %6039 = vmatpush1.bf16.msra.mxu0 %v5682
        %6040 = vmatprep.subr.bf16.mxu0 0
        %6041 = vmatpush1.bf16.msra.mxu0 %v5683
        %6042 = vmatprep.subr.bf16.mxu0 0
        %6043 = vmatpush1.bf16.msra.mxu0 %v5684
        %6044 = vmatprep.subr.bf16.mxu0 0
        %6045 = vmatpush1.bf16.msra.mxu0 %v5685
        %6046 = vmatprep.subr.bf16.mxu0 0
        %6047 = vmatpush1.bf16.msra.mxu0 %v5686
        %6048 = vmatprep.subr.bf16.mxu0 0
        %6049 = vmatpush1.bf16.msra.mxu0 %v5687
        %6050 = vmatprep.subr.bf16.mxu0 0
        %6051 = vmatpush1.bf16.msra.mxu0 %v5688
        %6052 = vmatprep.subr.bf16.mxu0 0
        %6053 = vmatpush1.bf16.msra.mxu0 %v5689
        %6054 = vmatprep.subr.bf16.mxu0 0
        %6055 = vmatpush1.bf16.msra.mxu0 %v5690
        %6056 = vmatprep.subr.bf16.mxu0 0
        %6057 = vmatpush1.bf16.msra.mxu0 %v5691
        %6058 = vmatprep.subr.bf16.mxu0 0
        %6059 = vmatpush1.bf16.msra.mxu0 %v5692
        %6060 = vmatprep.subr.bf16.mxu0 0
        %6061 = vmatpush1.bf16.msra.mxu0 %v5693
        %6062 = vmatprep.subr.bf16.mxu0 0
        %6063 = vmatpush1.bf16.msra.mxu0 %v5694
        %6064 = vmatprep.subr.bf16.mxu0 0
        %6065 = vmatpush1.bf16.msra.mxu0 %v5695
        %6066 = vmatprep.subr.bf16.mxu0 0
        %6067 = vmatpush1.bf16.msra.mxu0 %v5696
        %6068 = vmatprep.mubr.bf16.mxu0 %v4836
        %6069 = vmatmul.mubr.bf16.gmra.mrb[0].mxu0 %v4835
        %v6070 = vpop.f32.mrb[0].mxu0
        %v6071 = vadd.f32 %v6022, %v6070
        %v6072 = vpop.f32.mrb[0].mxu0
        %v6073 = vpop.f32.mrb[0].mxu0
        %v6074 = vadd.f32 %v6025, %v6073
        %v6075 = vpop.f32.mrb[0].mxu0
        %6076 = vmatprep.mubr.bf16.mxu0 %v4852
        %6077 = vmatmul.mubr.bf16.gmra.mrb[0].mxu0 %v4851
        %v6078 = vpop.f32.mrb[0].mxu0
        %v6079 = vadd.f32 %v6030, %v6078
        %v6080 = vpop.f32.mrb[0].mxu0
        %v6081 = vpop.f32.mrb[0].mxu0
        %v6082 = vadd.f32 %v6033, %v6081
        %v6083 = vpop.f32.mrb[0].mxu0
        %6084 = vdwg.mxu0
        %6085 = vmatprep.subr.bf16.mxu0 0
        %6086 = vmatpush1.bf16.msra.mxu0 %v5697
        %6087 = vmatprep.subr.bf16.mxu0 0
        %6088 = vmatpush1.bf16.msra.mxu0 %v5698
        %6089 = vmatprep.subr.bf16.mxu0 0
        %6090 = vmatpush1.bf16.msra.mxu0 %v5699
        %6091 = vmatprep.subr.bf16.mxu0 0
        %6092 = vmatpush1.bf16.msra.mxu0 %v5700
        %6093 = vmatprep.subr.bf16.mxu0 0
        %6094 = vmatpush1.bf16.msra.mxu0 %v5701
        %6095 = vmatprep.subr.bf16.mxu0 0
        %6096 = vmatpush1.bf16.msra.mxu0 %v5702
        %6097 = vmatprep.subr.bf16.mxu0 0
        %6098 = vmatpush1.bf16.msra.mxu0 %v5703
        %6099 = vmatprep.subr.bf16.mxu0 0
        %6100 = vmatpush1.bf16.msra.mxu0 %v5704
        %6101 = vmatprep.subr.bf16.mxu0 0
        %6102 = vmatpush1.bf16.msra.mxu0 %v5705
        %6103 = vmatprep.subr.bf16.mxu0 0
        %6104 = vmatpush1.bf16.msra.mxu0 %v5706
        %6105 = vmatprep.subr.bf16.mxu0 0
        %6106 = vmatpush1.bf16.msra.mxu0 %v5707
        %6107 = vmatprep.subr.bf16.mxu0 0
        %6108 = vmatpush1.bf16.msra.mxu0 %v5708
        %6109 = vmatprep.subr.bf16.mxu0 0
        %6110 = vmatpush1.bf16.msra.mxu0 %v5709
        %6111 = vmatprep.subr.bf16.mxu0 0
        %6112 = vmatpush1.bf16.msra.mxu0 %v5710
        %6113 = vmatprep.subr.bf16.mxu0 0
        %6114 = vmatpush1.bf16.msra.mxu0 %v5711
        %6115 = vmatprep.subr.bf16.mxu0 0
        %6116 = vmatpush1.bf16.msra.mxu0 %v5712
        %6117 = vmatprep.mubr.bf16.mxu0 %v4838
        %6118 = vmatmul.mubr.bf16.gmra.mrb[0].mxu0 %v4837
        %v6119 = vpop.f32.mrb[0].mxu0
        %v6120 = vadd.f32 %v6071, %v6119
        %v6121 = vpop.f32.mrb[0].mxu0
        %v6122 = vpop.f32.mrb[0].mxu0
        %v6123 = vadd.f32 %v6074, %v6122
        %v6124 = vpop.f32.mrb[0].mxu0
        %6125 = vmatprep.mubr.bf16.mxu0 %v4854
        %6126 = vmatmul.mubr.bf16.gmra.mrb[0].mxu0 %v4853
        %v6127 = vpop.f32.mrb[0].mxu0
        %v6128 = vadd.f32 %v6079, %v6127
        %v6129 = vpop.f32.mrb[0].mxu0
        %v6130 = vpop.f32.mrb[0].mxu0
        %v6131 = vadd.f32 %v6082, %v6130
        %v6132 = vpop.f32.mrb[0].mxu0
        %6133 = vdwg.mxu0
        %6134 = vmatprep.subr.bf16.mxu0 0
        %6135 = vmatpush1.bf16.msra.mxu0 %v5713
        %6136 = vmatprep.subr.bf16.mxu0 0
        %6137 = vmatpush1.bf16.msra.mxu0 %v5714
        %6138 = vmatprep.subr.bf16.mxu0 0
        %6139 = vmatpush1.bf16.msra.mxu0 %v5715
        %6140 = vmatprep.subr.bf16.mxu0 0
        %6141 = vmatpush1.bf16.msra.mxu0 %v5716
        %6142 = vmatprep.subr.bf16.mxu0 0
        %6143 = vmatpush1.bf16.msra.mxu0 %v5717
        %6144 = vmatprep.subr.bf16.mxu0 0
        %6145 = vmatpush1.bf16.msra.mxu0 %v5718
        %6146 = vmatprep.subr.bf16.mxu0 0
        %6147 = vmatpush1.bf16.msra.mxu0 %v5719
        %6148 = vmatprep.subr.bf16.mxu0 0
        %6149 = vmatpush1.bf16.msra.mxu0 %v5720
        %6150 = vmatprep.subr.bf16.mxu0 0
        %6151 = vmatpush1.bf16.msra.mxu0 %v5721
        %6152 = vmatprep.subr.bf16.mxu0 0
        %6153 = vmatpush1.bf16.msra.mxu0 %v5722
        %6154 = vmatprep.subr.bf16.mxu0 0
        %6155 = vmatpush1.bf16.msra.mxu0 %v5723
        %6156 = vmatprep.subr.bf16.mxu0 0
        %6157 = vmatpush1.bf16.msra.mxu0 %v5724
        %6158 = vmatprep.subr.bf16.mxu0 0
        %6159 = vmatpush1.bf16.msra.mxu0 %v5725
        %6160 = vmatprep.subr.bf16.mxu0 0
        %6161 = vmatpush1.bf16.msra.mxu0 %v5726
        %6162 = vmatprep.subr.bf16.mxu0 0
        %6163 = vmatpush1.bf16.msra.mxu0 %v5727
        %6164 = vmatprep.subr.bf16.mxu0 0
        %6165 = vmatpush1.bf16.msra.mxu0 %v5728
        %6166 = vmatprep.mubr.bf16.mxu0 %v4840
        %6167 = vmatmul.mubr.bf16.gmra.mrb[0].mxu0 %v4839
        %v6168 = vpop.f32.mrb[0].mxu0
        %v6169 = vadd.f32 %v6120, %v6168
        %v6170 = vpop.f32.mrb[0].mxu0
        %v6171 = vpop.f32.mrb[0].mxu0
        %v6172 = vadd.f32 %v6123, %v6171
        %v6173 = vpop.f32.mrb[0].mxu0
        %6174 = vmatprep.mubr.bf16.mxu0 %v4856
        %6175 = vmatmul.mubr.bf16.gmra.mrb[0].mxu0 %v4855
        %v6176 = vpop.f32.mrb[0].mxu0
        %v6177 = vadd.f32 %v6128, %v6176
        %v6178 = vpop.f32.mrb[0].mxu0
        %v6179 = vpop.f32.mrb[0].mxu0
        %v6180 = vadd.f32 %v6131, %v6179
        %v6181 = vpop.f32.mrb[0].mxu0
        %6182 = vdwg.mxu0
        %6183 = vmatprep.subr.bf16.mxu0 0
        %6184 = vmatpush1.bf16.msra.mxu0 %v5729
        %6185 = vmatprep.subr.bf16.mxu0 0
        %6186 = vmatpush1.bf16.msra.mxu0 %v5730
        %6187 = vmatprep.subr.bf16.mxu0 0
        %6188 = vmatpush1.bf16.msra.mxu0 %v5731
        %6189 = vmatprep.subr.bf16.mxu0 0
        %6190 = vmatpush1.bf16.msra.mxu0 %v5732
        %6191 = vmatprep.subr.bf16.mxu0 0
        %6192 = vmatpush1.bf16.msra.mxu0 %v5733
        %6193 = vmatprep.subr.bf16.mxu0 0
        %6194 = vmatpush1.bf16.msra.mxu0 %v5734
        %6195 = vmatprep.subr.bf16.mxu0 0
        %6196 = vmatpush1.bf16.msra.mxu0 %v5735
        %6197 = vmatprep.subr.bf16.mxu0 0
        %6198 = vmatpush1.bf16.msra.mxu0 %v5736
        %6199 = vmatprep.subr.bf16.mxu0 0
        %6200 = vmatpush1.bf16.msra.mxu0 %v5737
        %6201 = vmatprep.subr.bf16.mxu0 0
        %6202 = vmatpush1.bf16.msra.mxu0 %v5738
        %6203 = vmatprep.subr.bf16.mxu0 0
        %6204 = vmatpush1.bf16.msra.mxu0 %v5739
        %6205 = vmatprep.subr.bf16.mxu0 0
        %6206 = vmatpush1.bf16.msra.mxu0 %v5740
        %6207 = vmatprep.subr.bf16.mxu0 0
        %6208 = vmatpush1.bf16.msra.mxu0 %v5741
        %6209 = vmatprep.subr.bf16.mxu0 0
        %6210 = vmatpush1.bf16.msra.mxu0 %v5742
        %6211 = vmatprep.subr.bf16.mxu0 0
        %6212 = vmatpush1.bf16.msra.mxu0 %v5743
        %6213 = vmatprep.subr.bf16.mxu0 0
        %6214 = vmatpush1.bf16.msra.mxu0 %v5744
        %6215 = vmatprep.mubr.bf16.mxu0 %v4842
        %6216 = vmatmul.mubr.bf16.gmra.mrb[0].mxu0 %v4841
        %v6217 = vpop.f32.mrb[0].mxu0
        %v6218 = vadd.f32 %v6169, %v6217
        %v6219 = vpop.f32.mrb[0].mxu0
        %v6220 = vpop.f32.mrb[0].mxu0
        %v6221 = vadd.f32 %v6172, %v6220
        %v6222 = vpop.f32.mrb[0].mxu0
        %6223 = vmatprep.mubr.bf16.mxu0 %v4858
        %6224 = vmatmul.mubr.bf16.gmra.mrb[0].mxu0 %v4857
        %v6225 = vpop.f32.mrb[0].mxu0
        %v6226 = vadd.f32 %v6177, %v6225
        %v6227 = vpop.f32.mrb[0].mxu0
        %v6228 = vpop.f32.mrb[0].mxu0
        %v6229 = vadd.f32 %v6180, %v6228
        %v6230 = vpop.f32.mrb[0].mxu0
        %6231 = vdwg.mxu0
        %6232 = vmatprep.subr.bf16.mxu0 0
        %6233 = vmatpush1.bf16.msra.mxu0 %v5745
        %6234 = vmatprep.subr.bf16.mxu0 0
        %6235 = vmatpush1.bf16.msra.mxu0 %v5746
        %6236 = vmatprep.subr.bf16.mxu0 0
        %6237 = vmatpush1.bf16.msra.mxu0 %v5747
        %6238 = vmatprep.subr.bf16.mxu0 0
        %6239 = vmatpush1.bf16.msra.mxu0 %v5748
        %6240 = vmatprep.subr.bf16.mxu0 0
        %6241 = vmatpush1.bf16.msra.mxu0 %v5749
        %6242 = vmatprep.subr.bf16.mxu0 0
        %6243 = vmatpush1.bf16.msra.mxu0 %v5750
        %6244 = vmatprep.subr.bf16.mxu0 0
        %6245 = vmatpush1.bf16.msra.mxu0 %v5751
        %6246 = vmatprep.subr.bf16.mxu0 0
        %6247 = vmatpush1.bf16.msra.mxu0 %v5752
        %6248 = vmatprep.subr.bf16.mxu0 0
        %6249 = vmatpush1.bf16.msra.mxu0 %v5753
        %6250 = vmatprep.subr.bf16.mxu0 0
        %6251 = vmatpush1.bf16.msra.mxu0 %v5754
        %6252 = vmatprep.subr.bf16.mxu0 0
        %6253 = vmatpush1.bf16.msra.mxu0 %v5755
        %6254 = vmatprep.subr.bf16.mxu0 0
        %6255 = vmatpush1.bf16.msra.mxu0 %v5756
        %6256 = vmatprep.subr.bf16.mxu0 0
        %6257 = vmatpush1.bf16.msra.mxu0 %v5757
        %6258 = vmatprep.subr.bf16.mxu0 0
        %6259 = vmatpush1.bf16.msra.mxu0 %v5758
        %6260 = vmatprep.subr.bf16.mxu0 0
        %6261 = vmatpush1.bf16.msra.mxu0 %v5759
        %6262 = vmatprep.subr.bf16.mxu0 0
        %6263 = vmatpush1.bf16.msra.mxu0 %v5760
        %6264 = vmatprep.mubr.bf16.mxu0 %v4844
        %6265 = vmatmul.mubr.bf16.gmra.mrb[0].mxu0 %v4843
        %v6266 = vpop.f32.mrb[0].mxu0
        %v6267 = vadd.f32 %v6218, %v6266
        %v6268 = vpop.f32.mrb[0].mxu0
        %v6269 = vpop.f32.mrb[0].mxu0
        %v6270 = vadd.f32 %v6221, %v6269
        %v6271 = vpop.f32.mrb[0].mxu0
        %6272 = vmatprep.mubr.bf16.mxu0 %v4860
        %6273 = vmatmul.mubr.bf16.gmra.mrb[0].mxu0 %v4859
        %v6274 = vpop.f32.mrb[0].mxu0
        %v6275 = vadd.f32 %v6226, %v6274
        %v6276 = vpop.f32.mrb[0].mxu0
        %v6277 = vpop.f32.mrb[0].mxu0
        %v6278 = vadd.f32 %v6229, %v6277
        %v6279 = vpop.f32.mrb[0].mxu0
        %6280 = vdwg.mxu0
        %v6281 = vadd.f32 %v4053, %v6267
        %v6282 = vadd.f32 %v4054, %v6270
        %v6283 = vadd.f32 %v4055, %v6275
        %v6284 = vadd.f32 %v4056, %v6278
        %v6285 = vsel %vm430, %v6281, 0.0
        %6286 = vadd.xlane.f32.xlu0 %v6285
        %v6287 = vpop.xlane.xlu0 %6286
        %v6288 = vsel %vm430, %v6282, 0.0
        %6289 = vadd.xlane.f32.xlu0 %v6288
        %v6290 = vpop.xlane.xlu0 %6289
        %v6291 = vsel %vm430, %v6283, 0.0
        %6292 = vadd.xlane.f32.xlu0 %v6291
        %v6293 = vpop.xlane.xlu0 %6292
        %v6294 = vsel %vm430, %v6284, 0.0
        %6295 = vadd.xlane.f32.xlu0 %v6294
        %v6296 = vpop.xlane.xlu0 %6295
        %v6297 = vmul.f32 %v6287, %v4000
        %v6298 = vmul.f32 %v6290, %v4000
        %v6299 = vmul.f32 %v6293, %v4000
        %v6300 = vmul.f32 %v6296, %v4000
        %v6301 = vsub.f32 %v6281, %v6297
        %v6302 = vsub.f32 %v6282, %v6298
        %v6303 = vsub.f32 %v6283, %v6299
        %v6304 = vsub.f32 %v6284, %v6300
        %v6305 = vmul.f32 %v6301, %v6301
        %v6306 = vmul.f32 %v6302, %v6302
        %v6307 = vmul.f32 %v6303, %v6303
        %v6308 = vmul.f32 %v6304, %v6304
        %v6309 = vsel %vm430, %v6305, 0.0
        %6310 = vadd.xlane.f32.xlu0 %v6309
        %v6311 = vpop.xlane.xlu0 %6310
        %v6312 = vsel %vm430, %v6306, 0.0
        %6313 = vadd.xlane.f32.xlu0 %v6312
        %v6314 = vpop.xlane.xlu0 %6313
        %v6315 = vsel %vm430, %v6307, 0.0
        %6316 = vadd.xlane.f32.xlu0 %v6315
        %v6317 = vpop.xlane.xlu0 %6316
        %v6318 = vsel %vm430, %v6308, 0.0
        %6319 = vadd.xlane.f32.xlu0 %v6318
        %v6320 = vpop.xlane.xlu0 %6319
        %v6321 = vmul.f32 %v6311, %v4000
        %v6322 = vmul.f32 %v6314, %v4000
        %v6323 = vmul.f32 %v6317, %v4000
        %v6324 = vmul.f32 %v6320, %v4000
        %v6325 = vadd.f32 %v6321, 1e-05
        %v6326 = vadd.f32 %v6322, 1e-05
        %v6327 = vadd.f32 %v6323, 1e-05
        %v6328 = vadd.f32 %v6324, 1e-05
        %v6329 = vrsqrt.pop %v6325
        %v6330 = vrsqrt.pop %v6326
        %v6331 = vrsqrt.pop %v6327
        %v6332 = vrsqrt.pop %v6328
        %v6333 = vmul.f32 %v6301, %v6329
        %v6334 = vmul.f32 %v6302, %v6330
        %v6335 = vmul.f32 %v6303, %v6331
        %v6336 = vmul.f32 %v6304, %v6332
        %v6337 = vlaneseq
        %v6338 = vshrl.u32 %v6337, 7
        %v6339 = vsub.s32 4, %v6338
        %v6340 = vrot.slane %v418, %v6339
        %v6341 = vmul.f32 %v6333, %v6340
        %v6342 = vmul.f32 %v6334, %v6340
        %v6343 = vmul.f32 %v6335, %v6340
        %v6344 = vmul.f32 %v6336, %v6340
        %v6345 = vlaneseq
        %v6346 = vshrl.u32 %v6345, 7
        %v6347 = vsub.s32 5, %v6346
        %v6348 = vrot.slane %v418, %v6347
        %v6349 = vadd.f32 %v6341, %v6348
        %v6350 = vadd.f32 %v6342, %v6348
        %v6351 = vadd.f32 %v6343, %v6348
        %v6352 = vadd.f32 %v6344, %v6348
        %6353 = vst.msk [vmem:[#allocation2] sm:$0xff] %vm430, %v6349
        %6354 = vst.msk [vmem:[#allocation2 + $0x8] sm:$0xff] %vm430, %v6350
        %6355 = vst.msk [vmem:[#allocation2 + $0x10] sm:$0xff] %vm430, %v6351
        %6356 = vst.msk [vmem:[#allocation2 + $0x18] sm:$0xff] %vm430, %v6352
        %p6357 = scmp.eq.s32.totalorder %s20, 3
        // Predicated region
        $region57: #{spatial_encoder_forward.1} parent=51 // pred_check
          %p6358 = pneg %p6357
        $region58: #{spatial_encoder_forward.1} parent=51 // pred_check_branch
          %6360 = sbr.rel (%p6358) target = $region60
        $region59: #{spatial_encoder_forward.1} parent=51 // pred_region
          %6361 = vst.msk [vmem:[#allocation3] sm:$0xff] %vm430, %v6349
          %6362 = vst.msk [vmem:[#allocation3 + $0x8] sm:$0xff] %vm430, %v6350
          %6363 = vst.msk [vmem:[#allocation3 + $0x10] sm:$0xff] %vm430, %v6351
          %6364 = vst.msk [vmem:[#allocation3 + $0x18] sm:$0xff] %vm430, %v6352
        $region60: #{spatial_encoder_forward.1} parent=51 // pred_fallthru
          _
        // Predicated region
        $region61: #{spatial_encoder_forward.1} parent=51 // pred_check
          %p6365 = pneg %p236
        $region62: #{spatial_encoder_forward.1} parent=51 // pred_check_branch
          %6367 = sbr.rel (%p6365) target = $region64
        $region63: #{spatial_encoder_forward.1} parent=51 // pred_region
          %s6369 = ssub.s32 512, 512
          %6370 = vsyncadd [#allocation4], %s6369
          %s6371 = sshll.u32 [#allocation3], 4
          %s6372 = int_to_ptr.vmem [resolvable:$true] %s6371
          %6377 = dma.vmem_to_hbm [thread:$0]  %s6372, 512, %s8, [#allocation4], 128, 128, 8
        $region64: #{spatial_encoder_forward.1} parent=51 // pred_fallthru
          _
        // Predicated region
        $region65: #{spatial_encoder_forward.1} parent=51 // pred_check
          %p6378 = pneg %p236
        $region66: #{spatial_encoder_forward.1} parent=51 // pred_check_branch
          %6380 = sbr.rel (%p6378) target = $region68
        $region67: #{spatial_encoder_forward.1} parent=51 // pred_region
          %6381 = dma.done [#allocation4], 512
        $region68: #{spatial_encoder_forward.1} parent=51 // pred_fallthru
          _
      $region52: #{spatial_encoder_forward.1} parent=5 // pred_fallthru
        _
      %p6382 = scmp.le.s32.totalorder 2, %s15
      // Predicated region
      $region69: #{spatial_encoder_forward.1} parent=5 // pred_check
        %p6383 = pneg %p6382
      $region70: #{spatial_encoder_forward.1} parent=5 // pred_check_branch
        %6385 = sbr.rel (%p6383) target = $region72
      $region71: #{spatial_encoder_forward.1} parent=5 // pred_region
        %s6386 = ssub.s32 %s15, 2
      $region72: #{spatial_encoder_forward.1} parent=5 // pred_fallthru
        _
    $region6: #{spatial_encoder_forward.1} parent=1 // loop_footer
      %s19 = sadd.s32 1, %s15
    $region7: #{spatial_encoder_forward.1} parent=1 // loop_footer_branch
      %14 = sbr.rel target = $region3
    $region8: #{spatial_encoder_forward.1} parent=1 // loop_exit
      _
    %6387 = vsyncpa [#allocation4], 1
    %s6388 = scalar_lea.sflag [#allocation4], 1
    %6389 = vsyncpa %s6388, 1

</llo_original>
